<compile_context>
chip_gen: v6e
topology: v6e:2x2x1
jax: 0.10.0
libtpu: 0.0.40
codegen_flags: <defaults>
</compile_context>

<pallas_src>
import jax
import jax.numpy as jnp
from jax import lax
from jax.experimental import pallas as pl
from jax.experimental.pallas import tpu as pltpu  # noqa: F401  (TPU backend)

CHARS_EMBEDDING_DIM = 10
CHARS_HIDDEN_DIM = 50
MAX_WORD_LEN = 30
WORDS_HIDDEN_DIM_1 = 30
WORDS_HIDDEN_DIM_2 = 50


# ----------------------------------------------------------------------------
# In-kernel helpers
# ----------------------------------------------------------------------------
def _gate_mask(rows, hidden):
    """Static lane mask selecting the tanh branch (the g gate) — hoist per LSTM."""
    lane = lax.broadcasted_iota(jnp.int32, (rows, 4 * hidden), 1)
    return (lane >= 2 * hidden) & (lane < 3 * hidden)


def _cell_update(act, c, hidden):
    """PyTorch LSTMCell state update from the already-activated gate slab."""
    i_g = act[:, 0 * hidden:1 * hidden]
    f_g = act[:, 1 * hidden:2 * hidden]
    g_g = act[:, 2 * hidden:3 * hidden]
    o_g = act[:, 3 * hidden:4 * hidden]
    c_new = f_g * c + i_g * g_g
    h_new = o_g * jnp.tanh(c_new)
    return h_new, c_new


def _word_lstm(seq, wih_t, whh_t, bias, h0, c0, is_forward):
    """Serial LSTMCell over the rows of `seq` (batch 1 per step, WordsLstmB).

    seq (T, Din), wih_t (Din, 4H), whh_t (H, 4H), bias (1, 4H), h0/c0 (1, H).
    Returns hidden states stacked in *iteration* order (spec quirk: backward
    direction is NOT re-flipped), shape (T, H).
    """
    T = seq.shape[0]
    H = whh_t.shape[0]
    # Input projection + combined bias hoisted out of the recurrence: one MXU
    # matmul covering all T steps.
    xg = jnp.dot(seq, wih_t, preferred_element_type=jnp.float32) + bias
    g_mask = _gate_mask(1, H)  # hoisted; JAX does not CSE broadcast_in_dim
    h, c = h0, c0
    hs = []
    order = range(T) if is_forward else range(T - 1, -1, -1)
    for t in order:  # static, fully unrolled
        gates = xg[t:t + 1, :] + jnp.dot(h, whh_t,
                                         preferred_element_type=jnp.float32)
        act = jnp.where(g_mask, jnp.tanh(gates), jax.nn.sigmoid(gates))
        h, c = _cell_update(act, c, H)
        hs.append(h)
    return jnp.concatenate(hs, axis=0)  # (T, H), iteration order


# ----------------------------------------------------------------------------
# Fused TaggerB kernel
# ----------------------------------------------------------------------------
def tagger_b_kernel(xg_chars_ref, whhc_ref, h0c_ref, c0c_ref,
                    wih1_ref, whh1_ref, b1_ref, h01_ref, c01_ref,
                    wih2_ref, whh2_ref, b2_ref, h02_ref, c02_ref,
                    wlin_ref, blin_ref, out_ref):
    # ---- CharsLstmB: 30-step LSTMCell over all words in parallel ------------
    Hc = whhc_ref.shape[0]
    whhc = whhc_ref[...]
    h = h0c_ref[...]
    c = c0c_ref[...]
    g_mask = _gate_mask(h.shape[0], Hc)
    for t in range(xg_chars_ref.shape[0]):  # static, fully unrolled
        gates = xg_chars_ref[t] + jnp.dot(h, whhc,
                                          preferred_element_type=jnp.float32)
        act = jnp.where(g_mask, jnp.tanh(gates), jax.nn.sigmoid(gates))
        h, c = _cell_update(act, c, Hc)
    word_emb = h  # (N, 50)

    # ---- Layer 1: forward + backward WordsLstmB over the word sequence ------
    f1 = _word_lstm(word_emb, wih1_ref[0], whh1_ref[0], b1_ref[0],
                    h01_ref[0], c01_ref[0], True)
    b1 = _word_lstm(word_emb, wih1_ref[1], whh1_ref[1], b1_ref[1],
                    h01_ref[1], c01_ref[1], False)
    layer1 = jnp.concatenate([f1, b1], axis=1)  # (N, 60)

    # ---- Layer 2 -------------------------------------------------------------
    f2 = _word_lstm(layer1, wih2_ref[0], whh2_ref[0], b2_ref[0],
                    h02_ref[0], c02_ref[0], True)
    b2 = _word_lstm(layer1, wih2_ref[1], whh2_ref[1], b2_ref[1],
                    h02_ref[1], c02_ref[1], False)
    layer2 = jnp.concatenate([f2, b2], axis=1)  # (N, 100)

    # ---- Linear head ---------------------------------------------------------
    out_ref[...] = (jnp.dot(layer2, wlin_ref[...],
                            preferred_element_type=jnp.float32) + blin_ref[...])


# ----------------------------------------------------------------------------
# Wrapper
# ----------------------------------------------------------------------------
def tagger_b_forward(x, params, state_inits):
    """Full TaggerB forward pass: one fused pallas_call."""
    emb_table, w_ihc, w_hhc, b_ihc, b_hhc = params["chars"]
    h0c, c0c = state_inits["chars"]
    N = x.shape[0]

    # Embedding gather + chars-LSTM input projection hoisted into XLA: one
    # (T*N, D) x (D, 4H) matmul outside the serial recurrence.
    emb = emb_table[x]                       # (N, T, D) gather (XLA glue)
    emb_tnd = jnp.transpose(emb, (1, 0, 2))  # (T, N, D) time-major
    xg_chars = jnp.einsum("tnd,dg->tng", emb_tnd, w_ihc.T,
                          preferred_element_type=jnp.float32) + (b_ihc + b_hhc)

    def stack_dir(fp, bp, h_f, c_f, h_b, c_b):
        wi_f, wh_f, bi_f, bh_f = fp
        wi_b, wh_b, bi_b, bh_b = bp
        wih = jnp.stack([wi_f.T, wi_b.T])                                   # (2, Din, 4H)
        whh = jnp.stack([wh_f.T, wh_b.T])                                   # (2, H, 4H)
        bias = jnp.stack([(bi_f + bh_f)[None, :], (bi_b + bh_b)[None, :]])  # (2, 1, 4H)
        h0 = jnp.stack([h_f, h_b])                                          # (2, 1, H)
        c0 = jnp.stack([c_f, c_b])                                          # (2, 1, H)
        return wih, whh, bias, h0, c0

    wih1, whh1, b1, h01, c01 = stack_dir(params["f1"], params["b1"],
                                         *state_inits["f1"], *state_inits["b1"])
    wih2, whh2, b2, h02, c02 = stack_dir(params["f2"], params["b2"],
                                         *state_inits["f2"], *state_inits["b2"])

    w_lin, b_lin = params["linear"]
    num_tags = w_lin.shape[0]

    Hc, H1, H2, T = CHARS_HIDDEN_DIM, WORDS_HIDDEN_DIM_1, WORDS_HIDDEN_DIM_2, MAX_WORD_LEN

    def full(shape):
        return pl.BlockSpec(shape, lambda: (0,) * len(shape))

    logits = pl.pallas_call(
        tagger_b_kernel,
        out_shape=jax.ShapeDtypeStruct((N, num_tags), jnp.float32),
        in_specs=[
            full((T, N, 4 * Hc)),        # xg_chars
            full((Hc, 4 * Hc)),          # w_hh_chars^T
            full((N, Hc)),               # h0 chars
            full((N, Hc)),               # c0 chars
            full((2, Hc, 4 * H1)),       # w_ih layer1 (fwd/bwd)
            full((2, H1, 4 * H1)),       # w_hh layer1
            full((2, 1, 4 * H1)),        # bias layer1
            full((2, 1, H1)),            # h0 layer1
            full((2, 1, H1)),            # c0 layer1
            full((2, 2 * H1, 4 * H2)),   # w_ih layer2
            full((2, H2, 4 * H2)),       # w_hh layer2
            full((2, 1, 4 * H2)),        # bias layer2
            full((2, 1, H2)),            # h0 layer2
            full((2, 1, H2)),            # c0 layer2
            full((2 * H2, num_tags)),    # w_lin^T
            full((1, num_tags)),         # b_lin
        ],
        out_specs=full((N, num_tags)),
    )(xg_chars, w_hhc.T, h0c, c0c,
      wih1, whh1, b1, h01, c01,
      wih2, whh2, b2, h02, c02,
      w_lin.T, b_lin.reshape(1, num_tags))

    # TODO(synk): nn.Dropout() is constructed in training mode in the PyTorch
    # forward; deterministic eval/identity semantics are used here.
    return logits[:, None, :]  # (N, 1, num_tags)


# ----------------------------------------------------------------------------
# Pure-JAX reference (PyTorch LSTMCell semantics) for verification
# ----------------------------------------------------------------------------
def _lstm_cell_ref(x, h, c, w_ih, w_hh, b_ih, b_hh):
    H = w_hh.shape[1]
    gates = x @ w_ih.T + h @ w_hh.T + b_ih + b_hh
    i_g = jax.nn.sigmoid(gates[:, 0 * H:1 * H])
    f_g = jax.nn.sigmoid(gates[:, 1 * H:2 * H])
    g_g = jnp.tanh(gates[:, 2 * H:3 * H])
    o_g = jax.nn.sigmoid(gates[:, 3 * H:4 * H])
    c_new = f_g * c + i_g * g_g
    h_new = o_g * jnp.tanh(c_new)
    return h_new, c_new


def tagger_b_reference(x, params, state_inits):
    emb_table, w_ih, w_hh, b_ih, b_hh = params["chars"]
    h, c = state_inits["chars"]
    emb = emb_table[x]
    for t in range(MAX_WORD_LEN):
        h, c = _lstm_cell_ref(emb[:, t, :], h, c, w_ih, w_hh, b_ih, b_hh)
    word_emb = h

    def word_lstm(seq, cell_params, h0, c0, is_forward):
        wi, wh, bi, bh = cell_params
        T = seq.shape[0]
        hh, cc = h0, c0
        order = range(T) if is_forward else range(T - 1, -1, -1)
        hs = []
        for i in order:
            hh, cc = _lstm_cell_ref(seq[i:i + 1, :], hh, cc, wi, wh, bi, bh)
            hs.append(hh)
        return jnp.stack(hs)  # (T, 1, H), iteration order (matches the spec)

    f1 = word_lstm(word_emb, params["f1"], *state_inits["f1"], True)
    b1 = word_lstm(word_emb, params["b1"], *state_inits["b1"], False)
    layer1 = jnp.concatenate([f1, b1], axis=2)
    f2 = word_lstm(layer1[:, 0, :], params["f2"], *state_inits["f2"], True)
    b2 = word_lstm(layer1[:, 0, :], params["b2"], *state_inits["b2"], False)
    layer2 = jnp.concatenate([f2, b2], axis=2)
    w_lin, b_lin = params["linear"]
    logits = layer2[:, 0, :] @ w_lin.T + b_lin
    return logits[:, None, :]


# ----------------------------------------------------------------------------
# Deterministic example
# ----------------------------------------------------------------------------
if __name__ == "__main__":
    num_of_words = 8     # sentence length (also the chars-LSTM batch)
    num_of_chars = 64
    num_of_tags = 5

    key = jax.random.PRNGKey(0)
    keys = iter(jax.random.split(key, 32))

    def lstm_cell_params(k, in_dim, hidden):
        k1, k2, k3, k4 = jax.random.split(k, 4)
        bound = 1.0 / jnp.sqrt(hidden)
        w_ih = jax.random.uniform(k1, (4 * hidden, in_dim), jnp.float32, -bound, bound)
        w_hh = jax.random.uniform(k2, (4 * hidden, hidden), jnp.float32, -bound, bound)
        b_ih = jax.random.uniform(k3, (4 * hidden,), jnp.float32, -bound, bound)
        b_hh = jax.random.uniform(k4, (4 * hidden,), jnp.float32, -bound, bound)
        return w_ih, w_hh, b_ih, b_hh

    def xavier_state(k, rows, cols):
        # torch.nn.init.xavier_normal_ on (rows, cols), done deterministically.
        std = jnp.sqrt(2.0 / (rows + cols))
        k1, k2 = jax.random.split(k)
        return (std * jax.random.normal(k1, (rows, cols), jnp.float32),
                std * jax.random.normal(k2, (rows, cols), jnp.float32))

    x = jax.random.randint(next(keys), (num_of_words, MAX_WORD_LEN), 0,
                           num_of_chars, dtype=jnp.int32)

    emb_table = jax.random.normal(next(keys), (num_of_chars, CHARS_EMBEDDING_DIM),
                                  jnp.float32)
    params = {
        "chars": (emb_table,) + lstm_cell_params(next(keys), CHARS_EMBEDDING_DIM,
                                                 CHARS_HIDDEN_DIM),
        "f1": lstm_cell_params(next(keys), CHARS_HIDDEN_DIM, WORDS_HIDDEN_DIM_1),
        "b1": lstm_cell_params(next(keys), CHARS_HIDDEN_DIM, WORDS_HIDDEN_DIM_1),
        "f2": lstm_cell_params(next(keys), 2 * WORDS_HIDDEN_DIM_1, WORDS_HIDDEN_DIM_2),
        "b2": lstm_cell_params(next(keys), 2 * WORDS_HIDDEN_DIM_1, WORDS_HIDDEN_DIM_2),
    }
    lin_bound = 1.0 / jnp.sqrt(2 * WORDS_HIDDEN_DIM_2)
    w_lin = jax.random.uniform(next(keys), (num_of_tags, 2 * WORDS_HIDDEN_DIM_2),
                               jnp.float32, -lin_bound, lin_bound)
    b_lin = jax.random.uniform(next(keys), (num_of_tags,), jnp.float32,
                               -lin_bound, lin_bound)
    params["linear"] = (w_lin, b_lin)

    # h0/c0 are xavier_normal_-initialized inside each forward in the PyTorch
    # module; reproduce deterministically and share between kernel & reference.
    state_inits = {
        "chars": xavier_state(next(keys), num_of_words, CHARS_HIDDEN_DIM),
        "f1": xavier_state(next(keys), 1, WORDS_HIDDEN_DIM_1),
        "b1": xavier_state(next(keys), 1, WORDS_HIDDEN_DIM_1),
        "f2": xavier_state(next(keys), 1, WORDS_HIDDEN_DIM_2),
        "b2": xavier_state(next(keys), 1, WORDS_HIDDEN_DIM_2),
    }

    out = tagger_b_forward(x, params, state_inits)
    out = jax.block_until_ready(out)

    ref = tagger_b_reference(x, params, state_inits)
    assert out.shape == (num_of_words, 1, num_of_tags), out.shape
    assert jnp.allclose(out, ref, atol=1e-4, rtol=1e-4), "mismatch vs JAX reference"

    print("KERNEL_OK")
</pallas_src>

<mosaic_0001>
module attributes {stable_mosaic.version = 11 : i64} {
  func.func @tagger_b_kernel(%arg0: memref<30x8x200xf32, #tpu.memory_space<vmem>>, %arg1: memref<50x200xf32, #tpu.memory_space<vmem>>, %arg2: memref<8x50xf32, #tpu.memory_space<vmem>>, %arg3: memref<8x50xf32, #tpu.memory_space<vmem>>, %arg4: memref<2x50x120xf32, #tpu.memory_space<vmem>>, %arg5: memref<2x30x120xf32, #tpu.memory_space<vmem>>, %arg6: memref<2x1x120xf32, #tpu.memory_space<vmem>>, %arg7: memref<2x1x30xf32, #tpu.memory_space<vmem>>, %arg8: memref<2x1x30xf32, #tpu.memory_space<vmem>>, %arg9: memref<2x60x200xf32, #tpu.memory_space<vmem>>, %arg10: memref<2x50x200xf32, #tpu.memory_space<vmem>>, %arg11: memref<2x1x200xf32, #tpu.memory_space<vmem>>, %arg12: memref<2x1x50xf32, #tpu.memory_space<vmem>>, %arg13: memref<2x1x50xf32, #tpu.memory_space<vmem>>, %arg14: memref<100x5xf32, #tpu.memory_space<vmem>>, %arg15: memref<1x5xf32, #tpu.memory_space<vmem>>, %arg16: memref<8x5xf32, #tpu.memory_space<vmem>>) attributes {dimension_semantics = [], scalar_prefetch = 0 : i64, scratch_operands = 0 : i64, tpu.core_type = #tpu.core_type<tc>} {
    %c0 = arith.constant 0 : index
    %c0_0 = arith.constant 0 : index
    %0 = vector.load %arg1[%c0, %c0_0] : memref<50x200xf32, #tpu.memory_space<vmem>>, vector<50x200xf32>
    %c0_1 = arith.constant 0 : index
    %c0_2 = arith.constant 0 : index
    %1 = vector.load %arg2[%c0_1, %c0_2] : memref<8x50xf32, #tpu.memory_space<vmem>>, vector<8x50xf32>
    %c0_3 = arith.constant 0 : index
    %c0_4 = arith.constant 0 : index
    %2 = vector.load %arg3[%c0_3, %c0_4] : memref<8x50xf32, #tpu.memory_space<vmem>>, vector<8x50xf32>
    %3 = tpu.iota {dimensions = array<i32: 1>} : vector<8x200xi32>
    %c100_i32 = arith.constant 100 : i32
    %4 = vector.broadcast %c100_i32 : i32 to vector<8x200xi32>
    %5 = arith.cmpi sge, %3, %4 : vector<8x200xi32>
    %c150_i32 = arith.constant 150 : i32
    %6 = vector.broadcast %c150_i32 : i32 to vector<8x200xi32>
    %7 = arith.cmpi slt, %3, %6 : vector<8x200xi32>
    %8 = arith.andi %5, %7 : vector<8x200xi1>
    %c0_5 = arith.constant 0 : index
    %c0_6 = arith.constant 0 : index
    %c0_7 = arith.constant 0 : index
    %9 = vector.load %arg0[%c0_5, %c0_6, %c0_7] : memref<30x8x200xf32, #tpu.memory_space<vmem>>, vector<1x8x200xf32>
    %10 = vector.shape_cast %9 : vector<1x8x200xf32> to vector<8x200xf32>
    %cst = arith.constant dense<0.000000e+00> : vector<8x200xf32>
    %11 = tpu.matmul %1, %0, %cst {dimension_numbers = #tpu.dot_dimension_numbers<[1], [0], [0], [1], [0, 0, 1, 1], [], []>} : vector<8x50xf32>, vector<50x200xf32>, vector<8x200xf32> -> vector<8x200xf32>
    %12 = arith.addf %10, %11 : vector<8x200xf32>
    %13 = math.tanh %12 : vector<8x200xf32>
    %14 = arith.negf %12 : vector<8x200xf32>
    %15 = math.exp %14 : vector<8x200xf32>
    %cst_8 = arith.constant 1.000000e+00 : f32
    %16 = vector.broadcast %cst_8 : f32 to vector<8x200xf32>
    %17 = arith.addf %16, %15 : vector<8x200xf32>
    %18 = arith.divf %16, %17 : vector<8x200xf32>
    %19 = arith.select %8, %13, %18 : vector<8x200xi1>, vector<8x200xf32>
    %20 = vector.extract_strided_slice %19 {offsets = [0, 0], sizes = [8, 50], strides = [1, 1]} : vector<8x200xf32> to vector<8x50xf32>
    %21 = vector.extract_strided_slice %19 {offsets = [0, 50], sizes = [8, 50], strides = [1, 1]} : vector<8x200xf32> to vector<8x50xf32>
    %22 = vector.extract_strided_slice %19 {offsets = [0, 100], sizes = [8, 50], strides = [1, 1]} : vector<8x200xf32> to vector<8x50xf32>
    %23 = vector.extract_strided_slice %19 {offsets = [0, 150], sizes = [8, 50], strides = [1, 1]} : vector<8x200xf32> to vector<8x50xf32>
    %24 = arith.mulf %21, %2 : vector<8x50xf32>
    %25 = arith.mulf %20, %22 : vector<8x50xf32>
    %26 = arith.addf %24, %25 : vector<8x50xf32>
    %27 = math.tanh %26 : vector<8x50xf32>
    %28 = arith.mulf %23, %27 : vector<8x50xf32>
    %c1 = arith.constant 1 : index
    %c0_9 = arith.constant 0 : index
    %c0_10 = arith.constant 0 : index
    %29 = vector.load %arg0[%c1, %c0_9, %c0_10] : memref<30x8x200xf32, #tpu.memory_space<vmem>>, vector<1x8x200xf32>
    %30 = vector.shape_cast %29 : vector<1x8x200xf32> to vector<8x200xf32>
    %cst_11 = arith.constant dense<0.000000e+00> : vector<8x200xf32>
    %31 = tpu.matmul %28, %0, %cst_11 {dimension_numbers = #tpu.dot_dimension_numbers<[1], [0], [0], [1], [0, 0, 1, 1], [], []>} : vector<8x50xf32>, vector<50x200xf32>, vector<8x200xf32> -> vector<8x200xf32>
    %32 = arith.addf %30, %31 : vector<8x200xf32>
    %33 = math.tanh %32 : vector<8x200xf32>
    %34 = arith.negf %32 : vector<8x200xf32>
    %35 = math.exp %34 : vector<8x200xf32>
    %cst_12 = arith.constant 1.000000e+00 : f32
    %36 = vector.broadcast %cst_12 : f32 to vector<8x200xf32>
    %37 = arith.addf %36, %35 : vector<8x200xf32>
    %38 = arith.divf %36, %37 : vector<8x200xf32>
    %39 = arith.select %8, %33, %38 : vector<8x200xi1>, vector<8x200xf32>
    %40 = vector.extract_strided_slice %39 {offsets = [0, 0], sizes = [8, 50], strides = [1, 1]} : vector<8x200xf32> to vector<8x50xf32>
    %41 = vector.extract_strided_slice %39 {offsets = [0, 50], sizes = [8, 50], strides = [1, 1]} : vector<8x200xf32> to vector<8x50xf32>
    %42 = vector.extract_strided_slice %39 {offsets = [0, 100], sizes = [8, 50], strides = [1, 1]} : vector<8x200xf32> to vector<8x50xf32>
    %43 = vector.extract_strided_slice %39 {offsets = [0, 150], sizes = [8, 50], strides = [1, 1]} : vector<8x200xf32> to vector<8x50xf32>
    %44 = arith.mulf %41, %26 : vector<8x50xf32>
    %45 = arith.mulf %40, %42 : vector<8x50xf32>
    %46 = arith.addf %44, %45 : vector<8x50xf32>
    %47 = math.tanh %46 : vector<8x50xf32>
    %48 = arith.mulf %43, %47 : vector<8x50xf32>
    %c2 = arith.constant 2 : index
    %c0_13 = arith.constant 0 : index
    %c0_14 = arith.constant 0 : index
    %49 = vector.load %arg0[%c2, %c0_13, %c0_14] : memref<30x8x200xf32, #tpu.memory_space<vmem>>, vector<1x8x200xf32>
    %50 = vector.shape_cast %49 : vector<1x8x200xf32> to vector<8x200xf32>
    %cst_15 = arith.constant dense<0.000000e+00> : vector<8x200xf32>
    %51 = tpu.matmul %48, %0, %cst_15 {dimension_numbers = #tpu.dot_dimension_numbers<[1], [0], [0], [1], [0, 0, 1, 1], [], []>} : vector<8x50xf32>, vector<50x200xf32>, vector<8x200xf32> -> vector<8x200xf32>
    %52 = arith.addf %50, %51 : vector<8x200xf32>
    %53 = math.tanh %52 : vector<8x200xf32>
    %54 = arith.negf %52 : vector<8x200xf32>
    %55 = math.exp %54 : vector<8x200xf32>
    %cst_16 = arith.constant 1.000000e+00 : f32
    %56 = vector.broadcast %cst_16 : f32 to vector<8x200xf32>
    %57 = arith.addf %56, %55 : vector<8x200xf32>
    %58 = arith.divf %56, %57 : vector<8x200xf32>
    %59 = arith.select %8, %53, %58 : vector<8x200xi1>, vector<8x200xf32>
    %60 = vector.extract_strided_slice %59 {offsets = [0, 0], sizes = [8, 50], strides = [1, 1]} : vector<8x200xf32> to vector<8x50xf32>
    %61 = vector.extract_strided_slice %59 {offsets = [0, 50], sizes = [8, 50], strides = [1, 1]} : vector<8x200xf32> to vector<8x50xf32>
    %62 = vector.extract_strided_slice %59 {offsets = [0, 100], sizes = [8, 50], strides = [1, 1]} : vector<8x200xf32> to vector<8x50xf32>
    %63 = vector.extract_strided_slice %59 {offsets = [0, 150], sizes = [8, 50], strides = [1, 1]} : vector<8x200xf32> to vector<8x50xf32>
    %64 = arith.mulf %61, %46 : vector<8x50xf32>
    %65 = arith.mulf %60, %62 : vector<8x50xf32>
    %66 = arith.addf %64, %65 : vector<8x50xf32>
    %67 = math.tanh %66 : vector<8x50xf32>
    %68 = arith.mulf %63, %67 : vector<8x50xf32>
    %c3 = arith.constant 3 : index
    %c0_17 = arith.constant 0 : index
    %c0_18 = arith.constant 0 : index
    %69 = vector.load %arg0[%c3, %c0_17, %c0_18] : memref<30x8x200xf32, #tpu.memory_space<vmem>>, vector<1x8x200xf32>
    %70 = vector.shape_cast %69 : vector<1x8x200xf32> to vector<8x200xf32>
    %cst_19 = arith.constant dense<0.000000e+00> : vector<8x200xf32>
    %71 = tpu.matmul %68, %0, %cst_19 {dimension_numbers = #tpu.dot_dimension_numbers<[1], [0], [0], [1], [0, 0, 1, 1], [], []>} : vector<8x50xf32>, vector<50x200xf32>, vector<8x200xf32> -> vector<8x200xf32>
    %72 = arith.addf %70, %71 : vector<8x200xf32>
    %73 = math.tanh %72 : vector<8x200xf32>
    %74 = arith.negf %72 : vector<8x200xf32>
    %75 = math.exp %74 : vector<8x200xf32>
    %cst_20 = arith.constant 1.000000e+00 : f32
    %76 = vector.broadcast %cst_20 : f32 to vector<8x200xf32>
    %77 = arith.addf %76, %75 : vector<8x200xf32>
    %78 = arith.divf %76, %77 : vector<8x200xf32>
    %79 = arith.select %8, %73, %78 : vector<8x200xi1>, vector<8x200xf32>
    %80 = vector.extract_strided_slice %79 {offsets = [0, 0], sizes = [8, 50], strides = [1, 1]} : vector<8x200xf32> to vector<8x50xf32>
    %81 = vector.extract_strided_slice %79 {offsets = [0, 50], sizes = [8, 50], strides = [1, 1]} : vector<8x200xf32> to vector<8x50xf32>
    %82 = vector.extract_strided_slice %79 {offsets = [0, 100], sizes = [8, 50], strides = [1, 1]} : vector<8x200xf32> to vector<8x50xf32>
    %83 = vector.extract_strided_slice %79 {offsets = [0, 150], sizes = [8, 50], strides = [1, 1]} : vector<8x200xf32> to vector<8x50xf32>
    %84 = arith.mulf %81, %66 : vector<8x50xf32>
    %85 = arith.mulf %80, %82 : vector<8x50xf32>
    %86 = arith.addf %84, %85 : vector<8x50xf32>
    %87 = math.tanh %86 : vector<8x50xf32>
    %88 = arith.mulf %83, %87 : vector<8x50xf32>
    %c4 = arith.constant 4 : index
    %c0_21 = arith.constant 0 : index
    %c0_22 = arith.constant 0 : index
    %89 = vector.load %arg0[%c4, %c0_21, %c0_22] : memref<30x8x200xf32, #tpu.memory_space<vmem>>, vector<1x8x200xf32>
    %90 = vector.shape_cast %89 : vector<1x8x200xf32> to vector<8x200xf32>
    %cst_23 = arith.constant dense<0.000000e+00> : vector<8x200xf32>
    %91 = tpu.matmul %88, %0, %cst_23 {dimension_numbers = #tpu.dot_dimension_numbers<[1], [0], [0], [1], [0, 0, 1, 1], [], []>} : vector<8x50xf32>, vector<50x200xf32>, vector<8x200xf32> -> vector<8x200xf32>
    %92 = arith.addf %90, %91 : vector<8x200xf32>
    %93 = math.tanh %92 : vector<8x200xf32>
    %94 = arith.negf %92 : vector<8x200xf32>
    %95 = math.exp %94 : vector<8x200xf32>
    %cst_24 = arith.constant 1.000000e+00 : f32
    %96 = vector.broadcast %cst_24 : f32 to vector<8x200xf32>
    %97 = arith.addf %96, %95 : vector<8x200xf32>
    %98 = arith.divf %96, %97 : vector<8x200xf32>
    %99 = arith.select %8, %93, %98 : vector<8x200xi1>, vector<8x200xf32>
    %100 = vector.extract_strided_slice %99 {offsets = [0, 0], sizes = [8, 50], strides = [1, 1]} : vector<8x200xf32> to vector<8x50xf32>
    %101 = vector.extract_strided_slice %99 {offsets = [0, 50], sizes = [8, 50], strides = [1, 1]} : vector<8x200xf32> to vector<8x50xf32>
    %102 = vector.extract_strided_slice %99 {offsets = [0, 100], sizes = [8, 50], strides = [1, 1]} : vector<8x200xf32> to vector<8x50xf32>
    %103 = vector.extract_strided_slice %99 {offsets = [0, 150], sizes = [8, 50], strides = [1, 1]} : vector<8x200xf32> to vector<8x50xf32>
    %104 = arith.mulf %101, %86 : vector<8x50xf32>
    %105 = arith.mulf %100, %102 : vector<8x50xf32>
    %106 = arith.addf %104, %105 : vector<8x50xf32>
    %107 = math.tanh %106 : vector<8x50xf32>
    %108 = arith.mulf %103, %107 : vector<8x50xf32>
    %c5 = arith.constant 5 : index
    %c0_25 = arith.constant 0 : index
    %c0_26 = arith.constant 0 : index
    %109 = vector.load %arg0[%c5, %c0_25, %c0_26] : memref<30x8x200xf32, #tpu.memory_space<vmem>>, vector<1x8x200xf32>
    %110 = vector.shape_cast %109 : vector<1x8x200xf32> to vector<8x200xf32>
    %cst_27 = arith.constant dense<0.000000e+00> : vector<8x200xf32>
    %111 = tpu.matmul %108, %0, %cst_27 {dimension_numbers = #tpu.dot_dimension_numbers<[1], [0], [0], [1], [0, 0, 1, 1], [], []>} : vector<8x50xf32>, vector<50x200xf32>, vector<8x200xf32> -> vector<8x200xf32>
    %112 = arith.addf %110, %111 : vector<8x200xf32>
    %113 = math.tanh %112 : vector<8x200xf32>
    %114 = arith.negf %112 : vector<8x200xf32>
    %115 = math.exp %114 : vector<8x200xf32>
    %cst_28 = arith.constant 1.000000e+00 : f32
    %116 = vector.broadcast %cst_28 : f32 to vector<8x200xf32>
    %117 = arith.addf %116, %115 : vector<8x200xf32>
    %118 = arith.divf %116, %117 : vector<8x200xf32>
    %119 = arith.select %8, %113, %118 : vector<8x200xi1>, vector<8x200xf32>
    %120 = vector.extract_strided_slice %119 {offsets = [0, 0], sizes = [8, 50], strides = [1, 1]} : vector<8x200xf32> to vector<8x50xf32>
    %121 = vector.extract_strided_slice %119 {offsets = [0, 50], sizes = [8, 50], strides = [1, 1]} : vector<8x200xf32> to vector<8x50xf32>
    %122 = vector.extract_strided_slice %119 {offsets = [0, 100], sizes = [8, 50], strides = [1, 1]} : vector<8x200xf32> to vector<8x50xf32>
    %123 = vector.extract_strided_slice %119 {offsets = [0, 150], sizes = [8, 50], strides = [1, 1]} : vector<8x200xf32> to vector<8x50xf32>
    %124 = arith.mulf %121, %106 : vector<8x50xf32>
    %125 = arith.mulf %120, %122 : vector<8x50xf32>
    %126 = arith.addf %124, %125 : vector<8x50xf32>
    %127 = math.tanh %126 : vector<8x50xf32>
    %128 = arith.mulf %123, %127 : vector<8x50xf32>
    %c6 = arith.constant 6 : index
    %c0_29 = arith.constant 0 : index
    %c0_30 = arith.constant 0 : index
    %129 = vector.load %arg0[%c6, %c0_29, %c0_30] : memref<30x8x200xf32, #tpu.memory_space<vmem>>, vector<1x8x200xf32>
    %130 = vector.shape_cast %129 : vector<1x8x200xf32> to vector<8x200xf32>
    %cst_31 = arith.constant dense<0.000000e+00> : vector<8x200xf32>
    %131 = tpu.matmul %128, %0, %cst_31 {dimension_numbers = #tpu.dot_dimension_numbers<[1], [0], [0], [1], [0, 0, 1, 1], [], []>} : vector<8x50xf32>, vector<50x200xf32>, vector<8x200xf32> -> vector<8x200xf32>
    %132 = arith.addf %130, %131 : vector<8x200xf32>
    %133 = math.tanh %132 : vector<8x200xf32>
    %134 = arith.negf %132 : vector<8x200xf32>
    %135 = math.exp %134 : vector<8x200xf32>
    %cst_32 = arith.constant 1.000000e+00 : f32
    %136 = vector.broadcast %cst_32 : f32 to vector<8x200xf32>
    %137 = arith.addf %136, %135 : vector<8x200xf32>
    %138 = arith.divf %136, %137 : vector<8x200xf32>
    %139 = arith.select %8, %133, %138 : vector<8x200xi1>, vector<8x200xf32>
    %140 = vector.extract_strided_slice %139 {offsets = [0, 0], sizes = [8, 50], strides = [1, 1]} : vector<8x200xf32> to vector<8x50xf32>
    %141 = vector.extract_strided_slice %139 {offsets = [0, 50], sizes = [8, 50], strides = [1, 1]} : vector<8x200xf32> to vector<8x50xf32>
    %142 = vector.extract_strided_slice %139 {offsets = [0, 100], sizes = [8, 50], strides = [1, 1]} : vector<8x200xf32> to vector<8x50xf32>
    %143 = vector.extract_strided_slice %139 {offsets = [0, 150], sizes = [8, 50], strides = [1, 1]} : vector<8x200xf32> to vector<8x50xf32>
    %144 = arith.mulf %141, %126 : vector<8x50xf32>
    %145 = arith.mulf %140, %142 : vector<8x50xf32>
    %146 = arith.addf %144, %145 : vector<8x50xf32>
    %147 = math.tanh %146 : vector<8x50xf32>
    %148 = arith.mulf %143, %147 : vector<8x50xf32>
    %c7 = arith.constant 7 : index
    %c0_33 = arith.constant 0 : index
    %c0_34 = arith.constant 0 : index
    %149 = vector.load %arg0[%c7, %c0_33, %c0_34] : memref<30x8x200xf32, #tpu.memory_space<vmem>>, vector<1x8x200xf32>
    %150 = vector.shape_cast %149 : vector<1x8x200xf32> to vector<8x200xf32>
    %cst_35 = arith.constant dense<0.000000e+00> : vector<8x200xf32>
    %151 = tpu.matmul %148, %0, %cst_35 {dimension_numbers = #tpu.dot_dimension_numbers<[1], [0], [0], [1], [0, 0, 1, 1], [], []>} : vector<8x50xf32>, vector<50x200xf32>, vector<8x200xf32> -> vector<8x200xf32>
    %152 = arith.addf %150, %151 : vector<8x200xf32>
    %153 = math.tanh %152 : vector<8x200xf32>
    %154 = arith.negf %152 : vector<8x200xf32>
    %155 = math.exp %154 : vector<8x200xf32>
    %cst_36 = arith.constant 1.000000e+00 : f32
    %156 = vector.broadcast %cst_36 : f32 to vector<8x200xf32>
    %157 = arith.addf %156, %155 : vector<8x200xf32>
    %158 = arith.divf %156, %157 : vector<8x200xf32>
    %159 = arith.select %8, %153, %158 : vector<8x200xi1>, vector<8x200xf32>
    %160 = vector.extract_strided_slice %159 {offsets = [0, 0], sizes = [8, 50], strides = [1, 1]} : vector<8x200xf32> to vector<8x50xf32>
    %161 = vector.extract_strided_slice %159 {offsets = [0, 50], sizes = [8, 50], strides = [1, 1]} : vector<8x200xf32> to vector<8x50xf32>
    %162 = vector.extract_strided_slice %159 {offsets = [0, 100], sizes = [8, 50], strides = [1, 1]} : vector<8x200xf32> to vector<8x50xf32>
    %163 = vector.extract_strided_slice %159 {offsets = [0, 150], sizes = [8, 50], strides = [1, 1]} : vector<8x200xf32> to vector<8x50xf32>
    %164 = arith.mulf %161, %146 : vector<8x50xf32>
    %165 = arith.mulf %160, %162 : vector<8x50xf32>
    %166 = arith.addf %164, %165 : vector<8x50xf32>
    %167 = math.tanh %166 : vector<8x50xf32>
    %168 = arith.mulf %163, %167 : vector<8x50xf32>
    %c8 = arith.constant 8 : index
    %c0_37 = arith.constant 0 : index
    %c0_38 = arith.constant 0 : index
    %169 = vector.load %arg0[%c8, %c0_37, %c0_38] : memref<30x8x200xf32, #tpu.memory_space<vmem>>, vector<1x8x200xf32>
    %170 = vector.shape_cast %169 : vector<1x8x200xf32> to vector<8x200xf32>
    %cst_39 = arith.constant dense<0.000000e+00> : vector<8x200xf32>
    %171 = tpu.matmul %168, %0, %cst_39 {dimension_numbers = #tpu.dot_dimension_numbers<[1], [0], [0], [1], [0, 0, 1, 1], [], []>} : vector<8x50xf32>, vector<50x200xf32>, vector<8x200xf32> -> vector<8x200xf32>
    %172 = arith.addf %170, %171 : vector<8x200xf32>
    %173 = math.tanh %172 : vector<8x200xf32>
    %174 = arith.negf %172 : vector<8x200xf32>
    %175 = math.exp %174 : vector<8x200xf32>
    %cst_40 = arith.constant 1.000000e+00 : f32
    %176 = vector.broadcast %cst_40 : f32 to vector<8x200xf32>
    %177 = arith.addf %176, %175 : vector<8x200xf32>
    %178 = arith.divf %176, %177 : vector<8x200xf32>
    %179 = arith.select %8, %173, %178 : vector<8x200xi1>, vector<8x200xf32>
    %180 = vector.extract_strided_slice %179 {offsets = [0, 0], sizes = [8, 50], strides = [1, 1]} : vector<8x200xf32> to vector<8x50xf32>
    %181 = vector.extract_strided_slice %179 {offsets = [0, 50], sizes = [8, 50], strides = [1, 1]} : vector<8x200xf32> to vector<8x50xf32>
    %182 = vector.extract_strided_slice %179 {offsets = [0, 100], sizes = [8, 50], strides = [1, 1]} : vector<8x200xf32> to vector<8x50xf32>
    %183 = vector.extract_strided_slice %179 {offsets = [0, 150], sizes = [8, 50], strides = [1, 1]} : vector<8x200xf32> to vector<8x50xf32>
    %184 = arith.mulf %181, %166 : vector<8x50xf32>
    %185 = arith.mulf %180, %182 : vector<8x50xf32>
    %186 = arith.addf %184, %185 : vector<8x50xf32>
    %187 = math.tanh %186 : vector<8x50xf32>
    %188 = arith.mulf %183, %187 : vector<8x50xf32>
    %c9 = arith.constant 9 : index
    %c0_41 = arith.constant 0 : index
    %c0_42 = arith.constant 0 : index
    %189 = vector.load %arg0[%c9, %c0_41, %c0_42] : memref<30x8x200xf32, #tpu.memory_space<vmem>>, vector<1x8x200xf32>
    %190 = vector.shape_cast %189 : vector<1x8x200xf32> to vector<8x200xf32>
    %cst_43 = arith.constant dense<0.000000e+00> : vector<8x200xf32>
    %191 = tpu.matmul %188, %0, %cst_43 {dimension_numbers = #tpu.dot_dimension_numbers<[1], [0], [0], [1], [0, 0, 1, 1], [], []>} : vector<8x50xf32>, vector<50x200xf32>, vector<8x200xf32> -> vector<8x200xf32>
    %192 = arith.addf %190, %191 : vector<8x200xf32>
    %193 = math.tanh %192 : vector<8x200xf32>
    %194 = arith.negf %192 : vector<8x200xf32>
    %195 = math.exp %194 : vector<8x200xf32>
    %cst_44 = arith.constant 1.000000e+00 : f32
    %196 = vector.broadcast %cst_44 : f32 to vector<8x200xf32>
    %197 = arith.addf %196, %195 : vector<8x200xf32>
    %198 = arith.divf %196, %197 : vector<8x200xf32>
    %199 = arith.select %8, %193, %198 : vector<8x200xi1>, vector<8x200xf32>
    %200 = vector.extract_strided_slice %199 {offsets = [0, 0], sizes = [8, 50], strides = [1, 1]} : vector<8x200xf32> to vector<8x50xf32>
    %201 = vector.extract_strided_slice %199 {offsets = [0, 50], sizes = [8, 50], strides = [1, 1]} : vector<8x200xf32> to vector<8x50xf32>
    %202 = vector.extract_strided_slice %199 {offsets = [0, 100], sizes = [8, 50], strides = [1, 1]} : vector<8x200xf32> to vector<8x50xf32>
    %203 = vector.extract_strided_slice %199 {offsets = [0, 150], sizes = [8, 50], strides = [1, 1]} : vector<8x200xf32> to vector<8x50xf32>
    %204 = arith.mulf %201, %186 : vector<8x50xf32>
    %205 = arith.mulf %200, %202 : vector<8x50xf32>
    %206 = arith.addf %204, %205 : vector<8x50xf32>
    %207 = math.tanh %206 : vector<8x50xf32>
    %208 = arith.mulf %203, %207 : vector<8x50xf32>
    %c10 = arith.constant 10 : index
    %c0_45 = arith.constant 0 : index
    %c0_46 = arith.constant 0 : index
    %209 = vector.load %arg0[%c10, %c0_45, %c0_46] : memref<30x8x200xf32, #tpu.memory_space<vmem>>, vector<1x8x200xf32>
    %210 = vector.shape_cast %209 : vector<1x8x200xf32> to vector<8x200xf32>
    %cst_47 = arith.constant dense<0.000000e+00> : vector<8x200xf32>
    %211 = tpu.matmul %208, %0, %cst_47 {dimension_numbers = #tpu.dot_dimension_numbers<[1], [0], [0], [1], [0, 0, 1, 1], [], []>} : vector<8x50xf32>, vector<50x200xf32>, vector<8x200xf32> -> vector<8x200xf32>
    %212 = arith.addf %210, %211 : vector<8x200xf32>
    %213 = math.tanh %212 : vector<8x200xf32>
    %214 = arith.negf %212 : vector<8x200xf32>
    %215 = math.exp %214 : vector<8x200xf32>
    %cst_48 = arith.constant 1.000000e+00 : f32
    %216 = vector.broadcast %cst_48 : f32 to vector<8x200xf32>
    %217 = arith.addf %216, %215 : vector<8x200xf32>
    %218 = arith.divf %216, %217 : vector<8x200xf32>
    %219 = arith.select %8, %213, %218 : vector<8x200xi1>, vector<8x200xf32>
    %220 = vector.extract_strided_slice %219 {offsets = [0, 0], sizes = [8, 50], strides = [1, 1]} : vector<8x200xf32> to vector<8x50xf32>
    %221 = vector.extract_strided_slice %219 {offsets = [0, 50], sizes = [8, 50], strides = [1, 1]} : vector<8x200xf32> to vector<8x50xf32>
    %222 = vector.extract_strided_slice %219 {offsets = [0, 100], sizes = [8, 50], strides = [1, 1]} : vector<8x200xf32> to vector<8x50xf32>
    %223 = vector.extract_strided_slice %219 {offsets = [0, 150], sizes = [8, 50], strides = [1, 1]} : vector<8x200xf32> to vector<8x50xf32>
    %224 = arith.mulf %221, %206 : vector<8x50xf32>
    %225 = arith.mulf %220, %222 : vector<8x50xf32>
    %226 = arith.addf %224, %225 : vector<8x50xf32>
    %227 = math.tanh %226 : vector<8x50xf32>
    %228 = arith.mulf %223, %227 : vector<8x50xf32>
    %c11 = arith.constant 11 : index
    %c0_49 = arith.constant 0 : index
    %c0_50 = arith.constant 0 : index
    %229 = vector.load %arg0[%c11, %c0_49, %c0_50] : memref<30x8x200xf32, #tpu.memory_space<vmem>>, vector<1x8x200xf32>
    %230 = vector.shape_cast %229 : vector<1x8x200xf32> to vector<8x200xf32>
    %cst_51 = arith.constant dense<0.000000e+00> : vector<8x200xf32>
    %231 = tpu.matmul %228, %0, %cst_51 {dimension_numbers = #tpu.dot_dimension_numbers<[1], [0], [0], [1], [0, 0, 1, 1], [], []>} : vector<8x50xf32>, vector<50x200xf32>, vector<8x200xf32> -> vector<8x200xf32>
    %232 = arith.addf %230, %231 : vector<8x200xf32>
    %233 = math.tanh %232 : vector<8x200xf32>
    %234 = arith.negf %232 : vector<8x200xf32>
    %235 = math.exp %234 : vector<8x200xf32>
    %cst_52 = arith.constant 1.000000e+00 : f32
    %236 = vector.broadcast %cst_52 : f32 to vector<8x200xf32>
    %237 = arith.addf %236, %235 : vector<8x200xf32>
    %238 = arith.divf %236, %237 : vector<8x200xf32>
    %239 = arith.select %8, %233, %238 : vector<8x200xi1>, vector<8x200xf32>
    %240 = vector.extract_strided_slice %239 {offsets = [0, 0], sizes = [8, 50], strides = [1, 1]} : vector<8x200xf32> to vector<8x50xf32>
    %241 = vector.extract_strided_slice %239 {offsets = [0, 50], sizes = [8, 50], strides = [1, 1]} : vector<8x200xf32> to vector<8x50xf32>
    %242 = vector.extract_strided_slice %239 {offsets = [0, 100], sizes = [8, 50], strides = [1, 1]} : vector<8x200xf32> to vector<8x50xf32>
    %243 = vector.extract_strided_slice %239 {offsets = [0, 150], sizes = [8, 50], strides = [1, 1]} : vector<8x200xf32> to vector<8x50xf32>
    %244 = arith.mulf %241, %226 : vector<8x50xf32>
    %245 = arith.mulf %240, %242 : vector<8x50xf32>
    %246 = arith.addf %244, %245 : vector<8x50xf32>
    %247 = math.tanh %246 : vector<8x50xf32>
    %248 = arith.mulf %243, %247 : vector<8x50xf32>
    %c12 = arith.constant 12 : index
    %c0_53 = arith.constant 0 : index
    %c0_54 = arith.constant 0 : index
    %249 = vector.load %arg0[%c12, %c0_53, %c0_54] : memref<30x8x200xf32, #tpu.memory_space<vmem>>, vector<1x8x200xf32>
    %250 = vector.shape_cast %249 : vector<1x8x200xf32> to vector<8x200xf32>
    %cst_55 = arith.constant dense<0.000000e+00> : vector<8x200xf32>
    %251 = tpu.matmul %248, %0, %cst_55 {dimension_numbers = #tpu.dot_dimension_numbers<[1], [0], [0], [1], [0, 0, 1, 1], [], []>} : vector<8x50xf32>, vector<50x200xf32>, vector<8x200xf32> -> vector<8x200xf32>
    %252 = arith.addf %250, %251 : vector<8x200xf32>
    %253 = math.tanh %252 : vector<8x200xf32>
    %254 = arith.negf %252 : vector<8x200xf32>
    %255 = math.exp %254 : vector<8x200xf32>
    %cst_56 = arith.constant 1.000000e+00 : f32
    %256 = vector.broadcast %cst_56 : f32 to vector<8x200xf32>
    %257 = arith.addf %256, %255 : vector<8x200xf32>
    %258 = arith.divf %256, %257 : vector<8x200xf32>
    %259 = arith.select %8, %253, %258 : vector<8x200xi1>, vector<8x200xf32>
    %260 = vector.extract_strided_slice %259 {offsets = [0, 0], sizes = [8, 50], strides = [1, 1]} : vector<8x200xf32> to vector<8x50xf32>
    %261 = vector.extract_strided_slice %259 {offsets = [0, 50], sizes = [8, 50], strides = [1, 1]} : vector<8x200xf32> to vector<8x50xf32>
    %262 = vector.extract_strided_slice %259 {offsets = [0, 100], sizes = [8, 50], strides = [1, 1]} : vector<8x200xf32> to vector<8x50xf32>
    %263 = vector.extract_strided_slice %259 {offsets = [0, 150], sizes = [8, 50], strides = [1, 1]} : vector<8x200xf32> to vector<8x50xf32>
    %264 = arith.mulf %261, %246 : vector<8x50xf32>
    %265 = arith.mulf %260, %262 : vector<8x50xf32>
    %266 = arith.addf %264, %265 : vector<8x50xf32>
    %267 = math.tanh %266 : vector<8x50xf32>
    %268 = arith.mulf %263, %267 : vector<8x50xf32>
    %c13 = arith.constant 13 : index
    %c0_57 = arith.constant 0 : index
    %c0_58 = arith.constant 0 : index
    %269 = vector.load %arg0[%c13, %c0_57, %c0_58] : memref<30x8x200xf32, #tpu.memory_space<vmem>>, vector<1x8x200xf32>
    %270 = vector.shape_cast %269 : vector<1x8x200xf32> to vector<8x200xf32>
    %cst_59 = arith.constant dense<0.000000e+00> : vector<8x200xf32>
    %271 = tpu.matmul %268, %0, %cst_59 {dimension_numbers = #tpu.dot_dimension_numbers<[1], [0], [0], [1], [0, 0, 1, 1], [], []>} : vector<8x50xf32>, vector<50x200xf32>, vector<8x200xf32> -> vector<8x200xf32>
    %272 = arith.addf %270, %271 : vector<8x200xf32>
    %273 = math.tanh %272 : vector<8x200xf32>
    %274 = arith.negf %272 : vector<8x200xf32>
    %275 = math.exp %274 : vector<8x200xf32>
    %cst_60 = arith.constant 1.000000e+00 : f32
    %276 = vector.broadcast %cst_60 : f32 to vector<8x200xf32>
    %277 = arith.addf %276, %275 : vector<8x200xf32>
    %278 = arith.divf %276, %277 : vector<8x200xf32>
    %279 = arith.select %8, %273, %278 : vector<8x200xi1>, vector<8x200xf32>
    %280 = vector.extract_strided_slice %279 {offsets = [0, 0], sizes = [8, 50], strides = [1, 1]} : vector<8x200xf32> to vector<8x50xf32>
    %281 = vector.extract_strided_slice %279 {offsets = [0, 50], sizes = [8, 50], strides = [1, 1]} : vector<8x200xf32> to vector<8x50xf32>
    %282 = vector.extract_strided_slice %279 {offsets = [0, 100], sizes = [8, 50], strides = [1, 1]} : vector<8x200xf32> to vector<8x50xf32>
    %283 = vector.extract_strided_slice %279 {offsets = [0, 150], sizes = [8, 50], strides = [1, 1]} : vector<8x200xf32> to vector<8x50xf32>
    %284 = arith.mulf %281, %266 : vector<8x50xf32>
    %285 = arith.mulf %280, %282 : vector<8x50xf32>
    %286 = arith.addf %284, %285 : vector<8x50xf32>
    %287 = math.tanh %286 : vector<8x50xf32>
    %288 = arith.mulf %283, %287 : vector<8x50xf32>
    %c14 = arith.constant 14 : index
    %c0_61 = arith.constant 0 : index
    %c0_62 = arith.constant 0 : index
    %289 = vector.load %arg0[%c14, %c0_61, %c0_62] : memref<30x8x200xf32, #tpu.memory_space<vmem>>, vector<1x8x200xf32>
    %290 = vector.shape_cast %289 : vector<1x8x200xf32> to vector<8x200xf32>
    %cst_63 = arith.constant dense<0.000000e+00> : vector<8x200xf32>
    %291 = tpu.matmul %288, %0, %cst_63 {dimension_numbers = #tpu.dot_dimension_numbers<[1], [0], [0], [1], [0, 0, 1, 1], [], []>} : vector<8x50xf32>, vector<50x200xf32>, vector<8x200xf32> -> vector<8x200xf32>
    %292 = arith.addf %290, %291 : vector<8x200xf32>
    %293 = math.tanh %292 : vector<8x200xf32>
    %294 = arith.negf %292 : vector<8x200xf32>
    %295 = math.exp %294 : vector<8x200xf32>
    %cst_64 = arith.constant 1.000000e+00 : f32
    %296 = vector.broadcast %cst_64 : f32 to vector<8x200xf32>
    %297 = arith.addf %296, %295 : vector<8x200xf32>
    %298 = arith.divf %296, %297 : vector<8x200xf32>
    %299 = arith.select %8, %293, %298 : vector<8x200xi1>, vector<8x200xf32>
    %300 = vector.extract_strided_slice %299 {offsets = [0, 0], sizes = [8, 50], strides = [1, 1]} : vector<8x200xf32> to vector<8x50xf32>
    %301 = vector.extract_strided_slice %299 {offsets = [0, 50], sizes = [8, 50], strides = [1, 1]} : vector<8x200xf32> to vector<8x50xf32>
    %302 = vector.extract_strided_slice %299 {offsets = [0, 100], sizes = [8, 50], strides = [1, 1]} : vector<8x200xf32> to vector<8x50xf32>
    %303 = vector.extract_strided_slice %299 {offsets = [0, 150], sizes = [8, 50], strides = [1, 1]} : vector<8x200xf32> to vector<8x50xf32>
    %304 = arith.mulf %301, %286 : vector<8x50xf32>
    %305 = arith.mulf %300, %302 : vector<8x50xf32>
    %306 = arith.addf %304, %305 : vector<8x50xf32>
    %307 = math.tanh %306 : vector<8x50xf32>
    %308 = arith.mulf %303, %307 : vector<8x50xf32>
    %c15 = arith.constant 15 : index
    %c0_65 = arith.constant 0 : index
    %c0_66 = arith.constant 0 : index
    %309 = vector.load %arg0[%c15, %c0_65, %c0_66] : memref<30x8x200xf32, #tpu.memory_space<vmem>>, vector<1x8x200xf32>
    %310 = vector.shape_cast %309 : vector<1x8x200xf32> to vector<8x200xf32>
    %cst_67 = arith.constant dense<0.000000e+00> : vector<8x200xf32>
    %311 = tpu.matmul %308, %0, %cst_67 {dimension_numbers = #tpu.dot_dimension_numbers<[1], [0], [0], [1], [0, 0, 1, 1], [], []>} : vector<8x50xf32>, vector<50x200xf32>, vector<8x200xf32> -> vector<8x200xf32>
    %312 = arith.addf %310, %311 : vector<8x200xf32>
    %313 = math.tanh %312 : vector<8x200xf32>
    %314 = arith.negf %312 : vector<8x200xf32>
    %315 = math.exp %314 : vector<8x200xf32>
    %cst_68 = arith.constant 1.000000e+00 : f32
    %316 = vector.broadcast %cst_68 : f32 to vector<8x200xf32>
    %317 = arith.addf %316, %315 : vector<8x200xf32>
    %318 = arith.divf %316, %317 : vector<8x200xf32>
    %319 = arith.select %8, %313, %318 : vector<8x200xi1>, vector<8x200xf32>
    %320 = vector.extract_strided_slice %319 {offsets = [0, 0], sizes = [8, 50], strides = [1, 1]} : vector<8x200xf32> to vector<8x50xf32>
    %321 = vector.extract_strided_slice %319 {offsets = [0, 50], sizes = [8, 50], strides = [1, 1]} : vector<8x200xf32> to vector<8x50xf32>
    %322 = vector.extract_strided_slice %319 {offsets = [0, 100], sizes = [8, 50], strides = [1, 1]} : vector<8x200xf32> to vector<8x50xf32>
    %323 = vector.extract_strided_slice %319 {offsets = [0, 150], sizes = [8, 50], strides = [1, 1]} : vector<8x200xf32> to vector<8x50xf32>
    %324 = arith.mulf %321, %306 : vector<8x50xf32>
    %325 = arith.mulf %320, %322 : vector<8x50xf32>
    %326 = arith.addf %324, %325 : vector<8x50xf32>
    %327 = math.tanh %326 : vector<8x50xf32>
    %328 = arith.mulf %323, %327 : vector<8x50xf32>
    %c16 = arith.constant 16 : index
    %c0_69 = arith.constant 0 : index
    %c0_70 = arith.constant 0 : index
    %329 = vector.load %arg0[%c16, %c0_69, %c0_70] : memref<30x8x200xf32, #tpu.memory_space<vmem>>, vector<1x8x200xf32>
    %330 = vector.shape_cast %329 : vector<1x8x200xf32> to vector<8x200xf32>
    %cst_71 = arith.constant dense<0.000000e+00> : vector<8x200xf32>
    %331 = tpu.matmul %328, %0, %cst_71 {dimension_numbers = #tpu.dot_dimension_numbers<[1], [0], [0], [1], [0, 0, 1, 1], [], []>} : vector<8x50xf32>, vector<50x200xf32>, vector<8x200xf32> -> vector<8x200xf32>
    %332 = arith.addf %330, %331 : vector<8x200xf32>
    %333 = math.tanh %332 : vector<8x200xf32>
    %334 = arith.negf %332 : vector<8x200xf32>
    %335 = math.exp %334 : vector<8x200xf32>
    %cst_72 = arith.constant 1.000000e+00 : f32
    %336 = vector.broadcast %cst_72 : f32 to vector<8x200xf32>
    %337 = arith.addf %336, %335 : vector<8x200xf32>
    %338 = arith.divf %336, %337 : vector<8x200xf32>
    %339 = arith.select %8, %333, %338 : vector<8x200xi1>, vector<8x200xf32>
    %340 = vector.extract_strided_slice %339 {offsets = [0, 0], sizes = [8, 50], strides = [1, 1]} : vector<8x200xf32> to vector<8x50xf32>
    %341 = vector.extract_strided_slice %339 {offsets = [0, 50], sizes = [8, 50], strides = [1, 1]} : vector<8x200xf32> to vector<8x50xf32>
    %342 = vector.extract_strided_slice %339 {offsets = [0, 100], sizes = [8, 50], strides = [1, 1]} : vector<8x200xf32> to vector<8x50xf32>
    %343 = vector.extract_strided_slice %339 {offsets = [0, 150], sizes = [8, 50], strides = [1, 1]} : vector<8x200xf32> to vector<8x50xf32>
    %344 = arith.mulf %341, %326 : vector<8x50xf32>
    %345 = arith.mulf %340, %342 : vector<8x50xf32>
    %346 = arith.addf %344, %345 : vector<8x50xf32>
    %347 = math.tanh %346 : vector<8x50xf32>
    %348 = arith.mulf %343, %347 : vector<8x50xf32>
    %c17 = arith.constant 17 : index
    %c0_73 = arith.constant 0 : index
    %c0_74 = arith.constant 0 : index
    %349 = vector.load %arg0[%c17, %c0_73, %c0_74] : memref<30x8x200xf32, #tpu.memory_space<vmem>>, vector<1x8x200xf32>
    %350 = vector.shape_cast %349 : vector<1x8x200xf32> to vector<8x200xf32>
    %cst_75 = arith.constant dense<0.000000e+00> : vector<8x200xf32>
    %351 = tpu.matmul %348, %0, %cst_75 {dimension_numbers = #tpu.dot_dimension_numbers<[1], [0], [0], [1], [0, 0, 1, 1], [], []>} : vector<8x50xf32>, vector<50x200xf32>, vector<8x200xf32> -> vector<8x200xf32>
    %352 = arith.addf %350, %351 : vector<8x200xf32>
    %353 = math.tanh %352 : vector<8x200xf32>
    %354 = arith.negf %352 : vector<8x200xf32>
    %355 = math.exp %354 : vector<8x200xf32>
    %cst_76 = arith.constant 1.000000e+00 : f32
    %356 = vector.broadcast %cst_76 : f32 to vector<8x200xf32>
    %357 = arith.addf %356, %355 : vector<8x200xf32>
    %358 = arith.divf %356, %357 : vector<8x200xf32>
    %359 = arith.select %8, %353, %358 : vector<8x200xi1>, vector<8x200xf32>
    %360 = vector.extract_strided_slice %359 {offsets = [0, 0], sizes = [8, 50], strides = [1, 1]} : vector<8x200xf32> to vector<8x50xf32>
    %361 = vector.extract_strided_slice %359 {offsets = [0, 50], sizes = [8, 50], strides = [1, 1]} : vector<8x200xf32> to vector<8x50xf32>
    %362 = vector.extract_strided_slice %359 {offsets = [0, 100], sizes = [8, 50], strides = [1, 1]} : vector<8x200xf32> to vector<8x50xf32>
    %363 = vector.extract_strided_slice %359 {offsets = [0, 150], sizes = [8, 50], strides = [1, 1]} : vector<8x200xf32> to vector<8x50xf32>
    %364 = arith.mulf %361, %346 : vector<8x50xf32>
    %365 = arith.mulf %360, %362 : vector<8x50xf32>
    %366 = arith.addf %364, %365 : vector<8x50xf32>
    %367 = math.tanh %366 : vector<8x50xf32>
    %368 = arith.mulf %363, %367 : vector<8x50xf32>
    %c18 = arith.constant 18 : index
    %c0_77 = arith.constant 0 : index
    %c0_78 = arith.constant 0 : index
    %369 = vector.load %arg0[%c18, %c0_77, %c0_78] : memref<30x8x200xf32, #tpu.memory_space<vmem>>, vector<1x8x200xf32>
    %370 = vector.shape_cast %369 : vector<1x8x200xf32> to vector<8x200xf32>
    %cst_79 = arith.constant dense<0.000000e+00> : vector<8x200xf32>
    %371 = tpu.matmul %368, %0, %cst_79 {dimension_numbers = #tpu.dot_dimension_numbers<[1], [0], [0], [1], [0, 0, 1, 1], [], []>} : vector<8x50xf32>, vector<50x200xf32>, vector<8x200xf32> -> vector<8x200xf32>
    %372 = arith.addf %370, %371 : vector<8x200xf32>
    %373 = math.tanh %372 : vector<8x200xf32>
    %374 = arith.negf %372 : vector<8x200xf32>
    %375 = math.exp %374 : vector<8x200xf32>
    %cst_80 = arith.constant 1.000000e+00 : f32
    %376 = vector.broadcast %cst_80 : f32 to vector<8x200xf32>
    %377 = arith.addf %376, %375 : vector<8x200xf32>
    %378 = arith.divf %376, %377 : vector<8x200xf32>
    %379 = arith.select %8, %373, %378 : vector<8x200xi1>, vector<8x200xf32>
    %380 = vector.extract_strided_slice %379 {offsets = [0, 0], sizes = [8, 50], strides = [1, 1]} : vector<8x200xf32> to vector<8x50xf32>
    %381 = vector.extract_strided_slice %379 {offsets = [0, 50], sizes = [8, 50], strides = [1, 1]} : vector<8x200xf32> to vector<8x50xf32>
    %382 = vector.extract_strided_slice %379 {offsets = [0, 100], sizes = [8, 50], strides = [1, 1]} : vector<8x200xf32> to vector<8x50xf32>
    %383 = vector.extract_strided_slice %379 {offsets = [0, 150], sizes = [8, 50], strides = [1, 1]} : vector<8x200xf32> to vector<8x50xf32>
    %384 = arith.mulf %381, %366 : vector<8x50xf32>
    %385 = arith.mulf %380, %382 : vector<8x50xf32>
    %386 = arith.addf %384, %385 : vector<8x50xf32>
    %387 = math.tanh %386 : vector<8x50xf32>
    %388 = arith.mulf %383, %387 : vector<8x50xf32>
    %c19 = arith.constant 19 : index
    %c0_81 = arith.constant 0 : index
    %c0_82 = arith.constant 0 : index
    %389 = vector.load %arg0[%c19, %c0_81, %c0_82] : memref<30x8x200xf32, #tpu.memory_space<vmem>>, vector<1x8x200xf32>
    %390 = vector.shape_cast %389 : vector<1x8x200xf32> to vector<8x200xf32>
    %cst_83 = arith.constant dense<0.000000e+00> : vector<8x200xf32>
    %391 = tpu.matmul %388, %0, %cst_83 {dimension_numbers = #tpu.dot_dimension_numbers<[1], [0], [0], [1], [0, 0, 1, 1], [], []>} : vector<8x50xf32>, vector<50x200xf32>, vector<8x200xf32> -> vector<8x200xf32>
    %392 = arith.addf %390, %391 : vector<8x200xf32>
    %393 = math.tanh %392 : vector<8x200xf32>
    %394 = arith.negf %392 : vector<8x200xf32>
    %395 = math.exp %394 : vector<8x200xf32>
    %cst_84 = arith.constant 1.000000e+00 : f32
    %396 = vector.broadcast %cst_84 : f32 to vector<8x200xf32>
    %397 = arith.addf %396, %395 : vector<8x200xf32>
    %398 = arith.divf %396, %397 : vector<8x200xf32>
    %399 = arith.select %8, %393, %398 : vector<8x200xi1>, vector<8x200xf32>
    %400 = vector.extract_strided_slice %399 {offsets = [0, 0], sizes = [8, 50], strides = [1, 1]} : vector<8x200xf32> to vector<8x50xf32>
    %401 = vector.extract_strided_slice %399 {offsets = [0, 50], sizes = [8, 50], strides = [1, 1]} : vector<8x200xf32> to vector<8x50xf32>
    %402 = vector.extract_strided_slice %399 {offsets = [0, 100], sizes = [8, 50], strides = [1, 1]} : vector<8x200xf32> to vector<8x50xf32>
    %403 = vector.extract_strided_slice %399 {offsets = [0, 150], sizes = [8, 50], strides = [1, 1]} : vector<8x200xf32> to vector<8x50xf32>
    %404 = arith.mulf %401, %386 : vector<8x50xf32>
    %405 = arith.mulf %400, %402 : vector<8x50xf32>
    %406 = arith.addf %404, %405 : vector<8x50xf32>
    %407 = math.tanh %406 : vector<8x50xf32>
    %408 = arith.mulf %403, %407 : vector<8x50xf32>
    %c20 = arith.constant 20 : index
    %c0_85 = arith.constant 0 : index
    %c0_86 = arith.constant 0 : index
    %409 = vector.load %arg0[%c20, %c0_85, %c0_86] : memref<30x8x200xf32, #tpu.memory_space<vmem>>, vector<1x8x200xf32>
    %410 = vector.shape_cast %409 : vector<1x8x200xf32> to vector<8x200xf32>
    %cst_87 = arith.constant dense<0.000000e+00> : vector<8x200xf32>
    %411 = tpu.matmul %408, %0, %cst_87 {dimension_numbers = #tpu.dot_dimension_numbers<[1], [0], [0], [1], [0, 0, 1, 1], [], []>} : vector<8x50xf32>, vector<50x200xf32>, vector<8x200xf32> -> vector<8x200xf32>
    %412 = arith.addf %410, %411 : vector<8x200xf32>
    %413 = math.tanh %412 : vector<8x200xf32>
    %414 = arith.negf %412 : vector<8x200xf32>
    %415 = math.exp %414 : vector<8x200xf32>
    %cst_88 = arith.constant 1.000000e+00 : f32
    %416 = vector.broadcast %cst_88 : f32 to vector<8x200xf32>
    %417 = arith.addf %416, %415 : vector<8x200xf32>
    %418 = arith.divf %416, %417 : vector<8x200xf32>
    %419 = arith.select %8, %413, %418 : vector<8x200xi1>, vector<8x200xf32>
    %420 = vector.extract_strided_slice %419 {offsets = [0, 0], sizes = [8, 50], strides = [1, 1]} : vector<8x200xf32> to vector<8x50xf32>
    %421 = vector.extract_strided_slice %419 {offsets = [0, 50], sizes = [8, 50], strides = [1, 1]} : vector<8x200xf32> to vector<8x50xf32>
    %422 = vector.extract_strided_slice %419 {offsets = [0, 100], sizes = [8, 50], strides = [1, 1]} : vector<8x200xf32> to vector<8x50xf32>
    %423 = vector.extract_strided_slice %419 {offsets = [0, 150], sizes = [8, 50], strides = [1, 1]} : vector<8x200xf32> to vector<8x50xf32>
    %424 = arith.mulf %421, %406 : vector<8x50xf32>
    %425 = arith.mulf %420, %422 : vector<8x50xf32>
    %426 = arith.addf %424, %425 : vector<8x50xf32>
    %427 = math.tanh %426 : vector<8x50xf32>
    %428 = arith.mulf %423, %427 : vector<8x50xf32>
    %c21 = arith.constant 21 : index
    %c0_89 = arith.constant 0 : index
    %c0_90 = arith.constant 0 : index
    %429 = vector.load %arg0[%c21, %c0_89, %c0_90] : memref<30x8x200xf32, #tpu.memory_space<vmem>>, vector<1x8x200xf32>
    %430 = vector.shape_cast %429 : vector<1x8x200xf32> to vector<8x200xf32>
    %cst_91 = arith.constant dense<0.000000e+00> : vector<8x200xf32>
    %431 = tpu.matmul %428, %0, %cst_91 {dimension_numbers = #tpu.dot_dimension_numbers<[1], [0], [0], [1], [0, 0, 1, 1], [], []>} : vector<8x50xf32>, vector<50x200xf32>, vector<8x200xf32> -> vector<8x200xf32>
    %432 = arith.addf %430, %431 : vector<8x200xf32>
    %433 = math.tanh %432 : vector<8x200xf32>
    %434 = arith.negf %432 : vector<8x200xf32>
    %435 = math.exp %434 : vector<8x200xf32>
    %cst_92 = arith.constant 1.000000e+00 : f32
    %436 = vector.broadcast %cst_92 : f32 to vector<8x200xf32>
    %437 = arith.addf %436, %435 : vector<8x200xf32>
    %438 = arith.divf %436, %437 : vector<8x200xf32>
    %439 = arith.select %8, %433, %438 : vector<8x200xi1>, vector<8x200xf32>
    %440 = vector.extract_strided_slice %439 {offsets = [0, 0], sizes = [8, 50], strides = [1, 1]} : vector<8x200xf32> to vector<8x50xf32>
    %441 = vector.extract_strided_slice %439 {offsets = [0, 50], sizes = [8, 50], strides = [1, 1]} : vector<8x200xf32> to vector<8x50xf32>
    %442 = vector.extract_strided_slice %439 {offsets = [0, 100], sizes = [8, 50], strides = [1, 1]} : vector<8x200xf32> to vector<8x50xf32>
    %443 = vector.extract_strided_slice %439 {offsets = [0, 150], sizes = [8, 50], strides = [1, 1]} : vector<8x200xf32> to vector<8x50xf32>
    %444 = arith.mulf %441, %426 : vector<8x50xf32>
    %445 = arith.mulf %440, %442 : vector<8x50xf32>
    %446 = arith.addf %444, %445 : vector<8x50xf32>
    %447 = math.tanh %446 : vector<8x50xf32>
    %448 = arith.mulf %443, %447 : vector<8x50xf32>
    %c22 = arith.constant 22 : index
    %c0_93 = arith.constant 0 : index
    %c0_94 = arith.constant 0 : index
    %449 = vector.load %arg0[%c22, %c0_93, %c0_94] : memref<30x8x200xf32, #tpu.memory_space<vmem>>, vector<1x8x200xf32>
    %450 = vector.shape_cast %449 : vector<1x8x200xf32> to vector<8x200xf32>
    %cst_95 = arith.constant dense<0.000000e+00> : vector<8x200xf32>
    %451 = tpu.matmul %448, %0, %cst_95 {dimension_numbers = #tpu.dot_dimension_numbers<[1], [0], [0], [1], [0, 0, 1, 1], [], []>} : vector<8x50xf32>, vector<50x200xf32>, vector<8x200xf32> -> vector<8x200xf32>
    %452 = arith.addf %450, %451 : vector<8x200xf32>
    %453 = math.tanh %452 : vector<8x200xf32>
    %454 = arith.negf %452 : vector<8x200xf32>
    %455 = math.exp %454 : vector<8x200xf32>
    %cst_96 = arith.constant 1.000000e+00 : f32
    %456 = vector.broadcast %cst_96 : f32 to vector<8x200xf32>
    %457 = arith.addf %456, %455 : vector<8x200xf32>
    %458 = arith.divf %456, %457 : vector<8x200xf32>
    %459 = arith.select %8, %453, %458 : vector<8x200xi1>, vector<8x200xf32>
    %460 = vector.extract_strided_slice %459 {offsets = [0, 0], sizes = [8, 50], strides = [1, 1]} : vector<8x200xf32> to vector<8x50xf32>
    %461 = vector.extract_strided_slice %459 {offsets = [0, 50], sizes = [8, 50], strides = [1, 1]} : vector<8x200xf32> to vector<8x50xf32>
    %462 = vector.extract_strided_slice %459 {offsets = [0, 100], sizes = [8, 50], strides = [1, 1]} : vector<8x200xf32> to vector<8x50xf32>
    %463 = vector.extract_strided_slice %459 {offsets = [0, 150], sizes = [8, 50], strides = [1, 1]} : vector<8x200xf32> to vector<8x50xf32>
    %464 = arith.mulf %461, %446 : vector<8x50xf32>
    %465 = arith.mulf %460, %462 : vector<8x50xf32>
    %466 = arith.addf %464, %465 : vector<8x50xf32>
    %467 = math.tanh %466 : vector<8x50xf32>
    %468 = arith.mulf %463, %467 : vector<8x50xf32>
    %c23 = arith.constant 23 : index
    %c0_97 = arith.constant 0 : index
    %c0_98 = arith.constant 0 : index
    %469 = vector.load %arg0[%c23, %c0_97, %c0_98] : memref<30x8x200xf32, #tpu.memory_space<vmem>>, vector<1x8x200xf32>
    %470 = vector.shape_cast %469 : vector<1x8x200xf32> to vector<8x200xf32>
    %cst_99 = arith.constant dense<0.000000e+00> : vector<8x200xf32>
    %471 = tpu.matmul %468, %0, %cst_99 {dimension_numbers = #tpu.dot_dimension_numbers<[1], [0], [0], [1], [0, 0, 1, 1], [], []>} : vector<8x50xf32>, vector<50x200xf32>, vector<8x200xf32> -> vector<8x200xf32>
    %472 = arith.addf %470, %471 : vector<8x200xf32>
    %473 = math.tanh %472 : vector<8x200xf32>
    %474 = arith.negf %472 : vector<8x200xf32>
    %475 = math.exp %474 : vector<8x200xf32>
    %cst_100 = arith.constant 1.000000e+00 : f32
    %476 = vector.broadcast %cst_100 : f32 to vector<8x200xf32>
    %477 = arith.addf %476, %475 : vector<8x200xf32>
    %478 = arith.divf %476, %477 : vector<8x200xf32>
    %479 = arith.select %8, %473, %478 : vector<8x200xi1>, vector<8x200xf32>
    %480 = vector.extract_strided_slice %479 {offsets = [0, 0], sizes = [8, 50], strides = [1, 1]} : vector<8x200xf32> to vector<8x50xf32>
    %481 = vector.extract_strided_slice %479 {offsets = [0, 50], sizes = [8, 50], strides = [1, 1]} : vector<8x200xf32> to vector<8x50xf32>
    %482 = vector.extract_strided_slice %479 {offsets = [0, 100], sizes = [8, 50], strides = [1, 1]} : vector<8x200xf32> to vector<8x50xf32>
    %483 = vector.extract_strided_slice %479 {offsets = [0, 150], sizes = [8, 50], strides = [1, 1]} : vector<8x200xf32> to vector<8x50xf32>
    %484 = arith.mulf %481, %466 : vector<8x50xf32>
    %485 = arith.mulf %480, %482 : vector<8x50xf32>
    %486 = arith.addf %484, %485 : vector<8x50xf32>
    %487 = math.tanh %486 : vector<8x50xf32>
    %488 = arith.mulf %483, %487 : vector<8x50xf32>
    %c24 = arith.constant 24 : index
    %c0_101 = arith.constant 0 : index
    %c0_102 = arith.constant 0 : index
    %489 = vector.load %arg0[%c24, %c0_101, %c0_102] : memref<30x8x200xf32, #tpu.memory_space<vmem>>, vector<1x8x200xf32>
    %490 = vector.shape_cast %489 : vector<1x8x200xf32> to vector<8x200xf32>
    %cst_103 = arith.constant dense<0.000000e+00> : vector<8x200xf32>
    %491 = tpu.matmul %488, %0, %cst_103 {dimension_numbers = #tpu.dot_dimension_numbers<[1], [0], [0], [1], [0, 0, 1, 1], [], []>} : vector<8x50xf32>, vector<50x200xf32>, vector<8x200xf32> -> vector<8x200xf32>
    %492 = arith.addf %490, %491 : vector<8x200xf32>
    %493 = math.tanh %492 : vector<8x200xf32>
    %494 = arith.negf %492 : vector<8x200xf32>
    %495 = math.exp %494 : vector<8x200xf32>
    %cst_104 = arith.constant 1.000000e+00 : f32
    %496 = vector.broadcast %cst_104 : f32 to vector<8x200xf32>
    %497 = arith.addf %496, %495 : vector<8x200xf32>
    %498 = arith.divf %496, %497 : vector<8x200xf32>
    %499 = arith.select %8, %493, %498 : vector<8x200xi1>, vector<8x200xf32>
    %500 = vector.extract_strided_slice %499 {offsets = [0, 0], sizes = [8, 50], strides = [1, 1]} : vector<8x200xf32> to vector<8x50xf32>
    %501 = vector.extract_strided_slice %499 {offsets = [0, 50], sizes = [8, 50], strides = [1, 1]} : vector<8x200xf32> to vector<8x50xf32>
    %502 = vector.extract_strided_slice %499 {offsets = [0, 100], sizes = [8, 50], strides = [1, 1]} : vector<8x200xf32> to vector<8x50xf32>
    %503 = vector.extract_strided_slice %499 {offsets = [0, 150], sizes = [8, 50], strides = [1, 1]} : vector<8x200xf32> to vector<8x50xf32>
    %504 = arith.mulf %501, %486 : vector<8x50xf32>
    %505 = arith.mulf %500, %502 : vector<8x50xf32>
    %506 = arith.addf %504, %505 : vector<8x50xf32>
    %507 = math.tanh %506 : vector<8x50xf32>
    %508 = arith.mulf %503, %507 : vector<8x50xf32>
    %c25 = arith.constant 25 : index
    %c0_105 = arith.constant 0 : index
    %c0_106 = arith.constant 0 : index
    %509 = vector.load %arg0[%c25, %c0_105, %c0_106] : memref<30x8x200xf32, #tpu.memory_space<vmem>>, vector<1x8x200xf32>
    %510 = vector.shape_cast %509 : vector<1x8x200xf32> to vector<8x200xf32>
    %cst_107 = arith.constant dense<0.000000e+00> : vector<8x200xf32>
    %511 = tpu.matmul %508, %0, %cst_107 {dimension_numbers = #tpu.dot_dimension_numbers<[1], [0], [0], [1], [0, 0, 1, 1], [], []>} : vector<8x50xf32>, vector<50x200xf32>, vector<8x200xf32> -> vector<8x200xf32>
    %512 = arith.addf %510, %511 : vector<8x200xf32>
    %513 = math.tanh %512 : vector<8x200xf32>
    %514 = arith.negf %512 : vector<8x200xf32>
    %515 = math.exp %514 : vector<8x200xf32>
    %cst_108 = arith.constant 1.000000e+00 : f32
    %516 = vector.broadcast %cst_108 : f32 to vector<8x200xf32>
    %517 = arith.addf %516, %515 : vector<8x200xf32>
    %518 = arith.divf %516, %517 : vector<8x200xf32>
    %519 = arith.select %8, %513, %518 : vector<8x200xi1>, vector<8x200xf32>
    %520 = vector.extract_strided_slice %519 {offsets = [0, 0], sizes = [8, 50], strides = [1, 1]} : vector<8x200xf32> to vector<8x50xf32>
    %521 = vector.extract_strided_slice %519 {offsets = [0, 50], sizes = [8, 50], strides = [1, 1]} : vector<8x200xf32> to vector<8x50xf32>
    %522 = vector.extract_strided_slice %519 {offsets = [0, 100], sizes = [8, 50], strides = [1, 1]} : vector<8x200xf32> to vector<8x50xf32>
    %523 = vector.extract_strided_slice %519 {offsets = [0, 150], sizes = [8, 50], strides = [1, 1]} : vector<8x200xf32> to vector<8x50xf32>
    %524 = arith.mulf %521, %506 : vector<8x50xf32>
    %525 = arith.mulf %520, %522 : vector<8x50xf32>
    %526 = arith.addf %524, %525 : vector<8x50xf32>
    %527 = math.tanh %526 : vector<8x50xf32>
    %528 = arith.mulf %523, %527 : vector<8x50xf32>
    %c26 = arith.constant 26 : index
    %c0_109 = arith.constant 0 : index
    %c0_110 = arith.constant 0 : index
    %529 = vector.load %arg0[%c26, %c0_109, %c0_110] : memref<30x8x200xf32, #tpu.memory_space<vmem>>, vector<1x8x200xf32>
    %530 = vector.shape_cast %529 : vector<1x8x200xf32> to vector<8x200xf32>
    %cst_111 = arith.constant dense<0.000000e+00> : vector<8x200xf32>
    %531 = tpu.matmul %528, %0, %cst_111 {dimension_numbers = #tpu.dot_dimension_numbers<[1], [0], [0], [1], [0, 0, 1, 1], [], []>} : vector<8x50xf32>, vector<50x200xf32>, vector<8x200xf32> -> vector<8x200xf32>
    %532 = arith.addf %530, %531 : vector<8x200xf32>
    %533 = math.tanh %532 : vector<8x200xf32>
    %534 = arith.negf %532 : vector<8x200xf32>
    %535 = math.exp %534 : vector<8x200xf32>
    %cst_112 = arith.constant 1.000000e+00 : f32
    %536 = vector.broadcast %cst_112 : f32 to vector<8x200xf32>
    %537 = arith.addf %536, %535 : vector<8x200xf32>
    %538 = arith.divf %536, %537 : vector<8x200xf32>
    %539 = arith.select %8, %533, %538 : vector<8x200xi1>, vector<8x200xf32>
    %540 = vector.extract_strided_slice %539 {offsets = [0, 0], sizes = [8, 50], strides = [1, 1]} : vector<8x200xf32> to vector<8x50xf32>
    %541 = vector.extract_strided_slice %539 {offsets = [0, 50], sizes = [8, 50], strides = [1, 1]} : vector<8x200xf32> to vector<8x50xf32>
    %542 = vector.extract_strided_slice %539 {offsets = [0, 100], sizes = [8, 50], strides = [1, 1]} : vector<8x200xf32> to vector<8x50xf32>
    %543 = vector.extract_strided_slice %539 {offsets = [0, 150], sizes = [8, 50], strides = [1, 1]} : vector<8x200xf32> to vector<8x50xf32>
    %544 = arith.mulf %541, %526 : vector<8x50xf32>
    %545 = arith.mulf %540, %542 : vector<8x50xf32>
    %546 = arith.addf %544, %545 : vector<8x50xf32>
    %547 = math.tanh %546 : vector<8x50xf32>
    %548 = arith.mulf %543, %547 : vector<8x50xf32>
    %c27 = arith.constant 27 : index
    %c0_113 = arith.constant 0 : index
    %c0_114 = arith.constant 0 : index
    %549 = vector.load %arg0[%c27, %c0_113, %c0_114] : memref<30x8x200xf32, #tpu.memory_space<vmem>>, vector<1x8x200xf32>
    %550 = vector.shape_cast %549 : vector<1x8x200xf32> to vector<8x200xf32>
    %cst_115 = arith.constant dense<0.000000e+00> : vector<8x200xf32>
    %551 = tpu.matmul %548, %0, %cst_115 {dimension_numbers = #tpu.dot_dimension_numbers<[1], [0], [0], [1], [0, 0, 1, 1], [], []>} : vector<8x50xf32>, vector<50x200xf32>, vector<8x200xf32> -> vector<8x200xf32>
    %552 = arith.addf %550, %551 : vector<8x200xf32>
    %553 = math.tanh %552 : vector<8x200xf32>
    %554 = arith.negf %552 : vector<8x200xf32>
    %555 = math.exp %554 : vector<8x200xf32>
    %cst_116 = arith.constant 1.000000e+00 : f32
    %556 = vector.broadcast %cst_116 : f32 to vector<8x200xf32>
    %557 = arith.addf %556, %555 : vector<8x200xf32>
    %558 = arith.divf %556, %557 : vector<8x200xf32>
    %559 = arith.select %8, %553, %558 : vector<8x200xi1>, vector<8x200xf32>
    %560 = vector.extract_strided_slice %559 {offsets = [0, 0], sizes = [8, 50], strides = [1, 1]} : vector<8x200xf32> to vector<8x50xf32>
    %561 = vector.extract_strided_slice %559 {offsets = [0, 50], sizes = [8, 50], strides = [1, 1]} : vector<8x200xf32> to vector<8x50xf32>
    %562 = vector.extract_strided_slice %559 {offsets = [0, 100], sizes = [8, 50], strides = [1, 1]} : vector<8x200xf32> to vector<8x50xf32>
    %563 = vector.extract_strided_slice %559 {offsets = [0, 150], sizes = [8, 50], strides = [1, 1]} : vector<8x200xf32> to vector<8x50xf32>
    %564 = arith.mulf %561, %546 : vector<8x50xf32>
    %565 = arith.mulf %560, %562 : vector<8x50xf32>
    %566 = arith.addf %564, %565 : vector<8x50xf32>
    %567 = math.tanh %566 : vector<8x50xf32>
    %568 = arith.mulf %563, %567 : vector<8x50xf32>
    %c28 = arith.constant 28 : index
    %c0_117 = arith.constant 0 : index
    %c0_118 = arith.constant 0 : index
    %569 = vector.load %arg0[%c28, %c0_117, %c0_118] : memref<30x8x200xf32, #tpu.memory_space<vmem>>, vector<1x8x200xf32>
    %570 = vector.shape_cast %569 : vector<1x8x200xf32> to vector<8x200xf32>
    %cst_119 = arith.constant dense<0.000000e+00> : vector<8x200xf32>
    %571 = tpu.matmul %568, %0, %cst_119 {dimension_numbers = #tpu.dot_dimension_numbers<[1], [0], [0], [1], [0, 0, 1, 1], [], []>} : vector<8x50xf32>, vector<50x200xf32>, vector<8x200xf32> -> vector<8x200xf32>
    %572 = arith.addf %570, %571 : vector<8x200xf32>
    %573 = math.tanh %572 : vector<8x200xf32>
    %574 = arith.negf %572 : vector<8x200xf32>
    %575 = math.exp %574 : vector<8x200xf32>
    %cst_120 = arith.constant 1.000000e+00 : f32
    %576 = vector.broadcast %cst_120 : f32 to vector<8x200xf32>
    %577 = arith.addf %576, %575 : vector<8x200xf32>
    %578 = arith.divf %576, %577 : vector<8x200xf32>
    %579 = arith.select %8, %573, %578 : vector<8x200xi1>, vector<8x200xf32>
    %580 = vector.extract_strided_slice %579 {offsets = [0, 0], sizes = [8, 50], strides = [1, 1]} : vector<8x200xf32> to vector<8x50xf32>
    %581 = vector.extract_strided_slice %579 {offsets = [0, 50], sizes = [8, 50], strides = [1, 1]} : vector<8x200xf32> to vector<8x50xf32>
    %582 = vector.extract_strided_slice %579 {offsets = [0, 100], sizes = [8, 50], strides = [1, 1]} : vector<8x200xf32> to vector<8x50xf32>
    %583 = vector.extract_strided_slice %579 {offsets = [0, 150], sizes = [8, 50], strides = [1, 1]} : vector<8x200xf32> to vector<8x50xf32>
    %584 = arith.mulf %581, %566 : vector<8x50xf32>
    %585 = arith.mulf %580, %582 : vector<8x50xf32>
    %586 = arith.addf %584, %585 : vector<8x50xf32>
    %587 = math.tanh %586 : vector<8x50xf32>
    %588 = arith.mulf %583, %587 : vector<8x50xf32>
    %c29 = arith.constant 29 : index
    %c0_121 = arith.constant 0 : index
    %c0_122 = arith.constant 0 : index
    %589 = vector.load %arg0[%c29, %c0_121, %c0_122] : memref<30x8x200xf32, #tpu.memory_space<vmem>>, vector<1x8x200xf32>
    %590 = vector.shape_cast %589 : vector<1x8x200xf32> to vector<8x200xf32>
    %cst_123 = arith.constant dense<0.000000e+00> : vector<8x200xf32>
    %591 = tpu.matmul %588, %0, %cst_123 {dimension_numbers = #tpu.dot_dimension_numbers<[1], [0], [0], [1], [0, 0, 1, 1], [], []>} : vector<8x50xf32>, vector<50x200xf32>, vector<8x200xf32> -> vector<8x200xf32>
    %592 = arith.addf %590, %591 : vector<8x200xf32>
    %593 = math.tanh %592 : vector<8x200xf32>
    %594 = arith.negf %592 : vector<8x200xf32>
    %595 = math.exp %594 : vector<8x200xf32>
    %cst_124 = arith.constant 1.000000e+00 : f32
    %596 = vector.broadcast %cst_124 : f32 to vector<8x200xf32>
    %597 = arith.addf %596, %595 : vector<8x200xf32>
    %598 = arith.divf %596, %597 : vector<8x200xf32>
    %599 = arith.select %8, %593, %598 : vector<8x200xi1>, vector<8x200xf32>
    %600 = vector.extract_strided_slice %599 {offsets = [0, 0], sizes = [8, 50], strides = [1, 1]} : vector<8x200xf32> to vector<8x50xf32>
    %601 = vector.extract_strided_slice %599 {offsets = [0, 50], sizes = [8, 50], strides = [1, 1]} : vector<8x200xf32> to vector<8x50xf32>
    %602 = vector.extract_strided_slice %599 {offsets = [0, 100], sizes = [8, 50], strides = [1, 1]} : vector<8x200xf32> to vector<8x50xf32>
    %603 = vector.extract_strided_slice %599 {offsets = [0, 150], sizes = [8, 50], strides = [1, 1]} : vector<8x200xf32> to vector<8x50xf32>
    %604 = arith.mulf %601, %586 : vector<8x50xf32>
    %605 = arith.mulf %600, %602 : vector<8x50xf32>
    %606 = arith.addf %604, %605 : vector<8x50xf32>
    %607 = math.tanh %606 : vector<8x50xf32>
    %608 = arith.mulf %603, %607 : vector<8x50xf32>
    %c0_125 = arith.constant 0 : index
    %c0_126 = arith.constant 0 : index
    %c0_127 = arith.constant 0 : index
    %609 = vector.load %arg4[%c0_125, %c0_126, %c0_127] : memref<2x50x120xf32, #tpu.memory_space<vmem>>, vector<1x50x120xf32>
    %610 = vector.shape_cast %609 : vector<1x50x120xf32> to vector<50x120xf32>
    %c0_128 = arith.constant 0 : index
    %c0_129 = arith.constant 0 : index
    %c0_130 = arith.constant 0 : index
    %611 = vector.load %arg5[%c0_128, %c0_129, %c0_130] : memref<2x30x120xf32, #tpu.memory_space<vmem>>, vector<1x30x120xf32>
    %612 = vector.shape_cast %611 : vector<1x30x120xf32> to vector<30x120xf32>
    %c0_131 = arith.constant 0 : index
    %c0_132 = arith.constant 0 : index
    %c0_133 = arith.constant 0 : index
    %613 = vector.load %arg6[%c0_131, %c0_132, %c0_133] : memref<2x1x120xf32, #tpu.memory_space<vmem>>, vector<1x1x120xf32>
    %614 = vector.shape_cast %613 : vector<1x1x120xf32> to vector<1x120xf32>
    %c0_134 = arith.constant 0 : index
    %c0_135 = arith.constant 0 : index
    %c0_136 = arith.constant 0 : index
    %615 = vector.load %arg7[%c0_134, %c0_135, %c0_136] : memref<2x1x30xf32, #tpu.memory_space<vmem>>, vector<1x1x30xf32>
    %616 = vector.shape_cast %615 : vector<1x1x30xf32> to vector<1x30xf32>
    %c0_137 = arith.constant 0 : index
    %c0_138 = arith.constant 0 : index
    %c0_139 = arith.constant 0 : index
    %617 = vector.load %arg8[%c0_137, %c0_138, %c0_139] : memref<2x1x30xf32, #tpu.memory_space<vmem>>, vector<1x1x30xf32>
    %618 = vector.shape_cast %617 : vector<1x1x30xf32> to vector<1x30xf32>
    %cst_140 = arith.constant dense<0.000000e+00> : vector<8x120xf32>
    %619 = tpu.matmul %608, %610, %cst_140 {dimension_numbers = #tpu.dot_dimension_numbers<[1], [0], [0], [1], [0, 0, 1, 1], [], []>} : vector<8x50xf32>, vector<50x120xf32>, vector<8x120xf32> -> vector<8x120xf32>
    %620 = vector.broadcast %614 : vector<1x120xf32> to vector<8x120xf32>
    %621 = arith.addf %619, %620 : vector<8x120xf32>
    %622 = tpu.iota {dimensions = array<i32: 1>} : vector<1x120xi32>
    %c60_i32 = arith.constant 60 : i32
    %623 = vector.broadcast %c60_i32 : i32 to vector<1x120xi32>
    %624 = arith.cmpi sge, %622, %623 : vector<1x120xi32>
    %c90_i32 = arith.constant 90 : i32
    %625 = vector.broadcast %c90_i32 : i32 to vector<1x120xi32>
    %626 = arith.cmpi slt, %622, %625 : vector<1x120xi32>
    %627 = arith.andi %624, %626 : vector<1x120xi1>
    %628 = vector.extract_strided_slice %621 {offsets = [0, 0], sizes = [1, 120], strides = [1, 1]} : vector<8x120xf32> to vector<1x120xf32>
    %cst_141 = arith.constant dense<0.000000e+00> : vector<1x120xf32>
    %629 = tpu.matmul %616, %612, %cst_141 {dimension_numbers = #tpu.dot_dimension_numbers<[1], [0], [0], [1], [0, 0, 1, 1], [], []>} : vector<1x30xf32>, vector<30x120xf32>, vector<1x120xf32> -> vector<1x120xf32>
    %630 = arith.addf %628, %629 : vector<1x120xf32>
    %631 = math.tanh %630 : vector<1x120xf32>
    %632 = arith.negf %630 : vector<1x120xf32>
    %633 = math.exp %632 : vector<1x120xf32>
    %cst_142 = arith.constant 1.000000e+00 : f32
    %634 = vector.broadcast %cst_142 : f32 to vector<1x120xf32>
    %635 = arith.addf %634, %633 : vector<1x120xf32>
    %636 = arith.divf %634, %635 : vector<1x120xf32>
    %637 = arith.select %627, %631, %636 : vector<1x120xi1>, vector<1x120xf32>
    %638 = vector.extract_strided_slice %637 {offsets = [0, 0], sizes = [1, 30], strides = [1, 1]} : vector<1x120xf32> to vector<1x30xf32>
    %639 = vector.extract_strided_slice %637 {offsets = [0, 30], sizes = [1, 30], strides = [1, 1]} : vector<1x120xf32> to vector<1x30xf32>
    %640 = vector.extract_strided_slice %637 {offsets = [0, 60], sizes = [1, 30], strides = [1, 1]} : vector<1x120xf32> to vector<1x30xf32>
    %641 = vector.extract_strided_slice %637 {offsets = [0, 90], sizes = [1, 30], strides = [1, 1]} : vector<1x120xf32> to vector<1x30xf32>
    %642 = arith.mulf %639, %618 : vector<1x30xf32>
    %643 = arith.mulf %638, %640 : vector<1x30xf32>
    %644 = arith.addf %642, %643 : vector<1x30xf32>
    %645 = math.tanh %644 : vector<1x30xf32>
    %646 = arith.mulf %641, %645 : vector<1x30xf32>
    %647 = vector.extract_strided_slice %621 {offsets = [1, 0], sizes = [1, 120], strides = [1, 1]} : vector<8x120xf32> to vector<1x120xf32>
    %cst_143 = arith.constant dense<0.000000e+00> : vector<1x120xf32>
    %648 = tpu.matmul %646, %612, %cst_143 {dimension_numbers = #tpu.dot_dimension_numbers<[1], [0], [0], [1], [0, 0, 1, 1], [], []>} : vector<1x30xf32>, vector<30x120xf32>, vector<1x120xf32> -> vector<1x120xf32>
    %649 = arith.addf %647, %648 : vector<1x120xf32>
    %650 = math.tanh %649 : vector<1x120xf32>
    %651 = arith.negf %649 : vector<1x120xf32>
    %652 = math.exp %651 : vector<1x120xf32>
    %cst_144 = arith.constant 1.000000e+00 : f32
    %653 = vector.broadcast %cst_144 : f32 to vector<1x120xf32>
    %654 = arith.addf %653, %652 : vector<1x120xf32>
    %655 = arith.divf %653, %654 : vector<1x120xf32>
    %656 = arith.select %627, %650, %655 : vector<1x120xi1>, vector<1x120xf32>
    %657 = vector.extract_strided_slice %656 {offsets = [0, 0], sizes = [1, 30], strides = [1, 1]} : vector<1x120xf32> to vector<1x30xf32>
    %658 = vector.extract_strided_slice %656 {offsets = [0, 30], sizes = [1, 30], strides = [1, 1]} : vector<1x120xf32> to vector<1x30xf32>
    %659 = vector.extract_strided_slice %656 {offsets = [0, 60], sizes = [1, 30], strides = [1, 1]} : vector<1x120xf32> to vector<1x30xf32>
    %660 = vector.extract_strided_slice %656 {offsets = [0, 90], sizes = [1, 30], strides = [1, 1]} : vector<1x120xf32> to vector<1x30xf32>
    %661 = arith.mulf %658, %644 : vector<1x30xf32>
    %662 = arith.mulf %657, %659 : vector<1x30xf32>
    %663 = arith.addf %661, %662 : vector<1x30xf32>
    %664 = math.tanh %663 : vector<1x30xf32>
    %665 = arith.mulf %660, %664 : vector<1x30xf32>
    %666 = vector.extract_strided_slice %621 {offsets = [2, 0], sizes = [1, 120], strides = [1, 1]} : vector<8x120xf32> to vector<1x120xf32>
    %cst_145 = arith.constant dense<0.000000e+00> : vector<1x120xf32>
    %667 = tpu.matmul %665, %612, %cst_145 {dimension_numbers = #tpu.dot_dimension_numbers<[1], [0], [0], [1], [0, 0, 1, 1], [], []>} : vector<1x30xf32>, vector<30x120xf32>, vector<1x120xf32> -> vector<1x120xf32>
    %668 = arith.addf %666, %667 : vector<1x120xf32>
    %669 = math.tanh %668 : vector<1x120xf32>
    %670 = arith.negf %668 : vector<1x120xf32>
    %671 = math.exp %670 : vector<1x120xf32>
    %cst_146 = arith.constant 1.000000e+00 : f32
    %672 = vector.broadcast %cst_146 : f32 to vector<1x120xf32>
    %673 = arith.addf %672, %671 : vector<1x120xf32>
    %674 = arith.divf %672, %673 : vector<1x120xf32>
    %675 = arith.select %627, %669, %674 : vector<1x120xi1>, vector<1x120xf32>
    %676 = vector.extract_strided_slice %675 {offsets = [0, 0], sizes = [1, 30], strides = [1, 1]} : vector<1x120xf32> to vector<1x30xf32>
    %677 = vector.extract_strided_slice %675 {offsets = [0, 30], sizes = [1, 30], strides = [1, 1]} : vector<1x120xf32> to vector<1x30xf32>
    %678 = vector.extract_strided_slice %675 {offsets = [0, 60], sizes = [1, 30], strides = [1, 1]} : vector<1x120xf32> to vector<1x30xf32>
    %679 = vector.extract_strided_slice %675 {offsets = [0, 90], sizes = [1, 30], strides = [1, 1]} : vector<1x120xf32> to vector<1x30xf32>
    %680 = arith.mulf %677, %663 : vector<1x30xf32>
    %681 = arith.mulf %676, %678 : vector<1x30xf32>
    %682 = arith.addf %680, %681 : vector<1x30xf32>
    %683 = math.tanh %682 : vector<1x30xf32>
    %684 = arith.mulf %679, %683 : vector<1x30xf32>
    %685 = vector.extract_strided_slice %621 {offsets = [3, 0], sizes = [1, 120], strides = [1, 1]} : vector<8x120xf32> to vector<1x120xf32>
    %cst_147 = arith.constant dense<0.000000e+00> : vector<1x120xf32>
    %686 = tpu.matmul %684, %612, %cst_147 {dimension_numbers = #tpu.dot_dimension_numbers<[1], [0], [0], [1], [0, 0, 1, 1], [], []>} : vector<1x30xf32>, vector<30x120xf32>, vector<1x120xf32> -> vector<1x120xf32>
    %687 = arith.addf %685, %686 : vector<1x120xf32>
    %688 = math.tanh %687 : vector<1x120xf32>
    %689 = arith.negf %687 : vector<1x120xf32>
    %690 = math.exp %689 : vector<1x120xf32>
    %cst_148 = arith.constant 1.000000e+00 : f32
    %691 = vector.broadcast %cst_148 : f32 to vector<1x120xf32>
    %692 = arith.addf %691, %690 : vector<1x120xf32>
    %693 = arith.divf %691, %692 : vector<1x120xf32>
    %694 = arith.select %627, %688, %693 : vector<1x120xi1>, vector<1x120xf32>
    %695 = vector.extract_strided_slice %694 {offsets = [0, 0], sizes = [1, 30], strides = [1, 1]} : vector<1x120xf32> to vector<1x30xf32>
    %696 = vector.extract_strided_slice %694 {offsets = [0, 30], sizes = [1, 30], strides = [1, 1]} : vector<1x120xf32> to vector<1x30xf32>
    %697 = vector.extract_strided_slice %694 {offsets = [0, 60], sizes = [1, 30], strides = [1, 1]} : vector<1x120xf32> to vector<1x30xf32>
    %698 = vector.extract_strided_slice %694 {offsets = [0, 90], sizes = [1, 30], strides = [1, 1]} : vector<1x120xf32> to vector<1x30xf32>
    %699 = arith.mulf %696, %682 : vector<1x30xf32>
    %700 = arith.mulf %695, %697 : vector<1x30xf32>
    %701 = arith.addf %699, %700 : vector<1x30xf32>
    %702 = math.tanh %701 : vector<1x30xf32>
    %703 = arith.mulf %698, %702 : vector<1x30xf32>
    %704 = vector.extract_strided_slice %621 {offsets = [4, 0], sizes = [1, 120], strides = [1, 1]} : vector<8x120xf32> to vector<1x120xf32>
    %cst_149 = arith.constant dense<0.000000e+00> : vector<1x120xf32>
    %705 = tpu.matmul %703, %612, %cst_149 {dimension_numbers = #tpu.dot_dimension_numbers<[1], [0], [0], [1], [0, 0, 1, 1], [], []>} : vector<1x30xf32>, vector<30x120xf32>, vector<1x120xf32> -> vector<1x120xf32>
    %706 = arith.addf %704, %705 : vector<1x120xf32>
    %707 = math.tanh %706 : vector<1x120xf32>
    %708 = arith.negf %706 : vector<1x120xf32>
    %709 = math.exp %708 : vector<1x120xf32>
    %cst_150 = arith.constant 1.000000e+00 : f32
    %710 = vector.broadcast %cst_150 : f32 to vector<1x120xf32>
    %711 = arith.addf %710, %709 : vector<1x120xf32>
    %712 = arith.divf %710, %711 : vector<1x120xf32>
    %713 = arith.select %627, %707, %712 : vector<1x120xi1>, vector<1x120xf32>
    %714 = vector.extract_strided_slice %713 {offsets = [0, 0], sizes = [1, 30], strides = [1, 1]} : vector<1x120xf32> to vector<1x30xf32>
    %715 = vector.extract_strided_slice %713 {offsets = [0, 30], sizes = [1, 30], strides = [1, 1]} : vector<1x120xf32> to vector<1x30xf32>
    %716 = vector.extract_strided_slice %713 {offsets = [0, 60], sizes = [1, 30], strides = [1, 1]} : vector<1x120xf32> to vector<1x30xf32>
    %717 = vector.extract_strided_slice %713 {offsets = [0, 90], sizes = [1, 30], strides = [1, 1]} : vector<1x120xf32> to vector<1x30xf32>
    %718 = arith.mulf %715, %701 : vector<1x30xf32>
    %719 = arith.mulf %714, %716 : vector<1x30xf32>
    %720 = arith.addf %718, %719 : vector<1x30xf32>
    %721 = math.tanh %720 : vector<1x30xf32>
    %722 = arith.mulf %717, %721 : vector<1x30xf32>
    %723 = vector.extract_strided_slice %621 {offsets = [5, 0], sizes = [1, 120], strides = [1, 1]} : vector<8x120xf32> to vector<1x120xf32>
    %cst_151 = arith.constant dense<0.000000e+00> : vector<1x120xf32>
    %724 = tpu.matmul %722, %612, %cst_151 {dimension_numbers = #tpu.dot_dimension_numbers<[1], [0], [0], [1], [0, 0, 1, 1], [], []>} : vector<1x30xf32>, vector<30x120xf32>, vector<1x120xf32> -> vector<1x120xf32>
    %725 = arith.addf %723, %724 : vector<1x120xf32>
    %726 = math.tanh %725 : vector<1x120xf32>
    %727 = arith.negf %725 : vector<1x120xf32>
    %728 = math.exp %727 : vector<1x120xf32>
    %cst_152 = arith.constant 1.000000e+00 : f32
    %729 = vector.broadcast %cst_152 : f32 to vector<1x120xf32>
    %730 = arith.addf %729, %728 : vector<1x120xf32>
    %731 = arith.divf %729, %730 : vector<1x120xf32>
    %732 = arith.select %627, %726, %731 : vector<1x120xi1>, vector<1x120xf32>
    %733 = vector.extract_strided_slice %732 {offsets = [0, 0], sizes = [1, 30], strides = [1, 1]} : vector<1x120xf32> to vector<1x30xf32>
    %734 = vector.extract_strided_slice %732 {offsets = [0, 30], sizes = [1, 30], strides = [1, 1]} : vector<1x120xf32> to vector<1x30xf32>
    %735 = vector.extract_strided_slice %732 {offsets = [0, 60], sizes = [1, 30], strides = [1, 1]} : vector<1x120xf32> to vector<1x30xf32>
    %736 = vector.extract_strided_slice %732 {offsets = [0, 90], sizes = [1, 30], strides = [1, 1]} : vector<1x120xf32> to vector<1x30xf32>
    %737 = arith.mulf %734, %720 : vector<1x30xf32>
    %738 = arith.mulf %733, %735 : vector<1x30xf32>
    %739 = arith.addf %737, %738 : vector<1x30xf32>
    %740 = math.tanh %739 : vector<1x30xf32>
    %741 = arith.mulf %736, %740 : vector<1x30xf32>
    %742 = vector.extract_strided_slice %621 {offsets = [6, 0], sizes = [1, 120], strides = [1, 1]} : vector<8x120xf32> to vector<1x120xf32>
    %cst_153 = arith.constant dense<0.000000e+00> : vector<1x120xf32>
    %743 = tpu.matmul %741, %612, %cst_153 {dimension_numbers = #tpu.dot_dimension_numbers<[1], [0], [0], [1], [0, 0, 1, 1], [], []>} : vector<1x30xf32>, vector<30x120xf32>, vector<1x120xf32> -> vector<1x120xf32>
    %744 = arith.addf %742, %743 : vector<1x120xf32>
    %745 = math.tanh %744 : vector<1x120xf32>
    %746 = arith.negf %744 : vector<1x120xf32>
    %747 = math.exp %746 : vector<1x120xf32>
    %cst_154 = arith.constant 1.000000e+00 : f32
    %748 = vector.broadcast %cst_154 : f32 to vector<1x120xf32>
    %749 = arith.addf %748, %747 : vector<1x120xf32>
    %750 = arith.divf %748, %749 : vector<1x120xf32>
    %751 = arith.select %627, %745, %750 : vector<1x120xi1>, vector<1x120xf32>
    %752 = vector.extract_strided_slice %751 {offsets = [0, 0], sizes = [1, 30], strides = [1, 1]} : vector<1x120xf32> to vector<1x30xf32>
    %753 = vector.extract_strided_slice %751 {offsets = [0, 30], sizes = [1, 30], strides = [1, 1]} : vector<1x120xf32> to vector<1x30xf32>
    %754 = vector.extract_strided_slice %751 {offsets = [0, 60], sizes = [1, 30], strides = [1, 1]} : vector<1x120xf32> to vector<1x30xf32>
    %755 = vector.extract_strided_slice %751 {offsets = [0, 90], sizes = [1, 30], strides = [1, 1]} : vector<1x120xf32> to vector<1x30xf32>
    %756 = arith.mulf %753, %739 : vector<1x30xf32>
    %757 = arith.mulf %752, %754 : vector<1x30xf32>
    %758 = arith.addf %756, %757 : vector<1x30xf32>
    %759 = math.tanh %758 : vector<1x30xf32>
    %760 = arith.mulf %755, %759 : vector<1x30xf32>
    %761 = vector.extract_strided_slice %621 {offsets = [7, 0], sizes = [1, 120], strides = [1, 1]} : vector<8x120xf32> to vector<1x120xf32>
    %cst_155 = arith.constant dense<0.000000e+00> : vector<1x120xf32>
    %762 = tpu.matmul %760, %612, %cst_155 {dimension_numbers = #tpu.dot_dimension_numbers<[1], [0], [0], [1], [0, 0, 1, 1], [], []>} : vector<1x30xf32>, vector<30x120xf32>, vector<1x120xf32> -> vector<1x120xf32>
    %763 = arith.addf %761, %762 : vector<1x120xf32>
    %764 = math.tanh %763 : vector<1x120xf32>
    %765 = arith.negf %763 : vector<1x120xf32>
    %766 = math.exp %765 : vector<1x120xf32>
    %cst_156 = arith.constant 1.000000e+00 : f32
    %767 = vector.broadcast %cst_156 : f32 to vector<1x120xf32>
    %768 = arith.addf %767, %766 : vector<1x120xf32>
    %769 = arith.divf %767, %768 : vector<1x120xf32>
    %770 = arith.select %627, %764, %769 : vector<1x120xi1>, vector<1x120xf32>
    %771 = vector.extract_strided_slice %770 {offsets = [0, 0], sizes = [1, 30], strides = [1, 1]} : vector<1x120xf32> to vector<1x30xf32>
    %772 = vector.extract_strided_slice %770 {offsets = [0, 30], sizes = [1, 30], strides = [1, 1]} : vector<1x120xf32> to vector<1x30xf32>
    %773 = vector.extract_strided_slice %770 {offsets = [0, 60], sizes = [1, 30], strides = [1, 1]} : vector<1x120xf32> to vector<1x30xf32>
    %774 = vector.extract_strided_slice %770 {offsets = [0, 90], sizes = [1, 30], strides = [1, 1]} : vector<1x120xf32> to vector<1x30xf32>
    %775 = arith.mulf %772, %758 : vector<1x30xf32>
    %776 = arith.mulf %771, %773 : vector<1x30xf32>
    %777 = arith.addf %775, %776 : vector<1x30xf32>
    %778 = math.tanh %777 : vector<1x30xf32>
    %779 = arith.mulf %774, %778 : vector<1x30xf32>
    %780 = tpu.concatenate %646, %665, %684, %703, %722, %741, %760, %779 in 0 : vector<1x30xf32>, vector<1x30xf32>, vector<1x30xf32>, vector<1x30xf32>, vector<1x30xf32>, vector<1x30xf32>, vector<1x30xf32>, vector<1x30xf32> -> vector<8x30xf32>
    %c1_157 = arith.constant 1 : index
    %c0_158 = arith.constant 0 : index
    %c0_159 = arith.constant 0 : index
    %781 = vector.load %arg4[%c1_157, %c0_158, %c0_159] : memref<2x50x120xf32, #tpu.memory_space<vmem>>, vector<1x50x120xf32>
    %782 = vector.shape_cast %781 : vector<1x50x120xf32> to vector<50x120xf32>
    %c1_160 = arith.constant 1 : index
    %c0_161 = arith.constant 0 : index
    %c0_162 = arith.constant 0 : index
    %783 = vector.load %arg5[%c1_160, %c0_161, %c0_162] : memref<2x30x120xf32, #tpu.memory_space<vmem>>, vector<1x30x120xf32>
    %784 = vector.shape_cast %783 : vector<1x30x120xf32> to vector<30x120xf32>
    %c1_163 = arith.constant 1 : index
    %c0_164 = arith.constant 0 : index
    %c0_165 = arith.constant 0 : index
    %785 = vector.load %arg6[%c1_163, %c0_164, %c0_165] : memref<2x1x120xf32, #tpu.memory_space<vmem>>, vector<1x1x120xf32>
    %786 = vector.shape_cast %785 : vector<1x1x120xf32> to vector<1x120xf32>
    %c1_166 = arith.constant 1 : index
    %c0_167 = arith.constant 0 : index
    %c0_168 = arith.constant 0 : index
    %787 = vector.load %arg7[%c1_166, %c0_167, %c0_168] : memref<2x1x30xf32, #tpu.memory_space<vmem>>, vector<1x1x30xf32>
    %788 = vector.shape_cast %787 : vector<1x1x30xf32> to vector<1x30xf32>
    %c1_169 = arith.constant 1 : index
    %c0_170 = arith.constant 0 : index
    %c0_171 = arith.constant 0 : index
    %789 = vector.load %arg8[%c1_169, %c0_170, %c0_171] : memref<2x1x30xf32, #tpu.memory_space<vmem>>, vector<1x1x30xf32>
    %790 = vector.shape_cast %789 : vector<1x1x30xf32> to vector<1x30xf32>
    %cst_172 = arith.constant dense<0.000000e+00> : vector<8x120xf32>
    %791 = tpu.matmul %608, %782, %cst_172 {dimension_numbers = #tpu.dot_dimension_numbers<[1], [0], [0], [1], [0, 0, 1, 1], [], []>} : vector<8x50xf32>, vector<50x120xf32>, vector<8x120xf32> -> vector<8x120xf32>
    %792 = vector.broadcast %786 : vector<1x120xf32> to vector<8x120xf32>
    %793 = arith.addf %791, %792 : vector<8x120xf32>
    %794 = tpu.iota {dimensions = array<i32: 1>} : vector<1x120xi32>
    %c60_i32_173 = arith.constant 60 : i32
    %795 = vector.broadcast %c60_i32_173 : i32 to vector<1x120xi32>
    %796 = arith.cmpi sge, %794, %795 : vector<1x120xi32>
    %c90_i32_174 = arith.constant 90 : i32
    %797 = vector.broadcast %c90_i32_174 : i32 to vector<1x120xi32>
    %798 = arith.cmpi slt, %794, %797 : vector<1x120xi32>
    %799 = arith.andi %796, %798 : vector<1x120xi1>
    %800 = vector.extract_strided_slice %793 {offsets = [7, 0], sizes = [1, 120], strides = [1, 1]} : vector<8x120xf32> to vector<1x120xf32>
    %cst_175 = arith.constant dense<0.000000e+00> : vector<1x120xf32>
    %801 = tpu.matmul %788, %784, %cst_175 {dimension_numbers = #tpu.dot_dimension_numbers<[1], [0], [0], [1], [0, 0, 1, 1], [], []>} : vector<1x30xf32>, vector<30x120xf32>, vector<1x120xf32> -> vector<1x120xf32>
    %802 = arith.addf %800, %801 : vector<1x120xf32>
    %803 = math.tanh %802 : vector<1x120xf32>
    %804 = arith.negf %802 : vector<1x120xf32>
    %805 = math.exp %804 : vector<1x120xf32>
    %cst_176 = arith.constant 1.000000e+00 : f32
    %806 = vector.broadcast %cst_176 : f32 to vector<1x120xf32>
    %807 = arith.addf %806, %805 : vector<1x120xf32>
    %808 = arith.divf %806, %807 : vector<1x120xf32>
    %809 = arith.select %799, %803, %808 : vector<1x120xi1>, vector<1x120xf32>
    %810 = vector.extract_strided_slice %809 {offsets = [0, 0], sizes = [1, 30], strides = [1, 1]} : vector<1x120xf32> to vector<1x30xf32>
    %811 = vector.extract_strided_slice %809 {offsets = [0, 30], sizes = [1, 30], strides = [1, 1]} : vector<1x120xf32> to vector<1x30xf32>
    %812 = vector.extract_strided_slice %809 {offsets = [0, 60], sizes = [1, 30], strides = [1, 1]} : vector<1x120xf32> to vector<1x30xf32>
    %813 = vector.extract_strided_slice %809 {offsets = [0, 90], sizes = [1, 30], strides = [1, 1]} : vector<1x120xf32> to vector<1x30xf32>
    %814 = arith.mulf %811, %790 : vector<1x30xf32>
    %815 = arith.mulf %810, %812 : vector<1x30xf32>
    %816 = arith.addf %814, %815 : vector<1x30xf32>
    %817 = math.tanh %816 : vector<1x30xf32>
    %818 = arith.mulf %813, %817 : vector<1x30xf32>
    %819 = vector.extract_strided_slice %793 {offsets = [6, 0], sizes = [1, 120], strides = [1, 1]} : vector<8x120xf32> to vector<1x120xf32>
    %cst_177 = arith.constant dense<0.000000e+00> : vector<1x120xf32>
    %820 = tpu.matmul %818, %784, %cst_177 {dimension_numbers = #tpu.dot_dimension_numbers<[1], [0], [0], [1], [0, 0, 1, 1], [], []>} : vector<1x30xf32>, vector<30x120xf32>, vector<1x120xf32> -> vector<1x120xf32>
    %821 = arith.addf %819, %820 : vector<1x120xf32>
    %822 = math.tanh %821 : vector<1x120xf32>
    %823 = arith.negf %821 : vector<1x120xf32>
    %824 = math.exp %823 : vector<1x120xf32>
    %cst_178 = arith.constant 1.000000e+00 : f32
    %825 = vector.broadcast %cst_178 : f32 to vector<1x120xf32>
    %826 = arith.addf %825, %824 : vector<1x120xf32>
    %827 = arith.divf %825, %826 : vector<1x120xf32>
    %828 = arith.select %799, %822, %827 : vector<1x120xi1>, vector<1x120xf32>
    %829 = vector.extract_strided_slice %828 {offsets = [0, 0], sizes = [1, 30], strides = [1, 1]} : vector<1x120xf32> to vector<1x30xf32>
    %830 = vector.extract_strided_slice %828 {offsets = [0, 30], sizes = [1, 30], strides = [1, 1]} : vector<1x120xf32> to vector<1x30xf32>
    %831 = vector.extract_strided_slice %828 {offsets = [0, 60], sizes = [1, 30], strides = [1, 1]} : vector<1x120xf32> to vector<1x30xf32>
    %832 = vector.extract_strided_slice %828 {offsets = [0, 90], sizes = [1, 30], strides = [1, 1]} : vector<1x120xf32> to vector<1x30xf32>
    %833 = arith.mulf %830, %816 : vector<1x30xf32>
    %834 = arith.mulf %829, %831 : vector<1x30xf32>
    %835 = arith.addf %833, %834 : vector<1x30xf32>
    %836 = math.tanh %835 : vector<1x30xf32>
    %837 = arith.mulf %832, %836 : vector<1x30xf32>
    %838 = vector.extract_strided_slice %793 {offsets = [5, 0], sizes = [1, 120], strides = [1, 1]} : vector<8x120xf32> to vector<1x120xf32>
    %cst_179 = arith.constant dense<0.000000e+00> : vector<1x120xf32>
    %839 = tpu.matmul %837, %784, %cst_179 {dimension_numbers = #tpu.dot_dimension_numbers<[1], [0], [0], [1], [0, 0, 1, 1], [], []>} : vector<1x30xf32>, vector<30x120xf32>, vector<1x120xf32> -> vector<1x120xf32>
    %840 = arith.addf %838, %839 : vector<1x120xf32>
    %841 = math.tanh %840 : vector<1x120xf32>
    %842 = arith.negf %840 : vector<1x120xf32>
    %843 = math.exp %842 : vector<1x120xf32>
    %cst_180 = arith.constant 1.000000e+00 : f32
    %844 = vector.broadcast %cst_180 : f32 to vector<1x120xf32>
    %845 = arith.addf %844, %843 : vector<1x120xf32>
    %846 = arith.divf %844, %845 : vector<1x120xf32>
    %847 = arith.select %799, %841, %846 : vector<1x120xi1>, vector<1x120xf32>
    %848 = vector.extract_strided_slice %847 {offsets = [0, 0], sizes = [1, 30], strides = [1, 1]} : vector<1x120xf32> to vector<1x30xf32>
    %849 = vector.extract_strided_slice %847 {offsets = [0, 30], sizes = [1, 30], strides = [1, 1]} : vector<1x120xf32> to vector<1x30xf32>
    %850 = vector.extract_strided_slice %847 {offsets = [0, 60], sizes = [1, 30], strides = [1, 1]} : vector<1x120xf32> to vector<1x30xf32>
    %851 = vector.extract_strided_slice %847 {offsets = [0, 90], sizes = [1, 30], strides = [1, 1]} : vector<1x120xf32> to vector<1x30xf32>
    %852 = arith.mulf %849, %835 : vector<1x30xf32>
    %853 = arith.mulf %848, %850 : vector<1x30xf32>
    %854 = arith.addf %852, %853 : vector<1x30xf32>
    %855 = math.tanh %854 : vector<1x30xf32>
    %856 = arith.mulf %851, %855 : vector<1x30xf32>
    %857 = vector.extract_strided_slice %793 {offsets = [4, 0], sizes = [1, 120], strides = [1, 1]} : vector<8x120xf32> to vector<1x120xf32>
    %cst_181 = arith.constant dense<0.000000e+00> : vector<1x120xf32>
    %858 = tpu.matmul %856, %784, %cst_181 {dimension_numbers = #tpu.dot_dimension_numbers<[1], [0], [0], [1], [0, 0, 1, 1], [], []>} : vector<1x30xf32>, vector<30x120xf32>, vector<1x120xf32> -> vector<1x120xf32>
    %859 = arith.addf %857, %858 : vector<1x120xf32>
    %860 = math.tanh %859 : vector<1x120xf32>
    %861 = arith.negf %859 : vector<1x120xf32>
    %862 = math.exp %861 : vector<1x120xf32>
    %cst_182 = arith.constant 1.000000e+00 : f32
    %863 = vector.broadcast %cst_182 : f32 to vector<1x120xf32>
    %864 = arith.addf %863, %862 : vector<1x120xf32>
    %865 = arith.divf %863, %864 : vector<1x120xf32>
    %866 = arith.select %799, %860, %865 : vector<1x120xi1>, vector<1x120xf32>
    %867 = vector.extract_strided_slice %866 {offsets = [0, 0], sizes = [1, 30], strides = [1, 1]} : vector<1x120xf32> to vector<1x30xf32>
    %868 = vector.extract_strided_slice %866 {offsets = [0, 30], sizes = [1, 30], strides = [1, 1]} : vector<1x120xf32> to vector<1x30xf32>
    %869 = vector.extract_strided_slice %866 {offsets = [0, 60], sizes = [1, 30], strides = [1, 1]} : vector<1x120xf32> to vector<1x30xf32>
    %870 = vector.extract_strided_slice %866 {offsets = [0, 90], sizes = [1, 30], strides = [1, 1]} : vector<1x120xf32> to vector<1x30xf32>
    %871 = arith.mulf %868, %854 : vector<1x30xf32>
    %872 = arith.mulf %867, %869 : vector<1x30xf32>
    %873 = arith.addf %871, %872 : vector<1x30xf32>
    %874 = math.tanh %873 : vector<1x30xf32>
    %875 = arith.mulf %870, %874 : vector<1x30xf32>
    %876 = vector.extract_strided_slice %793 {offsets = [3, 0], sizes = [1, 120], strides = [1, 1]} : vector<8x120xf32> to vector<1x120xf32>
    %cst_183 = arith.constant dense<0.000000e+00> : vector<1x120xf32>
    %877 = tpu.matmul %875, %784, %cst_183 {dimension_numbers = #tpu.dot_dimension_numbers<[1], [0], [0], [1], [0, 0, 1, 1], [], []>} : vector<1x30xf32>, vector<30x120xf32>, vector<1x120xf32> -> vector<1x120xf32>
    %878 = arith.addf %876, %877 : vector<1x120xf32>
    %879 = math.tanh %878 : vector<1x120xf32>
    %880 = arith.negf %878 : vector<1x120xf32>
    %881 = math.exp %880 : vector<1x120xf32>
    %cst_184 = arith.constant 1.000000e+00 : f32
    %882 = vector.broadcast %cst_184 : f32 to vector<1x120xf32>
    %883 = arith.addf %882, %881 : vector<1x120xf32>
    %884 = arith.divf %882, %883 : vector<1x120xf32>
    %885 = arith.select %799, %879, %884 : vector<1x120xi1>, vector<1x120xf32>
    %886 = vector.extract_strided_slice %885 {offsets = [0, 0], sizes = [1, 30], strides = [1, 1]} : vector<1x120xf32> to vector<1x30xf32>
    %887 = vector.extract_strided_slice %885 {offsets = [0, 30], sizes = [1, 30], strides = [1, 1]} : vector<1x120xf32> to vector<1x30xf32>
    %888 = vector.extract_strided_slice %885 {offsets = [0, 60], sizes = [1, 30], strides = [1, 1]} : vector<1x120xf32> to vector<1x30xf32>
    %889 = vector.extract_strided_slice %885 {offsets = [0, 90], sizes = [1, 30], strides = [1, 1]} : vector<1x120xf32> to vector<1x30xf32>
    %890 = arith.mulf %887, %873 : vector<1x30xf32>
    %891 = arith.mulf %886, %888 : vector<1x30xf32>
    %892 = arith.addf %890, %891 : vector<1x30xf32>
    %893 = math.tanh %892 : vector<1x30xf32>
    %894 = arith.mulf %889, %893 : vector<1x30xf32>
    %895 = vector.extract_strided_slice %793 {offsets = [2, 0], sizes = [1, 120], strides = [1, 1]} : vector<8x120xf32> to vector<1x120xf32>
    %cst_185 = arith.constant dense<0.000000e+00> : vector<1x120xf32>
    %896 = tpu.matmul %894, %784, %cst_185 {dimension_numbers = #tpu.dot_dimension_numbers<[1], [0], [0], [1], [0, 0, 1, 1], [], []>} : vector<1x30xf32>, vector<30x120xf32>, vector<1x120xf32> -> vector<1x120xf32>
    %897 = arith.addf %895, %896 : vector<1x120xf32>
    %898 = math.tanh %897 : vector<1x120xf32>
    %899 = arith.negf %897 : vector<1x120xf32>
    %900 = math.exp %899 : vector<1x120xf32>
    %cst_186 = arith.constant 1.000000e+00 : f32
    %901 = vector.broadcast %cst_186 : f32 to vector<1x120xf32>
    %902 = arith.addf %901, %900 : vector<1x120xf32>
    %903 = arith.divf %901, %902 : vector<1x120xf32>
    %904 = arith.select %799, %898, %903 : vector<1x120xi1>, vector<1x120xf32>
    %905 = vector.extract_strided_slice %904 {offsets = [0, 0], sizes = [1, 30], strides = [1, 1]} : vector<1x120xf32> to vector<1x30xf32>
    %906 = vector.extract_strided_slice %904 {offsets = [0, 30], sizes = [1, 30], strides = [1, 1]} : vector<1x120xf32> to vector<1x30xf32>
    %907 = vector.extract_strided_slice %904 {offsets = [0, 60], sizes = [1, 30], strides = [1, 1]} : vector<1x120xf32> to vector<1x30xf32>
    %908 = vector.extract_strided_slice %904 {offsets = [0, 90], sizes = [1, 30], strides = [1, 1]} : vector<1x120xf32> to vector<1x30xf32>
    %909 = arith.mulf %906, %892 : vector<1x30xf32>
    %910 = arith.mulf %905, %907 : vector<1x30xf32>
    %911 = arith.addf %909, %910 : vector<1x30xf32>
    %912 = math.tanh %911 : vector<1x30xf32>
    %913 = arith.mulf %908, %912 : vector<1x30xf32>
    %914 = vector.extract_strided_slice %793 {offsets = [1, 0], sizes = [1, 120], strides = [1, 1]} : vector<8x120xf32> to vector<1x120xf32>
    %cst_187 = arith.constant dense<0.000000e+00> : vector<1x120xf32>
    %915 = tpu.matmul %913, %784, %cst_187 {dimension_numbers = #tpu.dot_dimension_numbers<[1], [0], [0], [1], [0, 0, 1, 1], [], []>} : vector<1x30xf32>, vector<30x120xf32>, vector<1x120xf32> -> vector<1x120xf32>
    %916 = arith.addf %914, %915 : vector<1x120xf32>
    %917 = math.tanh %916 : vector<1x120xf32>
    %918 = arith.negf %916 : vector<1x120xf32>
    %919 = math.exp %918 : vector<1x120xf32>
    %cst_188 = arith.constant 1.000000e+00 : f32
    %920 = vector.broadcast %cst_188 : f32 to vector<1x120xf32>
    %921 = arith.addf %920, %919 : vector<1x120xf32>
    %922 = arith.divf %920, %921 : vector<1x120xf32>
    %923 = arith.select %799, %917, %922 : vector<1x120xi1>, vector<1x120xf32>
    %924 = vector.extract_strided_slice %923 {offsets = [0, 0], sizes = [1, 30], strides = [1, 1]} : vector<1x120xf32> to vector<1x30xf32>
    %925 = vector.extract_strided_slice %923 {offsets = [0, 30], sizes = [1, 30], strides = [1, 1]} : vector<1x120xf32> to vector<1x30xf32>
    %926 = vector.extract_strided_slice %923 {offsets = [0, 60], sizes = [1, 30], strides = [1, 1]} : vector<1x120xf32> to vector<1x30xf32>
    %927 = vector.extract_strided_slice %923 {offsets = [0, 90], sizes = [1, 30], strides = [1, 1]} : vector<1x120xf32> to vector<1x30xf32>
    %928 = arith.mulf %925, %911 : vector<1x30xf32>
    %929 = arith.mulf %924, %926 : vector<1x30xf32>
    %930 = arith.addf %928, %929 : vector<1x30xf32>
    %931 = math.tanh %930 : vector<1x30xf32>
    %932 = arith.mulf %927, %931 : vector<1x30xf32>
    %933 = vector.extract_strided_slice %793 {offsets = [0, 0], sizes = [1, 120], strides = [1, 1]} : vector<8x120xf32> to vector<1x120xf32>
    %cst_189 = arith.constant dense<0.000000e+00> : vector<1x120xf32>
    %934 = tpu.matmul %932, %784, %cst_189 {dimension_numbers = #tpu.dot_dimension_numbers<[1], [0], [0], [1], [0, 0, 1, 1], [], []>} : vector<1x30xf32>, vector<30x120xf32>, vector<1x120xf32> -> vector<1x120xf32>
    %935 = arith.addf %933, %934 : vector<1x120xf32>
    %936 = math.tanh %935 : vector<1x120xf32>
    %937 = arith.negf %935 : vector<1x120xf32>
    %938 = math.exp %937 : vector<1x120xf32>
    %cst_190 = arith.constant 1.000000e+00 : f32
    %939 = vector.broadcast %cst_190 : f32 to vector<1x120xf32>
    %940 = arith.addf %939, %938 : vector<1x120xf32>
    %941 = arith.divf %939, %940 : vector<1x120xf32>
    %942 = arith.select %799, %936, %941 : vector<1x120xi1>, vector<1x120xf32>
    %943 = vector.extract_strided_slice %942 {offsets = [0, 0], sizes = [1, 30], strides = [1, 1]} : vector<1x120xf32> to vector<1x30xf32>
    %944 = vector.extract_strided_slice %942 {offsets = [0, 30], sizes = [1, 30], strides = [1, 1]} : vector<1x120xf32> to vector<1x30xf32>
    %945 = vector.extract_strided_slice %942 {offsets = [0, 60], sizes = [1, 30], strides = [1, 1]} : vector<1x120xf32> to vector<1x30xf32>
    %946 = vector.extract_strided_slice %942 {offsets = [0, 90], sizes = [1, 30], strides = [1, 1]} : vector<1x120xf32> to vector<1x30xf32>
    %947 = arith.mulf %944, %930 : vector<1x30xf32>
    %948 = arith.mulf %943, %945 : vector<1x30xf32>
    %949 = arith.addf %947, %948 : vector<1x30xf32>
    %950 = math.tanh %949 : vector<1x30xf32>
    %951 = arith.mulf %946, %950 : vector<1x30xf32>
    %952 = tpu.concatenate %818, %837, %856, %875, %894, %913, %932, %951 in 0 : vector<1x30xf32>, vector<1x30xf32>, vector<1x30xf32>, vector<1x30xf32>, vector<1x30xf32>, vector<1x30xf32>, vector<1x30xf32>, vector<1x30xf32> -> vector<8x30xf32>
    %953 = tpu.concatenate %780, %952 in 1 : vector<8x30xf32>, vector<8x30xf32> -> vector<8x60xf32>
    %c0_191 = arith.constant 0 : index
    %c0_192 = arith.constant 0 : index
    %c0_193 = arith.constant 0 : index
    %954 = vector.load %arg9[%c0_191, %c0_192, %c0_193] : memref<2x60x200xf32, #tpu.memory_space<vmem>>, vector<1x60x200xf32>
    %955 = vector.shape_cast %954 : vector<1x60x200xf32> to vector<60x200xf32>
    %c0_194 = arith.constant 0 : index
    %c0_195 = arith.constant 0 : index
    %c0_196 = arith.constant 0 : index
    %956 = vector.load %arg10[%c0_194, %c0_195, %c0_196] : memref<2x50x200xf32, #tpu.memory_space<vmem>>, vector<1x50x200xf32>
    %957 = vector.shape_cast %956 : vector<1x50x200xf32> to vector<50x200xf32>
    %c0_197 = arith.constant 0 : index
    %c0_198 = arith.constant 0 : index
    %c0_199 = arith.constant 0 : index
    %958 = vector.load %arg11[%c0_197, %c0_198, %c0_199] : memref<2x1x200xf32, #tpu.memory_space<vmem>>, vector<1x1x200xf32>
    %959 = vector.shape_cast %958 : vector<1x1x200xf32> to vector<1x200xf32>
    %c0_200 = arith.constant 0 : index
    %c0_201 = arith.constant 0 : index
    %c0_202 = arith.constant 0 : index
    %960 = vector.load %arg12[%c0_200, %c0_201, %c0_202] : memref<2x1x50xf32, #tpu.memory_space<vmem>>, vector<1x1x50xf32>
    %961 = vector.shape_cast %960 : vector<1x1x50xf32> to vector<1x50xf32>
    %c0_203 = arith.constant 0 : index
    %c0_204 = arith.constant 0 : index
    %c0_205 = arith.constant 0 : index
    %962 = vector.load %arg13[%c0_203, %c0_204, %c0_205] : memref<2x1x50xf32, #tpu.memory_space<vmem>>, vector<1x1x50xf32>
    %963 = vector.shape_cast %962 : vector<1x1x50xf32> to vector<1x50xf32>
    %cst_206 = arith.constant dense<0.000000e+00> : vector<8x200xf32>
    %964 = tpu.matmul %953, %955, %cst_206 {dimension_numbers = #tpu.dot_dimension_numbers<[1], [0], [0], [1], [0, 0, 1, 1], [], []>} : vector<8x60xf32>, vector<60x200xf32>, vector<8x200xf32> -> vector<8x200xf32>
    %965 = vector.broadcast %959 : vector<1x200xf32> to vector<8x200xf32>
    %966 = arith.addf %964, %965 : vector<8x200xf32>
    %967 = tpu.iota {dimensions = array<i32: 1>} : vector<1x200xi32>
    %c100_i32_207 = arith.constant 100 : i32
    %968 = vector.broadcast %c100_i32_207 : i32 to vector<1x200xi32>
    %969 = arith.cmpi sge, %967, %968 : vector<1x200xi32>
    %c150_i32_208 = arith.constant 150 : i32
    %970 = vector.broadcast %c150_i32_208 : i32 to vector<1x200xi32>
    %971 = arith.cmpi slt, %967, %970 : vector<1x200xi32>
    %972 = arith.andi %969, %971 : vector<1x200xi1>
    %973 = vector.extract_strided_slice %966 {offsets = [0, 0], sizes = [1, 200], strides = [1, 1]} : vector<8x200xf32> to vector<1x200xf32>
    %cst_209 = arith.constant dense<0.000000e+00> : vector<1x200xf32>
    %974 = tpu.matmul %961, %957, %cst_209 {dimension_numbers = #tpu.dot_dimension_numbers<[1], [0], [0], [1], [0, 0, 1, 1], [], []>} : vector<1x50xf32>, vector<50x200xf32>, vector<1x200xf32> -> vector<1x200xf32>
    %975 = arith.addf %973, %974 : vector<1x200xf32>
    %976 = math.tanh %975 : vector<1x200xf32>
    %977 = arith.negf %975 : vector<1x200xf32>
    %978 = math.exp %977 : vector<1x200xf32>
    %cst_210 = arith.constant 1.000000e+00 : f32
    %979 = vector.broadcast %cst_210 : f32 to vector<1x200xf32>
    %980 = arith.addf %979, %978 : vector<1x200xf32>
    %981 = arith.divf %979, %980 : vector<1x200xf32>
    %982 = arith.select %972, %976, %981 : vector<1x200xi1>, vector<1x200xf32>
    %983 = vector.extract_strided_slice %982 {offsets = [0, 0], sizes = [1, 50], strides = [1, 1]} : vector<1x200xf32> to vector<1x50xf32>
    %984 = vector.extract_strided_slice %982 {offsets = [0, 50], sizes = [1, 50], strides = [1, 1]} : vector<1x200xf32> to vector<1x50xf32>
    %985 = vector.extract_strided_slice %982 {offsets = [0, 100], sizes = [1, 50], strides = [1, 1]} : vector<1x200xf32> to vector<1x50xf32>
    %986 = vector.extract_strided_slice %982 {offsets = [0, 150], sizes = [1, 50], strides = [1, 1]} : vector<1x200xf32> to vector<1x50xf32>
    %987 = arith.mulf %984, %963 : vector<1x50xf32>
    %988 = arith.mulf %983, %985 : vector<1x50xf32>
    %989 = arith.addf %987, %988 : vector<1x50xf32>
    %990 = math.tanh %989 : vector<1x50xf32>
    %991 = arith.mulf %986, %990 : vector<1x50xf32>
    %992 = vector.extract_strided_slice %966 {offsets = [1, 0], sizes = [1, 200], strides = [1, 1]} : vector<8x200xf32> to vector<1x200xf32>
    %cst_211 = arith.constant dense<0.000000e+00> : vector<1x200xf32>
    %993 = tpu.matmul %991, %957, %cst_211 {dimension_numbers = #tpu.dot_dimension_numbers<[1], [0], [0], [1], [0, 0, 1, 1], [], []>} : vector<1x50xf32>, vector<50x200xf32>, vector<1x200xf32> -> vector<1x200xf32>
    %994 = arith.addf %992, %993 : vector<1x200xf32>
    %995 = math.tanh %994 : vector<1x200xf32>
    %996 = arith.negf %994 : vector<1x200xf32>
    %997 = math.exp %996 : vector<1x200xf32>
    %cst_212 = arith.constant 1.000000e+00 : f32
    %998 = vector.broadcast %cst_212 : f32 to vector<1x200xf32>
    %999 = arith.addf %998, %997 : vector<1x200xf32>
    %1000 = arith.divf %998, %999 : vector<1x200xf32>
    %1001 = arith.select %972, %995, %1000 : vector<1x200xi1>, vector<1x200xf32>
    %1002 = vector.extract_strided_slice %1001 {offsets = [0, 0], sizes = [1, 50], strides = [1, 1]} : vector<1x200xf32> to vector<1x50xf32>
    %1003 = vector.extract_strided_slice %1001 {offsets = [0, 50], sizes = [1, 50], strides = [1, 1]} : vector<1x200xf32> to vector<1x50xf32>
    %1004 = vector.extract_strided_slice %1001 {offsets = [0, 100], sizes = [1, 50], strides = [1, 1]} : vector<1x200xf32> to vector<1x50xf32>
    %1005 = vector.extract_strided_slice %1001 {offsets = [0, 150], sizes = [1, 50], strides = [1, 1]} : vector<1x200xf32> to vector<1x50xf32>
    %1006 = arith.mulf %1003, %989 : vector<1x50xf32>
    %1007 = arith.mulf %1002, %1004 : vector<1x50xf32>
    %1008 = arith.addf %1006, %1007 : vector<1x50xf32>
    %1009 = math.tanh %1008 : vector<1x50xf32>
    %1010 = arith.mulf %1005, %1009 : vector<1x50xf32>
    %1011 = vector.extract_strided_slice %966 {offsets = [2, 0], sizes = [1, 200], strides = [1, 1]} : vector<8x200xf32> to vector<1x200xf32>
    %cst_213 = arith.constant dense<0.000000e+00> : vector<1x200xf32>
    %1012 = tpu.matmul %1010, %957, %cst_213 {dimension_numbers = #tpu.dot_dimension_numbers<[1], [0], [0], [1], [0, 0, 1, 1], [], []>} : vector<1x50xf32>, vector<50x200xf32>, vector<1x200xf32> -> vector<1x200xf32>
    %1013 = arith.addf %1011, %1012 : vector<1x200xf32>
    %1014 = math.tanh %1013 : vector<1x200xf32>
    %1015 = arith.negf %1013 : vector<1x200xf32>
    %1016 = math.exp %1015 : vector<1x200xf32>
    %cst_214 = arith.constant 1.000000e+00 : f32
    %1017 = vector.broadcast %cst_214 : f32 to vector<1x200xf32>
    %1018 = arith.addf %1017, %1016 : vector<1x200xf32>
    %1019 = arith.divf %1017, %1018 : vector<1x200xf32>
    %1020 = arith.select %972, %1014, %1019 : vector<1x200xi1>, vector<1x200xf32>
    %1021 = vector.extract_strided_slice %1020 {offsets = [0, 0], sizes = [1, 50], strides = [1, 1]} : vector<1x200xf32> to vector<1x50xf32>
    %1022 = vector.extract_strided_slice %1020 {offsets = [0, 50], sizes = [1, 50], strides = [1, 1]} : vector<1x200xf32> to vector<1x50xf32>
    %1023 = vector.extract_strided_slice %1020 {offsets = [0, 100], sizes = [1, 50], strides = [1, 1]} : vector<1x200xf32> to vector<1x50xf32>
    %1024 = vector.extract_strided_slice %1020 {offsets = [0, 150], sizes = [1, 50], strides = [1, 1]} : vector<1x200xf32> to vector<1x50xf32>
    %1025 = arith.mulf %1022, %1008 : vector<1x50xf32>
    %1026 = arith.mulf %1021, %1023 : vector<1x50xf32>
    %1027 = arith.addf %1025, %1026 : vector<1x50xf32>
    %1028 = math.tanh %1027 : vector<1x50xf32>
    %1029 = arith.mulf %1024, %1028 : vector<1x50xf32>
    %1030 = vector.extract_strided_slice %966 {offsets = [3, 0], sizes = [1, 200], strides = [1, 1]} : vector<8x200xf32> to vector<1x200xf32>
    %cst_215 = arith.constant dense<0.000000e+00> : vector<1x200xf32>
    %1031 = tpu.matmul %1029, %957, %cst_215 {dimension_numbers = #tpu.dot_dimension_numbers<[1], [0], [0], [1], [0, 0, 1, 1], [], []>} : vector<1x50xf32>, vector<50x200xf32>, vector<1x200xf32> -> vector<1x200xf32>
    %1032 = arith.addf %1030, %1031 : vector<1x200xf32>
    %1033 = math.tanh %1032 : vector<1x200xf32>
    %1034 = arith.negf %1032 : vector<1x200xf32>
    %1035 = math.exp %1034 : vector<1x200xf32>
    %cst_216 = arith.constant 1.000000e+00 : f32
    %1036 = vector.broadcast %cst_216 : f32 to vector<1x200xf32>
    %1037 = arith.addf %1036, %1035 : vector<1x200xf32>
    %1038 = arith.divf %1036, %1037 : vector<1x200xf32>
    %1039 = arith.select %972, %1033, %1038 : vector<1x200xi1>, vector<1x200xf32>
    %1040 = vector.extract_strided_slice %1039 {offsets = [0, 0], sizes = [1, 50], strides = [1, 1]} : vector<1x200xf32> to vector<1x50xf32>
    %1041 = vector.extract_strided_slice %1039 {offsets = [0, 50], sizes = [1, 50], strides = [1, 1]} : vector<1x200xf32> to vector<1x50xf32>
    %1042 = vector.extract_strided_slice %1039 {offsets = [0, 100], sizes = [1, 50], strides = [1, 1]} : vector<1x200xf32> to vector<1x50xf32>
    %1043 = vector.extract_strided_slice %1039 {offsets = [0, 150], sizes = [1, 50], strides = [1, 1]} : vector<1x200xf32> to vector<1x50xf32>
    %1044 = arith.mulf %1041, %1027 : vector<1x50xf32>
    %1045 = arith.mulf %1040, %1042 : vector<1x50xf32>
    %1046 = arith.addf %1044, %1045 : vector<1x50xf32>
    %1047 = math.tanh %1046 : vector<1x50xf32>
    %1048 = arith.mulf %1043, %1047 : vector<1x50xf32>
    %1049 = vector.extract_strided_slice %966 {offsets = [4, 0], sizes = [1, 200], strides = [1, 1]} : vector<8x200xf32> to vector<1x200xf32>
    %cst_217 = arith.constant dense<0.000000e+00> : vector<1x200xf32>
    %1050 = tpu.matmul %1048, %957, %cst_217 {dimension_numbers = #tpu.dot_dimension_numbers<[1], [0], [0], [1], [0, 0, 1, 1], [], []>} : vector<1x50xf32>, vector<50x200xf32>, vector<1x200xf32> -> vector<1x200xf32>
    %1051 = arith.addf %1049, %1050 : vector<1x200xf32>
    %1052 = math.tanh %1051 : vector<1x200xf32>
    %1053 = arith.negf %1051 : vector<1x200xf32>
    %1054 = math.exp %1053 : vector<1x200xf32>
    %cst_218 = arith.constant 1.000000e+00 : f32
    %1055 = vector.broadcast %cst_218 : f32 to vector<1x200xf32>
    %1056 = arith.addf %1055, %1054 : vector<1x200xf32>
    %1057 = arith.divf %1055, %1056 : vector<1x200xf32>
    %1058 = arith.select %972, %1052, %1057 : vector<1x200xi1>, vector<1x200xf32>
    %1059 = vector.extract_strided_slice %1058 {offsets = [0, 0], sizes = [1, 50], strides = [1, 1]} : vector<1x200xf32> to vector<1x50xf32>
    %1060 = vector.extract_strided_slice %1058 {offsets = [0, 50], sizes = [1, 50], strides = [1, 1]} : vector<1x200xf32> to vector<1x50xf32>
    %1061 = vector.extract_strided_slice %1058 {offsets = [0, 100], sizes = [1, 50], strides = [1, 1]} : vector<1x200xf32> to vector<1x50xf32>
    %1062 = vector.extract_strided_slice %1058 {offsets = [0, 150], sizes = [1, 50], strides = [1, 1]} : vector<1x200xf32> to vector<1x50xf32>
    %1063 = arith.mulf %1060, %1046 : vector<1x50xf32>
    %1064 = arith.mulf %1059, %1061 : vector<1x50xf32>
    %1065 = arith.addf %1063, %1064 : vector<1x50xf32>
    %1066 = math.tanh %1065 : vector<1x50xf32>
    %1067 = arith.mulf %1062, %1066 : vector<1x50xf32>
    %1068 = vector.extract_strided_slice %966 {offsets = [5, 0], sizes = [1, 200], strides = [1, 1]} : vector<8x200xf32> to vector<1x200xf32>
    %cst_219 = arith.constant dense<0.000000e+00> : vector<1x200xf32>
    %1069 = tpu.matmul %1067, %957, %cst_219 {dimension_numbers = #tpu.dot_dimension_numbers<[1], [0], [0], [1], [0, 0, 1, 1], [], []>} : vector<1x50xf32>, vector<50x200xf32>, vector<1x200xf32> -> vector<1x200xf32>
    %1070 = arith.addf %1068, %1069 : vector<1x200xf32>
    %1071 = math.tanh %1070 : vector<1x200xf32>
    %1072 = arith.negf %1070 : vector<1x200xf32>
    %1073 = math.exp %1072 : vector<1x200xf32>
    %cst_220 = arith.constant 1.000000e+00 : f32
    %1074 = vector.broadcast %cst_220 : f32 to vector<1x200xf32>
    %1075 = arith.addf %1074, %1073 : vector<1x200xf32>
    %1076 = arith.divf %1074, %1075 : vector<1x200xf32>
    %1077 = arith.select %972, %1071, %1076 : vector<1x200xi1>, vector<1x200xf32>
    %1078 = vector.extract_strided_slice %1077 {offsets = [0, 0], sizes = [1, 50], strides = [1, 1]} : vector<1x200xf32> to vector<1x50xf32>
    %1079 = vector.extract_strided_slice %1077 {offsets = [0, 50], sizes = [1, 50], strides = [1, 1]} : vector<1x200xf32> to vector<1x50xf32>
    %1080 = vector.extract_strided_slice %1077 {offsets = [0, 100], sizes = [1, 50], strides = [1, 1]} : vector<1x200xf32> to vector<1x50xf32>
    %1081 = vector.extract_strided_slice %1077 {offsets = [0, 150], sizes = [1, 50], strides = [1, 1]} : vector<1x200xf32> to vector<1x50xf32>
    %1082 = arith.mulf %1079, %1065 : vector<1x50xf32>
    %1083 = arith.mulf %1078, %1080 : vector<1x50xf32>
    %1084 = arith.addf %1082, %1083 : vector<1x50xf32>
    %1085 = math.tanh %1084 : vector<1x50xf32>
    %1086 = arith.mulf %1081, %1085 : vector<1x50xf32>
    %1087 = vector.extract_strided_slice %966 {offsets = [6, 0], sizes = [1, 200], strides = [1, 1]} : vector<8x200xf32> to vector<1x200xf32>
    %cst_221 = arith.constant dense<0.000000e+00> : vector<1x200xf32>
    %1088 = tpu.matmul %1086, %957, %cst_221 {dimension_numbers = #tpu.dot_dimension_numbers<[1], [0], [0], [1], [0, 0, 1, 1], [], []>} : vector<1x50xf32>, vector<50x200xf32>, vector<1x200xf32> -> vector<1x200xf32>
    %1089 = arith.addf %1087, %1088 : vector<1x200xf32>
    %1090 = math.tanh %1089 : vector<1x200xf32>
    %1091 = arith.negf %1089 : vector<1x200xf32>
    %1092 = math.exp %1091 : vector<1x200xf32>
    %cst_222 = arith.constant 1.000000e+00 : f32
    %1093 = vector.broadcast %cst_222 : f32 to vector<1x200xf32>
    %1094 = arith.addf %1093, %1092 : vector<1x200xf32>
    %1095 = arith.divf %1093, %1094 : vector<1x200xf32>
    %1096 = arith.select %972, %1090, %1095 : vector<1x200xi1>, vector<1x200xf32>
    %1097 = vector.extract_strided_slice %1096 {offsets = [0, 0], sizes = [1, 50], strides = [1, 1]} : vector<1x200xf32> to vector<1x50xf32>
    %1098 = vector.extract_strided_slice %1096 {offsets = [0, 50], sizes = [1, 50], strides = [1, 1]} : vector<1x200xf32> to vector<1x50xf32>
    %1099 = vector.extract_strided_slice %1096 {offsets = [0, 100], sizes = [1, 50], strides = [1, 1]} : vector<1x200xf32> to vector<1x50xf32>
    %1100 = vector.extract_strided_slice %1096 {offsets = [0, 150], sizes = [1, 50], strides = [1, 1]} : vector<1x200xf32> to vector<1x50xf32>
    %1101 = arith.mulf %1098, %1084 : vector<1x50xf32>
    %1102 = arith.mulf %1097, %1099 : vector<1x50xf32>
    %1103 = arith.addf %1101, %1102 : vector<1x50xf32>
    %1104 = math.tanh %1103 : vector<1x50xf32>
    %1105 = arith.mulf %1100, %1104 : vector<1x50xf32>
    %1106 = vector.extract_strided_slice %966 {offsets = [7, 0], sizes = [1, 200], strides = [1, 1]} : vector<8x200xf32> to vector<1x200xf32>
    %cst_223 = arith.constant dense<0.000000e+00> : vector<1x200xf32>
    %1107 = tpu.matmul %1105, %957, %cst_223 {dimension_numbers = #tpu.dot_dimension_numbers<[1], [0], [0], [1], [0, 0, 1, 1], [], []>} : vector<1x50xf32>, vector<50x200xf32>, vector<1x200xf32> -> vector<1x200xf32>
    %1108 = arith.addf %1106, %1107 : vector<1x200xf32>
    %1109 = math.tanh %1108 : vector<1x200xf32>
    %1110 = arith.negf %1108 : vector<1x200xf32>
    %1111 = math.exp %1110 : vector<1x200xf32>
    %cst_224 = arith.constant 1.000000e+00 : f32
    %1112 = vector.broadcast %cst_224 : f32 to vector<1x200xf32>
    %1113 = arith.addf %1112, %1111 : vector<1x200xf32>
    %1114 = arith.divf %1112, %1113 : vector<1x200xf32>
    %1115 = arith.select %972, %1109, %1114 : vector<1x200xi1>, vector<1x200xf32>
    %1116 = vector.extract_strided_slice %1115 {offsets = [0, 0], sizes = [1, 50], strides = [1, 1]} : vector<1x200xf32> to vector<1x50xf32>
    %1117 = vector.extract_strided_slice %1115 {offsets = [0, 50], sizes = [1, 50], strides = [1, 1]} : vector<1x200xf32> to vector<1x50xf32>
    %1118 = vector.extract_strided_slice %1115 {offsets = [0, 100], sizes = [1, 50], strides = [1, 1]} : vector<1x200xf32> to vector<1x50xf32>
    %1119 = vector.extract_strided_slice %1115 {offsets = [0, 150], sizes = [1, 50], strides = [1, 1]} : vector<1x200xf32> to vector<1x50xf32>
    %1120 = arith.mulf %1117, %1103 : vector<1x50xf32>
    %1121 = arith.mulf %1116, %1118 : vector<1x50xf32>
    %1122 = arith.addf %1120, %1121 : vector<1x50xf32>
    %1123 = math.tanh %1122 : vector<1x50xf32>
    %1124 = arith.mulf %1119, %1123 : vector<1x50xf32>
    %1125 = tpu.concatenate %991, %1010, %1029, %1048, %1067, %1086, %1105, %1124 in 0 : vector<1x50xf32>, vector<1x50xf32>, vector<1x50xf32>, vector<1x50xf32>, vector<1x50xf32>, vector<1x50xf32>, vector<1x50xf32>, vector<1x50xf32> -> vector<8x50xf32>
    %c1_225 = arith.constant 1 : index
    %c0_226 = arith.constant 0 : index
    %c0_227 = arith.constant 0 : index
    %1126 = vector.load %arg9[%c1_225, %c0_226, %c0_227] : memref<2x60x200xf32, #tpu.memory_space<vmem>>, vector<1x60x200xf32>
    %1127 = vector.shape_cast %1126 : vector<1x60x200xf32> to vector<60x200xf32>
    %c1_228 = arith.constant 1 : index
    %c0_229 = arith.constant 0 : index
    %c0_230 = arith.constant 0 : index
    %1128 = vector.load %arg10[%c1_228, %c0_229, %c0_230] : memref<2x50x200xf32, #tpu.memory_space<vmem>>, vector<1x50x200xf32>
    %1129 = vector.shape_cast %1128 : vector<1x50x200xf32> to vector<50x200xf32>
    %c1_231 = arith.constant 1 : index
    %c0_232 = arith.constant 0 : index
    %c0_233 = arith.constant 0 : index
    %1130 = vector.load %arg11[%c1_231, %c0_232, %c0_233] : memref<2x1x200xf32, #tpu.memory_space<vmem>>, vector<1x1x200xf32>
    %1131 = vector.shape_cast %1130 : vector<1x1x200xf32> to vector<1x200xf32>
    %c1_234 = arith.constant 1 : index
    %c0_235 = arith.constant 0 : index
    %c0_236 = arith.constant 0 : index
    %1132 = vector.load %arg12[%c1_234, %c0_235, %c0_236] : memref<2x1x50xf32, #tpu.memory_space<vmem>>, vector<1x1x50xf32>
    %1133 = vector.shape_cast %1132 : vector<1x1x50xf32> to vector<1x50xf32>
    %c1_237 = arith.constant 1 : index
    %c0_238 = arith.constant 0 : index
    %c0_239 = arith.constant 0 : index
    %1134 = vector.load %arg13[%c1_237, %c0_238, %c0_239] : memref<2x1x50xf32, #tpu.memory_space<vmem>>, vector<1x1x50xf32>
    %1135 = vector.shape_cast %1134 : vector<1x1x50xf32> to vector<1x50xf32>
    %cst_240 = arith.constant dense<0.000000e+00> : vector<8x200xf32>
    %1136 = tpu.matmul %953, %1127, %cst_240 {dimension_numbers = #tpu.dot_dimension_numbers<[1], [0], [0], [1], [0, 0, 1, 1], [], []>} : vector<8x60xf32>, vector<60x200xf32>, vector<8x200xf32> -> vector<8x200xf32>
    %1137 = vector.broadcast %1131 : vector<1x200xf32> to vector<8x200xf32>
    %1138 = arith.addf %1136, %1137 : vector<8x200xf32>
    %1139 = tpu.iota {dimensions = array<i32: 1>} : vector<1x200xi32>
    %c100_i32_241 = arith.constant 100 : i32
    %1140 = vector.broadcast %c100_i32_241 : i32 to vector<1x200xi32>
    %1141 = arith.cmpi sge, %1139, %1140 : vector<1x200xi32>
    %c150_i32_242 = arith.constant 150 : i32
    %1142 = vector.broadcast %c150_i32_242 : i32 to vector<1x200xi32>
    %1143 = arith.cmpi slt, %1139, %1142 : vector<1x200xi32>
    %1144 = arith.andi %1141, %1143 : vector<1x200xi1>
    %1145 = vector.extract_strided_slice %1138 {offsets = [7, 0], sizes = [1, 200], strides = [1, 1]} : vector<8x200xf32> to vector<1x200xf32>
    %cst_243 = arith.constant dense<0.000000e+00> : vector<1x200xf32>
    %1146 = tpu.matmul %1133, %1129, %cst_243 {dimension_numbers = #tpu.dot_dimension_numbers<[1], [0], [0], [1], [0, 0, 1, 1], [], []>} : vector<1x50xf32>, vector<50x200xf32>, vector<1x200xf32> -> vector<1x200xf32>
    %1147 = arith.addf %1145, %1146 : vector<1x200xf32>
    %1148 = math.tanh %1147 : vector<1x200xf32>
    %1149 = arith.negf %1147 : vector<1x200xf32>
    %1150 = math.exp %1149 : vector<1x200xf32>
    %cst_244 = arith.constant 1.000000e+00 : f32
    %1151 = vector.broadcast %cst_244 : f32 to vector<1x200xf32>
    %1152 = arith.addf %1151, %1150 : vector<1x200xf32>
    %1153 = arith.divf %1151, %1152 : vector<1x200xf32>
    %1154 = arith.select %1144, %1148, %1153 : vector<1x200xi1>, vector<1x200xf32>
    %1155 = vector.extract_strided_slice %1154 {offsets = [0, 0], sizes = [1, 50], strides = [1, 1]} : vector<1x200xf32> to vector<1x50xf32>
    %1156 = vector.extract_strided_slice %1154 {offsets = [0, 50], sizes = [1, 50], strides = [1, 1]} : vector<1x200xf32> to vector<1x50xf32>
    %1157 = vector.extract_strided_slice %1154 {offsets = [0, 100], sizes = [1, 50], strides = [1, 1]} : vector<1x200xf32> to vector<1x50xf32>
    %1158 = vector.extract_strided_slice %1154 {offsets = [0, 150], sizes = [1, 50], strides = [1, 1]} : vector<1x200xf32> to vector<1x50xf32>
    %1159 = arith.mulf %1156, %1135 : vector<1x50xf32>
    %1160 = arith.mulf %1155, %1157 : vector<1x50xf32>
    %1161 = arith.addf %1159, %1160 : vector<1x50xf32>
    %1162 = math.tanh %1161 : vector<1x50xf32>
    %1163 = arith.mulf %1158, %1162 : vector<1x50xf32>
    %1164 = vector.extract_strided_slice %1138 {offsets = [6, 0], sizes = [1, 200], strides = [1, 1]} : vector<8x200xf32> to vector<1x200xf32>
    %cst_245 = arith.constant dense<0.000000e+00> : vector<1x200xf32>
    %1165 = tpu.matmul %1163, %1129, %cst_245 {dimension_numbers = #tpu.dot_dimension_numbers<[1], [0], [0], [1], [0, 0, 1, 1], [], []>} : vector<1x50xf32>, vector<50x200xf32>, vector<1x200xf32> -> vector<1x200xf32>
    %1166 = arith.addf %1164, %1165 : vector<1x200xf32>
    %1167 = math.tanh %1166 : vector<1x200xf32>
    %1168 = arith.negf %1166 : vector<1x200xf32>
    %1169 = math.exp %1168 : vector<1x200xf32>
    %cst_246 = arith.constant 1.000000e+00 : f32
    %1170 = vector.broadcast %cst_246 : f32 to vector<1x200xf32>
    %1171 = arith.addf %1170, %1169 : vector<1x200xf32>
    %1172 = arith.divf %1170, %1171 : vector<1x200xf32>
    %1173 = arith.select %1144, %1167, %1172 : vector<1x200xi1>, vector<1x200xf32>
    %1174 = vector.extract_strided_slice %1173 {offsets = [0, 0], sizes = [1, 50], strides = [1, 1]} : vector<1x200xf32> to vector<1x50xf32>
    %1175 = vector.extract_strided_slice %1173 {offsets = [0, 50], sizes = [1, 50], strides = [1, 1]} : vector<1x200xf32> to vector<1x50xf32>
    %1176 = vector.extract_strided_slice %1173 {offsets = [0, 100], sizes = [1, 50], strides = [1, 1]} : vector<1x200xf32> to vector<1x50xf32>
    %1177 = vector.extract_strided_slice %1173 {offsets = [0, 150], sizes = [1, 50], strides = [1, 1]} : vector<1x200xf32> to vector<1x50xf32>
    %1178 = arith.mulf %1175, %1161 : vector<1x50xf32>
    %1179 = arith.mulf %1174, %1176 : vector<1x50xf32>
    %1180 = arith.addf %1178, %1179 : vector<1x50xf32>
    %1181 = math.tanh %1180 : vector<1x50xf32>
    %1182 = arith.mulf %1177, %1181 : vector<1x50xf32>
    %1183 = vector.extract_strided_slice %1138 {offsets = [5, 0], sizes = [1, 200], strides = [1, 1]} : vector<8x200xf32> to vector<1x200xf32>
    %cst_247 = arith.constant dense<0.000000e+00> : vector<1x200xf32>
    %1184 = tpu.matmul %1182, %1129, %cst_247 {dimension_numbers = #tpu.dot_dimension_numbers<[1], [0], [0], [1], [0, 0, 1, 1], [], []>} : vector<1x50xf32>, vector<50x200xf32>, vector<1x200xf32> -> vector<1x200xf32>
    %1185 = arith.addf %1183, %1184 : vector<1x200xf32>
    %1186 = math.tanh %1185 : vector<1x200xf32>
    %1187 = arith.negf %1185 : vector<1x200xf32>
    %1188 = math.exp %1187 : vector<1x200xf32>
    %cst_248 = arith.constant 1.000000e+00 : f32
    %1189 = vector.broadcast %cst_248 : f32 to vector<1x200xf32>
    %1190 = arith.addf %1189, %1188 : vector<1x200xf32>
    %1191 = arith.divf %1189, %1190 : vector<1x200xf32>
    %1192 = arith.select %1144, %1186, %1191 : vector<1x200xi1>, vector<1x200xf32>
    %1193 = vector.extract_strided_slice %1192 {offsets = [0, 0], sizes = [1, 50], strides = [1, 1]} : vector<1x200xf32> to vector<1x50xf32>
    %1194 = vector.extract_strided_slice %1192 {offsets = [0, 50], sizes = [1, 50], strides = [1, 1]} : vector<1x200xf32> to vector<1x50xf32>
    %1195 = vector.extract_strided_slice %1192 {offsets = [0, 100], sizes = [1, 50], strides = [1, 1]} : vector<1x200xf32> to vector<1x50xf32>
    %1196 = vector.extract_strided_slice %1192 {offsets = [0, 150], sizes = [1, 50], strides = [1, 1]} : vector<1x200xf32> to vector<1x50xf32>
    %1197 = arith.mulf %1194, %1180 : vector<1x50xf32>
    %1198 = arith.mulf %1193, %1195 : vector<1x50xf32>
    %1199 = arith.addf %1197, %1198 : vector<1x50xf32>
    %1200 = math.tanh %1199 : vector<1x50xf32>
    %1201 = arith.mulf %1196, %1200 : vector<1x50xf32>
    %1202 = vector.extract_strided_slice %1138 {offsets = [4, 0], sizes = [1, 200], strides = [1, 1]} : vector<8x200xf32> to vector<1x200xf32>
    %cst_249 = arith.constant dense<0.000000e+00> : vector<1x200xf32>
    %1203 = tpu.matmul %1201, %1129, %cst_249 {dimension_numbers = #tpu.dot_dimension_numbers<[1], [0], [0], [1], [0, 0, 1, 1], [], []>} : vector<1x50xf32>, vector<50x200xf32>, vector<1x200xf32> -> vector<1x200xf32>
    %1204 = arith.addf %1202, %1203 : vector<1x200xf32>
    %1205 = math.tanh %1204 : vector<1x200xf32>
    %1206 = arith.negf %1204 : vector<1x200xf32>
    %1207 = math.exp %1206 : vector<1x200xf32>
    %cst_250 = arith.constant 1.000000e+00 : f32
    %1208 = vector.broadcast %cst_250 : f32 to vector<1x200xf32>
    %1209 = arith.addf %1208, %1207 : vector<1x200xf32>
    %1210 = arith.divf %1208, %1209 : vector<1x200xf32>
    %1211 = arith.select %1144, %1205, %1210 : vector<1x200xi1>, vector<1x200xf32>
    %1212 = vector.extract_strided_slice %1211 {offsets = [0, 0], sizes = [1, 50], strides = [1, 1]} : vector<1x200xf32> to vector<1x50xf32>
    %1213 = vector.extract_strided_slice %1211 {offsets = [0, 50], sizes = [1, 50], strides = [1, 1]} : vector<1x200xf32> to vector<1x50xf32>
    %1214 = vector.extract_strided_slice %1211 {offsets = [0, 100], sizes = [1, 50], strides = [1, 1]} : vector<1x200xf32> to vector<1x50xf32>
    %1215 = vector.extract_strided_slice %1211 {offsets = [0, 150], sizes = [1, 50], strides = [1, 1]} : vector<1x200xf32> to vector<1x50xf32>
    %1216 = arith.mulf %1213, %1199 : vector<1x50xf32>
    %1217 = arith.mulf %1212, %1214 : vector<1x50xf32>
    %1218 = arith.addf %1216, %1217 : vector<1x50xf32>
    %1219 = math.tanh %1218 : vector<1x50xf32>
    %1220 = arith.mulf %1215, %1219 : vector<1x50xf32>
    %1221 = vector.extract_strided_slice %1138 {offsets = [3, 0], sizes = [1, 200], strides = [1, 1]} : vector<8x200xf32> to vector<1x200xf32>
    %cst_251 = arith.constant dense<0.000000e+00> : vector<1x200xf32>
    %1222 = tpu.matmul %1220, %1129, %cst_251 {dimension_numbers = #tpu.dot_dimension_numbers<[1], [0], [0], [1], [0, 0, 1, 1], [], []>} : vector<1x50xf32>, vector<50x200xf32>, vector<1x200xf32> -> vector<1x200xf32>
    %1223 = arith.addf %1221, %1222 : vector<1x200xf32>
    %1224 = math.tanh %1223 : vector<1x200xf32>
    %1225 = arith.negf %1223 : vector<1x200xf32>
    %1226 = math.exp %1225 : vector<1x200xf32>
    %cst_252 = arith.constant 1.000000e+00 : f32
    %1227 = vector.broadcast %cst_252 : f32 to vector<1x200xf32>
    %1228 = arith.addf %1227, %1226 : vector<1x200xf32>
    %1229 = arith.divf %1227, %1228 : vector<1x200xf32>
    %1230 = arith.select %1144, %1224, %1229 : vector<1x200xi1>, vector<1x200xf32>
    %1231 = vector.extract_strided_slice %1230 {offsets = [0, 0], sizes = [1, 50], strides = [1, 1]} : vector<1x200xf32> to vector<1x50xf32>
    %1232 = vector.extract_strided_slice %1230 {offsets = [0, 50], sizes = [1, 50], strides = [1, 1]} : vector<1x200xf32> to vector<1x50xf32>
    %1233 = vector.extract_strided_slice %1230 {offsets = [0, 100], sizes = [1, 50], strides = [1, 1]} : vector<1x200xf32> to vector<1x50xf32>
    %1234 = vector.extract_strided_slice %1230 {offsets = [0, 150], sizes = [1, 50], strides = [1, 1]} : vector<1x200xf32> to vector<1x50xf32>
    %1235 = arith.mulf %1232, %1218 : vector<1x50xf32>
    %1236 = arith.mulf %1231, %1233 : vector<1x50xf32>
    %1237 = arith.addf %1235, %1236 : vector<1x50xf32>
    %1238 = math.tanh %1237 : vector<1x50xf32>
    %1239 = arith.mulf %1234, %1238 : vector<1x50xf32>
    %1240 = vector.extract_strided_slice %1138 {offsets = [2, 0], sizes = [1, 200], strides = [1, 1]} : vector<8x200xf32> to vector<1x200xf32>
    %cst_253 = arith.constant dense<0.000000e+00> : vector<1x200xf32>
    %1241 = tpu.matmul %1239, %1129, %cst_253 {dimension_numbers = #tpu.dot_dimension_numbers<[1], [0], [0], [1], [0, 0, 1, 1], [], []>} : vector<1x50xf32>, vector<50x200xf32>, vector<1x200xf32> -> vector<1x200xf32>
    %1242 = arith.addf %1240, %1241 : vector<1x200xf32>
    %1243 = math.tanh %1242 : vector<1x200xf32>
    %1244 = arith.negf %1242 : vector<1x200xf32>
    %1245 = math.exp %1244 : vector<1x200xf32>
    %cst_254 = arith.constant 1.000000e+00 : f32
    %1246 = vector.broadcast %cst_254 : f32 to vector<1x200xf32>
    %1247 = arith.addf %1246, %1245 : vector<1x200xf32>
    %1248 = arith.divf %1246, %1247 : vector<1x200xf32>
    %1249 = arith.select %1144, %1243, %1248 : vector<1x200xi1>, vector<1x200xf32>
    %1250 = vector.extract_strided_slice %1249 {offsets = [0, 0], sizes = [1, 50], strides = [1, 1]} : vector<1x200xf32> to vector<1x50xf32>
    %1251 = vector.extract_strided_slice %1249 {offsets = [0, 50], sizes = [1, 50], strides = [1, 1]} : vector<1x200xf32> to vector<1x50xf32>
    %1252 = vector.extract_strided_slice %1249 {offsets = [0, 100], sizes = [1, 50], strides = [1, 1]} : vector<1x200xf32> to vector<1x50xf32>
    %1253 = vector.extract_strided_slice %1249 {offsets = [0, 150], sizes = [1, 50], strides = [1, 1]} : vector<1x200xf32> to vector<1x50xf32>
    %1254 = arith.mulf %1251, %1237 : vector<1x50xf32>
    %1255 = arith.mulf %1250, %1252 : vector<1x50xf32>
    %1256 = arith.addf %1254, %1255 : vector<1x50xf32>
    %1257 = math.tanh %1256 : vector<1x50xf32>
    %1258 = arith.mulf %1253, %1257 : vector<1x50xf32>
    %1259 = vector.extract_strided_slice %1138 {offsets = [1, 0], sizes = [1, 200], strides = [1, 1]} : vector<8x200xf32> to vector<1x200xf32>
    %cst_255 = arith.constant dense<0.000000e+00> : vector<1x200xf32>
    %1260 = tpu.matmul %1258, %1129, %cst_255 {dimension_numbers = #tpu.dot_dimension_numbers<[1], [0], [0], [1], [0, 0, 1, 1], [], []>} : vector<1x50xf32>, vector<50x200xf32>, vector<1x200xf32> -> vector<1x200xf32>
    %1261 = arith.addf %1259, %1260 : vector<1x200xf32>
    %1262 = math.tanh %1261 : vector<1x200xf32>
    %1263 = arith.negf %1261 : vector<1x200xf32>
    %1264 = math.exp %1263 : vector<1x200xf32>
    %cst_256 = arith.constant 1.000000e+00 : f32
    %1265 = vector.broadcast %cst_256 : f32 to vector<1x200xf32>
    %1266 = arith.addf %1265, %1264 : vector<1x200xf32>
    %1267 = arith.divf %1265, %1266 : vector<1x200xf32>
    %1268 = arith.select %1144, %1262, %1267 : vector<1x200xi1>, vector<1x200xf32>
    %1269 = vector.extract_strided_slice %1268 {offsets = [0, 0], sizes = [1, 50], strides = [1, 1]} : vector<1x200xf32> to vector<1x50xf32>
    %1270 = vector.extract_strided_slice %1268 {offsets = [0, 50], sizes = [1, 50], strides = [1, 1]} : vector<1x200xf32> to vector<1x50xf32>
    %1271 = vector.extract_strided_slice %1268 {offsets = [0, 100], sizes = [1, 50], strides = [1, 1]} : vector<1x200xf32> to vector<1x50xf32>
    %1272 = vector.extract_strided_slice %1268 {offsets = [0, 150], sizes = [1, 50], strides = [1, 1]} : vector<1x200xf32> to vector<1x50xf32>
    %1273 = arith.mulf %1270, %1256 : vector<1x50xf32>
    %1274 = arith.mulf %1269, %1271 : vector<1x50xf32>
    %1275 = arith.addf %1273, %1274 : vector<1x50xf32>
    %1276 = math.tanh %1275 : vector<1x50xf32>
    %1277 = arith.mulf %1272, %1276 : vector<1x50xf32>
    %1278 = vector.extract_strided_slice %1138 {offsets = [0, 0], sizes = [1, 200], strides = [1, 1]} : vector<8x200xf32> to vector<1x200xf32>
    %cst_257 = arith.constant dense<0.000000e+00> : vector<1x200xf32>
    %1279 = tpu.matmul %1277, %1129, %cst_257 {dimension_numbers = #tpu.dot_dimension_numbers<[1], [0], [0], [1], [0, 0, 1, 1], [], []>} : vector<1x50xf32>, vector<50x200xf32>, vector<1x200xf32> -> vector<1x200xf32>
    %1280 = arith.addf %1278, %1279 : vector<1x200xf32>
    %1281 = math.tanh %1280 : vector<1x200xf32>
    %1282 = arith.negf %1280 : vector<1x200xf32>
    %1283 = math.exp %1282 : vector<1x200xf32>
    %cst_258 = arith.constant 1.000000e+00 : f32
    %1284 = vector.broadcast %cst_258 : f32 to vector<1x200xf32>
    %1285 = arith.addf %1284, %1283 : vector<1x200xf32>
    %1286 = arith.divf %1284, %1285 : vector<1x200xf32>
    %1287 = arith.select %1144, %1281, %1286 : vector<1x200xi1>, vector<1x200xf32>
    %1288 = vector.extract_strided_slice %1287 {offsets = [0, 0], sizes = [1, 50], strides = [1, 1]} : vector<1x200xf32> to vector<1x50xf32>
    %1289 = vector.extract_strided_slice %1287 {offsets = [0, 50], sizes = [1, 50], strides = [1, 1]} : vector<1x200xf32> to vector<1x50xf32>
    %1290 = vector.extract_strided_slice %1287 {offsets = [0, 100], sizes = [1, 50], strides = [1, 1]} : vector<1x200xf32> to vector<1x50xf32>
    %1291 = vector.extract_strided_slice %1287 {offsets = [0, 150], sizes = [1, 50], strides = [1, 1]} : vector<1x200xf32> to vector<1x50xf32>
    %1292 = arith.mulf %1289, %1275 : vector<1x50xf32>
    %1293 = arith.mulf %1288, %1290 : vector<1x50xf32>
    %1294 = arith.addf %1292, %1293 : vector<1x50xf32>
    %1295 = math.tanh %1294 : vector<1x50xf32>
    %1296 = arith.mulf %1291, %1295 : vector<1x50xf32>
    %1297 = tpu.concatenate %1163, %1182, %1201, %1220, %1239, %1258, %1277, %1296 in 0 : vector<1x50xf32>, vector<1x50xf32>, vector<1x50xf32>, vector<1x50xf32>, vector<1x50xf32>, vector<1x50xf32>, vector<1x50xf32>, vector<1x50xf32> -> vector<8x50xf32>
    %1298 = tpu.concatenate %1125, %1297 in 1 : vector<8x50xf32>, vector<8x50xf32> -> vector<8x100xf32>
    %c0_259 = arith.constant 0 : index
    %c0_260 = arith.constant 0 : index
    %1299 = vector.load %arg14[%c0_259, %c0_260] : memref<100x5xf32, #tpu.memory_space<vmem>>, vector<100x5xf32>
    %cst_261 = arith.constant dense<0.000000e+00> : vector<8x5xf32>
    %1300 = tpu.matmul %1298, %1299, %cst_261 {dimension_numbers = #tpu.dot_dimension_numbers<[1], [0], [0], [1], [0, 0, 1, 1], [], []>} : vector<8x100xf32>, vector<100x5xf32>, vector<8x5xf32> -> vector<8x5xf32>
    %c0_262 = arith.constant 0 : index
    %c0_263 = arith.constant 0 : index
    %1301 = vector.load %arg15[%c0_262, %c0_263] : memref<1x5xf32, #tpu.memory_space<vmem>>, vector<1x5xf32>
    %1302 = vector.broadcast %1301 : vector<1x5xf32> to vector<8x5xf32>
    %1303 = arith.addf %1300, %1302 : vector<8x5xf32>
    %c0_264 = arith.constant 0 : index
    %c0_265 = arith.constant 0 : index
    %1304 = vector.load %arg16[%c0_264, %c0_265] : memref<8x5xf32, #tpu.memory_space<vmem>>, vector<8x5xf32>
    tpu.vector_store %arg16[%c0_264, %c0_265], %1303 {strides = array<i32>} : memref<8x5xf32, #tpu.memory_space<vmem>>, vector<8x5xf32>,
    return
  }
}

</mosaic_0001>

<llo_original>
// kernel: tpu_custom_call.1
$region0: #{tpu_custom_call.1}
  #allocation0 [shape = 'u32[]', space=smem, size = 0x4, offset = 0x4, fixed_abs, tag = 'smem constant byte address 0x4 - core index']
  #allocation1 [shape = 'u32[144,128]{1,0:T(1,128)}', space=vmem, size = 0x12000, scoped, tag = 'internal scratch']
  %s0 = inlined_call_operand.vmem [shape: f32[30,8,200], index: 0, kind: input, shape index: {}]
  %s1 = inlined_call_operand.vmem [shape: f32[50,200], index: 1, kind: input, shape index: {}]
  %s2 = inlined_call_operand.vmem [shape: f32[8,50], index: 2, kind: input, shape index: {}]
  %s3 = inlined_call_operand.vmem [shape: f32[8,50], index: 3, kind: input, shape index: {}]
  %s4 = inlined_call_operand.vmem [shape: f32[2,50,120], index: 4, kind: input, shape index: {}]
  %s5 = inlined_call_operand.vmem [shape: f32[2,30,120], index: 5, kind: input, shape index: {}]
  %s6 = inlined_call_operand.vmem [shape: f32[2,1,120], index: 6, kind: input, shape index: {}]
  %s7 = inlined_call_operand.vmem [shape: f32[2,1,30], index: 7, kind: input, shape index: {}]
  %s8 = inlined_call_operand.vmem [shape: f32[2,1,30], index: 8, kind: input, shape index: {}]
  %s9 = inlined_call_operand.vmem [shape: f32[2,60,200], index: 9, kind: input, shape index: {}]
  %s10 = inlined_call_operand.vmem [shape: f32[2,50,200], index: 10, kind: input, shape index: {}]
  %s11 = inlined_call_operand.vmem [shape: f32[2,1,200], index: 11, kind: input, shape index: {}]
  %s12 = inlined_call_operand.vmem [shape: f32[2,1,50], index: 12, kind: input, shape index: {}]
  %s13 = inlined_call_operand.vmem [shape: f32[2,1,50], index: 13, kind: input, shape index: {}]
  %s14 = inlined_call_operand.vmem [shape: f32[100,5], index: 14, kind: input, shape index: {}]
  %s15 = inlined_call_operand.vmem [shape: f32[1,5], index: 15, kind: input, shape index: {}]
  %s16 = inlined_call_operand.hbm [shape: f32[8,5], index: 16, kind: output, shape index: {}]
  %s17 = sld [smem:[#allocation0]]
  $region74: #{tpu_custom_call.1} parent=0
    _
  %s19 = ssub.s32 1, %s17
  %s20 = scalar_select 0, %s19, %s17
  $region1: #{tpu_custom_call.1} parent=0
    #allocation2 [shape = 'u8[4096]{0}', space=vmem, size = 0x1000, scoped, tag = 'output window, operand 0, single buffered']
    #allocation3 [shape = 's32[1]{0}', space=sflag, size = 0x4, scoped, tag = 'scoped memory for tpu_custom_call.1']
    %21 = vsyncpa [#allocation3], 0
    // Predicated region
    $region2: #{tpu_custom_call.1} parent=1 // pred_check
      _
    $region3: #{tpu_custom_call.1} parent=1 // pred_check_branch
      %23 = sbr.rel (0) target = $region5
    $region4: #{tpu_custom_call.1} parent=1 // pred_region
      _
    $region5: #{tpu_custom_call.1} parent=1 // pred_fallthru
      _
    // Predicated region
    $region6: #{tpu_custom_call.1} parent=1 // pred_check
      _
    $region7: #{tpu_custom_call.1} parent=1 // pred_check_branch
      %25 = sbr.rel (0) target = $region9
    $region8: #{tpu_custom_call.1} parent=1 // pred_region
      _
    $region9: #{tpu_custom_call.1} parent=1 // pred_fallthru
      _
    // Predicated region
    $region10: #{tpu_custom_call.1} parent=1 // pred_check
      _
    $region11: #{tpu_custom_call.1} parent=1 // pred_check_branch
      %27 = sbr.rel (0) target = $region13
    $region12: #{tpu_custom_call.1} parent=1 // pred_region
      _
    $region13: #{tpu_custom_call.1} parent=1 // pred_fallthru
      _
    // Predicated region
    $region14: #{tpu_custom_call.1} parent=1 // pred_check
      _
    $region15: #{tpu_custom_call.1} parent=1 // pred_check_branch
      %29 = sbr.rel (0) target = $region17
    $region16: #{tpu_custom_call.1} parent=1 // pred_region
      _
    $region17: #{tpu_custom_call.1} parent=1 // pred_fallthru
      _
    // Predicated region
    $region18: #{tpu_custom_call.1} parent=1 // pred_check
      _
    $region19: #{tpu_custom_call.1} parent=1 // pred_check_branch
      %31 = sbr.rel (0) target = $region21
    $region20: #{tpu_custom_call.1} parent=1 // pred_region
      _
    $region21: #{tpu_custom_call.1} parent=1 // pred_fallthru
      _
    // Predicated region
    $region22: #{tpu_custom_call.1} parent=1 // pred_check
      _
    $region23: #{tpu_custom_call.1} parent=1 // pred_check_branch
      %33 = sbr.rel (0) target = $region25
    $region24: #{tpu_custom_call.1} parent=1 // pred_region
      _
    $region25: #{tpu_custom_call.1} parent=1 // pred_fallthru
      _
    // Predicated region
    $region26: #{tpu_custom_call.1} parent=1 // pred_check
      _
    $region27: #{tpu_custom_call.1} parent=1 // pred_check_branch
      %35 = sbr.rel (0) target = $region29
    $region28: #{tpu_custom_call.1} parent=1 // pred_region
      _
    $region29: #{tpu_custom_call.1} parent=1 // pred_fallthru
      _
    // Predicated region
    $region30: #{tpu_custom_call.1} parent=1 // pred_check
      _
    $region31: #{tpu_custom_call.1} parent=1 // pred_check_branch
      %37 = sbr.rel (0) target = $region33
    $region32: #{tpu_custom_call.1} parent=1 // pred_region
      _
    $region33: #{tpu_custom_call.1} parent=1 // pred_fallthru
      _
    // Predicated region
    $region34: #{tpu_custom_call.1} parent=1 // pred_check
      _
    $region35: #{tpu_custom_call.1} parent=1 // pred_check_branch
      %39 = sbr.rel (0) target = $region37
    $region36: #{tpu_custom_call.1} parent=1 // pred_region
      _
    $region37: #{tpu_custom_call.1} parent=1 // pred_fallthru
      _
    // Predicated region
    $region38: #{tpu_custom_call.1} parent=1 // pred_check
      _
    $region39: #{tpu_custom_call.1} parent=1 // pred_check_branch
      %41 = sbr.rel (0) target = $region41
    $region40: #{tpu_custom_call.1} parent=1 // pred_region
      _
    $region41: #{tpu_custom_call.1} parent=1 // pred_fallthru
      _
    // Predicated region
    $region42: #{tpu_custom_call.1} parent=1 // pred_check
      _
    $region43: #{tpu_custom_call.1} parent=1 // pred_check_branch
      %43 = sbr.rel (0) target = $region45
    $region44: #{tpu_custom_call.1} parent=1 // pred_region
      _
    $region45: #{tpu_custom_call.1} parent=1 // pred_fallthru
      _
    // Predicated region
    $region46: #{tpu_custom_call.1} parent=1 // pred_check
      _
    $region47: #{tpu_custom_call.1} parent=1 // pred_check_branch
      %45 = sbr.rel (0) target = $region49
    $region48: #{tpu_custom_call.1} parent=1 // pred_region
      _
    $region49: #{tpu_custom_call.1} parent=1 // pred_fallthru
      _
    // Predicated region
    $region50: #{tpu_custom_call.1} parent=1 // pred_check
      _
    $region51: #{tpu_custom_call.1} parent=1 // pred_check_branch
      %47 = sbr.rel (0) target = $region53
    $region52: #{tpu_custom_call.1} parent=1 // pred_region
      _
    $region53: #{tpu_custom_call.1} parent=1 // pred_fallthru
      _
    // Predicated region
    $region54: #{tpu_custom_call.1} parent=1 // pred_check
      _
    $region55: #{tpu_custom_call.1} parent=1 // pred_check_branch
      %49 = sbr.rel (0) target = $region57
    $region56: #{tpu_custom_call.1} parent=1 // pred_region
      _
    $region57: #{tpu_custom_call.1} parent=1 // pred_fallthru
      _
    // Predicated region
    $region58: #{tpu_custom_call.1} parent=1 // pred_check
      _
    $region59: #{tpu_custom_call.1} parent=1 // pred_check_branch
      %51 = sbr.rel (0) target = $region61
    $region60: #{tpu_custom_call.1} parent=1 // pred_region
      _
    $region61: #{tpu_custom_call.1} parent=1 // pred_fallthru
      _
    // Predicated region
    $region62: #{tpu_custom_call.1} parent=1 // pred_check
      _
    $region63: #{tpu_custom_call.1} parent=1 // pred_check_branch
      %53 = sbr.rel (0) target = $region65
    $region64: #{tpu_custom_call.1} parent=1 // pred_region
      _
    $region65: #{tpu_custom_call.1} parent=1 // pred_fallthru
      _
    %v54 = vld [vmem:[%s1] sm:$0xff]
    %v55 = vld [vmem:[%s1 + $0x8] sm:$0xff]
    %v56 = vld [vmem:[%s1 + $0x10] sm:$0xff]
    %v57 = vld [vmem:[%s1 + $0x18] sm:$0xff]
    %v58 = vld [vmem:[%s1 + $0x20] sm:$0xff]
    %v59 = vld [vmem:[%s1 + $0x28] sm:$0xff]
    %v60 = vld [vmem:[%s1 + $0x30] sm:$0xff]
    %v61 = vld [vmem:[%s1 + $0x38] sm:$0xff]
    %v62 = vld [vmem:[%s1 + $0x40] sm:$0xff]
    %v63 = vld [vmem:[%s1 + $0x48] sm:$0xff]
    %v64 = vld [vmem:[%s1 + $0x50] sm:$0xff]
    %v65 = vld [vmem:[%s1 + $0x58] sm:$0xff]
    %v66 = vld [vmem:[%s1 + $0x60] sm:$0x3]
    %v67 = vld [vmem:[%s1 + $0x68] sm:$0x3]
    %v68 = vld [vmem:[%s2] sm:$0xff]
    %v69 = vld [vmem:[%s3] sm:$0xff]
    %v70 = vlaneseq
    %v71 = vand.u32 %v70, 127
    %v72 = vadd.s32 %v71, 128
    %vm73 = vcmp.ge.s32.totalorder %v71, 100
    %vm74 = vcmp.ge.s32.totalorder %v72, 100
    %vm75 = vcmp.lt.s32.totalorder %v71, 150
    %vm76 = vcmp.lt.s32.totalorder %v72, 150
    %vm77 = vmand %vm73, %vm75
    %vm78 = vmand %vm74, %vm76
    %v79 = vld [vmem:[%s0] sm:$0xff]
    %v80 = vld [vmem:[%s0 + $0x8] sm:$0xff]
    %vm81 = vcmask 408576
    %v83 = vsel %vm81, %v68, 0
    %vm85 = vcmask 1041408
    %v87 = vsel %vm85, %v66, 0
    %v90 = vsel %vm85, %v67, 0
    %92 = vmatprep.subr.mxu0 0.0
    %93 = vmatpush1.msra.mxu0 0.0
    %94 = vmatprep.subr.mxu0 0.0
    %95 = vmatpush1.msra.mxu0 0.0
    %96 = vmatprep.subr.mxu0 0.0
    %97 = vmatpush1.msra.mxu0 0.0
    %98 = vmatprep.subr.mxu0 0.0
    %99 = vmatpush1.msra.mxu0 0.0
    %100 = vmatprep.subr.mxu0 0.0
    %101 = vmatpush1.msra.mxu0 0.0
    %102 = vmatprep.subr.mxu0 0.0
    %103 = vmatpush1.msra.mxu0 0.0
    %104 = vmatprep.subr.mxu0 0.0
    %105 = vmatpush1.msra.mxu0 0.0
    %106 = vmatprep.subr.mxu0 0.0
    %107 = vmatpush1.msra.mxu0 0.0
    %108 = vmatprep.subr.mxu0 0.0
    %109 = vmatpush1.msra.mxu0 0.0
    %110 = vmatprep.subr.mxu0 %v90
    %111 = vmatpush1.msra.mxu0 %v87
    %112 = vmatprep.subr.mxu0 %v65
    %113 = vmatpush1.msra.mxu0 %v64
    %114 = vmatprep.subr.mxu0 %v63
    %115 = vmatpush1.msra.mxu0 %v62
    %116 = vmatprep.subr.mxu0 %v61
    %117 = vmatpush1.msra.mxu0 %v60
    %118 = vmatprep.subr.mxu0 %v59
    %119 = vmatpush1.msra.mxu0 %v58
    %120 = vmatprep.subr.mxu0 %v57
    %121 = vmatpush1.msra.mxu0 %v56
    %122 = vmatprep.subr.mxu0 %v55
    %123 = vmatpush1.msra.mxu0 %v54
    %124 = vmatprep.subr.mxu0 0.0
    %125 = vmatpush2.msra.mxu0 0.0
    %126 = vmatprep.subr.mxu0 0.0
    %127 = vmatpush2.msra.mxu0 0.0
    %128 = vmatprep.subr.mxu0 0.0
    %129 = vmatpush2.msra.mxu0 0.0
    %130 = vmatprep.subr.mxu0 0.0
    %131 = vmatpush2.msra.mxu0 0.0
    %132 = vmatprep.subr.mxu0 0.0
    %133 = vmatpush2.msra.mxu0 0.0
    %134 = vmatprep.subr.mxu0 0.0
    %135 = vmatpush2.msra.mxu0 0.0
    %136 = vmatprep.subr.mxu0 0.0
    %137 = vmatpush2.msra.mxu0 0.0
    %138 = vmatprep.subr.mxu0 0.0
    %139 = vmatpush2.msra.mxu0 0.0
    %140 = vmatprep.subr.mxu0 0.0
    %141 = vmatpush2.msra.mxu0 0.0
    %142 = vmatprep.subr.mxu0 0.0
    %143 = vmatpush2.msra.mxu0 0.0
    %144 = vmatprep.subr.mxu0 0.0
    %145 = vmatpush2.msra.mxu0 0.0
    %146 = vmatprep.subr.mxu0 0.0
    %147 = vmatpush2.msra.mxu0 0.0
    %148 = vmatprep.subr.mxu0 0.0
    %149 = vmatpush2.msra.mxu0 0.0
    %150 = vmatprep.subr.mxu0 0.0
    %151 = vmatpush2.msra.mxu0 0.0
    %152 = vmatprep.subr.mxu0 0.0
    %153 = vmatpush2.msra.mxu0 0.0
    %154 = vmatprep.subr.mxu0 0.0
    %155 = vmatpush2.msra.mxu0 0.0
    %156 = vmatprep.mubr.f32.mxu0 0.0
    %157 = vmatmul.mubr.f32.gmra.mxu0 %v83
    %v158 = vpop.f32.mrf.mxu0
    %v159 = vadd.f32 0.0, %v158
    %v160 = vpop.f32.mrf.mxu0
    %v161 = vadd.f32 0.0, %v160
    %162 = vdwg.mxu0
    %v163 = vadd.f32 %v79, %v159
    %v164 = vadd.f32 %v80, %v161
    %v165 = vtanh.pop %v163
    %v166 = vtanh.pop %v164
    %v167 = vxor.u32 %v163, 2147483648
    %v168 = vxor.u32 %v164, 2147483648
    %v169 = vmul.f32 %v167, 1.442695
    %v170 = vpow.pop %v169
    %v171 = vmul.f32 %v168, 1.442695
    %v172 = vpow.pop %v171
    %v173 = vadd.f32 %v170, 1.0
    %v174 = vadd.f32 %v172, 1.0
    %v175 = vrcp.pop %v173
    %v176 = vmul.f32 1.0, %v175
    %v177 = vrcp.pop %v174
    %v178 = vmul.f32 1.0, %v177
    %v179 = vsel %vm77, %v165, %v176
    %v180 = vsel %vm78, %v166, %v178
    %182 = vrot.lane.b32.xlu0 %v69, 50
    %v183 = vpop.permute.xlu0 %182
    %v185 = vmul.f32 %v179, %v183
    %188 = vrot.lane.b32.xlu0 %v179, 28
    %v189 = vpop.permute.xlu0 %188
    %190 = vrot.lane.b32.xlu0 %v180, 28
    %v191 = vpop.permute.xlu0 %190
    %vm192 = vcmask 228352
    %v193 = vsel %vm192, %v189, %v191
    %v195 = vmul.f32 %v179, %v193
    %197 = vrot.lane.b32.xlu0 %v195, 50
    %v198 = vpop.permute.xlu0 %197
    %v200 = vadd.f32 %v185, %v198
    %v201 = vtanh.pop %v200
    %203 = vrot.lane.b32.xlu0 %v201, 100
    %v204 = vpop.permute.xlu0 %203
    %v206 = vmul.f32 %v180, %v204
    %s207 = scalar_lea.vmem %s0, 16
    %v208 = vld [vmem:[%s207] sm:$0xff]
    %v209 = vld [vmem:[%s207 + $0x8] sm:$0xff]
    %211 = vrot.lane.b32.xlu0 %v206, 106
    %v212 = vpop.permute.xlu0 %211
    %v213 = vsel %vm81, %v212, 0
    %215 = vmatprep.subr.mxu0 0.0
    %216 = vmatpush1.msra.mxu0 0.0
    %217 = vmatprep.subr.mxu0 0.0
    %218 = vmatpush1.msra.mxu0 0.0
    %219 = vmatprep.subr.mxu0 0.0
    %220 = vmatpush1.msra.mxu0 0.0
    %221 = vmatprep.subr.mxu0 0.0
    %222 = vmatpush1.msra.mxu0 0.0
    %223 = vmatprep.subr.mxu0 0.0
    %224 = vmatpush1.msra.mxu0 0.0
    %225 = vmatprep.subr.mxu0 0.0
    %226 = vmatpush1.msra.mxu0 0.0
    %227 = vmatprep.subr.mxu0 0.0
    %228 = vmatpush1.msra.mxu0 0.0
    %229 = vmatprep.subr.mxu0 0.0
    %230 = vmatpush1.msra.mxu0 0.0
    %231 = vmatprep.subr.mxu0 0.0
    %232 = vmatpush1.msra.mxu0 0.0
    %233 = vmatprep.subr.mxu0 %v90
    %234 = vmatpush1.msra.mxu0 %v87
    %235 = vmatprep.subr.mxu0 %v65
    %236 = vmatpush1.msra.mxu0 %v64
    %237 = vmatprep.subr.mxu0 %v63
    %238 = vmatpush1.msra.mxu0 %v62
    %239 = vmatprep.subr.mxu0 %v61
    %240 = vmatpush1.msra.mxu0 %v60
    %241 = vmatprep.subr.mxu0 %v59
    %242 = vmatpush1.msra.mxu0 %v58
    %243 = vmatprep.subr.mxu0 %v57
    %244 = vmatpush1.msra.mxu0 %v56
    %245 = vmatprep.subr.mxu0 %v55
    %246 = vmatpush1.msra.mxu0 %v54
    %247 = vmatprep.subr.mxu0 0.0
    %248 = vmatpush2.msra.mxu0 0.0
    %249 = vmatprep.subr.mxu0 0.0
    %250 = vmatpush2.msra.mxu0 0.0
    %251 = vmatprep.subr.mxu0 0.0
    %252 = vmatpush2.msra.mxu0 0.0
    %253 = vmatprep.subr.mxu0 0.0
    %254 = vmatpush2.msra.mxu0 0.0
    %255 = vmatprep.subr.mxu0 0.0
    %256 = vmatpush2.msra.mxu0 0.0
    %257 = vmatprep.subr.mxu0 0.0
    %258 = vmatpush2.msra.mxu0 0.0
    %259 = vmatprep.subr.mxu0 0.0
    %260 = vmatpush2.msra.mxu0 0.0
    %261 = vmatprep.subr.mxu0 0.0
    %262 = vmatpush2.msra.mxu0 0.0
    %263 = vmatprep.subr.mxu0 0.0
    %264 = vmatpush2.msra.mxu0 0.0
    %265 = vmatprep.subr.mxu0 0.0
    %266 = vmatpush2.msra.mxu0 0.0
    %267 = vmatprep.subr.mxu0 0.0
    %268 = vmatpush2.msra.mxu0 0.0
    %269 = vmatprep.subr.mxu0 0.0
    %270 = vmatpush2.msra.mxu0 0.0
    %271 = vmatprep.subr.mxu0 0.0
    %272 = vmatpush2.msra.mxu0 0.0
    %273 = vmatprep.subr.mxu0 0.0
    %274 = vmatpush2.msra.mxu0 0.0
    %275 = vmatprep.subr.mxu0 0.0
    %276 = vmatpush2.msra.mxu0 0.0
    %277 = vmatprep.subr.mxu0 0.0
    %278 = vmatpush2.msra.mxu0 0.0
    %279 = vmatprep.mubr.f32.mxu0 0.0
    %280 = vmatmul.mubr.f32.gmra.mxu0 %v213
    %v281 = vpop.f32.mrf.mxu0
    %v282 = vadd.f32 0.0, %v281
    %v283 = vpop.f32.mrf.mxu0
    %v284 = vadd.f32 0.0, %v283
    %285 = vdwg.mxu0
    %v286 = vadd.f32 %v208, %v282
    %v287 = vadd.f32 %v209, %v284
    %v288 = vtanh.pop %v286
    %v289 = vtanh.pop %v287
    %v290 = vxor.u32 %v286, 2147483648
    %v291 = vxor.u32 %v287, 2147483648
    %v292 = vmul.f32 %v290, 1.442695
    %v293 = vpow.pop %v292
    %v294 = vmul.f32 %v291, 1.442695
    %v295 = vpow.pop %v294
    %v296 = vadd.f32 %v293, 1.0
    %v297 = vadd.f32 %v295, 1.0
    %v298 = vrcp.pop %v296
    %v299 = vmul.f32 1.0, %v298
    %v300 = vrcp.pop %v297
    %v301 = vmul.f32 1.0, %v300
    %v302 = vsel %vm77, %v288, %v299
    %v303 = vsel %vm78, %v289, %v301
    %v304 = vmul.f32 %v302, %v200
    %307 = vrot.lane.b32.xlu0 %v302, 28
    %v308 = vpop.permute.xlu0 %307
    %309 = vrot.lane.b32.xlu0 %v303, 28
    %v310 = vpop.permute.xlu0 %309
    %v311 = vsel %vm192, %v308, %v310
    %v313 = vmul.f32 %v302, %v311
    %315 = vrot.lane.b32.xlu0 %v313, 50
    %v316 = vpop.permute.xlu0 %315
    %v318 = vadd.f32 %v304, %v316
    %v319 = vtanh.pop %v318
    %321 = vrot.lane.b32.xlu0 %v319, 100
    %v322 = vpop.permute.xlu0 %321
    %v324 = vmul.f32 %v303, %v322
    %s325 = scalar_lea.vmem %s0, 32
    %v326 = vld [vmem:[%s325] sm:$0xff]
    %v327 = vld [vmem:[%s325 + $0x8] sm:$0xff]
    %329 = vrot.lane.b32.xlu0 %v324, 106
    %v330 = vpop.permute.xlu0 %329
    %v331 = vsel %vm81, %v330, 0
    %333 = vmatprep.subr.mxu0 0.0
    %334 = vmatpush1.msra.mxu0 0.0
    %335 = vmatprep.subr.mxu0 0.0
    %336 = vmatpush1.msra.mxu0 0.0
    %337 = vmatprep.subr.mxu0 0.0
    %338 = vmatpush1.msra.mxu0 0.0
    %339 = vmatprep.subr.mxu0 0.0
    %340 = vmatpush1.msra.mxu0 0.0
    %341 = vmatprep.subr.mxu0 0.0
    %342 = vmatpush1.msra.mxu0 0.0
    %343 = vmatprep.subr.mxu0 0.0
    %344 = vmatpush1.msra.mxu0 0.0
    %345 = vmatprep.subr.mxu0 0.0
    %346 = vmatpush1.msra.mxu0 0.0
    %347 = vmatprep.subr.mxu0 0.0
    %348 = vmatpush1.msra.mxu0 0.0
    %349 = vmatprep.subr.mxu0 0.0
    %350 = vmatpush1.msra.mxu0 0.0
    %351 = vmatprep.subr.mxu0 %v90
    %352 = vmatpush1.msra.mxu0 %v87
    %353 = vmatprep.subr.mxu0 %v65
    %354 = vmatpush1.msra.mxu0 %v64
    %355 = vmatprep.subr.mxu0 %v63
    %356 = vmatpush1.msra.mxu0 %v62
    %357 = vmatprep.subr.mxu0 %v61
    %358 = vmatpush1.msra.mxu0 %v60
    %359 = vmatprep.subr.mxu0 %v59
    %360 = vmatpush1.msra.mxu0 %v58
    %361 = vmatprep.subr.mxu0 %v57
    %362 = vmatpush1.msra.mxu0 %v56
    %363 = vmatprep.subr.mxu0 %v55
    %364 = vmatpush1.msra.mxu0 %v54
    %365 = vmatprep.subr.mxu0 0.0
    %366 = vmatpush2.msra.mxu0 0.0
    %367 = vmatprep.subr.mxu0 0.0
    %368 = vmatpush2.msra.mxu0 0.0
    %369 = vmatprep.subr.mxu0 0.0
    %370 = vmatpush2.msra.mxu0 0.0
    %371 = vmatprep.subr.mxu0 0.0
    %372 = vmatpush2.msra.mxu0 0.0
    %373 = vmatprep.subr.mxu0 0.0
    %374 = vmatpush2.msra.mxu0 0.0
    %375 = vmatprep.subr.mxu0 0.0
    %376 = vmatpush2.msra.mxu0 0.0
    %377 = vmatprep.subr.mxu0 0.0
    %378 = vmatpush2.msra.mxu0 0.0
    %379 = vmatprep.subr.mxu0 0.0
    %380 = vmatpush2.msra.mxu0 0.0
    %381 = vmatprep.subr.mxu0 0.0
    %382 = vmatpush2.msra.mxu0 0.0
    %383 = vmatprep.subr.mxu0 0.0
    %384 = vmatpush2.msra.mxu0 0.0
    %385 = vmatprep.subr.mxu0 0.0
    %386 = vmatpush2.msra.mxu0 0.0
    %387 = vmatprep.subr.mxu0 0.0
    %388 = vmatpush2.msra.mxu0 0.0
    %389 = vmatprep.subr.mxu0 0.0
    %390 = vmatpush2.msra.mxu0 0.0
    %391 = vmatprep.subr.mxu0 0.0
    %392 = vmatpush2.msra.mxu0 0.0
    %393 = vmatprep.subr.mxu0 0.0
    %394 = vmatpush2.msra.mxu0 0.0
    %395 = vmatprep.subr.mxu0 0.0
    %396 = vmatpush2.msra.mxu0 0.0
    %397 = vmatprep.mubr.f32.mxu0 0.0
    %398 = vmatmul.mubr.f32.gmra.mxu0 %v331
    %v399 = vpop.f32.mrf.mxu0
    %v400 = vadd.f32 0.0, %v399
    %v401 = vpop.f32.mrf.mxu0
    %v402 = vadd.f32 0.0, %v401
    %403 = vdwg.mxu0
    %v404 = vadd.f32 %v326, %v400
    %v405 = vadd.f32 %v327, %v402
    %v406 = vtanh.pop %v404
    %v407 = vtanh.pop %v405
    %v408 = vxor.u32 %v404, 2147483648
    %v409 = vxor.u32 %v405, 2147483648
    %v410 = vmul.f32 %v408, 1.442695
    %v411 = vpow.pop %v410
    %v412 = vmul.f32 %v409, 1.442695
    %v413 = vpow.pop %v412
    %v414 = vadd.f32 %v411, 1.0
    %v415 = vadd.f32 %v413, 1.0
    %v416 = vrcp.pop %v414
    %v417 = vmul.f32 1.0, %v416
    %v418 = vrcp.pop %v415
    %v419 = vmul.f32 1.0, %v418
    %v420 = vsel %vm77, %v406, %v417
    %v421 = vsel %vm78, %v407, %v419
    %v422 = vmul.f32 %v420, %v318
    %425 = vrot.lane.b32.xlu0 %v420, 28
    %v426 = vpop.permute.xlu0 %425
    %427 = vrot.lane.b32.xlu0 %v421, 28
    %v428 = vpop.permute.xlu0 %427
    %v429 = vsel %vm192, %v426, %v428
    %v431 = vmul.f32 %v420, %v429
    %433 = vrot.lane.b32.xlu0 %v431, 50
    %v434 = vpop.permute.xlu0 %433
    %v436 = vadd.f32 %v422, %v434
    %v437 = vtanh.pop %v436
    %439 = vrot.lane.b32.xlu0 %v437, 100
    %v440 = vpop.permute.xlu0 %439
    %v442 = vmul.f32 %v421, %v440
    %s443 = scalar_lea.vmem %s0, 48
    %v444 = vld [vmem:[%s443] sm:$0xff]
    %v445 = vld [vmem:[%s443 + $0x8] sm:$0xff]
    %447 = vrot.lane.b32.xlu0 %v442, 106
    %v448 = vpop.permute.xlu0 %447
    %v449 = vsel %vm81, %v448, 0
    %451 = vmatprep.subr.mxu0 0.0
    %452 = vmatpush1.msra.mxu0 0.0
    %453 = vmatprep.subr.mxu0 0.0
    %454 = vmatpush1.msra.mxu0 0.0
    %455 = vmatprep.subr.mxu0 0.0
    %456 = vmatpush1.msra.mxu0 0.0
    %457 = vmatprep.subr.mxu0 0.0
    %458 = vmatpush1.msra.mxu0 0.0
    %459 = vmatprep.subr.mxu0 0.0
    %460 = vmatpush1.msra.mxu0 0.0
    %461 = vmatprep.subr.mxu0 0.0
    %462 = vmatpush1.msra.mxu0 0.0
    %463 = vmatprep.subr.mxu0 0.0
    %464 = vmatpush1.msra.mxu0 0.0
    %465 = vmatprep.subr.mxu0 0.0
    %466 = vmatpush1.msra.mxu0 0.0
    %467 = vmatprep.subr.mxu0 0.0
    %468 = vmatpush1.msra.mxu0 0.0
    %469 = vmatprep.subr.mxu0 %v90
    %470 = vmatpush1.msra.mxu0 %v87
    %471 = vmatprep.subr.mxu0 %v65
    %472 = vmatpush1.msra.mxu0 %v64
    %473 = vmatprep.subr.mxu0 %v63
    %474 = vmatpush1.msra.mxu0 %v62
    %475 = vmatprep.subr.mxu0 %v61
    %476 = vmatpush1.msra.mxu0 %v60
    %477 = vmatprep.subr.mxu0 %v59
    %478 = vmatpush1.msra.mxu0 %v58
    %479 = vmatprep.subr.mxu0 %v57
    %480 = vmatpush1.msra.mxu0 %v56
    %481 = vmatprep.subr.mxu0 %v55
    %482 = vmatpush1.msra.mxu0 %v54
    %483 = vmatprep.subr.mxu0 0.0
    %484 = vmatpush2.msra.mxu0 0.0
    %485 = vmatprep.subr.mxu0 0.0
    %486 = vmatpush2.msra.mxu0 0.0
    %487 = vmatprep.subr.mxu0 0.0
    %488 = vmatpush2.msra.mxu0 0.0
    %489 = vmatprep.subr.mxu0 0.0
    %490 = vmatpush2.msra.mxu0 0.0
    %491 = vmatprep.subr.mxu0 0.0
    %492 = vmatpush2.msra.mxu0 0.0
    %493 = vmatprep.subr.mxu0 0.0
    %494 = vmatpush2.msra.mxu0 0.0
    %495 = vmatprep.subr.mxu0 0.0
    %496 = vmatpush2.msra.mxu0 0.0
    %497 = vmatprep.subr.mxu0 0.0
    %498 = vmatpush2.msra.mxu0 0.0
    %499 = vmatprep.subr.mxu0 0.0
    %500 = vmatpush2.msra.mxu0 0.0
    %501 = vmatprep.subr.mxu0 0.0
    %502 = vmatpush2.msra.mxu0 0.0
    %503 = vmatprep.subr.mxu0 0.0
    %504 = vmatpush2.msra.mxu0 0.0
    %505 = vmatprep.subr.mxu0 0.0
    %506 = vmatpush2.msra.mxu0 0.0
    %507 = vmatprep.subr.mxu0 0.0
    %508 = vmatpush2.msra.mxu0 0.0
    %509 = vmatprep.subr.mxu0 0.0
    %510 = vmatpush2.msra.mxu0 0.0
    %511 = vmatprep.subr.mxu0 0.0
    %512 = vmatpush2.msra.mxu0 0.0
    %513 = vmatprep.subr.mxu0 0.0
    %514 = vmatpush2.msra.mxu0 0.0
    %515 = vmatprep.mubr.f32.mxu0 0.0
    %516 = vmatmul.mubr.f32.gmra.mxu0 %v449
    %v517 = vpop.f32.mrf.mxu0
    %v518 = vadd.f32 0.0, %v517
    %v519 = vpop.f32.mrf.mxu0
    %v520 = vadd.f32 0.0, %v519
    %521 = vdwg.mxu0
    %v522 = vadd.f32 %v444, %v518
    %v523 = vadd.f32 %v445, %v520
    %v524 = vtanh.pop %v522
    %v525 = vtanh.pop %v523
    %v526 = vxor.u32 %v522, 2147483648
    %v527 = vxor.u32 %v523, 2147483648
    %v528 = vmul.f32 %v526, 1.442695
    %v529 = vpow.pop %v528
    %v530 = vmul.f32 %v527, 1.442695
    %v531 = vpow.pop %v530
    %v532 = vadd.f32 %v529, 1.0
    %v533 = vadd.f32 %v531, 1.0
    %v534 = vrcp.pop %v532
    %v535 = vmul.f32 1.0, %v534
    %v536 = vrcp.pop %v533
    %v537 = vmul.f32 1.0, %v536
    %v538 = vsel %vm77, %v524, %v535
    %v539 = vsel %vm78, %v525, %v537
    %v540 = vmul.f32 %v538, %v436
    %543 = vrot.lane.b32.xlu0 %v538, 28
    %v544 = vpop.permute.xlu0 %543
    %545 = vrot.lane.b32.xlu0 %v539, 28
    %v546 = vpop.permute.xlu0 %545
    %v547 = vsel %vm192, %v544, %v546
    %v549 = vmul.f32 %v538, %v547
    %551 = vrot.lane.b32.xlu0 %v549, 50
    %v552 = vpop.permute.xlu0 %551
    %v554 = vadd.f32 %v540, %v552
    %v555 = vtanh.pop %v554
    %557 = vrot.lane.b32.xlu0 %v555, 100
    %v558 = vpop.permute.xlu0 %557
    %v560 = vmul.f32 %v539, %v558
    %s561 = scalar_lea.vmem %s0, 64
    %v562 = vld [vmem:[%s561] sm:$0xff]
    %v563 = vld [vmem:[%s561 + $0x8] sm:$0xff]
    %565 = vrot.lane.b32.xlu0 %v560, 106
    %v566 = vpop.permute.xlu0 %565
    %v567 = vsel %vm81, %v566, 0
    %569 = vmatprep.subr.mxu0 0.0
    %570 = vmatpush1.msra.mxu0 0.0
    %571 = vmatprep.subr.mxu0 0.0
    %572 = vmatpush1.msra.mxu0 0.0
    %573 = vmatprep.subr.mxu0 0.0
    %574 = vmatpush1.msra.mxu0 0.0
    %575 = vmatprep.subr.mxu0 0.0
    %576 = vmatpush1.msra.mxu0 0.0
    %577 = vmatprep.subr.mxu0 0.0
    %578 = vmatpush1.msra.mxu0 0.0
    %579 = vmatprep.subr.mxu0 0.0
    %580 = vmatpush1.msra.mxu0 0.0
    %581 = vmatprep.subr.mxu0 0.0
    %582 = vmatpush1.msra.mxu0 0.0
    %583 = vmatprep.subr.mxu0 0.0
    %584 = vmatpush1.msra.mxu0 0.0
    %585 = vmatprep.subr.mxu0 0.0
    %586 = vmatpush1.msra.mxu0 0.0
    %587 = vmatprep.subr.mxu0 %v90
    %588 = vmatpush1.msra.mxu0 %v87
    %589 = vmatprep.subr.mxu0 %v65
    %590 = vmatpush1.msra.mxu0 %v64
    %591 = vmatprep.subr.mxu0 %v63
    %592 = vmatpush1.msra.mxu0 %v62
    %593 = vmatprep.subr.mxu0 %v61
    %594 = vmatpush1.msra.mxu0 %v60
    %595 = vmatprep.subr.mxu0 %v59
    %596 = vmatpush1.msra.mxu0 %v58
    %597 = vmatprep.subr.mxu0 %v57
    %598 = vmatpush1.msra.mxu0 %v56
    %599 = vmatprep.subr.mxu0 %v55
    %600 = vmatpush1.msra.mxu0 %v54
    %601 = vmatprep.subr.mxu0 0.0
    %602 = vmatpush2.msra.mxu0 0.0
    %603 = vmatprep.subr.mxu0 0.0
    %604 = vmatpush2.msra.mxu0 0.0
    %605 = vmatprep.subr.mxu0 0.0
    %606 = vmatpush2.msra.mxu0 0.0
    %607 = vmatprep.subr.mxu0 0.0
    %608 = vmatpush2.msra.mxu0 0.0
    %609 = vmatprep.subr.mxu0 0.0
    %610 = vmatpush2.msra.mxu0 0.0
    %611 = vmatprep.subr.mxu0 0.0
    %612 = vmatpush2.msra.mxu0 0.0
    %613 = vmatprep.subr.mxu0 0.0
    %614 = vmatpush2.msra.mxu0 0.0
    %615 = vmatprep.subr.mxu0 0.0
    %616 = vmatpush2.msra.mxu0 0.0
    %617 = vmatprep.subr.mxu0 0.0
    %618 = vmatpush2.msra.mxu0 0.0
    %619 = vmatprep.subr.mxu0 0.0
    %620 = vmatpush2.msra.mxu0 0.0
    %621 = vmatprep.subr.mxu0 0.0
    %622 = vmatpush2.msra.mxu0 0.0
    %623 = vmatprep.subr.mxu0 0.0
    %624 = vmatpush2.msra.mxu0 0.0
    %625 = vmatprep.subr.mxu0 0.0
    %626 = vmatpush2.msra.mxu0 0.0
    %627 = vmatprep.subr.mxu0 0.0
    %628 = vmatpush2.msra.mxu0 0.0
    %629 = vmatprep.subr.mxu0 0.0
    %630 = vmatpush2.msra.mxu0 0.0
    %631 = vmatprep.subr.mxu0 0.0
    %632 = vmatpush2.msra.mxu0 0.0
    %633 = vmatprep.mubr.f32.mxu0 0.0
    %634 = vmatmul.mubr.f32.gmra.mxu0 %v567
    %v635 = vpop.f32.mrf.mxu0
    %v636 = vadd.f32 0.0, %v635
    %v637 = vpop.f32.mrf.mxu0
    %v638 = vadd.f32 0.0, %v637
    %639 = vdwg.mxu0
    %v640 = vadd.f32 %v562, %v636
    %v641 = vadd.f32 %v563, %v638
    %v642 = vtanh.pop %v640
    %v643 = vtanh.pop %v641
    %v644 = vxor.u32 %v640, 2147483648
    %v645 = vxor.u32 %v641, 2147483648
    %v646 = vmul.f32 %v644, 1.442695
    %v647 = vpow.pop %v646
    %v648 = vmul.f32 %v645, 1.442695
    %v649 = vpow.pop %v648
    %v650 = vadd.f32 %v647, 1.0
    %v651 = vadd.f32 %v649, 1.0
    %v652 = vrcp.pop %v650
    %v653 = vmul.f32 1.0, %v652
    %v654 = vrcp.pop %v651
    %v655 = vmul.f32 1.0, %v654
    %v656 = vsel %vm77, %v642, %v653
    %v657 = vsel %vm78, %v643, %v655
    %v658 = vmul.f32 %v656, %v554
    %661 = vrot.lane.b32.xlu0 %v656, 28
    %v662 = vpop.permute.xlu0 %661
    %663 = vrot.lane.b32.xlu0 %v657, 28
    %v664 = vpop.permute.xlu0 %663
    %v665 = vsel %vm192, %v662, %v664
    %v667 = vmul.f32 %v656, %v665
    %669 = vrot.lane.b32.xlu0 %v667, 50
    %v670 = vpop.permute.xlu0 %669
    %v672 = vadd.f32 %v658, %v670
    %v673 = vtanh.pop %v672
    %675 = vrot.lane.b32.xlu0 %v673, 100
    %v676 = vpop.permute.xlu0 %675
    %v678 = vmul.f32 %v657, %v676
    %s679 = scalar_lea.vmem %s0, 80
    %v680 = vld [vmem:[%s679] sm:$0xff]
    %v681 = vld [vmem:[%s679 + $0x8] sm:$0xff]
    %683 = vrot.lane.b32.xlu0 %v678, 106
    %v684 = vpop.permute.xlu0 %683
    %v685 = vsel %vm81, %v684, 0
    %687 = vmatprep.subr.mxu0 0.0
    %688 = vmatpush1.msra.mxu0 0.0
    %689 = vmatprep.subr.mxu0 0.0
    %690 = vmatpush1.msra.mxu0 0.0
    %691 = vmatprep.subr.mxu0 0.0
    %692 = vmatpush1.msra.mxu0 0.0
    %693 = vmatprep.subr.mxu0 0.0
    %694 = vmatpush1.msra.mxu0 0.0
    %695 = vmatprep.subr.mxu0 0.0
    %696 = vmatpush1.msra.mxu0 0.0
    %697 = vmatprep.subr.mxu0 0.0
    %698 = vmatpush1.msra.mxu0 0.0
    %699 = vmatprep.subr.mxu0 0.0
    %700 = vmatpush1.msra.mxu0 0.0
    %701 = vmatprep.subr.mxu0 0.0
    %702 = vmatpush1.msra.mxu0 0.0
    %703 = vmatprep.subr.mxu0 0.0
    %704 = vmatpush1.msra.mxu0 0.0
    %705 = vmatprep.subr.mxu0 %v90
    %706 = vmatpush1.msra.mxu0 %v87
    %707 = vmatprep.subr.mxu0 %v65
    %708 = vmatpush1.msra.mxu0 %v64
    %709 = vmatprep.subr.mxu0 %v63
    %710 = vmatpush1.msra.mxu0 %v62
    %711 = vmatprep.subr.mxu0 %v61
    %712 = vmatpush1.msra.mxu0 %v60
    %713 = vmatprep.subr.mxu0 %v59
    %714 = vmatpush1.msra.mxu0 %v58
    %715 = vmatprep.subr.mxu0 %v57
    %716 = vmatpush1.msra.mxu0 %v56
    %717 = vmatprep.subr.mxu0 %v55
    %718 = vmatpush1.msra.mxu0 %v54
    %719 = vmatprep.subr.mxu0 0.0
    %720 = vmatpush2.msra.mxu0 0.0
    %721 = vmatprep.subr.mxu0 0.0
    %722 = vmatpush2.msra.mxu0 0.0
    %723 = vmatprep.subr.mxu0 0.0
    %724 = vmatpush2.msra.mxu0 0.0
    %725 = vmatprep.subr.mxu0 0.0
    %726 = vmatpush2.msra.mxu0 0.0
    %727 = vmatprep.subr.mxu0 0.0
    %728 = vmatpush2.msra.mxu0 0.0
    %729 = vmatprep.subr.mxu0 0.0
    %730 = vmatpush2.msra.mxu0 0.0
    %731 = vmatprep.subr.mxu0 0.0
    %732 = vmatpush2.msra.mxu0 0.0
    %733 = vmatprep.subr.mxu0 0.0
    %734 = vmatpush2.msra.mxu0 0.0
    %735 = vmatprep.subr.mxu0 0.0
    %736 = vmatpush2.msra.mxu0 0.0
    %737 = vmatprep.subr.mxu0 0.0
    %738 = vmatpush2.msra.mxu0 0.0
    %739 = vmatprep.subr.mxu0 0.0
    %740 = vmatpush2.msra.mxu0 0.0
    %741 = vmatprep.subr.mxu0 0.0
    %742 = vmatpush2.msra.mxu0 0.0
    %743 = vmatprep.subr.mxu0 0.0
    %744 = vmatpush2.msra.mxu0 0.0
    %745 = vmatprep.subr.mxu0 0.0
    %746 = vmatpush2.msra.mxu0 0.0
    %747 = vmatprep.subr.mxu0 0.0
    %748 = vmatpush2.msra.mxu0 0.0
    %749 = vmatprep.subr.mxu0 0.0
    %750 = vmatpush2.msra.mxu0 0.0
    %751 = vmatprep.mubr.f32.mxu0 0.0
    %752 = vmatmul.mubr.f32.gmra.mxu0 %v685
    %v753 = vpop.f32.mrf.mxu0
    %v754 = vadd.f32 0.0, %v753
    %v755 = vpop.f32.mrf.mxu0
    %v756 = vadd.f32 0.0, %v755
    %757 = vdwg.mxu0
    %v758 = vadd.f32 %v680, %v754
    %v759 = vadd.f32 %v681, %v756
    %v760 = vtanh.pop %v758
    %v761 = vtanh.pop %v759
    %v762 = vxor.u32 %v758, 2147483648
    %v763 = vxor.u32 %v759, 2147483648
    %v764 = vmul.f32 %v762, 1.442695
    %v765 = vpow.pop %v764
    %v766 = vmul.f32 %v763, 1.442695
    %v767 = vpow.pop %v766
    %v768 = vadd.f32 %v765, 1.0
    %v769 = vadd.f32 %v767, 1.0
    %v770 = vrcp.pop %v768
    %v771 = vmul.f32 1.0, %v770
    %v772 = vrcp.pop %v769
    %v773 = vmul.f32 1.0, %v772
    %v774 = vsel %vm77, %v760, %v771
    %v775 = vsel %vm78, %v761, %v773
    %v776 = vmul.f32 %v774, %v672
    %779 = vrot.lane.b32.xlu0 %v774, 28
    %v780 = vpop.permute.xlu0 %779
    %781 = vrot.lane.b32.xlu0 %v775, 28
    %v782 = vpop.permute.xlu0 %781
    %v783 = vsel %vm192, %v780, %v782
    %v785 = vmul.f32 %v774, %v783
    %787 = vrot.lane.b32.xlu0 %v785, 50
    %v788 = vpop.permute.xlu0 %787
    %v790 = vadd.f32 %v776, %v788
    %v791 = vtanh.pop %v790
    %793 = vrot.lane.b32.xlu0 %v791, 100
    %v794 = vpop.permute.xlu0 %793
    %v796 = vmul.f32 %v775, %v794
    %s797 = scalar_lea.vmem %s0, 96
    %v798 = vld [vmem:[%s797] sm:$0xff]
    %v799 = vld [vmem:[%s797 + $0x8] sm:$0xff]
    %801 = vrot.lane.b32.xlu0 %v796, 106
    %v802 = vpop.permute.xlu0 %801
    %v803 = vsel %vm81, %v802, 0
    %805 = vmatprep.subr.mxu0 0.0
    %806 = vmatpush1.msra.mxu0 0.0
    %807 = vmatprep.subr.mxu0 0.0
    %808 = vmatpush1.msra.mxu0 0.0
    %809 = vmatprep.subr.mxu0 0.0
    %810 = vmatpush1.msra.mxu0 0.0
    %811 = vmatprep.subr.mxu0 0.0
    %812 = vmatpush1.msra.mxu0 0.0
    %813 = vmatprep.subr.mxu0 0.0
    %814 = vmatpush1.msra.mxu0 0.0
    %815 = vmatprep.subr.mxu0 0.0
    %816 = vmatpush1.msra.mxu0 0.0
    %817 = vmatprep.subr.mxu0 0.0
    %818 = vmatpush1.msra.mxu0 0.0
    %819 = vmatprep.subr.mxu0 0.0
    %820 = vmatpush1.msra.mxu0 0.0
    %821 = vmatprep.subr.mxu0 0.0
    %822 = vmatpush1.msra.mxu0 0.0
    %823 = vmatprep.subr.mxu0 %v90
    %824 = vmatpush1.msra.mxu0 %v87
    %825 = vmatprep.subr.mxu0 %v65
    %826 = vmatpush1.msra.mxu0 %v64
    %827 = vmatprep.subr.mxu0 %v63
    %828 = vmatpush1.msra.mxu0 %v62
    %829 = vmatprep.subr.mxu0 %v61
    %830 = vmatpush1.msra.mxu0 %v60
    %831 = vmatprep.subr.mxu0 %v59
    %832 = vmatpush1.msra.mxu0 %v58
    %833 = vmatprep.subr.mxu0 %v57
    %834 = vmatpush1.msra.mxu0 %v56
    %835 = vmatprep.subr.mxu0 %v55
    %836 = vmatpush1.msra.mxu0 %v54
    %837 = vmatprep.subr.mxu0 0.0
    %838 = vmatpush2.msra.mxu0 0.0
    %839 = vmatprep.subr.mxu0 0.0
    %840 = vmatpush2.msra.mxu0 0.0
    %841 = vmatprep.subr.mxu0 0.0
    %842 = vmatpush2.msra.mxu0 0.0
    %843 = vmatprep.subr.mxu0 0.0
    %844 = vmatpush2.msra.mxu0 0.0
    %845 = vmatprep.subr.mxu0 0.0
    %846 = vmatpush2.msra.mxu0 0.0
    %847 = vmatprep.subr.mxu0 0.0
    %848 = vmatpush2.msra.mxu0 0.0
    %849 = vmatprep.subr.mxu0 0.0
    %850 = vmatpush2.msra.mxu0 0.0
    %851 = vmatprep.subr.mxu0 0.0
    %852 = vmatpush2.msra.mxu0 0.0
    %853 = vmatprep.subr.mxu0 0.0
    %854 = vmatpush2.msra.mxu0 0.0
    %855 = vmatprep.subr.mxu0 0.0
    %856 = vmatpush2.msra.mxu0 0.0
    %857 = vmatprep.subr.mxu0 0.0
    %858 = vmatpush2.msra.mxu0 0.0
    %859 = vmatprep.subr.mxu0 0.0
    %860 = vmatpush2.msra.mxu0 0.0
    %861 = vmatprep.subr.mxu0 0.0
    %862 = vmatpush2.msra.mxu0 0.0
    %863 = vmatprep.subr.mxu0 0.0
    %864 = vmatpush2.msra.mxu0 0.0
    %865 = vmatprep.subr.mxu0 0.0
    %866 = vmatpush2.msra.mxu0 0.0
    %867 = vmatprep.subr.mxu0 0.0
    %868 = vmatpush2.msra.mxu0 0.0
    %869 = vmatprep.mubr.f32.mxu0 0.0
    %870 = vmatmul.mubr.f32.gmra.mxu0 %v803
    %v871 = vpop.f32.mrf.mxu0
    %v872 = vadd.f32 0.0, %v871
    %v873 = vpop.f32.mrf.mxu0
    %v874 = vadd.f32 0.0, %v873
    %875 = vdwg.mxu0
    %v876 = vadd.f32 %v798, %v872
    %v877 = vadd.f32 %v799, %v874
    %v878 = vtanh.pop %v876
    %v879 = vtanh.pop %v877
    %v880 = vxor.u32 %v876, 2147483648
    %v881 = vxor.u32 %v877, 2147483648
    %v882 = vmul.f32 %v880, 1.442695
    %v883 = vpow.pop %v882
    %v884 = vmul.f32 %v881, 1.442695
    %v885 = vpow.pop %v884
    %v886 = vadd.f32 %v883, 1.0
    %v887 = vadd.f32 %v885, 1.0
    %v888 = vrcp.pop %v886
    %v889 = vmul.f32 1.0, %v888
    %v890 = vrcp.pop %v887
    %v891 = vmul.f32 1.0, %v890
    %v892 = vsel %vm77, %v878, %v889
    %v893 = vsel %vm78, %v879, %v891
    %v894 = vmul.f32 %v892, %v790
    %897 = vrot.lane.b32.xlu0 %v892, 28
    %v898 = vpop.permute.xlu0 %897
    %899 = vrot.lane.b32.xlu0 %v893, 28
    %v900 = vpop.permute.xlu0 %899
    %v901 = vsel %vm192, %v898, %v900
    %v903 = vmul.f32 %v892, %v901
    %905 = vrot.lane.b32.xlu0 %v903, 50
    %v906 = vpop.permute.xlu0 %905
    %v908 = vadd.f32 %v894, %v906
    %v909 = vtanh.pop %v908
    %911 = vrot.lane.b32.xlu0 %v909, 100
    %v912 = vpop.permute.xlu0 %911
    %v914 = vmul.f32 %v893, %v912
    %s915 = scalar_lea.vmem %s0, 112
    %v916 = vld [vmem:[%s915] sm:$0xff]
    %v917 = vld [vmem:[%s915 + $0x8] sm:$0xff]
    %919 = vrot.lane.b32.xlu0 %v914, 106
    %v920 = vpop.permute.xlu0 %919
    %v921 = vsel %vm81, %v920, 0
    %923 = vmatprep.subr.mxu0 0.0
    %924 = vmatpush1.msra.mxu0 0.0
    %925 = vmatprep.subr.mxu0 0.0
    %926 = vmatpush1.msra.mxu0 0.0
    %927 = vmatprep.subr.mxu0 0.0
    %928 = vmatpush1.msra.mxu0 0.0
    %929 = vmatprep.subr.mxu0 0.0
    %930 = vmatpush1.msra.mxu0 0.0
    %931 = vmatprep.subr.mxu0 0.0
    %932 = vmatpush1.msra.mxu0 0.0
    %933 = vmatprep.subr.mxu0 0.0
    %934 = vmatpush1.msra.mxu0 0.0
    %935 = vmatprep.subr.mxu0 0.0
    %936 = vmatpush1.msra.mxu0 0.0
    %937 = vmatprep.subr.mxu0 0.0
    %938 = vmatpush1.msra.mxu0 0.0
    %939 = vmatprep.subr.mxu0 0.0
    %940 = vmatpush1.msra.mxu0 0.0
    %941 = vmatprep.subr.mxu0 %v90
    %942 = vmatpush1.msra.mxu0 %v87
    %943 = vmatprep.subr.mxu0 %v65
    %944 = vmatpush1.msra.mxu0 %v64
    %945 = vmatprep.subr.mxu0 %v63
    %946 = vmatpush1.msra.mxu0 %v62
    %947 = vmatprep.subr.mxu0 %v61
    %948 = vmatpush1.msra.mxu0 %v60
    %949 = vmatprep.subr.mxu0 %v59
    %950 = vmatpush1.msra.mxu0 %v58
    %951 = vmatprep.subr.mxu0 %v57
    %952 = vmatpush1.msra.mxu0 %v56
    %953 = vmatprep.subr.mxu0 %v55
    %954 = vmatpush1.msra.mxu0 %v54
    %955 = vmatprep.subr.mxu0 0.0
    %956 = vmatpush2.msra.mxu0 0.0
    %957 = vmatprep.subr.mxu0 0.0
    %958 = vmatpush2.msra.mxu0 0.0
    %959 = vmatprep.subr.mxu0 0.0
    %960 = vmatpush2.msra.mxu0 0.0
    %961 = vmatprep.subr.mxu0 0.0
    %962 = vmatpush2.msra.mxu0 0.0
    %963 = vmatprep.subr.mxu0 0.0
    %964 = vmatpush2.msra.mxu0 0.0
    %965 = vmatprep.subr.mxu0 0.0
    %966 = vmatpush2.msra.mxu0 0.0
    %967 = vmatprep.subr.mxu0 0.0
    %968 = vmatpush2.msra.mxu0 0.0
    %969 = vmatprep.subr.mxu0 0.0
    %970 = vmatpush2.msra.mxu0 0.0
    %971 = vmatprep.subr.mxu0 0.0
    %972 = vmatpush2.msra.mxu0 0.0
    %973 = vmatprep.subr.mxu0 0.0
    %974 = vmatpush2.msra.mxu0 0.0
    %975 = vmatprep.subr.mxu0 0.0
    %976 = vmatpush2.msra.mxu0 0.0
    %977 = vmatprep.subr.mxu0 0.0
    %978 = vmatpush2.msra.mxu0 0.0
    %979 = vmatprep.subr.mxu0 0.0
    %980 = vmatpush2.msra.mxu0 0.0
    %981 = vmatprep.subr.mxu0 0.0
    %982 = vmatpush2.msra.mxu0 0.0
    %983 = vmatprep.subr.mxu0 0.0
    %984 = vmatpush2.msra.mxu0 0.0
    %985 = vmatprep.subr.mxu0 0.0
    %986 = vmatpush2.msra.mxu0 0.0
    %987 = vmatprep.mubr.f32.mxu0 0.0
    %988 = vmatmul.mubr.f32.gmra.mxu0 %v921
    %v989 = vpop.f32.mrf.mxu0
    %v990 = vadd.f32 0.0, %v989
    %v991 = vpop.f32.mrf.mxu0
    %v992 = vadd.f32 0.0, %v991
    %993 = vdwg.mxu0
    %v994 = vadd.f32 %v916, %v990
    %v995 = vadd.f32 %v917, %v992
    %v996 = vtanh.pop %v994
    %v997 = vtanh.pop %v995
    %v998 = vxor.u32 %v994, 2147483648
    %v999 = vxor.u32 %v995, 2147483648
    %v1000 = vmul.f32 %v998, 1.442695
    %v1001 = vpow.pop %v1000
    %v1002 = vmul.f32 %v999, 1.442695
    %v1003 = vpow.pop %v1002
    %v1004 = vadd.f32 %v1001, 1.0
    %v1005 = vadd.f32 %v1003, 1.0
    %v1006 = vrcp.pop %v1004
    %v1007 = vmul.f32 1.0, %v1006
    %v1008 = vrcp.pop %v1005
    %v1009 = vmul.f32 1.0, %v1008
    %v1010 = vsel %vm77, %v996, %v1007
    %v1011 = vsel %vm78, %v997, %v1009
    %v1012 = vmul.f32 %v1010, %v908
    %1015 = vrot.lane.b32.xlu0 %v1010, 28
    %v1016 = vpop.permute.xlu0 %1015
    %1017 = vrot.lane.b32.xlu0 %v1011, 28
    %v1018 = vpop.permute.xlu0 %1017
    %v1019 = vsel %vm192, %v1016, %v1018
    %v1021 = vmul.f32 %v1010, %v1019
    %1023 = vrot.lane.b32.xlu0 %v1021, 50
    %v1024 = vpop.permute.xlu0 %1023
    %v1026 = vadd.f32 %v1012, %v1024
    %v1027 = vtanh.pop %v1026
    %1029 = vrot.lane.b32.xlu0 %v1027, 100
    %v1030 = vpop.permute.xlu0 %1029
    %v1032 = vmul.f32 %v1011, %v1030
    %s1033 = scalar_lea.vmem %s0, 128
    %v1034 = vld [vmem:[%s1033] sm:$0xff]
    %v1035 = vld [vmem:[%s1033 + $0x8] sm:$0xff]
    %1037 = vrot.lane.b32.xlu0 %v1032, 106
    %v1038 = vpop.permute.xlu0 %1037
    %v1039 = vsel %vm81, %v1038, 0
    %1041 = vmatprep.subr.mxu0 0.0
    %1042 = vmatpush1.msra.mxu0 0.0
    %1043 = vmatprep.subr.mxu0 0.0
    %1044 = vmatpush1.msra.mxu0 0.0
    %1045 = vmatprep.subr.mxu0 0.0
    %1046 = vmatpush1.msra.mxu0 0.0
    %1047 = vmatprep.subr.mxu0 0.0
    %1048 = vmatpush1.msra.mxu0 0.0
    %1049 = vmatprep.subr.mxu0 0.0
    %1050 = vmatpush1.msra.mxu0 0.0
    %1051 = vmatprep.subr.mxu0 0.0
    %1052 = vmatpush1.msra.mxu0 0.0
    %1053 = vmatprep.subr.mxu0 0.0
    %1054 = vmatpush1.msra.mxu0 0.0
    %1055 = vmatprep.subr.mxu0 0.0
    %1056 = vmatpush1.msra.mxu0 0.0
    %1057 = vmatprep.subr.mxu0 0.0
    %1058 = vmatpush1.msra.mxu0 0.0
    %1059 = vmatprep.subr.mxu0 %v90
    %1060 = vmatpush1.msra.mxu0 %v87
    %1061 = vmatprep.subr.mxu0 %v65
    %1062 = vmatpush1.msra.mxu0 %v64
    %1063 = vmatprep.subr.mxu0 %v63
    %1064 = vmatpush1.msra.mxu0 %v62
    %1065 = vmatprep.subr.mxu0 %v61
    %1066 = vmatpush1.msra.mxu0 %v60
    %1067 = vmatprep.subr.mxu0 %v59
    %1068 = vmatpush1.msra.mxu0 %v58
    %1069 = vmatprep.subr.mxu0 %v57
    %1070 = vmatpush1.msra.mxu0 %v56
    %1071 = vmatprep.subr.mxu0 %v55
    %1072 = vmatpush1.msra.mxu0 %v54
    %1073 = vmatprep.subr.mxu0 0.0
    %1074 = vmatpush2.msra.mxu0 0.0
    %1075 = vmatprep.subr.mxu0 0.0
    %1076 = vmatpush2.msra.mxu0 0.0
    %1077 = vmatprep.subr.mxu0 0.0
    %1078 = vmatpush2.msra.mxu0 0.0
    %1079 = vmatprep.subr.mxu0 0.0
    %1080 = vmatpush2.msra.mxu0 0.0
    %1081 = vmatprep.subr.mxu0 0.0
    %1082 = vmatpush2.msra.mxu0 0.0
    %1083 = vmatprep.subr.mxu0 0.0
    %1084 = vmatpush2.msra.mxu0 0.0
    %1085 = vmatprep.subr.mxu0 0.0
    %1086 = vmatpush2.msra.mxu0 0.0
    %1087 = vmatprep.subr.mxu0 0.0
    %1088 = vmatpush2.msra.mxu0 0.0
    %1089 = vmatprep.subr.mxu0 0.0
    %1090 = vmatpush2.msra.mxu0 0.0
    %1091 = vmatprep.subr.mxu0 0.0
    %1092 = vmatpush2.msra.mxu0 0.0
    %1093 = vmatprep.subr.mxu0 0.0
    %1094 = vmatpush2.msra.mxu0 0.0
    %1095 = vmatprep.subr.mxu0 0.0
    %1096 = vmatpush2.msra.mxu0 0.0
    %1097 = vmatprep.subr.mxu0 0.0
    %1098 = vmatpush2.msra.mxu0 0.0
    %1099 = vmatprep.subr.mxu0 0.0
    %1100 = vmatpush2.msra.mxu0 0.0
    %1101 = vmatprep.subr.mxu0 0.0
    %1102 = vmatpush2.msra.mxu0 0.0
    %1103 = vmatprep.subr.mxu0 0.0
    %1104 = vmatpush2.msra.mxu0 0.0
    %1105 = vmatprep.mubr.f32.mxu0 0.0
    %1106 = vmatmul.mubr.f32.gmra.mxu0 %v1039
    %v1107 = vpop.f32.mrf.mxu0
    %v1108 = vadd.f32 0.0, %v1107
    %v1109 = vpop.f32.mrf.mxu0
    %v1110 = vadd.f32 0.0, %v1109
    %1111 = vdwg.mxu0
    %v1112 = vadd.f32 %v1034, %v1108
    %v1113 = vadd.f32 %v1035, %v1110
    %v1114 = vtanh.pop %v1112
    %v1115 = vtanh.pop %v1113
    %v1116 = vxor.u32 %v1112, 2147483648
    %v1117 = vxor.u32 %v1113, 2147483648
    %v1118 = vmul.f32 %v1116, 1.442695
    %v1119 = vpow.pop %v1118
    %v1120 = vmul.f32 %v1117, 1.442695
    %v1121 = vpow.pop %v1120
    %v1122 = vadd.f32 %v1119, 1.0
    %v1123 = vadd.f32 %v1121, 1.0
    %v1124 = vrcp.pop %v1122
    %v1125 = vmul.f32 1.0, %v1124
    %v1126 = vrcp.pop %v1123
    %v1127 = vmul.f32 1.0, %v1126
    %v1128 = vsel %vm77, %v1114, %v1125
    %v1129 = vsel %vm78, %v1115, %v1127
    %v1130 = vmul.f32 %v1128, %v1026
    %1133 = vrot.lane.b32.xlu0 %v1128, 28
    %v1134 = vpop.permute.xlu0 %1133
    %1135 = vrot.lane.b32.xlu0 %v1129, 28
    %v1136 = vpop.permute.xlu0 %1135
    %v1137 = vsel %vm192, %v1134, %v1136
    %v1139 = vmul.f32 %v1128, %v1137
    %1141 = vrot.lane.b32.xlu0 %v1139, 50
    %v1142 = vpop.permute.xlu0 %1141
    %v1144 = vadd.f32 %v1130, %v1142
    %v1145 = vtanh.pop %v1144
    %1147 = vrot.lane.b32.xlu0 %v1145, 100
    %v1148 = vpop.permute.xlu0 %1147
    %v1150 = vmul.f32 %v1129, %v1148
    %s1151 = scalar_lea.vmem %s0, 144
    %v1152 = vld [vmem:[%s1151] sm:$0xff]
    %v1153 = vld [vmem:[%s1151 + $0x8] sm:$0xff]
    %1155 = vrot.lane.b32.xlu0 %v1150, 106
    %v1156 = vpop.permute.xlu0 %1155
    %v1157 = vsel %vm81, %v1156, 0
    %1159 = vmatprep.subr.mxu0 0.0
    %1160 = vmatpush1.msra.mxu0 0.0
    %1161 = vmatprep.subr.mxu0 0.0
    %1162 = vmatpush1.msra.mxu0 0.0
    %1163 = vmatprep.subr.mxu0 0.0
    %1164 = vmatpush1.msra.mxu0 0.0
    %1165 = vmatprep.subr.mxu0 0.0
    %1166 = vmatpush1.msra.mxu0 0.0
    %1167 = vmatprep.subr.mxu0 0.0
    %1168 = vmatpush1.msra.mxu0 0.0
    %1169 = vmatprep.subr.mxu0 0.0
    %1170 = vmatpush1.msra.mxu0 0.0
    %1171 = vmatprep.subr.mxu0 0.0
    %1172 = vmatpush1.msra.mxu0 0.0
    %1173 = vmatprep.subr.mxu0 0.0
    %1174 = vmatpush1.msra.mxu0 0.0
    %1175 = vmatprep.subr.mxu0 0.0
    %1176 = vmatpush1.msra.mxu0 0.0
    %1177 = vmatprep.subr.mxu0 %v90
    %1178 = vmatpush1.msra.mxu0 %v87
    %1179 = vmatprep.subr.mxu0 %v65
    %1180 = vmatpush1.msra.mxu0 %v64
    %1181 = vmatprep.subr.mxu0 %v63
    %1182 = vmatpush1.msra.mxu0 %v62
    %1183 = vmatprep.subr.mxu0 %v61
    %1184 = vmatpush1.msra.mxu0 %v60
    %1185 = vmatprep.subr.mxu0 %v59
    %1186 = vmatpush1.msra.mxu0 %v58
    %1187 = vmatprep.subr.mxu0 %v57
    %1188 = vmatpush1.msra.mxu0 %v56
    %1189 = vmatprep.subr.mxu0 %v55
    %1190 = vmatpush1.msra.mxu0 %v54
    %1191 = vmatprep.subr.mxu0 0.0
    %1192 = vmatpush2.msra.mxu0 0.0
    %1193 = vmatprep.subr.mxu0 0.0
    %1194 = vmatpush2.msra.mxu0 0.0
    %1195 = vmatprep.subr.mxu0 0.0
    %1196 = vmatpush2.msra.mxu0 0.0
    %1197 = vmatprep.subr.mxu0 0.0
    %1198 = vmatpush2.msra.mxu0 0.0
    %1199 = vmatprep.subr.mxu0 0.0
    %1200 = vmatpush2.msra.mxu0 0.0
    %1201 = vmatprep.subr.mxu0 0.0
    %1202 = vmatpush2.msra.mxu0 0.0
    %1203 = vmatprep.subr.mxu0 0.0
    %1204 = vmatpush2.msra.mxu0 0.0
    %1205 = vmatprep.subr.mxu0 0.0
    %1206 = vmatpush2.msra.mxu0 0.0
    %1207 = vmatprep.subr.mxu0 0.0
    %1208 = vmatpush2.msra.mxu0 0.0
    %1209 = vmatprep.subr.mxu0 0.0
    %1210 = vmatpush2.msra.mxu0 0.0
    %1211 = vmatprep.subr.mxu0 0.0
    %1212 = vmatpush2.msra.mxu0 0.0
    %1213 = vmatprep.subr.mxu0 0.0
    %1214 = vmatpush2.msra.mxu0 0.0
    %1215 = vmatprep.subr.mxu0 0.0
    %1216 = vmatpush2.msra.mxu0 0.0
    %1217 = vmatprep.subr.mxu0 0.0
    %1218 = vmatpush2.msra.mxu0 0.0
    %1219 = vmatprep.subr.mxu0 0.0
    %1220 = vmatpush2.msra.mxu0 0.0
    %1221 = vmatprep.subr.mxu0 0.0
    %1222 = vmatpush2.msra.mxu0 0.0
    %1223 = vmatprep.mubr.f32.mxu0 0.0
    %1224 = vmatmul.mubr.f32.gmra.mxu0 %v1157
    %v1225 = vpop.f32.mrf.mxu0
    %v1226 = vadd.f32 0.0, %v1225
    %v1227 = vpop.f32.mrf.mxu0
    %v1228 = vadd.f32 0.0, %v1227
    %1229 = vdwg.mxu0
    %v1230 = vadd.f32 %v1152, %v1226
    %v1231 = vadd.f32 %v1153, %v1228
    %v1232 = vtanh.pop %v1230
    %v1233 = vtanh.pop %v1231
    %v1234 = vxor.u32 %v1230, 2147483648
    %v1235 = vxor.u32 %v1231, 2147483648
    %v1236 = vmul.f32 %v1234, 1.442695
    %v1237 = vpow.pop %v1236
    %v1238 = vmul.f32 %v1235, 1.442695
    %v1239 = vpow.pop %v1238
    %v1240 = vadd.f32 %v1237, 1.0
    %v1241 = vadd.f32 %v1239, 1.0
    %v1242 = vrcp.pop %v1240
    %v1243 = vmul.f32 1.0, %v1242
    %v1244 = vrcp.pop %v1241
    %v1245 = vmul.f32 1.0, %v1244
    %v1246 = vsel %vm77, %v1232, %v1243
    %v1247 = vsel %vm78, %v1233, %v1245
    %v1248 = vmul.f32 %v1246, %v1144
    %1251 = vrot.lane.b32.xlu0 %v1246, 28
    %v1252 = vpop.permute.xlu0 %1251
    %1253 = vrot.lane.b32.xlu0 %v1247, 28
    %v1254 = vpop.permute.xlu0 %1253
    %v1255 = vsel %vm192, %v1252, %v1254
    %v1257 = vmul.f32 %v1246, %v1255
    %1259 = vrot.lane.b32.xlu0 %v1257, 50
    %v1260 = vpop.permute.xlu0 %1259
    %v1262 = vadd.f32 %v1248, %v1260
    %v1263 = vtanh.pop %v1262
    %1265 = vrot.lane.b32.xlu0 %v1263, 100
    %v1266 = vpop.permute.xlu0 %1265
    %v1268 = vmul.f32 %v1247, %v1266
    %s1269 = scalar_lea.vmem %s0, 160
    %v1270 = vld [vmem:[%s1269] sm:$0xff]
    %v1271 = vld [vmem:[%s1269 + $0x8] sm:$0xff]
    %1273 = vrot.lane.b32.xlu0 %v1268, 106
    %v1274 = vpop.permute.xlu0 %1273
    %v1275 = vsel %vm81, %v1274, 0
    %1277 = vmatprep.subr.mxu0 0.0
    %1278 = vmatpush1.msra.mxu0 0.0
    %1279 = vmatprep.subr.mxu0 0.0
    %1280 = vmatpush1.msra.mxu0 0.0
    %1281 = vmatprep.subr.mxu0 0.0
    %1282 = vmatpush1.msra.mxu0 0.0
    %1283 = vmatprep.subr.mxu0 0.0
    %1284 = vmatpush1.msra.mxu0 0.0
    %1285 = vmatprep.subr.mxu0 0.0
    %1286 = vmatpush1.msra.mxu0 0.0
    %1287 = vmatprep.subr.mxu0 0.0
    %1288 = vmatpush1.msra.mxu0 0.0
    %1289 = vmatprep.subr.mxu0 0.0
    %1290 = vmatpush1.msra.mxu0 0.0
    %1291 = vmatprep.subr.mxu0 0.0
    %1292 = vmatpush1.msra.mxu0 0.0
    %1293 = vmatprep.subr.mxu0 0.0
    %1294 = vmatpush1.msra.mxu0 0.0
    %1295 = vmatprep.subr.mxu0 %v90
    %1296 = vmatpush1.msra.mxu0 %v87
    %1297 = vmatprep.subr.mxu0 %v65
    %1298 = vmatpush1.msra.mxu0 %v64
    %1299 = vmatprep.subr.mxu0 %v63
    %1300 = vmatpush1.msra.mxu0 %v62
    %1301 = vmatprep.subr.mxu0 %v61
    %1302 = vmatpush1.msra.mxu0 %v60
    %1303 = vmatprep.subr.mxu0 %v59
    %1304 = vmatpush1.msra.mxu0 %v58
    %1305 = vmatprep.subr.mxu0 %v57
    %1306 = vmatpush1.msra.mxu0 %v56
    %1307 = vmatprep.subr.mxu0 %v55
    %1308 = vmatpush1.msra.mxu0 %v54
    %1309 = vmatprep.subr.mxu0 0.0
    %1310 = vmatpush2.msra.mxu0 0.0
    %1311 = vmatprep.subr.mxu0 0.0
    %1312 = vmatpush2.msra.mxu0 0.0
    %1313 = vmatprep.subr.mxu0 0.0
    %1314 = vmatpush2.msra.mxu0 0.0
    %1315 = vmatprep.subr.mxu0 0.0
    %1316 = vmatpush2.msra.mxu0 0.0
    %1317 = vmatprep.subr.mxu0 0.0
    %1318 = vmatpush2.msra.mxu0 0.0
    %1319 = vmatprep.subr.mxu0 0.0
    %1320 = vmatpush2.msra.mxu0 0.0
    %1321 = vmatprep.subr.mxu0 0.0
    %1322 = vmatpush2.msra.mxu0 0.0
    %1323 = vmatprep.subr.mxu0 0.0
    %1324 = vmatpush2.msra.mxu0 0.0
    %1325 = vmatprep.subr.mxu0 0.0
    %1326 = vmatpush2.msra.mxu0 0.0
    %1327 = vmatprep.subr.mxu0 0.0
    %1328 = vmatpush2.msra.mxu0 0.0
    %1329 = vmatprep.subr.mxu0 0.0
    %1330 = vmatpush2.msra.mxu0 0.0
    %1331 = vmatprep.subr.mxu0 0.0
    %1332 = vmatpush2.msra.mxu0 0.0
    %1333 = vmatprep.subr.mxu0 0.0
    %1334 = vmatpush2.msra.mxu0 0.0
    %1335 = vmatprep.subr.mxu0 0.0
    %1336 = vmatpush2.msra.mxu0 0.0
    %1337 = vmatprep.subr.mxu0 0.0
    %1338 = vmatpush2.msra.mxu0 0.0
    %1339 = vmatprep.subr.mxu0 0.0
    %1340 = vmatpush2.msra.mxu0 0.0
    %1341 = vmatprep.mubr.f32.mxu0 0.0
    %1342 = vmatmul.mubr.f32.gmra.mxu0 %v1275
    %v1343 = vpop.f32.mrf.mxu0
    %v1344 = vadd.f32 0.0, %v1343
    %v1345 = vpop.f32.mrf.mxu0
    %v1346 = vadd.f32 0.0, %v1345
    %1347 = vdwg.mxu0
    %v1348 = vadd.f32 %v1270, %v1344
    %v1349 = vadd.f32 %v1271, %v1346
    %v1350 = vtanh.pop %v1348
    %v1351 = vtanh.pop %v1349
    %v1352 = vxor.u32 %v1348, 2147483648
    %v1353 = vxor.u32 %v1349, 2147483648
    %v1354 = vmul.f32 %v1352, 1.442695
    %v1355 = vpow.pop %v1354
    %v1356 = vmul.f32 %v1353, 1.442695
    %v1357 = vpow.pop %v1356
    %v1358 = vadd.f32 %v1355, 1.0
    %v1359 = vadd.f32 %v1357, 1.0
    %v1360 = vrcp.pop %v1358
    %v1361 = vmul.f32 1.0, %v1360
    %v1362 = vrcp.pop %v1359
    %v1363 = vmul.f32 1.0, %v1362
    %v1364 = vsel %vm77, %v1350, %v1361
    %v1365 = vsel %vm78, %v1351, %v1363
    %v1366 = vmul.f32 %v1364, %v1262
    %1369 = vrot.lane.b32.xlu0 %v1364, 28
    %v1370 = vpop.permute.xlu0 %1369
    %1371 = vrot.lane.b32.xlu0 %v1365, 28
    %v1372 = vpop.permute.xlu0 %1371
    %v1373 = vsel %vm192, %v1370, %v1372
    %v1375 = vmul.f32 %v1364, %v1373
    %1377 = vrot.lane.b32.xlu0 %v1375, 50
    %v1378 = vpop.permute.xlu0 %1377
    %v1380 = vadd.f32 %v1366, %v1378
    %v1381 = vtanh.pop %v1380
    %1383 = vrot.lane.b32.xlu0 %v1381, 100
    %v1384 = vpop.permute.xlu0 %1383
    %v1386 = vmul.f32 %v1365, %v1384
    %s1387 = scalar_lea.vmem %s0, 176
    %v1388 = vld [vmem:[%s1387] sm:$0xff]
    %v1389 = vld [vmem:[%s1387 + $0x8] sm:$0xff]
    %1391 = vrot.lane.b32.xlu0 %v1386, 106
    %v1392 = vpop.permute.xlu0 %1391
    %v1393 = vsel %vm81, %v1392, 0
    %1395 = vmatprep.subr.mxu0 0.0
    %1396 = vmatpush1.msra.mxu0 0.0
    %1397 = vmatprep.subr.mxu0 0.0
    %1398 = vmatpush1.msra.mxu0 0.0
    %1399 = vmatprep.subr.mxu0 0.0
    %1400 = vmatpush1.msra.mxu0 0.0
    %1401 = vmatprep.subr.mxu0 0.0
    %1402 = vmatpush1.msra.mxu0 0.0
    %1403 = vmatprep.subr.mxu0 0.0
    %1404 = vmatpush1.msra.mxu0 0.0
    %1405 = vmatprep.subr.mxu0 0.0
    %1406 = vmatpush1.msra.mxu0 0.0
    %1407 = vmatprep.subr.mxu0 0.0
    %1408 = vmatpush1.msra.mxu0 0.0
    %1409 = vmatprep.subr.mxu0 0.0
    %1410 = vmatpush1.msra.mxu0 0.0
    %1411 = vmatprep.subr.mxu0 0.0
    %1412 = vmatpush1.msra.mxu0 0.0
    %1413 = vmatprep.subr.mxu0 %v90
    %1414 = vmatpush1.msra.mxu0 %v87
    %1415 = vmatprep.subr.mxu0 %v65
    %1416 = vmatpush1.msra.mxu0 %v64
    %1417 = vmatprep.subr.mxu0 %v63
    %1418 = vmatpush1.msra.mxu0 %v62
    %1419 = vmatprep.subr.mxu0 %v61
    %1420 = vmatpush1.msra.mxu0 %v60
    %1421 = vmatprep.subr.mxu0 %v59
    %1422 = vmatpush1.msra.mxu0 %v58
    %1423 = vmatprep.subr.mxu0 %v57
    %1424 = vmatpush1.msra.mxu0 %v56
    %1425 = vmatprep.subr.mxu0 %v55
    %1426 = vmatpush1.msra.mxu0 %v54
    %1427 = vmatprep.subr.mxu0 0.0
    %1428 = vmatpush2.msra.mxu0 0.0
    %1429 = vmatprep.subr.mxu0 0.0
    %1430 = vmatpush2.msra.mxu0 0.0
    %1431 = vmatprep.subr.mxu0 0.0
    %1432 = vmatpush2.msra.mxu0 0.0
    %1433 = vmatprep.subr.mxu0 0.0
    %1434 = vmatpush2.msra.mxu0 0.0
    %1435 = vmatprep.subr.mxu0 0.0
    %1436 = vmatpush2.msra.mxu0 0.0
    %1437 = vmatprep.subr.mxu0 0.0
    %1438 = vmatpush2.msra.mxu0 0.0
    %1439 = vmatprep.subr.mxu0 0.0
    %1440 = vmatpush2.msra.mxu0 0.0
    %1441 = vmatprep.subr.mxu0 0.0
    %1442 = vmatpush2.msra.mxu0 0.0
    %1443 = vmatprep.subr.mxu0 0.0
    %1444 = vmatpush2.msra.mxu0 0.0
    %1445 = vmatprep.subr.mxu0 0.0
    %1446 = vmatpush2.msra.mxu0 0.0
    %1447 = vmatprep.subr.mxu0 0.0
    %1448 = vmatpush2.msra.mxu0 0.0
    %1449 = vmatprep.subr.mxu0 0.0
    %1450 = vmatpush2.msra.mxu0 0.0
    %1451 = vmatprep.subr.mxu0 0.0
    %1452 = vmatpush2.msra.mxu0 0.0
    %1453 = vmatprep.subr.mxu0 0.0
    %1454 = vmatpush2.msra.mxu0 0.0
    %1455 = vmatprep.subr.mxu0 0.0
    %1456 = vmatpush2.msra.mxu0 0.0
    %1457 = vmatprep.subr.mxu0 0.0
    %1458 = vmatpush2.msra.mxu0 0.0
    %1459 = vmatprep.mubr.f32.mxu0 0.0
    %1460 = vmatmul.mubr.f32.gmra.mxu0 %v1393
    %v1461 = vpop.f32.mrf.mxu0
    %v1462 = vadd.f32 0.0, %v1461
    %v1463 = vpop.f32.mrf.mxu0
    %v1464 = vadd.f32 0.0, %v1463
    %1465 = vdwg.mxu0
    %v1466 = vadd.f32 %v1388, %v1462
    %v1467 = vadd.f32 %v1389, %v1464
    %v1468 = vtanh.pop %v1466
    %v1469 = vtanh.pop %v1467
    %v1470 = vxor.u32 %v1466, 2147483648
    %v1471 = vxor.u32 %v1467, 2147483648
    %v1472 = vmul.f32 %v1470, 1.442695
    %v1473 = vpow.pop %v1472
    %v1474 = vmul.f32 %v1471, 1.442695
    %v1475 = vpow.pop %v1474
    %v1476 = vadd.f32 %v1473, 1.0
    %v1477 = vadd.f32 %v1475, 1.0
    %v1478 = vrcp.pop %v1476
    %v1479 = vmul.f32 1.0, %v1478
    %v1480 = vrcp.pop %v1477
    %v1481 = vmul.f32 1.0, %v1480
    %v1482 = vsel %vm77, %v1468, %v1479
    %v1483 = vsel %vm78, %v1469, %v1481
    %v1484 = vmul.f32 %v1482, %v1380
    %1487 = vrot.lane.b32.xlu0 %v1482, 28
    %v1488 = vpop.permute.xlu0 %1487
    %1489 = vrot.lane.b32.xlu0 %v1483, 28
    %v1490 = vpop.permute.xlu0 %1489
    %v1491 = vsel %vm192, %v1488, %v1490
    %v1493 = vmul.f32 %v1482, %v1491
    %1495 = vrot.lane.b32.xlu0 %v1493, 50
    %v1496 = vpop.permute.xlu0 %1495
    %v1498 = vadd.f32 %v1484, %v1496
    %v1499 = vtanh.pop %v1498
    %1501 = vrot.lane.b32.xlu0 %v1499, 100
    %v1502 = vpop.permute.xlu0 %1501
    %v1504 = vmul.f32 %v1483, %v1502
    %s1505 = scalar_lea.vmem %s0, 192
    %v1506 = vld [vmem:[%s1505] sm:$0xff]
    %v1507 = vld [vmem:[%s1505 + $0x8] sm:$0xff]
    %1509 = vrot.lane.b32.xlu0 %v1504, 106
    %v1510 = vpop.permute.xlu0 %1509
    %v1511 = vsel %vm81, %v1510, 0
    %1513 = vmatprep.subr.mxu0 0.0
    %1514 = vmatpush1.msra.mxu0 0.0
    %1515 = vmatprep.subr.mxu0 0.0
    %1516 = vmatpush1.msra.mxu0 0.0
    %1517 = vmatprep.subr.mxu0 0.0
    %1518 = vmatpush1.msra.mxu0 0.0
    %1519 = vmatprep.subr.mxu0 0.0
    %1520 = vmatpush1.msra.mxu0 0.0
    %1521 = vmatprep.subr.mxu0 0.0
    %1522 = vmatpush1.msra.mxu0 0.0
    %1523 = vmatprep.subr.mxu0 0.0
    %1524 = vmatpush1.msra.mxu0 0.0
    %1525 = vmatprep.subr.mxu0 0.0
    %1526 = vmatpush1.msra.mxu0 0.0
    %1527 = vmatprep.subr.mxu0 0.0
    %1528 = vmatpush1.msra.mxu0 0.0
    %1529 = vmatprep.subr.mxu0 0.0
    %1530 = vmatpush1.msra.mxu0 0.0
    %1531 = vmatprep.subr.mxu0 %v90
    %1532 = vmatpush1.msra.mxu0 %v87
    %1533 = vmatprep.subr.mxu0 %v65
    %1534 = vmatpush1.msra.mxu0 %v64
    %1535 = vmatprep.subr.mxu0 %v63
    %1536 = vmatpush1.msra.mxu0 %v62
    %1537 = vmatprep.subr.mxu0 %v61
    %1538 = vmatpush1.msra.mxu0 %v60
    %1539 = vmatprep.subr.mxu0 %v59
    %1540 = vmatpush1.msra.mxu0 %v58
    %1541 = vmatprep.subr.mxu0 %v57
    %1542 = vmatpush1.msra.mxu0 %v56
    %1543 = vmatprep.subr.mxu0 %v55
    %1544 = vmatpush1.msra.mxu0 %v54
    %1545 = vmatprep.subr.mxu0 0.0
    %1546 = vmatpush2.msra.mxu0 0.0
    %1547 = vmatprep.subr.mxu0 0.0
    %1548 = vmatpush2.msra.mxu0 0.0
    %1549 = vmatprep.subr.mxu0 0.0
    %1550 = vmatpush2.msra.mxu0 0.0
    %1551 = vmatprep.subr.mxu0 0.0
    %1552 = vmatpush2.msra.mxu0 0.0
    %1553 = vmatprep.subr.mxu0 0.0
    %1554 = vmatpush2.msra.mxu0 0.0
    %1555 = vmatprep.subr.mxu0 0.0
    %1556 = vmatpush2.msra.mxu0 0.0
    %1557 = vmatprep.subr.mxu0 0.0
    %1558 = vmatpush2.msra.mxu0 0.0
    %1559 = vmatprep.subr.mxu0 0.0
    %1560 = vmatpush2.msra.mxu0 0.0
    %1561 = vmatprep.subr.mxu0 0.0
    %1562 = vmatpush2.msra.mxu0 0.0
    %1563 = vmatprep.subr.mxu0 0.0
    %1564 = vmatpush2.msra.mxu0 0.0
    %1565 = vmatprep.subr.mxu0 0.0
    %1566 = vmatpush2.msra.mxu0 0.0
    %1567 = vmatprep.subr.mxu0 0.0
    %1568 = vmatpush2.msra.mxu0 0.0
    %1569 = vmatprep.subr.mxu0 0.0
    %1570 = vmatpush2.msra.mxu0 0.0
    %1571 = vmatprep.subr.mxu0 0.0
    %1572 = vmatpush2.msra.mxu0 0.0
    %1573 = vmatprep.subr.mxu0 0.0
    %1574 = vmatpush2.msra.mxu0 0.0
    %1575 = vmatprep.subr.mxu0 0.0
    %1576 = vmatpush2.msra.mxu0 0.0
    %1577 = vmatprep.mubr.f32.mxu0 0.0
    %1578 = vmatmul.mubr.f32.gmra.mxu0 %v1511
    %v1579 = vpop.f32.mrf.mxu0
    %v1580 = vadd.f32 0.0, %v1579
    %v1581 = vpop.f32.mrf.mxu0
    %v1582 = vadd.f32 0.0, %v1581
    %1583 = vdwg.mxu0
    %v1584 = vadd.f32 %v1506, %v1580
    %v1585 = vadd.f32 %v1507, %v1582
    %v1586 = vtanh.pop %v1584
    %v1587 = vtanh.pop %v1585
    %v1588 = vxor.u32 %v1584, 2147483648
    %v1589 = vxor.u32 %v1585, 2147483648
    %v1590 = vmul.f32 %v1588, 1.442695
    %v1591 = vpow.pop %v1590
    %v1592 = vmul.f32 %v1589, 1.442695
    %v1593 = vpow.pop %v1592
    %v1594 = vadd.f32 %v1591, 1.0
    %v1595 = vadd.f32 %v1593, 1.0
    %v1596 = vrcp.pop %v1594
    %v1597 = vmul.f32 1.0, %v1596
    %v1598 = vrcp.pop %v1595
    %v1599 = vmul.f32 1.0, %v1598
    %v1600 = vsel %vm77, %v1586, %v1597
    %v1601 = vsel %vm78, %v1587, %v1599
    %v1602 = vmul.f32 %v1600, %v1498
    %1605 = vrot.lane.b32.xlu0 %v1600, 28
    %v1606 = vpop.permute.xlu0 %1605
    %1607 = vrot.lane.b32.xlu0 %v1601, 28
    %v1608 = vpop.permute.xlu0 %1607
    %v1609 = vsel %vm192, %v1606, %v1608
    %v1611 = vmul.f32 %v1600, %v1609
    %1613 = vrot.lane.b32.xlu0 %v1611, 50
    %v1614 = vpop.permute.xlu0 %1613
    %v1616 = vadd.f32 %v1602, %v1614
    %v1617 = vtanh.pop %v1616
    %1619 = vrot.lane.b32.xlu0 %v1617, 100
    %v1620 = vpop.permute.xlu0 %1619
    %v1622 = vmul.f32 %v1601, %v1620
    %s1623 = scalar_lea.vmem %s0, 208
    %v1624 = vld [vmem:[%s1623] sm:$0xff]
    %v1625 = vld [vmem:[%s1623 + $0x8] sm:$0xff]
    %1627 = vrot.lane.b32.xlu0 %v1622, 106
    %v1628 = vpop.permute.xlu0 %1627
    %v1629 = vsel %vm81, %v1628, 0
    %1631 = vmatprep.subr.mxu0 0.0
    %1632 = vmatpush1.msra.mxu0 0.0
    %1633 = vmatprep.subr.mxu0 0.0
    %1634 = vmatpush1.msra.mxu0 0.0
    %1635 = vmatprep.subr.mxu0 0.0
    %1636 = vmatpush1.msra.mxu0 0.0
    %1637 = vmatprep.subr.mxu0 0.0
    %1638 = vmatpush1.msra.mxu0 0.0
    %1639 = vmatprep.subr.mxu0 0.0
    %1640 = vmatpush1.msra.mxu0 0.0
    %1641 = vmatprep.subr.mxu0 0.0
    %1642 = vmatpush1.msra.mxu0 0.0
    %1643 = vmatprep.subr.mxu0 0.0
    %1644 = vmatpush1.msra.mxu0 0.0
    %1645 = vmatprep.subr.mxu0 0.0
    %1646 = vmatpush1.msra.mxu0 0.0
    %1647 = vmatprep.subr.mxu0 0.0
    %1648 = vmatpush1.msra.mxu0 0.0
    %1649 = vmatprep.subr.mxu0 %v90
    %1650 = vmatpush1.msra.mxu0 %v87
    %1651 = vmatprep.subr.mxu0 %v65
    %1652 = vmatpush1.msra.mxu0 %v64
    %1653 = vmatprep.subr.mxu0 %v63
    %1654 = vmatpush1.msra.mxu0 %v62
    %1655 = vmatprep.subr.mxu0 %v61
    %1656 = vmatpush1.msra.mxu0 %v60
    %1657 = vmatprep.subr.mxu0 %v59
    %1658 = vmatpush1.msra.mxu0 %v58
    %1659 = vmatprep.subr.mxu0 %v57
    %1660 = vmatpush1.msra.mxu0 %v56
    %1661 = vmatprep.subr.mxu0 %v55
    %1662 = vmatpush1.msra.mxu0 %v54
    %1663 = vmatprep.subr.mxu0 0.0
    %1664 = vmatpush2.msra.mxu0 0.0
    %1665 = vmatprep.subr.mxu0 0.0
    %1666 = vmatpush2.msra.mxu0 0.0
    %1667 = vmatprep.subr.mxu0 0.0
    %1668 = vmatpush2.msra.mxu0 0.0
    %1669 = vmatprep.subr.mxu0 0.0
    %1670 = vmatpush2.msra.mxu0 0.0
    %1671 = vmatprep.subr.mxu0 0.0
    %1672 = vmatpush2.msra.mxu0 0.0
    %1673 = vmatprep.subr.mxu0 0.0
    %1674 = vmatpush2.msra.mxu0 0.0
    %1675 = vmatprep.subr.mxu0 0.0
    %1676 = vmatpush2.msra.mxu0 0.0
    %1677 = vmatprep.subr.mxu0 0.0
    %1678 = vmatpush2.msra.mxu0 0.0
    %1679 = vmatprep.subr.mxu0 0.0
    %1680 = vmatpush2.msra.mxu0 0.0
    %1681 = vmatprep.subr.mxu0 0.0
    %1682 = vmatpush2.msra.mxu0 0.0
    %1683 = vmatprep.subr.mxu0 0.0
    %1684 = vmatpush2.msra.mxu0 0.0
    %1685 = vmatprep.subr.mxu0 0.0
    %1686 = vmatpush2.msra.mxu0 0.0
    %1687 = vmatprep.subr.mxu0 0.0
    %1688 = vmatpush2.msra.mxu0 0.0
    %1689 = vmatprep.subr.mxu0 0.0
    %1690 = vmatpush2.msra.mxu0 0.0
    %1691 = vmatprep.subr.mxu0 0.0
    %1692 = vmatpush2.msra.mxu0 0.0
    %1693 = vmatprep.subr.mxu0 0.0
    %1694 = vmatpush2.msra.mxu0 0.0
    %1695 = vmatprep.mubr.f32.mxu0 0.0
    %1696 = vmatmul.mubr.f32.gmra.mxu0 %v1629
    %v1697 = vpop.f32.mrf.mxu0
    %v1698 = vadd.f32 0.0, %v1697
    %v1699 = vpop.f32.mrf.mxu0
    %v1700 = vadd.f32 0.0, %v1699
    %1701 = vdwg.mxu0
    %v1702 = vadd.f32 %v1624, %v1698
    %v1703 = vadd.f32 %v1625, %v1700
    %v1704 = vtanh.pop %v1702
    %v1705 = vtanh.pop %v1703
    %v1706 = vxor.u32 %v1702, 2147483648
    %v1707 = vxor.u32 %v1703, 2147483648
    %v1708 = vmul.f32 %v1706, 1.442695
    %v1709 = vpow.pop %v1708
    %v1710 = vmul.f32 %v1707, 1.442695
    %v1711 = vpow.pop %v1710
    %v1712 = vadd.f32 %v1709, 1.0
    %v1713 = vadd.f32 %v1711, 1.0
    %v1714 = vrcp.pop %v1712
    %v1715 = vmul.f32 1.0, %v1714
    %v1716 = vrcp.pop %v1713
    %v1717 = vmul.f32 1.0, %v1716
    %v1718 = vsel %vm77, %v1704, %v1715
    %v1719 = vsel %vm78, %v1705, %v1717
    %v1720 = vmul.f32 %v1718, %v1616
    %1723 = vrot.lane.b32.xlu0 %v1718, 28
    %v1724 = vpop.permute.xlu0 %1723
    %1725 = vrot.lane.b32.xlu0 %v1719, 28
    %v1726 = vpop.permute.xlu0 %1725
    %v1727 = vsel %vm192, %v1724, %v1726
    %v1729 = vmul.f32 %v1718, %v1727
    %1731 = vrot.lane.b32.xlu0 %v1729, 50
    %v1732 = vpop.permute.xlu0 %1731
    %v1734 = vadd.f32 %v1720, %v1732
    %v1735 = vtanh.pop %v1734
    %1737 = vrot.lane.b32.xlu0 %v1735, 100
    %v1738 = vpop.permute.xlu0 %1737
    %v1740 = vmul.f32 %v1719, %v1738
    %s1741 = scalar_lea.vmem %s0, 224
    %v1742 = vld [vmem:[%s1741] sm:$0xff]
    %v1743 = vld [vmem:[%s1741 + $0x8] sm:$0xff]
    %1745 = vrot.lane.b32.xlu0 %v1740, 106
    %v1746 = vpop.permute.xlu0 %1745
    %v1747 = vsel %vm81, %v1746, 0
    %1749 = vmatprep.subr.mxu0 0.0
    %1750 = vmatpush1.msra.mxu0 0.0
    %1751 = vmatprep.subr.mxu0 0.0
    %1752 = vmatpush1.msra.mxu0 0.0
    %1753 = vmatprep.subr.mxu0 0.0
    %1754 = vmatpush1.msra.mxu0 0.0
    %1755 = vmatprep.subr.mxu0 0.0
    %1756 = vmatpush1.msra.mxu0 0.0
    %1757 = vmatprep.subr.mxu0 0.0
    %1758 = vmatpush1.msra.mxu0 0.0
    %1759 = vmatprep.subr.mxu0 0.0
    %1760 = vmatpush1.msra.mxu0 0.0
    %1761 = vmatprep.subr.mxu0 0.0
    %1762 = vmatpush1.msra.mxu0 0.0
    %1763 = vmatprep.subr.mxu0 0.0
    %1764 = vmatpush1.msra.mxu0 0.0
    %1765 = vmatprep.subr.mxu0 0.0
    %1766 = vmatpush1.msra.mxu0 0.0
    %1767 = vmatprep.subr.mxu0 %v90
    %1768 = vmatpush1.msra.mxu0 %v87
    %1769 = vmatprep.subr.mxu0 %v65
    %1770 = vmatpush1.msra.mxu0 %v64
    %1771 = vmatprep.subr.mxu0 %v63
    %1772 = vmatpush1.msra.mxu0 %v62
    %1773 = vmatprep.subr.mxu0 %v61
    %1774 = vmatpush1.msra.mxu0 %v60
    %1775 = vmatprep.subr.mxu0 %v59
    %1776 = vmatpush1.msra.mxu0 %v58
    %1777 = vmatprep.subr.mxu0 %v57
    %1778 = vmatpush1.msra.mxu0 %v56
    %1779 = vmatprep.subr.mxu0 %v55
    %1780 = vmatpush1.msra.mxu0 %v54
    %1781 = vmatprep.subr.mxu0 0.0
    %1782 = vmatpush2.msra.mxu0 0.0
    %1783 = vmatprep.subr.mxu0 0.0
    %1784 = vmatpush2.msra.mxu0 0.0
    %1785 = vmatprep.subr.mxu0 0.0
    %1786 = vmatpush2.msra.mxu0 0.0
    %1787 = vmatprep.subr.mxu0 0.0
    %1788 = vmatpush2.msra.mxu0 0.0
    %1789 = vmatprep.subr.mxu0 0.0
    %1790 = vmatpush2.msra.mxu0 0.0
    %1791 = vmatprep.subr.mxu0 0.0
    %1792 = vmatpush2.msra.mxu0 0.0
    %1793 = vmatprep.subr.mxu0 0.0
    %1794 = vmatpush2.msra.mxu0 0.0
    %1795 = vmatprep.subr.mxu0 0.0
    %1796 = vmatpush2.msra.mxu0 0.0
    %1797 = vmatprep.subr.mxu0 0.0
    %1798 = vmatpush2.msra.mxu0 0.0
    %1799 = vmatprep.subr.mxu0 0.0
    %1800 = vmatpush2.msra.mxu0 0.0
    %1801 = vmatprep.subr.mxu0 0.0
    %1802 = vmatpush2.msra.mxu0 0.0
    %1803 = vmatprep.subr.mxu0 0.0
    %1804 = vmatpush2.msra.mxu0 0.0
    %1805 = vmatprep.subr.mxu0 0.0
    %1806 = vmatpush2.msra.mxu0 0.0
    %1807 = vmatprep.subr.mxu0 0.0
    %1808 = vmatpush2.msra.mxu0 0.0
    %1809 = vmatprep.subr.mxu0 0.0
    %1810 = vmatpush2.msra.mxu0 0.0
    %1811 = vmatprep.subr.mxu0 0.0
    %1812 = vmatpush2.msra.mxu0 0.0
    %1813 = vmatprep.mubr.f32.mxu0 0.0
    %1814 = vmatmul.mubr.f32.gmra.mxu0 %v1747
    %v1815 = vpop.f32.mrf.mxu0
    %v1816 = vadd.f32 0.0, %v1815
    %v1817 = vpop.f32.mrf.mxu0
    %v1818 = vadd.f32 0.0, %v1817
    %1819 = vdwg.mxu0
    %v1820 = vadd.f32 %v1742, %v1816
    %v1821 = vadd.f32 %v1743, %v1818
    %v1822 = vtanh.pop %v1820
    %v1823 = vtanh.pop %v1821
    %v1824 = vxor.u32 %v1820, 2147483648
    %v1825 = vxor.u32 %v1821, 2147483648
    %v1826 = vmul.f32 %v1824, 1.442695
    %v1827 = vpow.pop %v1826
    %v1828 = vmul.f32 %v1825, 1.442695
    %v1829 = vpow.pop %v1828
    %v1830 = vadd.f32 %v1827, 1.0
    %v1831 = vadd.f32 %v1829, 1.0
    %v1832 = vrcp.pop %v1830
    %v1833 = vmul.f32 1.0, %v1832
    %v1834 = vrcp.pop %v1831
    %v1835 = vmul.f32 1.0, %v1834
    %v1836 = vsel %vm77, %v1822, %v1833
    %v1837 = vsel %vm78, %v1823, %v1835
    %v1838 = vmul.f32 %v1836, %v1734
    %1841 = vrot.lane.b32.xlu0 %v1836, 28
    %v1842 = vpop.permute.xlu0 %1841
    %1843 = vrot.lane.b32.xlu0 %v1837, 28
    %v1844 = vpop.permute.xlu0 %1843
    %v1845 = vsel %vm192, %v1842, %v1844
    %v1847 = vmul.f32 %v1836, %v1845
    %1849 = vrot.lane.b32.xlu0 %v1847, 50
    %v1850 = vpop.permute.xlu0 %1849
    %v1852 = vadd.f32 %v1838, %v1850
    %v1853 = vtanh.pop %v1852
    %1855 = vrot.lane.b32.xlu0 %v1853, 100
    %v1856 = vpop.permute.xlu0 %1855
    %v1858 = vmul.f32 %v1837, %v1856
    %s1859 = scalar_lea.vmem %s0, 240
    %v1860 = vld [vmem:[%s1859] sm:$0xff]
    %v1861 = vld [vmem:[%s1859 + $0x8] sm:$0xff]
    %1863 = vrot.lane.b32.xlu0 %v1858, 106
    %v1864 = vpop.permute.xlu0 %1863
    %v1865 = vsel %vm81, %v1864, 0
    %1867 = vmatprep.subr.mxu0 0.0
    %1868 = vmatpush1.msra.mxu0 0.0
    %1869 = vmatprep.subr.mxu0 0.0
    %1870 = vmatpush1.msra.mxu0 0.0
    %1871 = vmatprep.subr.mxu0 0.0
    %1872 = vmatpush1.msra.mxu0 0.0
    %1873 = vmatprep.subr.mxu0 0.0
    %1874 = vmatpush1.msra.mxu0 0.0
    %1875 = vmatprep.subr.mxu0 0.0
    %1876 = vmatpush1.msra.mxu0 0.0
    %1877 = vmatprep.subr.mxu0 0.0
    %1878 = vmatpush1.msra.mxu0 0.0
    %1879 = vmatprep.subr.mxu0 0.0
    %1880 = vmatpush1.msra.mxu0 0.0
    %1881 = vmatprep.subr.mxu0 0.0
    %1882 = vmatpush1.msra.mxu0 0.0
    %1883 = vmatprep.subr.mxu0 0.0
    %1884 = vmatpush1.msra.mxu0 0.0
    %1885 = vmatprep.subr.mxu0 %v90
    %1886 = vmatpush1.msra.mxu0 %v87
    %1887 = vmatprep.subr.mxu0 %v65
    %1888 = vmatpush1.msra.mxu0 %v64
    %1889 = vmatprep.subr.mxu0 %v63
    %1890 = vmatpush1.msra.mxu0 %v62
    %1891 = vmatprep.subr.mxu0 %v61
    %1892 = vmatpush1.msra.mxu0 %v60
    %1893 = vmatprep.subr.mxu0 %v59
    %1894 = vmatpush1.msra.mxu0 %v58
    %1895 = vmatprep.subr.mxu0 %v57
    %1896 = vmatpush1.msra.mxu0 %v56
    %1897 = vmatprep.subr.mxu0 %v55
    %1898 = vmatpush1.msra.mxu0 %v54
    %1899 = vmatprep.subr.mxu0 0.0
    %1900 = vmatpush2.msra.mxu0 0.0
    %1901 = vmatprep.subr.mxu0 0.0
    %1902 = vmatpush2.msra.mxu0 0.0
    %1903 = vmatprep.subr.mxu0 0.0
    %1904 = vmatpush2.msra.mxu0 0.0
    %1905 = vmatprep.subr.mxu0 0.0
    %1906 = vmatpush2.msra.mxu0 0.0
    %1907 = vmatprep.subr.mxu0 0.0
    %1908 = vmatpush2.msra.mxu0 0.0
    %1909 = vmatprep.subr.mxu0 0.0
    %1910 = vmatpush2.msra.mxu0 0.0
    %1911 = vmatprep.subr.mxu0 0.0
    %1912 = vmatpush2.msra.mxu0 0.0
    %1913 = vmatprep.subr.mxu0 0.0
    %1914 = vmatpush2.msra.mxu0 0.0
    %1915 = vmatprep.subr.mxu0 0.0
    %1916 = vmatpush2.msra.mxu0 0.0
    %1917 = vmatprep.subr.mxu0 0.0
    %1918 = vmatpush2.msra.mxu0 0.0
    %1919 = vmatprep.subr.mxu0 0.0
    %1920 = vmatpush2.msra.mxu0 0.0
    %1921 = vmatprep.subr.mxu0 0.0
    %1922 = vmatpush2.msra.mxu0 0.0
    %1923 = vmatprep.subr.mxu0 0.0
    %1924 = vmatpush2.msra.mxu0 0.0
    %1925 = vmatprep.subr.mxu0 0.0
    %1926 = vmatpush2.msra.mxu0 0.0
    %1927 = vmatprep.subr.mxu0 0.0
    %1928 = vmatpush2.msra.mxu0 0.0
    %1929 = vmatprep.subr.mxu0 0.0
    %1930 = vmatpush2.msra.mxu0 0.0
    %1931 = vmatprep.mubr.f32.mxu0 0.0
    %1932 = vmatmul.mubr.f32.gmra.mxu0 %v1865
    %v1933 = vpop.f32.mrf.mxu0
    %v1934 = vadd.f32 0.0, %v1933
    %v1935 = vpop.f32.mrf.mxu0
    %v1936 = vadd.f32 0.0, %v1935
    %1937 = vdwg.mxu0
    %v1938 = vadd.f32 %v1860, %v1934
    %v1939 = vadd.f32 %v1861, %v1936
    %v1940 = vtanh.pop %v1938
    %v1941 = vtanh.pop %v1939
    %v1942 = vxor.u32 %v1938, 2147483648
    %v1943 = vxor.u32 %v1939, 2147483648
    %v1944 = vmul.f32 %v1942, 1.442695
    %v1945 = vpow.pop %v1944
    %v1946 = vmul.f32 %v1943, 1.442695
    %v1947 = vpow.pop %v1946
    %v1948 = vadd.f32 %v1945, 1.0
    %v1949 = vadd.f32 %v1947, 1.0
    %v1950 = vrcp.pop %v1948
    %v1951 = vmul.f32 1.0, %v1950
    %v1952 = vrcp.pop %v1949
    %v1953 = vmul.f32 1.0, %v1952
    %v1954 = vsel %vm77, %v1940, %v1951
    %v1955 = vsel %vm78, %v1941, %v1953
    %v1956 = vmul.f32 %v1954, %v1852
    %1959 = vrot.lane.b32.xlu0 %v1954, 28
    %v1960 = vpop.permute.xlu0 %1959
    %1961 = vrot.lane.b32.xlu0 %v1955, 28
    %v1962 = vpop.permute.xlu0 %1961
    %v1963 = vsel %vm192, %v1960, %v1962
    %v1965 = vmul.f32 %v1954, %v1963
    %1967 = vrot.lane.b32.xlu0 %v1965, 50
    %v1968 = vpop.permute.xlu0 %1967
    %v1970 = vadd.f32 %v1956, %v1968
    %v1971 = vtanh.pop %v1970
    %1973 = vrot.lane.b32.xlu0 %v1971, 100
    %v1974 = vpop.permute.xlu0 %1973
    %v1976 = vmul.f32 %v1955, %v1974
    %s1977 = scalar_lea.vmem %s0, 256
    %v1978 = vld [vmem:[%s1977] sm:$0xff]
    %v1979 = vld [vmem:[%s1977 + $0x8] sm:$0xff]
    %1981 = vrot.lane.b32.xlu0 %v1976, 106
    %v1982 = vpop.permute.xlu0 %1981
    %v1983 = vsel %vm81, %v1982, 0
    %1985 = vmatprep.subr.mxu0 0.0
    %1986 = vmatpush1.msra.mxu0 0.0
    %1987 = vmatprep.subr.mxu0 0.0
    %1988 = vmatpush1.msra.mxu0 0.0
    %1989 = vmatprep.subr.mxu0 0.0
    %1990 = vmatpush1.msra.mxu0 0.0
    %1991 = vmatprep.subr.mxu0 0.0
    %1992 = vmatpush1.msra.mxu0 0.0
    %1993 = vmatprep.subr.mxu0 0.0
    %1994 = vmatpush1.msra.mxu0 0.0
    %1995 = vmatprep.subr.mxu0 0.0
    %1996 = vmatpush1.msra.mxu0 0.0
    %1997 = vmatprep.subr.mxu0 0.0
    %1998 = vmatpush1.msra.mxu0 0.0
    %1999 = vmatprep.subr.mxu0 0.0
    %2000 = vmatpush1.msra.mxu0 0.0
    %2001 = vmatprep.subr.mxu0 0.0
    %2002 = vmatpush1.msra.mxu0 0.0
    %2003 = vmatprep.subr.mxu0 %v90
    %2004 = vmatpush1.msra.mxu0 %v87
    %2005 = vmatprep.subr.mxu0 %v65
    %2006 = vmatpush1.msra.mxu0 %v64
    %2007 = vmatprep.subr.mxu0 %v63
    %2008 = vmatpush1.msra.mxu0 %v62
    %2009 = vmatprep.subr.mxu0 %v61
    %2010 = vmatpush1.msra.mxu0 %v60
    %2011 = vmatprep.subr.mxu0 %v59
    %2012 = vmatpush1.msra.mxu0 %v58
    %2013 = vmatprep.subr.mxu0 %v57
    %2014 = vmatpush1.msra.mxu0 %v56
    %2015 = vmatprep.subr.mxu0 %v55
    %2016 = vmatpush1.msra.mxu0 %v54
    %2017 = vmatprep.subr.mxu0 0.0
    %2018 = vmatpush2.msra.mxu0 0.0
    %2019 = vmatprep.subr.mxu0 0.0
    %2020 = vmatpush2.msra.mxu0 0.0
    %2021 = vmatprep.subr.mxu0 0.0
    %2022 = vmatpush2.msra.mxu0 0.0
    %2023 = vmatprep.subr.mxu0 0.0
    %2024 = vmatpush2.msra.mxu0 0.0
    %2025 = vmatprep.subr.mxu0 0.0
    %2026 = vmatpush2.msra.mxu0 0.0
    %2027 = vmatprep.subr.mxu0 0.0
    %2028 = vmatpush2.msra.mxu0 0.0
    %2029 = vmatprep.subr.mxu0 0.0
    %2030 = vmatpush2.msra.mxu0 0.0
    %2031 = vmatprep.subr.mxu0 0.0
    %2032 = vmatpush2.msra.mxu0 0.0
    %2033 = vmatprep.subr.mxu0 0.0
    %2034 = vmatpush2.msra.mxu0 0.0
    %2035 = vmatprep.subr.mxu0 0.0
    %2036 = vmatpush2.msra.mxu0 0.0
    %2037 = vmatprep.subr.mxu0 0.0
    %2038 = vmatpush2.msra.mxu0 0.0
    %2039 = vmatprep.subr.mxu0 0.0
    %2040 = vmatpush2.msra.mxu0 0.0
    %2041 = vmatprep.subr.mxu0 0.0
    %2042 = vmatpush2.msra.mxu0 0.0
    %2043 = vmatprep.subr.mxu0 0.0
    %2044 = vmatpush2.msra.mxu0 0.0
    %2045 = vmatprep.subr.mxu0 0.0
    %2046 = vmatpush2.msra.mxu0 0.0
    %2047 = vmatprep.subr.mxu0 0.0
    %2048 = vmatpush2.msra.mxu0 0.0
    %2049 = vmatprep.mubr.f32.mxu0 0.0
    %2050 = vmatmul.mubr.f32.gmra.mxu0 %v1983
    %v2051 = vpop.f32.mrf.mxu0
    %v2052 = vadd.f32 0.0, %v2051
    %v2053 = vpop.f32.mrf.mxu0
    %v2054 = vadd.f32 0.0, %v2053
    %2055 = vdwg.mxu0
    %v2056 = vadd.f32 %v1978, %v2052
    %v2057 = vadd.f32 %v1979, %v2054
    %v2058 = vtanh.pop %v2056
    %v2059 = vtanh.pop %v2057
    %v2060 = vxor.u32 %v2056, 2147483648
    %v2061 = vxor.u32 %v2057, 2147483648
    %v2062 = vmul.f32 %v2060, 1.442695
    %v2063 = vpow.pop %v2062
    %v2064 = vmul.f32 %v2061, 1.442695
    %v2065 = vpow.pop %v2064
    %v2066 = vadd.f32 %v2063, 1.0
    %v2067 = vadd.f32 %v2065, 1.0
    %v2068 = vrcp.pop %v2066
    %v2069 = vmul.f32 1.0, %v2068
    %v2070 = vrcp.pop %v2067
    %v2071 = vmul.f32 1.0, %v2070
    %v2072 = vsel %vm77, %v2058, %v2069
    %v2073 = vsel %vm78, %v2059, %v2071
    %v2074 = vmul.f32 %v2072, %v1970
    %2077 = vrot.lane.b32.xlu0 %v2072, 28
    %v2078 = vpop.permute.xlu0 %2077
    %2079 = vrot.lane.b32.xlu0 %v2073, 28
    %v2080 = vpop.permute.xlu0 %2079
    %v2081 = vsel %vm192, %v2078, %v2080
    %v2083 = vmul.f32 %v2072, %v2081
    %2085 = vrot.lane.b32.xlu0 %v2083, 50
    %v2086 = vpop.permute.xlu0 %2085
    %v2088 = vadd.f32 %v2074, %v2086
    %v2089 = vtanh.pop %v2088
    %2091 = vrot.lane.b32.xlu0 %v2089, 100
    %v2092 = vpop.permute.xlu0 %2091
    %v2094 = vmul.f32 %v2073, %v2092
    %s2095 = scalar_lea.vmem %s0, 272
    %v2096 = vld [vmem:[%s2095] sm:$0xff]
    %v2097 = vld [vmem:[%s2095 + $0x8] sm:$0xff]
    %2099 = vrot.lane.b32.xlu0 %v2094, 106
    %v2100 = vpop.permute.xlu0 %2099
    %v2101 = vsel %vm81, %v2100, 0
    %2103 = vmatprep.subr.mxu0 0.0
    %2104 = vmatpush1.msra.mxu0 0.0
    %2105 = vmatprep.subr.mxu0 0.0
    %2106 = vmatpush1.msra.mxu0 0.0
    %2107 = vmatprep.subr.mxu0 0.0
    %2108 = vmatpush1.msra.mxu0 0.0
    %2109 = vmatprep.subr.mxu0 0.0
    %2110 = vmatpush1.msra.mxu0 0.0
    %2111 = vmatprep.subr.mxu0 0.0
    %2112 = vmatpush1.msra.mxu0 0.0
    %2113 = vmatprep.subr.mxu0 0.0
    %2114 = vmatpush1.msra.mxu0 0.0
    %2115 = vmatprep.subr.mxu0 0.0
    %2116 = vmatpush1.msra.mxu0 0.0
    %2117 = vmatprep.subr.mxu0 0.0
    %2118 = vmatpush1.msra.mxu0 0.0
    %2119 = vmatprep.subr.mxu0 0.0
    %2120 = vmatpush1.msra.mxu0 0.0
    %2121 = vmatprep.subr.mxu0 %v90
    %2122 = vmatpush1.msra.mxu0 %v87
    %2123 = vmatprep.subr.mxu0 %v65
    %2124 = vmatpush1.msra.mxu0 %v64
    %2125 = vmatprep.subr.mxu0 %v63
    %2126 = vmatpush1.msra.mxu0 %v62
    %2127 = vmatprep.subr.mxu0 %v61
    %2128 = vmatpush1.msra.mxu0 %v60
    %2129 = vmatprep.subr.mxu0 %v59
    %2130 = vmatpush1.msra.mxu0 %v58
    %2131 = vmatprep.subr.mxu0 %v57
    %2132 = vmatpush1.msra.mxu0 %v56
    %2133 = vmatprep.subr.mxu0 %v55
    %2134 = vmatpush1.msra.mxu0 %v54
    %2135 = vmatprep.subr.mxu0 0.0
    %2136 = vmatpush2.msra.mxu0 0.0
    %2137 = vmatprep.subr.mxu0 0.0
    %2138 = vmatpush2.msra.mxu0 0.0
    %2139 = vmatprep.subr.mxu0 0.0
    %2140 = vmatpush2.msra.mxu0 0.0
    %2141 = vmatprep.subr.mxu0 0.0
    %2142 = vmatpush2.msra.mxu0 0.0
    %2143 = vmatprep.subr.mxu0 0.0
    %2144 = vmatpush2.msra.mxu0 0.0
    %2145 = vmatprep.subr.mxu0 0.0
    %2146 = vmatpush2.msra.mxu0 0.0
    %2147 = vmatprep.subr.mxu0 0.0
    %2148 = vmatpush2.msra.mxu0 0.0
    %2149 = vmatprep.subr.mxu0 0.0
    %2150 = vmatpush2.msra.mxu0 0.0
    %2151 = vmatprep.subr.mxu0 0.0
    %2152 = vmatpush2.msra.mxu0 0.0
    %2153 = vmatprep.subr.mxu0 0.0
    %2154 = vmatpush2.msra.mxu0 0.0
    %2155 = vmatprep.subr.mxu0 0.0
    %2156 = vmatpush2.msra.mxu0 0.0
    %2157 = vmatprep.subr.mxu0 0.0
    %2158 = vmatpush2.msra.mxu0 0.0
    %2159 = vmatprep.subr.mxu0 0.0
    %2160 = vmatpush2.msra.mxu0 0.0
    %2161 = vmatprep.subr.mxu0 0.0
    %2162 = vmatpush2.msra.mxu0 0.0
    %2163 = vmatprep.subr.mxu0 0.0
    %2164 = vmatpush2.msra.mxu0 0.0
    %2165 = vmatprep.subr.mxu0 0.0
    %2166 = vmatpush2.msra.mxu0 0.0
    %2167 = vmatprep.mubr.f32.mxu0 0.0
    %2168 = vmatmul.mubr.f32.gmra.mxu0 %v2101
    %v2169 = vpop.f32.mrf.mxu0
    %v2170 = vadd.f32 0.0, %v2169
    %v2171 = vpop.f32.mrf.mxu0
    %v2172 = vadd.f32 0.0, %v2171
    %2173 = vdwg.mxu0
    %v2174 = vadd.f32 %v2096, %v2170
    %v2175 = vadd.f32 %v2097, %v2172
    %v2176 = vtanh.pop %v2174
    %v2177 = vtanh.pop %v2175
    %v2178 = vxor.u32 %v2174, 2147483648
    %v2179 = vxor.u32 %v2175, 2147483648
    %v2180 = vmul.f32 %v2178, 1.442695
    %v2181 = vpow.pop %v2180
    %v2182 = vmul.f32 %v2179, 1.442695
    %v2183 = vpow.pop %v2182
    %v2184 = vadd.f32 %v2181, 1.0
    %v2185 = vadd.f32 %v2183, 1.0
    %v2186 = vrcp.pop %v2184
    %v2187 = vmul.f32 1.0, %v2186
    %v2188 = vrcp.pop %v2185
    %v2189 = vmul.f32 1.0, %v2188
    %v2190 = vsel %vm77, %v2176, %v2187
    %v2191 = vsel %vm78, %v2177, %v2189
    %v2192 = vmul.f32 %v2190, %v2088
    %2195 = vrot.lane.b32.xlu0 %v2190, 28
    %v2196 = vpop.permute.xlu0 %2195
    %2197 = vrot.lane.b32.xlu0 %v2191, 28
    %v2198 = vpop.permute.xlu0 %2197
    %v2199 = vsel %vm192, %v2196, %v2198
    %v2201 = vmul.f32 %v2190, %v2199
    %2203 = vrot.lane.b32.xlu0 %v2201, 50
    %v2204 = vpop.permute.xlu0 %2203
    %v2206 = vadd.f32 %v2192, %v2204
    %v2207 = vtanh.pop %v2206
    %2209 = vrot.lane.b32.xlu0 %v2207, 100
    %v2210 = vpop.permute.xlu0 %2209
    %v2212 = vmul.f32 %v2191, %v2210
    %s2213 = scalar_lea.vmem %s0, 288
    %v2214 = vld [vmem:[%s2213] sm:$0xff]
    %v2215 = vld [vmem:[%s2213 + $0x8] sm:$0xff]
    %2217 = vrot.lane.b32.xlu0 %v2212, 106
    %v2218 = vpop.permute.xlu0 %2217
    %v2219 = vsel %vm81, %v2218, 0
    %2221 = vmatprep.subr.mxu0 0.0
    %2222 = vmatpush1.msra.mxu0 0.0
    %2223 = vmatprep.subr.mxu0 0.0
    %2224 = vmatpush1.msra.mxu0 0.0
    %2225 = vmatprep.subr.mxu0 0.0
    %2226 = vmatpush1.msra.mxu0 0.0
    %2227 = vmatprep.subr.mxu0 0.0
    %2228 = vmatpush1.msra.mxu0 0.0
    %2229 = vmatprep.subr.mxu0 0.0
    %2230 = vmatpush1.msra.mxu0 0.0
    %2231 = vmatprep.subr.mxu0 0.0
    %2232 = vmatpush1.msra.mxu0 0.0
    %2233 = vmatprep.subr.mxu0 0.0
    %2234 = vmatpush1.msra.mxu0 0.0
    %2235 = vmatprep.subr.mxu0 0.0
    %2236 = vmatpush1.msra.mxu0 0.0
    %2237 = vmatprep.subr.mxu0 0.0
    %2238 = vmatpush1.msra.mxu0 0.0
    %2239 = vmatprep.subr.mxu0 %v90
    %2240 = vmatpush1.msra.mxu0 %v87
    %2241 = vmatprep.subr.mxu0 %v65
    %2242 = vmatpush1.msra.mxu0 %v64
    %2243 = vmatprep.subr.mxu0 %v63
    %2244 = vmatpush1.msra.mxu0 %v62
    %2245 = vmatprep.subr.mxu0 %v61
    %2246 = vmatpush1.msra.mxu0 %v60
    %2247 = vmatprep.subr.mxu0 %v59
    %2248 = vmatpush1.msra.mxu0 %v58
    %2249 = vmatprep.subr.mxu0 %v57
    %2250 = vmatpush1.msra.mxu0 %v56
    %2251 = vmatprep.subr.mxu0 %v55
    %2252 = vmatpush1.msra.mxu0 %v54
    %2253 = vmatprep.subr.mxu0 0.0
    %2254 = vmatpush2.msra.mxu0 0.0
    %2255 = vmatprep.subr.mxu0 0.0
    %2256 = vmatpush2.msra.mxu0 0.0
    %2257 = vmatprep.subr.mxu0 0.0
    %2258 = vmatpush2.msra.mxu0 0.0
    %2259 = vmatprep.subr.mxu0 0.0
    %2260 = vmatpush2.msra.mxu0 0.0
    %2261 = vmatprep.subr.mxu0 0.0
    %2262 = vmatpush2.msra.mxu0 0.0
    %2263 = vmatprep.subr.mxu0 0.0
    %2264 = vmatpush2.msra.mxu0 0.0
    %2265 = vmatprep.subr.mxu0 0.0
    %2266 = vmatpush2.msra.mxu0 0.0
    %2267 = vmatprep.subr.mxu0 0.0
    %2268 = vmatpush2.msra.mxu0 0.0
    %2269 = vmatprep.subr.mxu0 0.0
    %2270 = vmatpush2.msra.mxu0 0.0
    %2271 = vmatprep.subr.mxu0 0.0
    %2272 = vmatpush2.msra.mxu0 0.0
    %2273 = vmatprep.subr.mxu0 0.0
    %2274 = vmatpush2.msra.mxu0 0.0
    %2275 = vmatprep.subr.mxu0 0.0
    %2276 = vmatpush2.msra.mxu0 0.0
    %2277 = vmatprep.subr.mxu0 0.0
    %2278 = vmatpush2.msra.mxu0 0.0
    %2279 = vmatprep.subr.mxu0 0.0
    %2280 = vmatpush2.msra.mxu0 0.0
    %2281 = vmatprep.subr.mxu0 0.0
    %2282 = vmatpush2.msra.mxu0 0.0
    %2283 = vmatprep.subr.mxu0 0.0
    %2284 = vmatpush2.msra.mxu0 0.0
    %2285 = vmatprep.mubr.f32.mxu0 0.0
    %2286 = vmatmul.mubr.f32.gmra.mxu0 %v2219
    %v2287 = vpop.f32.mrf.mxu0
    %v2288 = vadd.f32 0.0, %v2287
    %v2289 = vpop.f32.mrf.mxu0
    %v2290 = vadd.f32 0.0, %v2289
    %2291 = vdwg.mxu0
    %v2292 = vadd.f32 %v2214, %v2288
    %v2293 = vadd.f32 %v2215, %v2290
    %v2294 = vtanh.pop %v2292
    %v2295 = vtanh.pop %v2293
    %v2296 = vxor.u32 %v2292, 2147483648
    %v2297 = vxor.u32 %v2293, 2147483648
    %v2298 = vmul.f32 %v2296, 1.442695
    %v2299 = vpow.pop %v2298
    %v2300 = vmul.f32 %v2297, 1.442695
    %v2301 = vpow.pop %v2300
    %v2302 = vadd.f32 %v2299, 1.0
    %v2303 = vadd.f32 %v2301, 1.0
    %v2304 = vrcp.pop %v2302
    %v2305 = vmul.f32 1.0, %v2304
    %v2306 = vrcp.pop %v2303
    %v2307 = vmul.f32 1.0, %v2306
    %v2308 = vsel %vm77, %v2294, %v2305
    %v2309 = vsel %vm78, %v2295, %v2307
    %v2310 = vmul.f32 %v2308, %v2206
    %2313 = vrot.lane.b32.xlu0 %v2308, 28
    %v2314 = vpop.permute.xlu0 %2313
    %2315 = vrot.lane.b32.xlu0 %v2309, 28
    %v2316 = vpop.permute.xlu0 %2315
    %v2317 = vsel %vm192, %v2314, %v2316
    %v2319 = vmul.f32 %v2308, %v2317
    %2321 = vrot.lane.b32.xlu0 %v2319, 50
    %v2322 = vpop.permute.xlu0 %2321
    %v2324 = vadd.f32 %v2310, %v2322
    %v2325 = vtanh.pop %v2324
    %2327 = vrot.lane.b32.xlu0 %v2325, 100
    %v2328 = vpop.permute.xlu0 %2327
    %v2330 = vmul.f32 %v2309, %v2328
    %s2331 = scalar_lea.vmem %s0, 304
    %v2332 = vld [vmem:[%s2331] sm:$0xff]
    %v2333 = vld [vmem:[%s2331 + $0x8] sm:$0xff]
    %2335 = vrot.lane.b32.xlu0 %v2330, 106
    %v2336 = vpop.permute.xlu0 %2335
    %v2337 = vsel %vm81, %v2336, 0
    %2339 = vmatprep.subr.mxu0 0.0
    %2340 = vmatpush1.msra.mxu0 0.0
    %2341 = vmatprep.subr.mxu0 0.0
    %2342 = vmatpush1.msra.mxu0 0.0
    %2343 = vmatprep.subr.mxu0 0.0
    %2344 = vmatpush1.msra.mxu0 0.0
    %2345 = vmatprep.subr.mxu0 0.0
    %2346 = vmatpush1.msra.mxu0 0.0
    %2347 = vmatprep.subr.mxu0 0.0
    %2348 = vmatpush1.msra.mxu0 0.0
    %2349 = vmatprep.subr.mxu0 0.0
    %2350 = vmatpush1.msra.mxu0 0.0
    %2351 = vmatprep.subr.mxu0 0.0
    %2352 = vmatpush1.msra.mxu0 0.0
    %2353 = vmatprep.subr.mxu0 0.0
    %2354 = vmatpush1.msra.mxu0 0.0
    %2355 = vmatprep.subr.mxu0 0.0
    %2356 = vmatpush1.msra.mxu0 0.0
    %2357 = vmatprep.subr.mxu0 %v90
    %2358 = vmatpush1.msra.mxu0 %v87
    %2359 = vmatprep.subr.mxu0 %v65
    %2360 = vmatpush1.msra.mxu0 %v64
    %2361 = vmatprep.subr.mxu0 %v63
    %2362 = vmatpush1.msra.mxu0 %v62
    %2363 = vmatprep.subr.mxu0 %v61
    %2364 = vmatpush1.msra.mxu0 %v60
    %2365 = vmatprep.subr.mxu0 %v59
    %2366 = vmatpush1.msra.mxu0 %v58
    %2367 = vmatprep.subr.mxu0 %v57
    %2368 = vmatpush1.msra.mxu0 %v56
    %2369 = vmatprep.subr.mxu0 %v55
    %2370 = vmatpush1.msra.mxu0 %v54
    %2371 = vmatprep.subr.mxu0 0.0
    %2372 = vmatpush2.msra.mxu0 0.0
    %2373 = vmatprep.subr.mxu0 0.0
    %2374 = vmatpush2.msra.mxu0 0.0
    %2375 = vmatprep.subr.mxu0 0.0
    %2376 = vmatpush2.msra.mxu0 0.0
    %2377 = vmatprep.subr.mxu0 0.0
    %2378 = vmatpush2.msra.mxu0 0.0
    %2379 = vmatprep.subr.mxu0 0.0
    %2380 = vmatpush2.msra.mxu0 0.0
    %2381 = vmatprep.subr.mxu0 0.0
    %2382 = vmatpush2.msra.mxu0 0.0
    %2383 = vmatprep.subr.mxu0 0.0
    %2384 = vmatpush2.msra.mxu0 0.0
    %2385 = vmatprep.subr.mxu0 0.0
    %2386 = vmatpush2.msra.mxu0 0.0
    %2387 = vmatprep.subr.mxu0 0.0
    %2388 = vmatpush2.msra.mxu0 0.0
    %2389 = vmatprep.subr.mxu0 0.0
    %2390 = vmatpush2.msra.mxu0 0.0
    %2391 = vmatprep.subr.mxu0 0.0
    %2392 = vmatpush2.msra.mxu0 0.0
    %2393 = vmatprep.subr.mxu0 0.0
    %2394 = vmatpush2.msra.mxu0 0.0
    %2395 = vmatprep.subr.mxu0 0.0
    %2396 = vmatpush2.msra.mxu0 0.0
    %2397 = vmatprep.subr.mxu0 0.0
    %2398 = vmatpush2.msra.mxu0 0.0
    %2399 = vmatprep.subr.mxu0 0.0
    %2400 = vmatpush2.msra.mxu0 0.0
    %2401 = vmatprep.subr.mxu0 0.0
    %2402 = vmatpush2.msra.mxu0 0.0
    %2403 = vmatprep.mubr.f32.mxu0 0.0
    %2404 = vmatmul.mubr.f32.gmra.mxu0 %v2337
    %v2405 = vpop.f32.mrf.mxu0
    %v2406 = vadd.f32 0.0, %v2405
    %v2407 = vpop.f32.mrf.mxu0
    %v2408 = vadd.f32 0.0, %v2407
    %2409 = vdwg.mxu0
    %v2410 = vadd.f32 %v2332, %v2406
    %v2411 = vadd.f32 %v2333, %v2408
    %v2412 = vtanh.pop %v2410
    %v2413 = vtanh.pop %v2411
    %v2414 = vxor.u32 %v2410, 2147483648
    %v2415 = vxor.u32 %v2411, 2147483648
    %v2416 = vmul.f32 %v2414, 1.442695
    %v2417 = vpow.pop %v2416
    %v2418 = vmul.f32 %v2415, 1.442695
    %v2419 = vpow.pop %v2418
    %v2420 = vadd.f32 %v2417, 1.0
    %v2421 = vadd.f32 %v2419, 1.0
    %v2422 = vrcp.pop %v2420
    %v2423 = vmul.f32 1.0, %v2422
    %v2424 = vrcp.pop %v2421
    %v2425 = vmul.f32 1.0, %v2424
    %v2426 = vsel %vm77, %v2412, %v2423
    %v2427 = vsel %vm78, %v2413, %v2425
    %v2428 = vmul.f32 %v2426, %v2324
    %2431 = vrot.lane.b32.xlu0 %v2426, 28
    %v2432 = vpop.permute.xlu0 %2431
    %2433 = vrot.lane.b32.xlu0 %v2427, 28
    %v2434 = vpop.permute.xlu0 %2433
    %v2435 = vsel %vm192, %v2432, %v2434
    %v2437 = vmul.f32 %v2426, %v2435
    %2439 = vrot.lane.b32.xlu0 %v2437, 50
    %v2440 = vpop.permute.xlu0 %2439
    %v2442 = vadd.f32 %v2428, %v2440
    %v2443 = vtanh.pop %v2442
    %2445 = vrot.lane.b32.xlu0 %v2443, 100
    %v2446 = vpop.permute.xlu0 %2445
    %v2448 = vmul.f32 %v2427, %v2446
    %s2449 = scalar_lea.vmem %s0, 320
    %v2450 = vld [vmem:[%s2449] sm:$0xff]
    %v2451 = vld [vmem:[%s2449 + $0x8] sm:$0xff]
    %2453 = vrot.lane.b32.xlu0 %v2448, 106
    %v2454 = vpop.permute.xlu0 %2453
    %v2455 = vsel %vm81, %v2454, 0
    %2457 = vmatprep.subr.mxu0 0.0
    %2458 = vmatpush1.msra.mxu0 0.0
    %2459 = vmatprep.subr.mxu0 0.0
    %2460 = vmatpush1.msra.mxu0 0.0
    %2461 = vmatprep.subr.mxu0 0.0
    %2462 = vmatpush1.msra.mxu0 0.0
    %2463 = vmatprep.subr.mxu0 0.0
    %2464 = vmatpush1.msra.mxu0 0.0
    %2465 = vmatprep.subr.mxu0 0.0
    %2466 = vmatpush1.msra.mxu0 0.0
    %2467 = vmatprep.subr.mxu0 0.0
    %2468 = vmatpush1.msra.mxu0 0.0
    %2469 = vmatprep.subr.mxu0 0.0
    %2470 = vmatpush1.msra.mxu0 0.0
    %2471 = vmatprep.subr.mxu0 0.0
    %2472 = vmatpush1.msra.mxu0 0.0
    %2473 = vmatprep.subr.mxu0 0.0
    %2474 = vmatpush1.msra.mxu0 0.0
    %2475 = vmatprep.subr.mxu0 %v90
    %2476 = vmatpush1.msra.mxu0 %v87
    %2477 = vmatprep.subr.mxu0 %v65
    %2478 = vmatpush1.msra.mxu0 %v64
    %2479 = vmatprep.subr.mxu0 %v63
    %2480 = vmatpush1.msra.mxu0 %v62
    %2481 = vmatprep.subr.mxu0 %v61
    %2482 = vmatpush1.msra.mxu0 %v60
    %2483 = vmatprep.subr.mxu0 %v59
    %2484 = vmatpush1.msra.mxu0 %v58
    %2485 = vmatprep.subr.mxu0 %v57
    %2486 = vmatpush1.msra.mxu0 %v56
    %2487 = vmatprep.subr.mxu0 %v55
    %2488 = vmatpush1.msra.mxu0 %v54
    %2489 = vmatprep.subr.mxu0 0.0
    %2490 = vmatpush2.msra.mxu0 0.0
    %2491 = vmatprep.subr.mxu0 0.0
    %2492 = vmatpush2.msra.mxu0 0.0
    %2493 = vmatprep.subr.mxu0 0.0
    %2494 = vmatpush2.msra.mxu0 0.0
    %2495 = vmatprep.subr.mxu0 0.0
    %2496 = vmatpush2.msra.mxu0 0.0
    %2497 = vmatprep.subr.mxu0 0.0
    %2498 = vmatpush2.msra.mxu0 0.0
    %2499 = vmatprep.subr.mxu0 0.0
    %2500 = vmatpush2.msra.mxu0 0.0
    %2501 = vmatprep.subr.mxu0 0.0
    %2502 = vmatpush2.msra.mxu0 0.0
    %2503 = vmatprep.subr.mxu0 0.0
    %2504 = vmatpush2.msra.mxu0 0.0
    %2505 = vmatprep.subr.mxu0 0.0
    %2506 = vmatpush2.msra.mxu0 0.0
    %2507 = vmatprep.subr.mxu0 0.0
    %2508 = vmatpush2.msra.mxu0 0.0
    %2509 = vmatprep.subr.mxu0 0.0
    %2510 = vmatpush2.msra.mxu0 0.0
    %2511 = vmatprep.subr.mxu0 0.0
    %2512 = vmatpush2.msra.mxu0 0.0
    %2513 = vmatprep.subr.mxu0 0.0
    %2514 = vmatpush2.msra.mxu0 0.0
    %2515 = vmatprep.subr.mxu0 0.0
    %2516 = vmatpush2.msra.mxu0 0.0
    %2517 = vmatprep.subr.mxu0 0.0
    %2518 = vmatpush2.msra.mxu0 0.0
    %2519 = vmatprep.subr.mxu0 0.0
    %2520 = vmatpush2.msra.mxu0 0.0
    %2521 = vmatprep.mubr.f32.mxu0 0.0
    %2522 = vmatmul.mubr.f32.gmra.mxu0 %v2455
    %v2523 = vpop.f32.mrf.mxu0
    %v2524 = vadd.f32 0.0, %v2523
    %v2525 = vpop.f32.mrf.mxu0
    %v2526 = vadd.f32 0.0, %v2525
    %2527 = vdwg.mxu0
    %v2528 = vadd.f32 %v2450, %v2524
    %v2529 = vadd.f32 %v2451, %v2526
    %v2530 = vtanh.pop %v2528
    %v2531 = vtanh.pop %v2529
    %v2532 = vxor.u32 %v2528, 2147483648
    %v2533 = vxor.u32 %v2529, 2147483648
    %v2534 = vmul.f32 %v2532, 1.442695
    %v2535 = vpow.pop %v2534
    %v2536 = vmul.f32 %v2533, 1.442695
    %v2537 = vpow.pop %v2536
    %v2538 = vadd.f32 %v2535, 1.0
    %v2539 = vadd.f32 %v2537, 1.0
    %v2540 = vrcp.pop %v2538
    %v2541 = vmul.f32 1.0, %v2540
    %v2542 = vrcp.pop %v2539
    %v2543 = vmul.f32 1.0, %v2542
    %v2544 = vsel %vm77, %v2530, %v2541
    %v2545 = vsel %vm78, %v2531, %v2543
    %v2546 = vmul.f32 %v2544, %v2442
    %2549 = vrot.lane.b32.xlu0 %v2544, 28
    %v2550 = vpop.permute.xlu0 %2549
    %2551 = vrot.lane.b32.xlu0 %v2545, 28
    %v2552 = vpop.permute.xlu0 %2551
    %v2553 = vsel %vm192, %v2550, %v2552
    %v2555 = vmul.f32 %v2544, %v2553
    %2557 = vrot.lane.b32.xlu0 %v2555, 50
    %v2558 = vpop.permute.xlu0 %2557
    %v2560 = vadd.f32 %v2546, %v2558
    %v2561 = vtanh.pop %v2560
    %2563 = vrot.lane.b32.xlu0 %v2561, 100
    %v2564 = vpop.permute.xlu0 %2563
    %v2566 = vmul.f32 %v2545, %v2564
    %s2567 = scalar_lea.vmem %s0, 336
    %v2568 = vld [vmem:[%s2567] sm:$0xff]
    %v2569 = vld [vmem:[%s2567 + $0x8] sm:$0xff]
    %2571 = vrot.lane.b32.xlu0 %v2566, 106
    %v2572 = vpop.permute.xlu0 %2571
    %v2573 = vsel %vm81, %v2572, 0
    %2575 = vmatprep.subr.mxu0 0.0
    %2576 = vmatpush1.msra.mxu0 0.0
    %2577 = vmatprep.subr.mxu0 0.0
    %2578 = vmatpush1.msra.mxu0 0.0
    %2579 = vmatprep.subr.mxu0 0.0
    %2580 = vmatpush1.msra.mxu0 0.0
    %2581 = vmatprep.subr.mxu0 0.0
    %2582 = vmatpush1.msra.mxu0 0.0
    %2583 = vmatprep.subr.mxu0 0.0
    %2584 = vmatpush1.msra.mxu0 0.0
    %2585 = vmatprep.subr.mxu0 0.0
    %2586 = vmatpush1.msra.mxu0 0.0
    %2587 = vmatprep.subr.mxu0 0.0
    %2588 = vmatpush1.msra.mxu0 0.0
    %2589 = vmatprep.subr.mxu0 0.0
    %2590 = vmatpush1.msra.mxu0 0.0
    %2591 = vmatprep.subr.mxu0 0.0
    %2592 = vmatpush1.msra.mxu0 0.0
    %2593 = vmatprep.subr.mxu0 %v90
    %2594 = vmatpush1.msra.mxu0 %v87
    %2595 = vmatprep.subr.mxu0 %v65
    %2596 = vmatpush1.msra.mxu0 %v64
    %2597 = vmatprep.subr.mxu0 %v63
    %2598 = vmatpush1.msra.mxu0 %v62
    %2599 = vmatprep.subr.mxu0 %v61
    %2600 = vmatpush1.msra.mxu0 %v60
    %2601 = vmatprep.subr.mxu0 %v59
    %2602 = vmatpush1.msra.mxu0 %v58
    %2603 = vmatprep.subr.mxu0 %v57
    %2604 = vmatpush1.msra.mxu0 %v56
    %2605 = vmatprep.subr.mxu0 %v55
    %2606 = vmatpush1.msra.mxu0 %v54
    %2607 = vmatprep.subr.mxu0 0.0
    %2608 = vmatpush2.msra.mxu0 0.0
    %2609 = vmatprep.subr.mxu0 0.0
    %2610 = vmatpush2.msra.mxu0 0.0
    %2611 = vmatprep.subr.mxu0 0.0
    %2612 = vmatpush2.msra.mxu0 0.0
    %2613 = vmatprep.subr.mxu0 0.0
    %2614 = vmatpush2.msra.mxu0 0.0
    %2615 = vmatprep.subr.mxu0 0.0
    %2616 = vmatpush2.msra.mxu0 0.0
    %2617 = vmatprep.subr.mxu0 0.0
    %2618 = vmatpush2.msra.mxu0 0.0
    %2619 = vmatprep.subr.mxu0 0.0
    %2620 = vmatpush2.msra.mxu0 0.0
    %2621 = vmatprep.subr.mxu0 0.0
    %2622 = vmatpush2.msra.mxu0 0.0
    %2623 = vmatprep.subr.mxu0 0.0
    %2624 = vmatpush2.msra.mxu0 0.0
    %2625 = vmatprep.subr.mxu0 0.0
    %2626 = vmatpush2.msra.mxu0 0.0
    %2627 = vmatprep.subr.mxu0 0.0
    %2628 = vmatpush2.msra.mxu0 0.0
    %2629 = vmatprep.subr.mxu0 0.0
    %2630 = vmatpush2.msra.mxu0 0.0
    %2631 = vmatprep.subr.mxu0 0.0
    %2632 = vmatpush2.msra.mxu0 0.0
    %2633 = vmatprep.subr.mxu0 0.0
    %2634 = vmatpush2.msra.mxu0 0.0
    %2635 = vmatprep.subr.mxu0 0.0
    %2636 = vmatpush2.msra.mxu0 0.0
    %2637 = vmatprep.subr.mxu0 0.0
    %2638 = vmatpush2.msra.mxu0 0.0
    %2639 = vmatprep.mubr.f32.mxu0 0.0
    %2640 = vmatmul.mubr.f32.gmra.mxu0 %v2573
    %v2641 = vpop.f32.mrf.mxu0
    %v2642 = vadd.f32 0.0, %v2641
    %v2643 = vpop.f32.mrf.mxu0
    %v2644 = vadd.f32 0.0, %v2643
    %2645 = vdwg.mxu0
    %v2646 = vadd.f32 %v2568, %v2642
    %v2647 = vadd.f32 %v2569, %v2644
    %v2648 = vtanh.pop %v2646
    %v2649 = vtanh.pop %v2647
    %v2650 = vxor.u32 %v2646, 2147483648
    %v2651 = vxor.u32 %v2647, 2147483648
    %v2652 = vmul.f32 %v2650, 1.442695
    %v2653 = vpow.pop %v2652
    %v2654 = vmul.f32 %v2651, 1.442695
    %v2655 = vpow.pop %v2654
    %v2656 = vadd.f32 %v2653, 1.0
    %v2657 = vadd.f32 %v2655, 1.0
    %v2658 = vrcp.pop %v2656
    %v2659 = vmul.f32 1.0, %v2658
    %v2660 = vrcp.pop %v2657
    %v2661 = vmul.f32 1.0, %v2660
    %v2662 = vsel %vm77, %v2648, %v2659
    %v2663 = vsel %vm78, %v2649, %v2661
    %v2664 = vmul.f32 %v2662, %v2560
    %2667 = vrot.lane.b32.xlu0 %v2662, 28
    %v2668 = vpop.permute.xlu0 %2667
    %2669 = vrot.lane.b32.xlu0 %v2663, 28
    %v2670 = vpop.permute.xlu0 %2669
    %v2671 = vsel %vm192, %v2668, %v2670
    %v2673 = vmul.f32 %v2662, %v2671
    %2675 = vrot.lane.b32.xlu0 %v2673, 50
    %v2676 = vpop.permute.xlu0 %2675
    %v2678 = vadd.f32 %v2664, %v2676
    %v2679 = vtanh.pop %v2678
    %2681 = vrot.lane.b32.xlu0 %v2679, 100
    %v2682 = vpop.permute.xlu0 %2681
    %v2684 = vmul.f32 %v2663, %v2682
    %s2685 = scalar_lea.vmem %s0, 352
    %v2686 = vld [vmem:[%s2685] sm:$0xff]
    %v2687 = vld [vmem:[%s2685 + $0x8] sm:$0xff]
    %2689 = vrot.lane.b32.xlu0 %v2684, 106
    %v2690 = vpop.permute.xlu0 %2689
    %v2691 = vsel %vm81, %v2690, 0
    %2693 = vmatprep.subr.mxu0 0.0
    %2694 = vmatpush1.msra.mxu0 0.0
    %2695 = vmatprep.subr.mxu0 0.0
    %2696 = vmatpush1.msra.mxu0 0.0
    %2697 = vmatprep.subr.mxu0 0.0
    %2698 = vmatpush1.msra.mxu0 0.0
    %2699 = vmatprep.subr.mxu0 0.0
    %2700 = vmatpush1.msra.mxu0 0.0
    %2701 = vmatprep.subr.mxu0 0.0
    %2702 = vmatpush1.msra.mxu0 0.0
    %2703 = vmatprep.subr.mxu0 0.0
    %2704 = vmatpush1.msra.mxu0 0.0
    %2705 = vmatprep.subr.mxu0 0.0
    %2706 = vmatpush1.msra.mxu0 0.0
    %2707 = vmatprep.subr.mxu0 0.0
    %2708 = vmatpush1.msra.mxu0 0.0
    %2709 = vmatprep.subr.mxu0 0.0
    %2710 = vmatpush1.msra.mxu0 0.0
    %2711 = vmatprep.subr.mxu0 %v90
    %2712 = vmatpush1.msra.mxu0 %v87
    %2713 = vmatprep.subr.mxu0 %v65
    %2714 = vmatpush1.msra.mxu0 %v64
    %2715 = vmatprep.subr.mxu0 %v63
    %2716 = vmatpush1.msra.mxu0 %v62
    %2717 = vmatprep.subr.mxu0 %v61
    %2718 = vmatpush1.msra.mxu0 %v60
    %2719 = vmatprep.subr.mxu0 %v59
    %2720 = vmatpush1.msra.mxu0 %v58
    %2721 = vmatprep.subr.mxu0 %v57
    %2722 = vmatpush1.msra.mxu0 %v56
    %2723 = vmatprep.subr.mxu0 %v55
    %2724 = vmatpush1.msra.mxu0 %v54
    %2725 = vmatprep.subr.mxu0 0.0
    %2726 = vmatpush2.msra.mxu0 0.0
    %2727 = vmatprep.subr.mxu0 0.0
    %2728 = vmatpush2.msra.mxu0 0.0
    %2729 = vmatprep.subr.mxu0 0.0
    %2730 = vmatpush2.msra.mxu0 0.0
    %2731 = vmatprep.subr.mxu0 0.0
    %2732 = vmatpush2.msra.mxu0 0.0
    %2733 = vmatprep.subr.mxu0 0.0
    %2734 = vmatpush2.msra.mxu0 0.0
    %2735 = vmatprep.subr.mxu0 0.0
    %2736 = vmatpush2.msra.mxu0 0.0
    %2737 = vmatprep.subr.mxu0 0.0
    %2738 = vmatpush2.msra.mxu0 0.0
    %2739 = vmatprep.subr.mxu0 0.0
    %2740 = vmatpush2.msra.mxu0 0.0
    %2741 = vmatprep.subr.mxu0 0.0
    %2742 = vmatpush2.msra.mxu0 0.0
    %2743 = vmatprep.subr.mxu0 0.0
    %2744 = vmatpush2.msra.mxu0 0.0
    %2745 = vmatprep.subr.mxu0 0.0
    %2746 = vmatpush2.msra.mxu0 0.0
    %2747 = vmatprep.subr.mxu0 0.0
    %2748 = vmatpush2.msra.mxu0 0.0
    %2749 = vmatprep.subr.mxu0 0.0
    %2750 = vmatpush2.msra.mxu0 0.0
    %2751 = vmatprep.subr.mxu0 0.0
    %2752 = vmatpush2.msra.mxu0 0.0
    %2753 = vmatprep.subr.mxu0 0.0
    %2754 = vmatpush2.msra.mxu0 0.0
    %2755 = vmatprep.subr.mxu0 0.0
    %2756 = vmatpush2.msra.mxu0 0.0
    %2757 = vmatprep.mubr.f32.mxu0 0.0
    %2758 = vmatmul.mubr.f32.gmra.mxu0 %v2691
    %v2759 = vpop.f32.mrf.mxu0
    %v2760 = vadd.f32 0.0, %v2759
    %v2761 = vpop.f32.mrf.mxu0
    %v2762 = vadd.f32 0.0, %v2761
    %2763 = vdwg.mxu0
    %v2764 = vadd.f32 %v2686, %v2760
    %v2765 = vadd.f32 %v2687, %v2762
    %v2766 = vtanh.pop %v2764
    %v2767 = vtanh.pop %v2765
    %v2768 = vxor.u32 %v2764, 2147483648
    %v2769 = vxor.u32 %v2765, 2147483648
    %v2770 = vmul.f32 %v2768, 1.442695
    %v2771 = vpow.pop %v2770
    %v2772 = vmul.f32 %v2769, 1.442695
    %v2773 = vpow.pop %v2772
    %v2774 = vadd.f32 %v2771, 1.0
    %v2775 = vadd.f32 %v2773, 1.0
    %v2776 = vrcp.pop %v2774
    %v2777 = vmul.f32 1.0, %v2776
    %v2778 = vrcp.pop %v2775
    %v2779 = vmul.f32 1.0, %v2778
    %v2780 = vsel %vm77, %v2766, %v2777
    %v2781 = vsel %vm78, %v2767, %v2779
    %v2782 = vmul.f32 %v2780, %v2678
    %2785 = vrot.lane.b32.xlu0 %v2780, 28
    %v2786 = vpop.permute.xlu0 %2785
    %2787 = vrot.lane.b32.xlu0 %v2781, 28
    %v2788 = vpop.permute.xlu0 %2787
    %v2789 = vsel %vm192, %v2786, %v2788
    %v2791 = vmul.f32 %v2780, %v2789
    %2793 = vrot.lane.b32.xlu0 %v2791, 50
    %v2794 = vpop.permute.xlu0 %2793
    %v2796 = vadd.f32 %v2782, %v2794
    %v2797 = vtanh.pop %v2796
    %2799 = vrot.lane.b32.xlu0 %v2797, 100
    %v2800 = vpop.permute.xlu0 %2799
    %v2802 = vmul.f32 %v2781, %v2800
    %s2803 = scalar_lea.vmem %s0, 368
    %v2804 = vld [vmem:[%s2803] sm:$0xff]
    %v2805 = vld [vmem:[%s2803 + $0x8] sm:$0xff]
    %2807 = vrot.lane.b32.xlu0 %v2802, 106
    %v2808 = vpop.permute.xlu0 %2807
    %v2809 = vsel %vm81, %v2808, 0
    %2811 = vmatprep.subr.mxu0 0.0
    %2812 = vmatpush1.msra.mxu0 0.0
    %2813 = vmatprep.subr.mxu0 0.0
    %2814 = vmatpush1.msra.mxu0 0.0
    %2815 = vmatprep.subr.mxu0 0.0
    %2816 = vmatpush1.msra.mxu0 0.0
    %2817 = vmatprep.subr.mxu0 0.0
    %2818 = vmatpush1.msra.mxu0 0.0
    %2819 = vmatprep.subr.mxu0 0.0
    %2820 = vmatpush1.msra.mxu0 0.0
    %2821 = vmatprep.subr.mxu0 0.0
    %2822 = vmatpush1.msra.mxu0 0.0
    %2823 = vmatprep.subr.mxu0 0.0
    %2824 = vmatpush1.msra.mxu0 0.0
    %2825 = vmatprep.subr.mxu0 0.0
    %2826 = vmatpush1.msra.mxu0 0.0
    %2827 = vmatprep.subr.mxu0 0.0
    %2828 = vmatpush1.msra.mxu0 0.0
    %2829 = vmatprep.subr.mxu0 %v90
    %2830 = vmatpush1.msra.mxu0 %v87
    %2831 = vmatprep.subr.mxu0 %v65
    %2832 = vmatpush1.msra.mxu0 %v64
    %2833 = vmatprep.subr.mxu0 %v63
    %2834 = vmatpush1.msra.mxu0 %v62
    %2835 = vmatprep.subr.mxu0 %v61
    %2836 = vmatpush1.msra.mxu0 %v60
    %2837 = vmatprep.subr.mxu0 %v59
    %2838 = vmatpush1.msra.mxu0 %v58
    %2839 = vmatprep.subr.mxu0 %v57
    %2840 = vmatpush1.msra.mxu0 %v56
    %2841 = vmatprep.subr.mxu0 %v55
    %2842 = vmatpush1.msra.mxu0 %v54
    %2843 = vmatprep.subr.mxu0 0.0
    %2844 = vmatpush2.msra.mxu0 0.0
    %2845 = vmatprep.subr.mxu0 0.0
    %2846 = vmatpush2.msra.mxu0 0.0
    %2847 = vmatprep.subr.mxu0 0.0
    %2848 = vmatpush2.msra.mxu0 0.0
    %2849 = vmatprep.subr.mxu0 0.0
    %2850 = vmatpush2.msra.mxu0 0.0
    %2851 = vmatprep.subr.mxu0 0.0
    %2852 = vmatpush2.msra.mxu0 0.0
    %2853 = vmatprep.subr.mxu0 0.0
    %2854 = vmatpush2.msra.mxu0 0.0
    %2855 = vmatprep.subr.mxu0 0.0
    %2856 = vmatpush2.msra.mxu0 0.0
    %2857 = vmatprep.subr.mxu0 0.0
    %2858 = vmatpush2.msra.mxu0 0.0
    %2859 = vmatprep.subr.mxu0 0.0
    %2860 = vmatpush2.msra.mxu0 0.0
    %2861 = vmatprep.subr.mxu0 0.0
    %2862 = vmatpush2.msra.mxu0 0.0
    %2863 = vmatprep.subr.mxu0 0.0
    %2864 = vmatpush2.msra.mxu0 0.0
    %2865 = vmatprep.subr.mxu0 0.0
    %2866 = vmatpush2.msra.mxu0 0.0
    %2867 = vmatprep.subr.mxu0 0.0
    %2868 = vmatpush2.msra.mxu0 0.0
    %2869 = vmatprep.subr.mxu0 0.0
    %2870 = vmatpush2.msra.mxu0 0.0
    %2871 = vmatprep.subr.mxu0 0.0
    %2872 = vmatpush2.msra.mxu0 0.0
    %2873 = vmatprep.subr.mxu0 0.0
    %2874 = vmatpush2.msra.mxu0 0.0
    %2875 = vmatprep.mubr.f32.mxu0 0.0
    %2876 = vmatmul.mubr.f32.gmra.mxu0 %v2809
    %v2877 = vpop.f32.mrf.mxu0
    %v2878 = vadd.f32 0.0, %v2877
    %v2879 = vpop.f32.mrf.mxu0
    %v2880 = vadd.f32 0.0, %v2879
    %2881 = vdwg.mxu0
    %v2882 = vadd.f32 %v2804, %v2878
    %v2883 = vadd.f32 %v2805, %v2880
    %v2884 = vtanh.pop %v2882
    %v2885 = vtanh.pop %v2883
    %v2886 = vxor.u32 %v2882, 2147483648
    %v2887 = vxor.u32 %v2883, 2147483648
    %v2888 = vmul.f32 %v2886, 1.442695
    %v2889 = vpow.pop %v2888
    %v2890 = vmul.f32 %v2887, 1.442695
    %v2891 = vpow.pop %v2890
    %v2892 = vadd.f32 %v2889, 1.0
    %v2893 = vadd.f32 %v2891, 1.0
    %v2894 = vrcp.pop %v2892
    %v2895 = vmul.f32 1.0, %v2894
    %v2896 = vrcp.pop %v2893
    %v2897 = vmul.f32 1.0, %v2896
    %v2898 = vsel %vm77, %v2884, %v2895
    %v2899 = vsel %vm78, %v2885, %v2897
    %v2900 = vmul.f32 %v2898, %v2796
    %2903 = vrot.lane.b32.xlu0 %v2898, 28
    %v2904 = vpop.permute.xlu0 %2903
    %2905 = vrot.lane.b32.xlu0 %v2899, 28
    %v2906 = vpop.permute.xlu0 %2905
    %v2907 = vsel %vm192, %v2904, %v2906
    %v2909 = vmul.f32 %v2898, %v2907
    %2911 = vrot.lane.b32.xlu0 %v2909, 50
    %v2912 = vpop.permute.xlu0 %2911
    %v2914 = vadd.f32 %v2900, %v2912
    %v2915 = vtanh.pop %v2914
    %2917 = vrot.lane.b32.xlu0 %v2915, 100
    %v2918 = vpop.permute.xlu0 %2917
    %v2920 = vmul.f32 %v2899, %v2918
    %s2921 = scalar_lea.vmem %s0, 384
    %v2922 = vld [vmem:[%s2921] sm:$0xff]
    %v2923 = vld [vmem:[%s2921 + $0x8] sm:$0xff]
    %2925 = vrot.lane.b32.xlu0 %v2920, 106
    %v2926 = vpop.permute.xlu0 %2925
    %v2927 = vsel %vm81, %v2926, 0
    %2929 = vmatprep.subr.mxu0 0.0
    %2930 = vmatpush1.msra.mxu0 0.0
    %2931 = vmatprep.subr.mxu0 0.0
    %2932 = vmatpush1.msra.mxu0 0.0
    %2933 = vmatprep.subr.mxu0 0.0
    %2934 = vmatpush1.msra.mxu0 0.0
    %2935 = vmatprep.subr.mxu0 0.0
    %2936 = vmatpush1.msra.mxu0 0.0
    %2937 = vmatprep.subr.mxu0 0.0
    %2938 = vmatpush1.msra.mxu0 0.0
    %2939 = vmatprep.subr.mxu0 0.0
    %2940 = vmatpush1.msra.mxu0 0.0
    %2941 = vmatprep.subr.mxu0 0.0
    %2942 = vmatpush1.msra.mxu0 0.0
    %2943 = vmatprep.subr.mxu0 0.0
    %2944 = vmatpush1.msra.mxu0 0.0
    %2945 = vmatprep.subr.mxu0 0.0
    %2946 = vmatpush1.msra.mxu0 0.0
    %2947 = vmatprep.subr.mxu0 %v90
    %2948 = vmatpush1.msra.mxu0 %v87
    %2949 = vmatprep.subr.mxu0 %v65
    %2950 = vmatpush1.msra.mxu0 %v64
    %2951 = vmatprep.subr.mxu0 %v63
    %2952 = vmatpush1.msra.mxu0 %v62
    %2953 = vmatprep.subr.mxu0 %v61
    %2954 = vmatpush1.msra.mxu0 %v60
    %2955 = vmatprep.subr.mxu0 %v59
    %2956 = vmatpush1.msra.mxu0 %v58
    %2957 = vmatprep.subr.mxu0 %v57
    %2958 = vmatpush1.msra.mxu0 %v56
    %2959 = vmatprep.subr.mxu0 %v55
    %2960 = vmatpush1.msra.mxu0 %v54
    %2961 = vmatprep.subr.mxu0 0.0
    %2962 = vmatpush2.msra.mxu0 0.0
    %2963 = vmatprep.subr.mxu0 0.0
    %2964 = vmatpush2.msra.mxu0 0.0
    %2965 = vmatprep.subr.mxu0 0.0
    %2966 = vmatpush2.msra.mxu0 0.0
    %2967 = vmatprep.subr.mxu0 0.0
    %2968 = vmatpush2.msra.mxu0 0.0
    %2969 = vmatprep.subr.mxu0 0.0
    %2970 = vmatpush2.msra.mxu0 0.0
    %2971 = vmatprep.subr.mxu0 0.0
    %2972 = vmatpush2.msra.mxu0 0.0
    %2973 = vmatprep.subr.mxu0 0.0
    %2974 = vmatpush2.msra.mxu0 0.0
    %2975 = vmatprep.subr.mxu0 0.0
    %2976 = vmatpush2.msra.mxu0 0.0
    %2977 = vmatprep.subr.mxu0 0.0
    %2978 = vmatpush2.msra.mxu0 0.0
    %2979 = vmatprep.subr.mxu0 0.0
    %2980 = vmatpush2.msra.mxu0 0.0
    %2981 = vmatprep.subr.mxu0 0.0
    %2982 = vmatpush2.msra.mxu0 0.0
    %2983 = vmatprep.subr.mxu0 0.0
    %2984 = vmatpush2.msra.mxu0 0.0
    %2985 = vmatprep.subr.mxu0 0.0
    %2986 = vmatpush2.msra.mxu0 0.0
    %2987 = vmatprep.subr.mxu0 0.0
    %2988 = vmatpush2.msra.mxu0 0.0
    %2989 = vmatprep.subr.mxu0 0.0
    %2990 = vmatpush2.msra.mxu0 0.0
    %2991 = vmatprep.subr.mxu0 0.0
    %2992 = vmatpush2.msra.mxu0 0.0
    %2993 = vmatprep.mubr.f32.mxu0 0.0
    %2994 = vmatmul.mubr.f32.gmra.mxu0 %v2927
    %v2995 = vpop.f32.mrf.mxu0
    %v2996 = vadd.f32 0.0, %v2995
    %v2997 = vpop.f32.mrf.mxu0
    %v2998 = vadd.f32 0.0, %v2997
    %2999 = vdwg.mxu0
    %v3000 = vadd.f32 %v2922, %v2996
    %v3001 = vadd.f32 %v2923, %v2998
    %v3002 = vtanh.pop %v3000
    %v3003 = vtanh.pop %v3001
    %v3004 = vxor.u32 %v3000, 2147483648
    %v3005 = vxor.u32 %v3001, 2147483648
    %v3006 = vmul.f32 %v3004, 1.442695
    %v3007 = vpow.pop %v3006
    %v3008 = vmul.f32 %v3005, 1.442695
    %v3009 = vpow.pop %v3008
    %v3010 = vadd.f32 %v3007, 1.0
    %v3011 = vadd.f32 %v3009, 1.0
    %v3012 = vrcp.pop %v3010
    %v3013 = vmul.f32 1.0, %v3012
    %v3014 = vrcp.pop %v3011
    %v3015 = vmul.f32 1.0, %v3014
    %v3016 = vsel %vm77, %v3002, %v3013
    %v3017 = vsel %vm78, %v3003, %v3015
    %v3018 = vmul.f32 %v3016, %v2914
    %3021 = vrot.lane.b32.xlu0 %v3016, 28
    %v3022 = vpop.permute.xlu0 %3021
    %3023 = vrot.lane.b32.xlu0 %v3017, 28
    %v3024 = vpop.permute.xlu0 %3023
    %v3025 = vsel %vm192, %v3022, %v3024
    %v3027 = vmul.f32 %v3016, %v3025
    %3029 = vrot.lane.b32.xlu0 %v3027, 50
    %v3030 = vpop.permute.xlu0 %3029
    %v3032 = vadd.f32 %v3018, %v3030
    %v3033 = vtanh.pop %v3032
    %3035 = vrot.lane.b32.xlu0 %v3033, 100
    %v3036 = vpop.permute.xlu0 %3035
    %v3038 = vmul.f32 %v3017, %v3036
    %s3039 = scalar_lea.vmem %s0, 400
    %v3040 = vld [vmem:[%s3039] sm:$0xff]
    %v3041 = vld [vmem:[%s3039 + $0x8] sm:$0xff]
    %3043 = vrot.lane.b32.xlu0 %v3038, 106
    %v3044 = vpop.permute.xlu0 %3043
    %v3045 = vsel %vm81, %v3044, 0
    %3047 = vmatprep.subr.mxu0 0.0
    %3048 = vmatpush1.msra.mxu0 0.0
    %3049 = vmatprep.subr.mxu0 0.0
    %3050 = vmatpush1.msra.mxu0 0.0
    %3051 = vmatprep.subr.mxu0 0.0
    %3052 = vmatpush1.msra.mxu0 0.0
    %3053 = vmatprep.subr.mxu0 0.0
    %3054 = vmatpush1.msra.mxu0 0.0
    %3055 = vmatprep.subr.mxu0 0.0
    %3056 = vmatpush1.msra.mxu0 0.0
    %3057 = vmatprep.subr.mxu0 0.0
    %3058 = vmatpush1.msra.mxu0 0.0
    %3059 = vmatprep.subr.mxu0 0.0
    %3060 = vmatpush1.msra.mxu0 0.0
    %3061 = vmatprep.subr.mxu0 0.0
    %3062 = vmatpush1.msra.mxu0 0.0
    %3063 = vmatprep.subr.mxu0 0.0
    %3064 = vmatpush1.msra.mxu0 0.0
    %3065 = vmatprep.subr.mxu0 %v90
    %3066 = vmatpush1.msra.mxu0 %v87
    %3067 = vmatprep.subr.mxu0 %v65
    %3068 = vmatpush1.msra.mxu0 %v64
    %3069 = vmatprep.subr.mxu0 %v63
    %3070 = vmatpush1.msra.mxu0 %v62
    %3071 = vmatprep.subr.mxu0 %v61
    %3072 = vmatpush1.msra.mxu0 %v60
    %3073 = vmatprep.subr.mxu0 %v59
    %3074 = vmatpush1.msra.mxu0 %v58
    %3075 = vmatprep.subr.mxu0 %v57
    %3076 = vmatpush1.msra.mxu0 %v56
    %3077 = vmatprep.subr.mxu0 %v55
    %3078 = vmatpush1.msra.mxu0 %v54
    %3079 = vmatprep.subr.mxu0 0.0
    %3080 = vmatpush2.msra.mxu0 0.0
    %3081 = vmatprep.subr.mxu0 0.0
    %3082 = vmatpush2.msra.mxu0 0.0
    %3083 = vmatprep.subr.mxu0 0.0
    %3084 = vmatpush2.msra.mxu0 0.0
    %3085 = vmatprep.subr.mxu0 0.0
    %3086 = vmatpush2.msra.mxu0 0.0
    %3087 = vmatprep.subr.mxu0 0.0
    %3088 = vmatpush2.msra.mxu0 0.0
    %3089 = vmatprep.subr.mxu0 0.0
    %3090 = vmatpush2.msra.mxu0 0.0
    %3091 = vmatprep.subr.mxu0 0.0
    %3092 = vmatpush2.msra.mxu0 0.0
    %3093 = vmatprep.subr.mxu0 0.0
    %3094 = vmatpush2.msra.mxu0 0.0
    %3095 = vmatprep.subr.mxu0 0.0
    %3096 = vmatpush2.msra.mxu0 0.0
    %3097 = vmatprep.subr.mxu0 0.0
    %3098 = vmatpush2.msra.mxu0 0.0
    %3099 = vmatprep.subr.mxu0 0.0
    %3100 = vmatpush2.msra.mxu0 0.0
    %3101 = vmatprep.subr.mxu0 0.0
    %3102 = vmatpush2.msra.mxu0 0.0
    %3103 = vmatprep.subr.mxu0 0.0
    %3104 = vmatpush2.msra.mxu0 0.0
    %3105 = vmatprep.subr.mxu0 0.0
    %3106 = vmatpush2.msra.mxu0 0.0
    %3107 = vmatprep.subr.mxu0 0.0
    %3108 = vmatpush2.msra.mxu0 0.0
    %3109 = vmatprep.subr.mxu0 0.0
    %3110 = vmatpush2.msra.mxu0 0.0
    %3111 = vmatprep.mubr.f32.mxu0 0.0
    %3112 = vmatmul.mubr.f32.gmra.mxu0 %v3045
    %v3113 = vpop.f32.mrf.mxu0
    %v3114 = vadd.f32 0.0, %v3113
    %v3115 = vpop.f32.mrf.mxu0
    %v3116 = vadd.f32 0.0, %v3115
    %3117 = vdwg.mxu0
    %v3118 = vadd.f32 %v3040, %v3114
    %v3119 = vadd.f32 %v3041, %v3116
    %v3120 = vtanh.pop %v3118
    %v3121 = vtanh.pop %v3119
    %v3122 = vxor.u32 %v3118, 2147483648
    %v3123 = vxor.u32 %v3119, 2147483648
    %v3124 = vmul.f32 %v3122, 1.442695
    %v3125 = vpow.pop %v3124
    %v3126 = vmul.f32 %v3123, 1.442695
    %v3127 = vpow.pop %v3126
    %v3128 = vadd.f32 %v3125, 1.0
    %v3129 = vadd.f32 %v3127, 1.0
    %v3130 = vrcp.pop %v3128
    %v3131 = vmul.f32 1.0, %v3130
    %v3132 = vrcp.pop %v3129
    %v3133 = vmul.f32 1.0, %v3132
    %v3134 = vsel %vm77, %v3120, %v3131
    %v3135 = vsel %vm78, %v3121, %v3133
    %v3136 = vmul.f32 %v3134, %v3032
    %3139 = vrot.lane.b32.xlu0 %v3134, 28
    %v3140 = vpop.permute.xlu0 %3139
    %3141 = vrot.lane.b32.xlu0 %v3135, 28
    %v3142 = vpop.permute.xlu0 %3141
    %v3143 = vsel %vm192, %v3140, %v3142
    %v3145 = vmul.f32 %v3134, %v3143
    %3147 = vrot.lane.b32.xlu0 %v3145, 50
    %v3148 = vpop.permute.xlu0 %3147
    %v3150 = vadd.f32 %v3136, %v3148
    %v3151 = vtanh.pop %v3150
    %3153 = vrot.lane.b32.xlu0 %v3151, 100
    %v3154 = vpop.permute.xlu0 %3153
    %v3156 = vmul.f32 %v3135, %v3154
    %s3157 = scalar_lea.vmem %s0, 416
    %v3158 = vld [vmem:[%s3157] sm:$0xff]
    %v3159 = vld [vmem:[%s3157 + $0x8] sm:$0xff]
    %3161 = vrot.lane.b32.xlu0 %v3156, 106
    %v3162 = vpop.permute.xlu0 %3161
    %v3163 = vsel %vm81, %v3162, 0
    %3165 = vmatprep.subr.mxu0 0.0
    %3166 = vmatpush1.msra.mxu0 0.0
    %3167 = vmatprep.subr.mxu0 0.0
    %3168 = vmatpush1.msra.mxu0 0.0
    %3169 = vmatprep.subr.mxu0 0.0
    %3170 = vmatpush1.msra.mxu0 0.0
    %3171 = vmatprep.subr.mxu0 0.0
    %3172 = vmatpush1.msra.mxu0 0.0
    %3173 = vmatprep.subr.mxu0 0.0
    %3174 = vmatpush1.msra.mxu0 0.0
    %3175 = vmatprep.subr.mxu0 0.0
    %3176 = vmatpush1.msra.mxu0 0.0
    %3177 = vmatprep.subr.mxu0 0.0
    %3178 = vmatpush1.msra.mxu0 0.0
    %3179 = vmatprep.subr.mxu0 0.0
    %3180 = vmatpush1.msra.mxu0 0.0
    %3181 = vmatprep.subr.mxu0 0.0
    %3182 = vmatpush1.msra.mxu0 0.0
    %3183 = vmatprep.subr.mxu0 %v90
    %3184 = vmatpush1.msra.mxu0 %v87
    %3185 = vmatprep.subr.mxu0 %v65
    %3186 = vmatpush1.msra.mxu0 %v64
    %3187 = vmatprep.subr.mxu0 %v63
    %3188 = vmatpush1.msra.mxu0 %v62
    %3189 = vmatprep.subr.mxu0 %v61
    %3190 = vmatpush1.msra.mxu0 %v60
    %3191 = vmatprep.subr.mxu0 %v59
    %3192 = vmatpush1.msra.mxu0 %v58
    %3193 = vmatprep.subr.mxu0 %v57
    %3194 = vmatpush1.msra.mxu0 %v56
    %3195 = vmatprep.subr.mxu0 %v55
    %3196 = vmatpush1.msra.mxu0 %v54
    %3197 = vmatprep.subr.mxu0 0.0
    %3198 = vmatpush2.msra.mxu0 0.0
    %3199 = vmatprep.subr.mxu0 0.0
    %3200 = vmatpush2.msra.mxu0 0.0
    %3201 = vmatprep.subr.mxu0 0.0
    %3202 = vmatpush2.msra.mxu0 0.0
    %3203 = vmatprep.subr.mxu0 0.0
    %3204 = vmatpush2.msra.mxu0 0.0
    %3205 = vmatprep.subr.mxu0 0.0
    %3206 = vmatpush2.msra.mxu0 0.0
    %3207 = vmatprep.subr.mxu0 0.0
    %3208 = vmatpush2.msra.mxu0 0.0
    %3209 = vmatprep.subr.mxu0 0.0
    %3210 = vmatpush2.msra.mxu0 0.0
    %3211 = vmatprep.subr.mxu0 0.0
    %3212 = vmatpush2.msra.mxu0 0.0
    %3213 = vmatprep.subr.mxu0 0.0
    %3214 = vmatpush2.msra.mxu0 0.0
    %3215 = vmatprep.subr.mxu0 0.0
    %3216 = vmatpush2.msra.mxu0 0.0
    %3217 = vmatprep.subr.mxu0 0.0
    %3218 = vmatpush2.msra.mxu0 0.0
    %3219 = vmatprep.subr.mxu0 0.0
    %3220 = vmatpush2.msra.mxu0 0.0
    %3221 = vmatprep.subr.mxu0 0.0
    %3222 = vmatpush2.msra.mxu0 0.0
    %3223 = vmatprep.subr.mxu0 0.0
    %3224 = vmatpush2.msra.mxu0 0.0
    %3225 = vmatprep.subr.mxu0 0.0
    %3226 = vmatpush2.msra.mxu0 0.0
    %3227 = vmatprep.subr.mxu0 0.0
    %3228 = vmatpush2.msra.mxu0 0.0
    %3229 = vmatprep.mubr.f32.mxu0 0.0
    %3230 = vmatmul.mubr.f32.gmra.mxu0 %v3163
    %v3231 = vpop.f32.mrf.mxu0
    %v3232 = vadd.f32 0.0, %v3231
    %v3233 = vpop.f32.mrf.mxu0
    %v3234 = vadd.f32 0.0, %v3233
    %3235 = vdwg.mxu0
    %v3236 = vadd.f32 %v3158, %v3232
    %v3237 = vadd.f32 %v3159, %v3234
    %v3238 = vtanh.pop %v3236
    %v3239 = vtanh.pop %v3237
    %v3240 = vxor.u32 %v3236, 2147483648
    %v3241 = vxor.u32 %v3237, 2147483648
    %v3242 = vmul.f32 %v3240, 1.442695
    %v3243 = vpow.pop %v3242
    %v3244 = vmul.f32 %v3241, 1.442695
    %v3245 = vpow.pop %v3244
    %v3246 = vadd.f32 %v3243, 1.0
    %v3247 = vadd.f32 %v3245, 1.0
    %v3248 = vrcp.pop %v3246
    %v3249 = vmul.f32 1.0, %v3248
    %v3250 = vrcp.pop %v3247
    %v3251 = vmul.f32 1.0, %v3250
    %v3252 = vsel %vm77, %v3238, %v3249
    %v3253 = vsel %vm78, %v3239, %v3251
    %v3254 = vmul.f32 %v3252, %v3150
    %3257 = vrot.lane.b32.xlu0 %v3252, 28
    %v3258 = vpop.permute.xlu0 %3257
    %3259 = vrot.lane.b32.xlu0 %v3253, 28
    %v3260 = vpop.permute.xlu0 %3259
    %v3261 = vsel %vm192, %v3258, %v3260
    %v3263 = vmul.f32 %v3252, %v3261
    %3265 = vrot.lane.b32.xlu0 %v3263, 50
    %v3266 = vpop.permute.xlu0 %3265
    %v3268 = vadd.f32 %v3254, %v3266
    %v3269 = vtanh.pop %v3268
    %3271 = vrot.lane.b32.xlu0 %v3269, 100
    %v3272 = vpop.permute.xlu0 %3271
    %v3274 = vmul.f32 %v3253, %v3272
    %s3275 = scalar_lea.vmem %s0, 432
    %v3276 = vld [vmem:[%s3275] sm:$0xff]
    %v3277 = vld [vmem:[%s3275 + $0x8] sm:$0xff]
    %3279 = vrot.lane.b32.xlu0 %v3274, 106
    %v3280 = vpop.permute.xlu0 %3279
    %v3281 = vsel %vm81, %v3280, 0
    %3283 = vmatprep.subr.mxu0 0.0
    %3284 = vmatpush1.msra.mxu0 0.0
    %3285 = vmatprep.subr.mxu0 0.0
    %3286 = vmatpush1.msra.mxu0 0.0
    %3287 = vmatprep.subr.mxu0 0.0
    %3288 = vmatpush1.msra.mxu0 0.0
    %3289 = vmatprep.subr.mxu0 0.0
    %3290 = vmatpush1.msra.mxu0 0.0
    %3291 = vmatprep.subr.mxu0 0.0
    %3292 = vmatpush1.msra.mxu0 0.0
    %3293 = vmatprep.subr.mxu0 0.0
    %3294 = vmatpush1.msra.mxu0 0.0
    %3295 = vmatprep.subr.mxu0 0.0
    %3296 = vmatpush1.msra.mxu0 0.0
    %3297 = vmatprep.subr.mxu0 0.0
    %3298 = vmatpush1.msra.mxu0 0.0
    %3299 = vmatprep.subr.mxu0 0.0
    %3300 = vmatpush1.msra.mxu0 0.0
    %3301 = vmatprep.subr.mxu0 %v90
    %3302 = vmatpush1.msra.mxu0 %v87
    %3303 = vmatprep.subr.mxu0 %v65
    %3304 = vmatpush1.msra.mxu0 %v64
    %3305 = vmatprep.subr.mxu0 %v63
    %3306 = vmatpush1.msra.mxu0 %v62
    %3307 = vmatprep.subr.mxu0 %v61
    %3308 = vmatpush1.msra.mxu0 %v60
    %3309 = vmatprep.subr.mxu0 %v59
    %3310 = vmatpush1.msra.mxu0 %v58
    %3311 = vmatprep.subr.mxu0 %v57
    %3312 = vmatpush1.msra.mxu0 %v56
    %3313 = vmatprep.subr.mxu0 %v55
    %3314 = vmatpush1.msra.mxu0 %v54
    %3315 = vmatprep.subr.mxu0 0.0
    %3316 = vmatpush2.msra.mxu0 0.0
    %3317 = vmatprep.subr.mxu0 0.0
    %3318 = vmatpush2.msra.mxu0 0.0
    %3319 = vmatprep.subr.mxu0 0.0
    %3320 = vmatpush2.msra.mxu0 0.0
    %3321 = vmatprep.subr.mxu0 0.0
    %3322 = vmatpush2.msra.mxu0 0.0
    %3323 = vmatprep.subr.mxu0 0.0
    %3324 = vmatpush2.msra.mxu0 0.0
    %3325 = vmatprep.subr.mxu0 0.0
    %3326 = vmatpush2.msra.mxu0 0.0
    %3327 = vmatprep.subr.mxu0 0.0
    %3328 = vmatpush2.msra.mxu0 0.0
    %3329 = vmatprep.subr.mxu0 0.0
    %3330 = vmatpush2.msra.mxu0 0.0
    %3331 = vmatprep.subr.mxu0 0.0
    %3332 = vmatpush2.msra.mxu0 0.0
    %3333 = vmatprep.subr.mxu0 0.0
    %3334 = vmatpush2.msra.mxu0 0.0
    %3335 = vmatprep.subr.mxu0 0.0
    %3336 = vmatpush2.msra.mxu0 0.0
    %3337 = vmatprep.subr.mxu0 0.0
    %3338 = vmatpush2.msra.mxu0 0.0
    %3339 = vmatprep.subr.mxu0 0.0
    %3340 = vmatpush2.msra.mxu0 0.0
    %3341 = vmatprep.subr.mxu0 0.0
    %3342 = vmatpush2.msra.mxu0 0.0
    %3343 = vmatprep.subr.mxu0 0.0
    %3344 = vmatpush2.msra.mxu0 0.0
    %3345 = vmatprep.subr.mxu0 0.0
    %3346 = vmatpush2.msra.mxu0 0.0
    %3347 = vmatprep.mubr.f32.mxu0 0.0
    %3348 = vmatmul.mubr.f32.gmra.mxu0 %v3281
    %v3349 = vpop.f32.mrf.mxu0
    %v3350 = vadd.f32 0.0, %v3349
    %v3351 = vpop.f32.mrf.mxu0
    %v3352 = vadd.f32 0.0, %v3351
    %3353 = vdwg.mxu0
    %v3354 = vadd.f32 %v3276, %v3350
    %v3355 = vadd.f32 %v3277, %v3352
    %v3356 = vtanh.pop %v3354
    %v3357 = vtanh.pop %v3355
    %v3358 = vxor.u32 %v3354, 2147483648
    %v3359 = vxor.u32 %v3355, 2147483648
    %v3360 = vmul.f32 %v3358, 1.442695
    %v3361 = vpow.pop %v3360
    %v3362 = vmul.f32 %v3359, 1.442695
    %v3363 = vpow.pop %v3362
    %v3364 = vadd.f32 %v3361, 1.0
    %v3365 = vadd.f32 %v3363, 1.0
    %v3366 = vrcp.pop %v3364
    %v3367 = vmul.f32 1.0, %v3366
    %v3368 = vrcp.pop %v3365
    %v3369 = vmul.f32 1.0, %v3368
    %v3370 = vsel %vm77, %v3356, %v3367
    %v3371 = vsel %vm78, %v3357, %v3369
    %v3372 = vmul.f32 %v3370, %v3268
    %3375 = vrot.lane.b32.xlu0 %v3370, 28
    %v3376 = vpop.permute.xlu0 %3375
    %3377 = vrot.lane.b32.xlu0 %v3371, 28
    %v3378 = vpop.permute.xlu0 %3377
    %v3379 = vsel %vm192, %v3376, %v3378
    %v3381 = vmul.f32 %v3370, %v3379
    %3383 = vrot.lane.b32.xlu0 %v3381, 50
    %v3384 = vpop.permute.xlu0 %3383
    %v3386 = vadd.f32 %v3372, %v3384
    %v3387 = vtanh.pop %v3386
    %3389 = vrot.lane.b32.xlu0 %v3387, 100
    %v3390 = vpop.permute.xlu0 %3389
    %v3392 = vmul.f32 %v3371, %v3390
    %s3393 = scalar_lea.vmem %s0, 448
    %v3394 = vld [vmem:[%s3393] sm:$0xff]
    %v3395 = vld [vmem:[%s3393 + $0x8] sm:$0xff]
    %3397 = vrot.lane.b32.xlu0 %v3392, 106
    %v3398 = vpop.permute.xlu0 %3397
    %v3399 = vsel %vm81, %v3398, 0
    %3401 = vmatprep.subr.mxu0 0.0
    %3402 = vmatpush1.msra.mxu0 0.0
    %3403 = vmatprep.subr.mxu0 0.0
    %3404 = vmatpush1.msra.mxu0 0.0
    %3405 = vmatprep.subr.mxu0 0.0
    %3406 = vmatpush1.msra.mxu0 0.0
    %3407 = vmatprep.subr.mxu0 0.0
    %3408 = vmatpush1.msra.mxu0 0.0
    %3409 = vmatprep.subr.mxu0 0.0
    %3410 = vmatpush1.msra.mxu0 0.0
    %3411 = vmatprep.subr.mxu0 0.0
    %3412 = vmatpush1.msra.mxu0 0.0
    %3413 = vmatprep.subr.mxu0 0.0
    %3414 = vmatpush1.msra.mxu0 0.0
    %3415 = vmatprep.subr.mxu0 0.0
    %3416 = vmatpush1.msra.mxu0 0.0
    %3417 = vmatprep.subr.mxu0 0.0
    %3418 = vmatpush1.msra.mxu0 0.0
    %3419 = vmatprep.subr.mxu0 %v90
    %3420 = vmatpush1.msra.mxu0 %v87
    %3421 = vmatprep.subr.mxu0 %v65
    %3422 = vmatpush1.msra.mxu0 %v64
    %3423 = vmatprep.subr.mxu0 %v63
    %3424 = vmatpush1.msra.mxu0 %v62
    %3425 = vmatprep.subr.mxu0 %v61
    %3426 = vmatpush1.msra.mxu0 %v60
    %3427 = vmatprep.subr.mxu0 %v59
    %3428 = vmatpush1.msra.mxu0 %v58
    %3429 = vmatprep.subr.mxu0 %v57
    %3430 = vmatpush1.msra.mxu0 %v56
    %3431 = vmatprep.subr.mxu0 %v55
    %3432 = vmatpush1.msra.mxu0 %v54
    %3433 = vmatprep.subr.mxu0 0.0
    %3434 = vmatpush2.msra.mxu0 0.0
    %3435 = vmatprep.subr.mxu0 0.0
    %3436 = vmatpush2.msra.mxu0 0.0
    %3437 = vmatprep.subr.mxu0 0.0
    %3438 = vmatpush2.msra.mxu0 0.0
    %3439 = vmatprep.subr.mxu0 0.0
    %3440 = vmatpush2.msra.mxu0 0.0
    %3441 = vmatprep.subr.mxu0 0.0
    %3442 = vmatpush2.msra.mxu0 0.0
    %3443 = vmatprep.subr.mxu0 0.0
    %3444 = vmatpush2.msra.mxu0 0.0
    %3445 = vmatprep.subr.mxu0 0.0
    %3446 = vmatpush2.msra.mxu0 0.0
    %3447 = vmatprep.subr.mxu0 0.0
    %3448 = vmatpush2.msra.mxu0 0.0
    %3449 = vmatprep.subr.mxu0 0.0
    %3450 = vmatpush2.msra.mxu0 0.0
    %3451 = vmatprep.subr.mxu0 0.0
    %3452 = vmatpush2.msra.mxu0 0.0
    %3453 = vmatprep.subr.mxu0 0.0
    %3454 = vmatpush2.msra.mxu0 0.0
    %3455 = vmatprep.subr.mxu0 0.0
    %3456 = vmatpush2.msra.mxu0 0.0
    %3457 = vmatprep.subr.mxu0 0.0
    %3458 = vmatpush2.msra.mxu0 0.0
    %3459 = vmatprep.subr.mxu0 0.0
    %3460 = vmatpush2.msra.mxu0 0.0
    %3461 = vmatprep.subr.mxu0 0.0
    %3462 = vmatpush2.msra.mxu0 0.0
    %3463 = vmatprep.subr.mxu0 0.0
    %3464 = vmatpush2.msra.mxu0 0.0
    %3465 = vmatprep.mubr.f32.mxu0 0.0
    %3466 = vmatmul.mubr.f32.gmra.mxu0 %v3399
    %v3467 = vpop.f32.mrf.mxu0
    %v3468 = vadd.f32 0.0, %v3467
    %v3469 = vpop.f32.mrf.mxu0
    %v3470 = vadd.f32 0.0, %v3469
    %3471 = vdwg.mxu0
    %v3472 = vadd.f32 %v3394, %v3468
    %v3473 = vadd.f32 %v3395, %v3470
    %v3474 = vtanh.pop %v3472
    %v3475 = vtanh.pop %v3473
    %v3476 = vxor.u32 %v3472, 2147483648
    %v3477 = vxor.u32 %v3473, 2147483648
    %v3478 = vmul.f32 %v3476, 1.442695
    %v3479 = vpow.pop %v3478
    %v3480 = vmul.f32 %v3477, 1.442695
    %v3481 = vpow.pop %v3480
    %v3482 = vadd.f32 %v3479, 1.0
    %v3483 = vadd.f32 %v3481, 1.0
    %v3484 = vrcp.pop %v3482
    %v3485 = vmul.f32 1.0, %v3484
    %v3486 = vrcp.pop %v3483
    %v3487 = vmul.f32 1.0, %v3486
    %v3488 = vsel %vm77, %v3474, %v3485
    %v3489 = vsel %vm78, %v3475, %v3487
    %v3490 = vmul.f32 %v3488, %v3386
    %3493 = vrot.lane.b32.xlu0 %v3488, 28
    %v3494 = vpop.permute.xlu0 %3493
    %3495 = vrot.lane.b32.xlu0 %v3489, 28
    %v3496 = vpop.permute.xlu0 %3495
    %v3497 = vsel %vm192, %v3494, %v3496
    %v3499 = vmul.f32 %v3488, %v3497
    %3501 = vrot.lane.b32.xlu0 %v3499, 50
    %v3502 = vpop.permute.xlu0 %3501
    %v3504 = vadd.f32 %v3490, %v3502
    %v3505 = vtanh.pop %v3504
    %3507 = vrot.lane.b32.xlu0 %v3505, 100
    %v3508 = vpop.permute.xlu0 %3507
    %v3510 = vmul.f32 %v3489, %v3508
    %s3511 = scalar_lea.vmem %s0, 464
    %v3512 = vld [vmem:[%s3511] sm:$0xff]
    %v3513 = vld [vmem:[%s3511 + $0x8] sm:$0xff]
    %3515 = vrot.lane.b32.xlu0 %v3510, 106
    %v3516 = vpop.permute.xlu0 %3515
    %v3517 = vsel %vm81, %v3516, 0
    %3519 = vmatprep.subr.mxu0 0.0
    %3520 = vmatpush1.msra.mxu0 0.0
    %3521 = vmatprep.subr.mxu0 0.0
    %3522 = vmatpush1.msra.mxu0 0.0
    %3523 = vmatprep.subr.mxu0 0.0
    %3524 = vmatpush1.msra.mxu0 0.0
    %3525 = vmatprep.subr.mxu0 0.0
    %3526 = vmatpush1.msra.mxu0 0.0
    %3527 = vmatprep.subr.mxu0 0.0
    %3528 = vmatpush1.msra.mxu0 0.0
    %3529 = vmatprep.subr.mxu0 0.0
    %3530 = vmatpush1.msra.mxu0 0.0
    %3531 = vmatprep.subr.mxu0 0.0
    %3532 = vmatpush1.msra.mxu0 0.0
    %3533 = vmatprep.subr.mxu0 0.0
    %3534 = vmatpush1.msra.mxu0 0.0
    %3535 = vmatprep.subr.mxu0 0.0
    %3536 = vmatpush1.msra.mxu0 0.0
    %3537 = vmatprep.subr.mxu0 %v90
    %3538 = vmatpush1.msra.mxu0 %v87
    %3539 = vmatprep.subr.mxu0 %v65
    %3540 = vmatpush1.msra.mxu0 %v64
    %3541 = vmatprep.subr.mxu0 %v63
    %3542 = vmatpush1.msra.mxu0 %v62
    %3543 = vmatprep.subr.mxu0 %v61
    %3544 = vmatpush1.msra.mxu0 %v60
    %3545 = vmatprep.subr.mxu0 %v59
    %3546 = vmatpush1.msra.mxu0 %v58
    %3547 = vmatprep.subr.mxu0 %v57
    %3548 = vmatpush1.msra.mxu0 %v56
    %3549 = vmatprep.subr.mxu0 %v55
    %3550 = vmatpush1.msra.mxu0 %v54
    %3551 = vmatprep.subr.mxu0 0.0
    %3552 = vmatpush2.msra.mxu0 0.0
    %3553 = vmatprep.subr.mxu0 0.0
    %3554 = vmatpush2.msra.mxu0 0.0
    %3555 = vmatprep.subr.mxu0 0.0
    %3556 = vmatpush2.msra.mxu0 0.0
    %3557 = vmatprep.subr.mxu0 0.0
    %3558 = vmatpush2.msra.mxu0 0.0
    %3559 = vmatprep.subr.mxu0 0.0
    %3560 = vmatpush2.msra.mxu0 0.0
    %3561 = vmatprep.subr.mxu0 0.0
    %3562 = vmatpush2.msra.mxu0 0.0
    %3563 = vmatprep.subr.mxu0 0.0
    %3564 = vmatpush2.msra.mxu0 0.0
    %3565 = vmatprep.subr.mxu0 0.0
    %3566 = vmatpush2.msra.mxu0 0.0
    %3567 = vmatprep.subr.mxu0 0.0
    %3568 = vmatpush2.msra.mxu0 0.0
    %3569 = vmatprep.subr.mxu0 0.0
    %3570 = vmatpush2.msra.mxu0 0.0
    %3571 = vmatprep.subr.mxu0 0.0
    %3572 = vmatpush2.msra.mxu0 0.0
    %3573 = vmatprep.subr.mxu0 0.0
    %3574 = vmatpush2.msra.mxu0 0.0
    %3575 = vmatprep.subr.mxu0 0.0
    %3576 = vmatpush2.msra.mxu0 0.0
    %3577 = vmatprep.subr.mxu0 0.0
    %3578 = vmatpush2.msra.mxu0 0.0
    %3579 = vmatprep.subr.mxu0 0.0
    %3580 = vmatpush2.msra.mxu0 0.0
    %3581 = vmatprep.subr.mxu0 0.0
    %3582 = vmatpush2.msra.mxu0 0.0
    %3583 = vmatprep.mubr.f32.mxu0 0.0
    %3584 = vmatmul.mubr.f32.gmra.mxu0 %v3517
    %v3585 = vpop.f32.mrf.mxu0
    %v3586 = vadd.f32 0.0, %v3585
    %v3587 = vpop.f32.mrf.mxu0
    %v3588 = vadd.f32 0.0, %v3587
    %3589 = vdwg.mxu0
    %v3590 = vadd.f32 %v3512, %v3586
    %v3591 = vadd.f32 %v3513, %v3588
    %v3592 = vtanh.pop %v3590
    %v3593 = vtanh.pop %v3591
    %v3594 = vxor.u32 %v3590, 2147483648
    %v3595 = vxor.u32 %v3591, 2147483648
    %v3596 = vmul.f32 %v3594, 1.442695
    %v3597 = vpow.pop %v3596
    %v3598 = vmul.f32 %v3595, 1.442695
    %v3599 = vpow.pop %v3598
    %v3600 = vadd.f32 %v3597, 1.0
    %v3601 = vadd.f32 %v3599, 1.0
    %v3602 = vrcp.pop %v3600
    %v3603 = vmul.f32 1.0, %v3602
    %v3604 = vrcp.pop %v3601
    %v3605 = vmul.f32 1.0, %v3604
    %v3606 = vsel %vm77, %v3592, %v3603
    %v3607 = vsel %vm78, %v3593, %v3605
    %v3608 = vmul.f32 %v3606, %v3504
    %3611 = vrot.lane.b32.xlu0 %v3606, 28
    %v3612 = vpop.permute.xlu0 %3611
    %3613 = vrot.lane.b32.xlu0 %v3607, 28
    %v3614 = vpop.permute.xlu0 %3613
    %v3615 = vsel %vm192, %v3612, %v3614
    %v3617 = vmul.f32 %v3606, %v3615
    %3619 = vrot.lane.b32.xlu0 %v3617, 50
    %v3620 = vpop.permute.xlu0 %3619
    %v3622 = vadd.f32 %v3608, %v3620
    %v3623 = vtanh.pop %v3622
    %3625 = vrot.lane.b32.xlu0 %v3623, 100
    %v3626 = vpop.permute.xlu0 %3625
    %v3628 = vmul.f32 %v3607, %v3626
    %v3629 = vld [vmem:[%s4] sm:$0xff]
    %v3630 = vld [vmem:[%s4 + $0x8] sm:$0xff]
    %v3631 = vld [vmem:[%s4 + $0x10] sm:$0xff]
    %v3632 = vld [vmem:[%s4 + $0x18] sm:$0xff]
    %v3633 = vld [vmem:[%s4 + $0x20] sm:$0xff]
    %v3634 = vld [vmem:[%s4 + $0x28] sm:$0xff]
    %v3635 = vld [vmem:[%s4 + $0x30] sm:$0x3]
    %v3636 = vld [vmem:[%s5] sm:$0xff]
    %v3637 = vld [vmem:[%s5 + $0x8] sm:$0xff]
    %v3638 = vld [vmem:[%s5 + $0x10] sm:$0xff]
    %v3639 = vld [vmem:[%s5 + $0x18] sm:$0x3f]
    %v3640 = vld [vmem:[%s6] sm:$0x1]
    %v3641 = vld [vmem:[%s7] sm:$0x1]
    %v3642 = vld [vmem:[%s8] sm:$0x1]
    %v3644 = vlaneseq
    %v3645 = vshrl.u32 %v3644, 7
    %v3646 = vsub.s32 0, %v3645
    %v3647 = vrot.slane %v3640, %v3646
    %3650 = vrot.lane.b32.xlu0 %v3628, 106
    %v3651 = vpop.permute.xlu0 %3650
    %v3652 = vsel %vm81, %v3651, 0
    %v3655 = vsel %vm85, %v3635, 0
    %3657 = vmatprep.subr.mxu0 0.0
    %3658 = vmatpush1.msra.mxu0 0.0
    %3659 = vmatprep.subr.mxu0 0.0
    %3660 = vmatpush1.msra.mxu0 0.0
    %3661 = vmatprep.subr.mxu0 0.0
    %3662 = vmatpush1.msra.mxu0 0.0
    %3663 = vmatprep.subr.mxu0 0.0
    %3664 = vmatpush1.msra.mxu0 0.0
    %3665 = vmatprep.subr.mxu0 0.0
    %3666 = vmatpush1.msra.mxu0 0.0
    %3667 = vmatprep.subr.mxu0 0.0
    %3668 = vmatpush1.msra.mxu0 0.0
    %3669 = vmatprep.subr.mxu0 0.0
    %3670 = vmatpush1.msra.mxu0 0.0
    %3671 = vmatprep.subr.mxu0 0.0
    %3672 = vmatpush1.msra.mxu0 0.0
    %3673 = vmatprep.subr.mxu0 0.0
    %3674 = vmatpush1.msra.mxu0 0.0
    %3675 = vmatprep.subr.mxu0 0.0
    %3676 = vmatpush1.msra.mxu0 %v3655
    %3677 = vmatprep.subr.mxu0 0.0
    %3678 = vmatpush1.msra.mxu0 %v3634
    %3679 = vmatprep.subr.mxu0 0.0
    %3680 = vmatpush1.msra.mxu0 %v3633
    %3681 = vmatprep.subr.mxu0 0.0
    %3682 = vmatpush1.msra.mxu0 %v3632
    %3683 = vmatprep.subr.mxu0 0.0
    %3684 = vmatpush1.msra.mxu0 %v3631
    %3685 = vmatprep.subr.mxu0 0.0
    %3686 = vmatpush1.msra.mxu0 %v3630
    %3687 = vmatprep.subr.mxu0 0.0
    %3688 = vmatpush1.msra.mxu0 %v3629
    %3689 = vmatprep.subr.mxu0 0.0
    %3690 = vmatpush2.msra.mxu0 0.0
    %3691 = vmatprep.subr.mxu0 0.0
    %3692 = vmatpush2.msra.mxu0 0.0
    %3693 = vmatprep.subr.mxu0 0.0
    %3694 = vmatpush2.msra.mxu0 0.0
    %3695 = vmatprep.subr.mxu0 0.0
    %3696 = vmatpush2.msra.mxu0 0.0
    %3697 = vmatprep.subr.mxu0 0.0
    %3698 = vmatpush2.msra.mxu0 0.0
    %3699 = vmatprep.subr.mxu0 0.0
    %3700 = vmatpush2.msra.mxu0 0.0
    %3701 = vmatprep.subr.mxu0 0.0
    %3702 = vmatpush2.msra.mxu0 0.0
    %3703 = vmatprep.subr.mxu0 0.0
    %3704 = vmatpush2.msra.mxu0 0.0
    %3705 = vmatprep.subr.mxu0 0.0
    %3706 = vmatpush2.msra.mxu0 0.0
    %3707 = vmatprep.subr.mxu0 0.0
    %3708 = vmatpush2.msra.mxu0 0.0
    %3709 = vmatprep.subr.mxu0 0.0
    %3710 = vmatpush2.msra.mxu0 0.0
    %3711 = vmatprep.subr.mxu0 0.0
    %3712 = vmatpush2.msra.mxu0 0.0
    %3713 = vmatprep.subr.mxu0 0.0
    %3714 = vmatpush2.msra.mxu0 0.0
    %3715 = vmatprep.subr.mxu0 0.0
    %3716 = vmatpush2.msra.mxu0 0.0
    %3717 = vmatprep.subr.mxu0 0.0
    %3718 = vmatpush2.msra.mxu0 0.0
    %3719 = vmatprep.subr.mxu0 0.0
    %3720 = vmatpush2.msra.mxu0 0.0
    %3721 = vmatprep.mubr.f32.mxu0 0.0
    %3722 = vmatmul.mubr.f32.gmra.mxu0 %v3652
    %v3723 = vpop.f32.mrf.mxu0
    %v3724 = vadd.f32 %v3647, %v3723
    %v3725 = vpop.f32.mrf.mxu0
    %3726 = vdwg.mxu0
    %vm3727 = vcmp.ge.s32.totalorder %v71, 60
    %vm3728 = vcmp.lt.s32.totalorder %v71, 90
    %vm3729 = vmand %vm3727, %vm3728
    %vm3730 = vcmask 244736
    %v3732 = vsel %vm3730, %v3641, 0
    %vm3734 = vcmask 1045504
    %v3736 = vsel %vm3734, %v3639, 0
    %3738 = vmatprep.subr.mxu0 0.0
    %3739 = vmatpush1.msra.mxu0 0.0
    %3740 = vmatprep.subr.mxu0 0.0
    %3741 = vmatpush1.msra.mxu0 0.0
    %3742 = vmatprep.subr.mxu0 0.0
    %3743 = vmatpush1.msra.mxu0 0.0
    %3744 = vmatprep.subr.mxu0 0.0
    %3745 = vmatpush1.msra.mxu0 0.0
    %3746 = vmatprep.subr.mxu0 0.0
    %3747 = vmatpush1.msra.mxu0 0.0
    %3748 = vmatprep.subr.mxu0 0.0
    %3749 = vmatpush1.msra.mxu0 0.0
    %3750 = vmatprep.subr.mxu0 0.0
    %3751 = vmatpush1.msra.mxu0 0.0
    %3752 = vmatprep.subr.mxu0 0.0
    %3753 = vmatpush1.msra.mxu0 0.0
    %3754 = vmatprep.subr.mxu0 0.0
    %3755 = vmatpush1.msra.mxu0 0.0
    %3756 = vmatprep.subr.mxu0 0.0
    %3757 = vmatpush1.msra.mxu0 0.0
    %3758 = vmatprep.subr.mxu0 0.0
    %3759 = vmatpush1.msra.mxu0 0.0
    %3760 = vmatprep.subr.mxu0 0.0
    %3761 = vmatpush1.msra.mxu0 0.0
    %3762 = vmatprep.subr.mxu0 0.0
    %3763 = vmatpush1.msra.mxu0 %v3736
    %3764 = vmatprep.subr.mxu0 0.0
    %3765 = vmatpush1.msra.mxu0 %v3638
    %3766 = vmatprep.subr.mxu0 0.0
    %3767 = vmatpush1.msra.mxu0 %v3637
    %3768 = vmatprep.subr.mxu0 0.0
    %3769 = vmatpush1.msra.mxu0 %v3636
    %3770 = vmatprep.subr.mxu0 0.0
    %3771 = vmatpush2.msra.mxu0 0.0
    %3772 = vmatprep.subr.mxu0 0.0
    %3773 = vmatpush2.msra.mxu0 0.0
    %3774 = vmatprep.subr.mxu0 0.0
    %3775 = vmatpush2.msra.mxu0 0.0
    %3776 = vmatprep.subr.mxu0 0.0
    %3777 = vmatpush2.msra.mxu0 0.0
    %3778 = vmatprep.subr.mxu0 0.0
    %3779 = vmatpush2.msra.mxu0 0.0
    %3780 = vmatprep.subr.mxu0 0.0
    %3781 = vmatpush2.msra.mxu0 0.0
    %3782 = vmatprep.subr.mxu0 0.0
    %3783 = vmatpush2.msra.mxu0 0.0
    %3784 = vmatprep.subr.mxu0 0.0
    %3785 = vmatpush2.msra.mxu0 0.0
    %3786 = vmatprep.subr.mxu0 0.0
    %3787 = vmatpush2.msra.mxu0 0.0
    %3788 = vmatprep.subr.mxu0 0.0
    %3789 = vmatpush2.msra.mxu0 0.0
    %3790 = vmatprep.subr.mxu0 0.0
    %3791 = vmatpush2.msra.mxu0 0.0
    %3792 = vmatprep.subr.mxu0 0.0
    %3793 = vmatpush2.msra.mxu0 0.0
    %3794 = vmatprep.subr.mxu0 0.0
    %3795 = vmatpush2.msra.mxu0 0.0
    %3796 = vmatprep.subr.mxu0 0.0
    %3797 = vmatpush2.msra.mxu0 0.0
    %3798 = vmatprep.subr.mxu0 0.0
    %3799 = vmatpush2.msra.mxu0 0.0
    %3800 = vmatprep.subr.mxu0 0.0
    %3801 = vmatpush2.msra.mxu0 0.0
    %3802 = vmatprep.mubr.f32.mxu0 0.0
    %3803 = vmatmul.mubr.f32.gmra.mxu0 %v3732
    %v3804 = vpop.f32.mrf.mxu0
    %v3805 = vadd.f32 0.0, %v3804
    %v3806 = vpop.f32.mrf.mxu0
    %3807 = vdwg.mxu0
    %v3808 = vadd.f32 %v3724, %v3805
    %v3809 = vtanh.pop %v3808
    %v3810 = vxor.u32 %v3808, 2147483648
    %v3811 = vmul.f32 %v3810, 1.442695
    %v3812 = vpow.pop %v3811
    %v3813 = vadd.f32 %v3812, 1.0
    %v3814 = vrcp.pop %v3813
    %v3815 = vmul.f32 1.0, %v3814
    %v3816 = vsel %vm3729, %v3809, %v3815
    %v3818 = vlaneseq
    %v3819 = vshrl.u32 %v3818, 7
    %v3820 = vsub.s32 0, %v3819
    %v3821 = vrot.slane %v3642, %v3820
    %3822 = vrot.lane.b32.xlu0 %v3821, 30
    %v3823 = vpop.permute.xlu0 %3822
    %v3825 = vmul.f32 %v3816, %v3823
    %3827 = vrot.lane.b32.xlu0 %v3816, 68
    %v3828 = vpop.permute.xlu0 %3827
    %v3830 = vmul.f32 %v3816, %v3828
    %3832 = vrot.lane.b32.xlu0 %v3830, 30
    %v3833 = vpop.permute.xlu0 %3832
    %v3835 = vadd.f32 %v3825, %v3833
    %v3836 = vtanh.pop %v3835
    %3838 = vrot.lane.b32.xlu0 %v3836, 60
    %v3839 = vpop.permute.xlu0 %3838
    %v3841 = vmul.f32 %v3816, %v3839
    %3843 = vrot.lane.b32.xlu0 %v3841, 38
    %v3844 = vpop.permute.xlu0 %3843
    %v3845 = vsel %vm3730, %v3844, 0
    %3847 = vmatprep.subr.mxu0 0.0
    %3848 = vmatpush1.msra.mxu0 0.0
    %3849 = vmatprep.subr.mxu0 0.0
    %3850 = vmatpush1.msra.mxu0 0.0
    %3851 = vmatprep.subr.mxu0 0.0
    %3852 = vmatpush1.msra.mxu0 0.0
    %3853 = vmatprep.subr.mxu0 0.0
    %3854 = vmatpush1.msra.mxu0 0.0
    %3855 = vmatprep.subr.mxu0 0.0
    %3856 = vmatpush1.msra.mxu0 0.0
    %3857 = vmatprep.subr.mxu0 0.0
    %3858 = vmatpush1.msra.mxu0 0.0
    %3859 = vmatprep.subr.mxu0 0.0
    %3860 = vmatpush1.msra.mxu0 0.0
    %3861 = vmatprep.subr.mxu0 0.0
    %3862 = vmatpush1.msra.mxu0 0.0
    %3863 = vmatprep.subr.mxu0 0.0
    %3864 = vmatpush1.msra.mxu0 0.0
    %3865 = vmatprep.subr.mxu0 0.0
    %3866 = vmatpush1.msra.mxu0 0.0
    %3867 = vmatprep.subr.mxu0 0.0
    %3868 = vmatpush1.msra.mxu0 0.0
    %3869 = vmatprep.subr.mxu0 0.0
    %3870 = vmatpush1.msra.mxu0 0.0
    %3871 = vmatprep.subr.mxu0 0.0
    %3872 = vmatpush1.msra.mxu0 %v3736
    %3873 = vmatprep.subr.mxu0 0.0
    %3874 = vmatpush1.msra.mxu0 %v3638
    %3875 = vmatprep.subr.mxu0 0.0
    %3876 = vmatpush1.msra.mxu0 %v3637
    %3877 = vmatprep.subr.mxu0 0.0
    %3878 = vmatpush1.msra.mxu0 %v3636
    %3879 = vmatprep.subr.mxu0 0.0
    %3880 = vmatpush2.msra.mxu0 0.0
    %3881 = vmatprep.subr.mxu0 0.0
    %3882 = vmatpush2.msra.mxu0 0.0
    %3883 = vmatprep.subr.mxu0 0.0
    %3884 = vmatpush2.msra.mxu0 0.0
    %3885 = vmatprep.subr.mxu0 0.0
    %3886 = vmatpush2.msra.mxu0 0.0
    %3887 = vmatprep.subr.mxu0 0.0
    %3888 = vmatpush2.msra.mxu0 0.0
    %3889 = vmatprep.subr.mxu0 0.0
    %3890 = vmatpush2.msra.mxu0 0.0
    %3891 = vmatprep.subr.mxu0 0.0
    %3892 = vmatpush2.msra.mxu0 0.0
    %3893 = vmatprep.subr.mxu0 0.0
    %3894 = vmatpush2.msra.mxu0 0.0
    %3895 = vmatprep.subr.mxu0 0.0
    %3896 = vmatpush2.msra.mxu0 0.0
    %3897 = vmatprep.subr.mxu0 0.0
    %3898 = vmatpush2.msra.mxu0 0.0
    %3899 = vmatprep.subr.mxu0 0.0
    %3900 = vmatpush2.msra.mxu0 0.0
    %3901 = vmatprep.subr.mxu0 0.0
    %3902 = vmatpush2.msra.mxu0 0.0
    %3903 = vmatprep.subr.mxu0 0.0
    %3904 = vmatpush2.msra.mxu0 0.0
    %3905 = vmatprep.subr.mxu0 0.0
    %3906 = vmatpush2.msra.mxu0 0.0
    %3907 = vmatprep.subr.mxu0 0.0
    %3908 = vmatpush2.msra.mxu0 0.0
    %3909 = vmatprep.subr.mxu0 0.0
    %3910 = vmatpush2.msra.mxu0 0.0
    %3911 = vmatprep.mubr.f32.mxu0 0.0
    %3912 = vmatmul.mubr.f32.gmra.mxu0 %v3845
    %v3913 = vpop.f32.mrf.mxu0
    %v3914 = vadd.f32 0.0, %v3913
    %v3915 = vpop.f32.mrf.mxu0
    %3916 = vdwg.mxu0
    %v3918 = vrot.slane %v3914, 7
    %v3920 = vadd.f32 %v3724, %v3918
    %v3921 = vtanh.pop %v3920
    %v3922 = vxor.u32 %v3920, 2147483648
    %v3923 = vmul.f32 %v3922, 1.442695
    %v3924 = vpow.pop %v3923
    %v3925 = vadd.f32 %v3924, 1.0
    %v3926 = vrcp.pop %v3925
    %v3927 = vmul.f32 1.0, %v3926
    %v3928 = vsel %vm3729, %v3921, %v3927
    %v3930 = vrot.slane %v3835, 7
    %v3932 = vmul.f32 %v3928, %v3930
    %3934 = vrot.lane.b32.xlu0 %v3928, 68
    %v3935 = vpop.permute.xlu0 %3934
    %v3937 = vmul.f32 %v3928, %v3935
    %3939 = vrot.lane.b32.xlu0 %v3937, 30
    %v3940 = vpop.permute.xlu0 %3939
    %v3942 = vadd.f32 %v3932, %v3940
    %v3943 = vtanh.pop %v3942
    %3945 = vrot.lane.b32.xlu0 %v3943, 60
    %v3946 = vpop.permute.xlu0 %3945
    %v3948 = vmul.f32 %v3928, %v3946
    %v3950 = vrot.slane %v3948, 1
    %3951 = vrot.lane.b32.xlu0 %v3950, 38
    %v3952 = vpop.permute.xlu0 %3951
    %v3953 = vsel %vm3730, %v3952, 0
    %3955 = vmatprep.subr.mxu0 0.0
    %3956 = vmatpush1.msra.mxu0 0.0
    %3957 = vmatprep.subr.mxu0 0.0
    %3958 = vmatpush1.msra.mxu0 0.0
    %3959 = vmatprep.subr.mxu0 0.0
    %3960 = vmatpush1.msra.mxu0 0.0
    %3961 = vmatprep.subr.mxu0 0.0
    %3962 = vmatpush1.msra.mxu0 0.0
    %3963 = vmatprep.subr.mxu0 0.0
    %3964 = vmatpush1.msra.mxu0 0.0
    %3965 = vmatprep.subr.mxu0 0.0
    %3966 = vmatpush1.msra.mxu0 0.0
    %3967 = vmatprep.subr.mxu0 0.0
    %3968 = vmatpush1.msra.mxu0 0.0
    %3969 = vmatprep.subr.mxu0 0.0
    %3970 = vmatpush1.msra.mxu0 0.0
    %3971 = vmatprep.subr.mxu0 0.0
    %3972 = vmatpush1.msra.mxu0 0.0
    %3973 = vmatprep.subr.mxu0 0.0
    %3974 = vmatpush1.msra.mxu0 0.0
    %3975 = vmatprep.subr.mxu0 0.0
    %3976 = vmatpush1.msra.mxu0 0.0
    %3977 = vmatprep.subr.mxu0 0.0
    %3978 = vmatpush1.msra.mxu0 0.0
    %3979 = vmatprep.subr.mxu0 0.0
    %3980 = vmatpush1.msra.mxu0 %v3736
    %3981 = vmatprep.subr.mxu0 0.0
    %3982 = vmatpush1.msra.mxu0 %v3638
    %3983 = vmatprep.subr.mxu0 0.0
    %3984 = vmatpush1.msra.mxu0 %v3637
    %3985 = vmatprep.subr.mxu0 0.0
    %3986 = vmatpush1.msra.mxu0 %v3636
    %3987 = vmatprep.subr.mxu0 0.0
    %3988 = vmatpush2.msra.mxu0 0.0
    %3989 = vmatprep.subr.mxu0 0.0
    %3990 = vmatpush2.msra.mxu0 0.0
    %3991 = vmatprep.subr.mxu0 0.0
    %3992 = vmatpush2.msra.mxu0 0.0
    %3993 = vmatprep.subr.mxu0 0.0
    %3994 = vmatpush2.msra.mxu0 0.0
    %3995 = vmatprep.subr.mxu0 0.0
    %3996 = vmatpush2.msra.mxu0 0.0
    %3997 = vmatprep.subr.mxu0 0.0
    %3998 = vmatpush2.msra.mxu0 0.0
    %3999 = vmatprep.subr.mxu0 0.0
    %4000 = vmatpush2.msra.mxu0 0.0
    %4001 = vmatprep.subr.mxu0 0.0
    %4002 = vmatpush2.msra.mxu0 0.0
    %4003 = vmatprep.subr.mxu0 0.0
    %4004 = vmatpush2.msra.mxu0 0.0
    %4005 = vmatprep.subr.mxu0 0.0
    %4006 = vmatpush2.msra.mxu0 0.0
    %4007 = vmatprep.subr.mxu0 0.0
    %4008 = vmatpush2.msra.mxu0 0.0
    %4009 = vmatprep.subr.mxu0 0.0
    %4010 = vmatpush2.msra.mxu0 0.0
    %4011 = vmatprep.subr.mxu0 0.0
    %4012 = vmatpush2.msra.mxu0 0.0
    %4013 = vmatprep.subr.mxu0 0.0
    %4014 = vmatpush2.msra.mxu0 0.0
    %4015 = vmatprep.subr.mxu0 0.0
    %4016 = vmatpush2.msra.mxu0 0.0
    %4017 = vmatprep.subr.mxu0 0.0
    %4018 = vmatpush2.msra.mxu0 0.0
    %4019 = vmatprep.mubr.f32.mxu0 0.0
    %4020 = vmatmul.mubr.f32.gmra.mxu0 %v3953
    %v4021 = vpop.f32.mrf.mxu0
    %v4022 = vadd.f32 0.0, %v4021
    %v4023 = vpop.f32.mrf.mxu0
    %4024 = vdwg.mxu0
    %v4026 = vrot.slane %v4022, 6
    %v4028 = vadd.f32 %v3724, %v4026
    %v4029 = vtanh.pop %v4028
    %v4030 = vxor.u32 %v4028, 2147483648
    %v4031 = vmul.f32 %v4030, 1.442695
    %v4032 = vpow.pop %v4031
    %v4033 = vadd.f32 %v4032, 1.0
    %v4034 = vrcp.pop %v4033
    %v4035 = vmul.f32 1.0, %v4034
    %v4036 = vsel %vm3729, %v4029, %v4035
    %v4038 = vrot.slane %v3942, 7
    %v4040 = vmul.f32 %v4036, %v4038
    %4042 = vrot.lane.b32.xlu0 %v4036, 68
    %v4043 = vpop.permute.xlu0 %4042
    %v4045 = vmul.f32 %v4036, %v4043
    %4047 = vrot.lane.b32.xlu0 %v4045, 30
    %v4048 = vpop.permute.xlu0 %4047
    %v4050 = vadd.f32 %v4040, %v4048
    %v4051 = vtanh.pop %v4050
    %4053 = vrot.lane.b32.xlu0 %v4051, 60
    %v4054 = vpop.permute.xlu0 %4053
    %v4056 = vmul.f32 %v4036, %v4054
    %v4058 = vrot.slane %v4056, 2
    %4059 = vrot.lane.b32.xlu0 %v4058, 38
    %v4060 = vpop.permute.xlu0 %4059
    %v4061 = vsel %vm3730, %v4060, 0
    %4063 = vmatprep.subr.mxu0 0.0
    %4064 = vmatpush1.msra.mxu0 0.0
    %4065 = vmatprep.subr.mxu0 0.0
    %4066 = vmatpush1.msra.mxu0 0.0
    %4067 = vmatprep.subr.mxu0 0.0
    %4068 = vmatpush1.msra.mxu0 0.0
    %4069 = vmatprep.subr.mxu0 0.0
    %4070 = vmatpush1.msra.mxu0 0.0
    %4071 = vmatprep.subr.mxu0 0.0
    %4072 = vmatpush1.msra.mxu0 0.0
    %4073 = vmatprep.subr.mxu0 0.0
    %4074 = vmatpush1.msra.mxu0 0.0
    %4075 = vmatprep.subr.mxu0 0.0
    %4076 = vmatpush1.msra.mxu0 0.0
    %4077 = vmatprep.subr.mxu0 0.0
    %4078 = vmatpush1.msra.mxu0 0.0
    %4079 = vmatprep.subr.mxu0 0.0
    %4080 = vmatpush1.msra.mxu0 0.0
    %4081 = vmatprep.subr.mxu0 0.0
    %4082 = vmatpush1.msra.mxu0 0.0
    %4083 = vmatprep.subr.mxu0 0.0
    %4084 = vmatpush1.msra.mxu0 0.0
    %4085 = vmatprep.subr.mxu0 0.0
    %4086 = vmatpush1.msra.mxu0 0.0
    %4087 = vmatprep.subr.mxu0 0.0
    %4088 = vmatpush1.msra.mxu0 %v3736
    %4089 = vmatprep.subr.mxu0 0.0
    %4090 = vmatpush1.msra.mxu0 %v3638
    %4091 = vmatprep.subr.mxu0 0.0
    %4092 = vmatpush1.msra.mxu0 %v3637
    %4093 = vmatprep.subr.mxu0 0.0
    %4094 = vmatpush1.msra.mxu0 %v3636
    %4095 = vmatprep.subr.mxu0 0.0
    %4096 = vmatpush2.msra.mxu0 0.0
    %4097 = vmatprep.subr.mxu0 0.0
    %4098 = vmatpush2.msra.mxu0 0.0
    %4099 = vmatprep.subr.mxu0 0.0
    %4100 = vmatpush2.msra.mxu0 0.0
    %4101 = vmatprep.subr.mxu0 0.0
    %4102 = vmatpush2.msra.mxu0 0.0
    %4103 = vmatprep.subr.mxu0 0.0
    %4104 = vmatpush2.msra.mxu0 0.0
    %4105 = vmatprep.subr.mxu0 0.0
    %4106 = vmatpush2.msra.mxu0 0.0
    %4107 = vmatprep.subr.mxu0 0.0
    %4108 = vmatpush2.msra.mxu0 0.0
    %4109 = vmatprep.subr.mxu0 0.0
    %4110 = vmatpush2.msra.mxu0 0.0
    %4111 = vmatprep.subr.mxu0 0.0
    %4112 = vmatpush2.msra.mxu0 0.0
    %4113 = vmatprep.subr.mxu0 0.0
    %4114 = vmatpush2.msra.mxu0 0.0
    %4115 = vmatprep.subr.mxu0 0.0
    %4116 = vmatpush2.msra.mxu0 0.0
    %4117 = vmatprep.subr.mxu0 0.0
    %4118 = vmatpush2.msra.mxu0 0.0
    %4119 = vmatprep.subr.mxu0 0.0
    %4120 = vmatpush2.msra.mxu0 0.0
    %4121 = vmatprep.subr.mxu0 0.0
    %4122 = vmatpush2.msra.mxu0 0.0
    %4123 = vmatprep.subr.mxu0 0.0
    %4124 = vmatpush2.msra.mxu0 0.0
    %4125 = vmatprep.subr.mxu0 0.0
    %4126 = vmatpush2.msra.mxu0 0.0
    %4127 = vmatprep.mubr.f32.mxu0 0.0
    %4128 = vmatmul.mubr.f32.gmra.mxu0 %v4061
    %v4129 = vpop.f32.mrf.mxu0
    %v4130 = vadd.f32 0.0, %v4129
    %v4131 = vpop.f32.mrf.mxu0
    %4132 = vdwg.mxu0
    %v4134 = vrot.slane %v4130, 5
    %v4136 = vadd.f32 %v3724, %v4134
    %v4137 = vtanh.pop %v4136
    %v4138 = vxor.u32 %v4136, 2147483648
    %v4139 = vmul.f32 %v4138, 1.442695
    %v4140 = vpow.pop %v4139
    %v4141 = vadd.f32 %v4140, 1.0
    %v4142 = vrcp.pop %v4141
    %v4143 = vmul.f32 1.0, %v4142
    %v4144 = vsel %vm3729, %v4137, %v4143
    %v4146 = vrot.slane %v4050, 7
    %v4148 = vmul.f32 %v4144, %v4146
    %4150 = vrot.lane.b32.xlu0 %v4144, 68
    %v4151 = vpop.permute.xlu0 %4150
    %v4153 = vmul.f32 %v4144, %v4151
    %4155 = vrot.lane.b32.xlu0 %v4153, 30
    %v4156 = vpop.permute.xlu0 %4155
    %v4158 = vadd.f32 %v4148, %v4156
    %v4159 = vtanh.pop %v4158
    %4161 = vrot.lane.b32.xlu0 %v4159, 60
    %v4162 = vpop.permute.xlu0 %4161
    %v4164 = vmul.f32 %v4144, %v4162
    %v4166 = vrot.slane %v4164, 3
    %4167 = vrot.lane.b32.xlu0 %v4166, 38
    %v4168 = vpop.permute.xlu0 %4167
    %v4169 = vsel %vm3730, %v4168, 0
    %4171 = vmatprep.subr.mxu0 0.0
    %4172 = vmatpush1.msra.mxu0 0.0
    %4173 = vmatprep.subr.mxu0 0.0
    %4174 = vmatpush1.msra.mxu0 0.0
    %4175 = vmatprep.subr.mxu0 0.0
    %4176 = vmatpush1.msra.mxu0 0.0
    %4177 = vmatprep.subr.mxu0 0.0
    %4178 = vmatpush1.msra.mxu0 0.0
    %4179 = vmatprep.subr.mxu0 0.0
    %4180 = vmatpush1.msra.mxu0 0.0
    %4181 = vmatprep.subr.mxu0 0.0
    %4182 = vmatpush1.msra.mxu0 0.0
    %4183 = vmatprep.subr.mxu0 0.0
    %4184 = vmatpush1.msra.mxu0 0.0
    %4185 = vmatprep.subr.mxu0 0.0
    %4186 = vmatpush1.msra.mxu0 0.0
    %4187 = vmatprep.subr.mxu0 0.0
    %4188 = vmatpush1.msra.mxu0 0.0
    %4189 = vmatprep.subr.mxu0 0.0
    %4190 = vmatpush1.msra.mxu0 0.0
    %4191 = vmatprep.subr.mxu0 0.0
    %4192 = vmatpush1.msra.mxu0 0.0
    %4193 = vmatprep.subr.mxu0 0.0
    %4194 = vmatpush1.msra.mxu0 0.0
    %4195 = vmatprep.subr.mxu0 0.0
    %4196 = vmatpush1.msra.mxu0 %v3736
    %4197 = vmatprep.subr.mxu0 0.0
    %4198 = vmatpush1.msra.mxu0 %v3638
    %4199 = vmatprep.subr.mxu0 0.0
    %4200 = vmatpush1.msra.mxu0 %v3637
    %4201 = vmatprep.subr.mxu0 0.0
    %4202 = vmatpush1.msra.mxu0 %v3636
    %4203 = vmatprep.subr.mxu0 0.0
    %4204 = vmatpush2.msra.mxu0 0.0
    %4205 = vmatprep.subr.mxu0 0.0
    %4206 = vmatpush2.msra.mxu0 0.0
    %4207 = vmatprep.subr.mxu0 0.0
    %4208 = vmatpush2.msra.mxu0 0.0
    %4209 = vmatprep.subr.mxu0 0.0
    %4210 = vmatpush2.msra.mxu0 0.0
    %4211 = vmatprep.subr.mxu0 0.0
    %4212 = vmatpush2.msra.mxu0 0.0
    %4213 = vmatprep.subr.mxu0 0.0
    %4214 = vmatpush2.msra.mxu0 0.0
    %4215 = vmatprep.subr.mxu0 0.0
    %4216 = vmatpush2.msra.mxu0 0.0
    %4217 = vmatprep.subr.mxu0 0.0
    %4218 = vmatpush2.msra.mxu0 0.0
    %4219 = vmatprep.subr.mxu0 0.0
    %4220 = vmatpush2.msra.mxu0 0.0
    %4221 = vmatprep.subr.mxu0 0.0
    %4222 = vmatpush2.msra.mxu0 0.0
    %4223 = vmatprep.subr.mxu0 0.0
    %4224 = vmatpush2.msra.mxu0 0.0
    %4225 = vmatprep.subr.mxu0 0.0
    %4226 = vmatpush2.msra.mxu0 0.0
    %4227 = vmatprep.subr.mxu0 0.0
    %4228 = vmatpush2.msra.mxu0 0.0
    %4229 = vmatprep.subr.mxu0 0.0
    %4230 = vmatpush2.msra.mxu0 0.0
    %4231 = vmatprep.subr.mxu0 0.0
    %4232 = vmatpush2.msra.mxu0 0.0
    %4233 = vmatprep.subr.mxu0 0.0
    %4234 = vmatpush2.msra.mxu0 0.0
    %4235 = vmatprep.mubr.f32.mxu0 0.0
    %4236 = vmatmul.mubr.f32.gmra.mxu0 %v4169
    %v4237 = vpop.f32.mrf.mxu0
    %v4238 = vadd.f32 0.0, %v4237
    %v4239 = vpop.f32.mrf.mxu0
    %4240 = vdwg.mxu0
    %v4242 = vrot.slane %v4238, 4
    %v4244 = vadd.f32 %v3724, %v4242
    %v4245 = vtanh.pop %v4244
    %v4246 = vxor.u32 %v4244, 2147483648
    %v4247 = vmul.f32 %v4246, 1.442695
    %v4248 = vpow.pop %v4247
    %v4249 = vadd.f32 %v4248, 1.0
    %v4250 = vrcp.pop %v4249
    %v4251 = vmul.f32 1.0, %v4250
    %v4252 = vsel %vm3729, %v4245, %v4251
    %v4254 = vrot.slane %v4158, 7
    %v4256 = vmul.f32 %v4252, %v4254
    %4258 = vrot.lane.b32.xlu0 %v4252, 68
    %v4259 = vpop.permute.xlu0 %4258
    %v4261 = vmul.f32 %v4252, %v4259
    %4263 = vrot.lane.b32.xlu0 %v4261, 30
    %v4264 = vpop.permute.xlu0 %4263
    %v4266 = vadd.f32 %v4256, %v4264
    %v4267 = vtanh.pop %v4266
    %4269 = vrot.lane.b32.xlu0 %v4267, 60
    %v4270 = vpop.permute.xlu0 %4269
    %v4272 = vmul.f32 %v4252, %v4270
    %v4274 = vrot.slane %v4272, 4
    %4275 = vrot.lane.b32.xlu0 %v4274, 38
    %v4276 = vpop.permute.xlu0 %4275
    %v4277 = vsel %vm3730, %v4276, 0
    %4279 = vmatprep.subr.mxu0 0.0
    %4280 = vmatpush1.msra.mxu0 0.0
    %4281 = vmatprep.subr.mxu0 0.0
    %4282 = vmatpush1.msra.mxu0 0.0
    %4283 = vmatprep.subr.mxu0 0.0
    %4284 = vmatpush1.msra.mxu0 0.0
    %4285 = vmatprep.subr.mxu0 0.0
    %4286 = vmatpush1.msra.mxu0 0.0
    %4287 = vmatprep.subr.mxu0 0.0
    %4288 = vmatpush1.msra.mxu0 0.0
    %4289 = vmatprep.subr.mxu0 0.0
    %4290 = vmatpush1.msra.mxu0 0.0
    %4291 = vmatprep.subr.mxu0 0.0
    %4292 = vmatpush1.msra.mxu0 0.0
    %4293 = vmatprep.subr.mxu0 0.0
    %4294 = vmatpush1.msra.mxu0 0.0
    %4295 = vmatprep.subr.mxu0 0.0
    %4296 = vmatpush1.msra.mxu0 0.0
    %4297 = vmatprep.subr.mxu0 0.0
    %4298 = vmatpush1.msra.mxu0 0.0
    %4299 = vmatprep.subr.mxu0 0.0
    %4300 = vmatpush1.msra.mxu0 0.0
    %4301 = vmatprep.subr.mxu0 0.0
    %4302 = vmatpush1.msra.mxu0 0.0
    %4303 = vmatprep.subr.mxu0 0.0
    %4304 = vmatpush1.msra.mxu0 %v3736
    %4305 = vmatprep.subr.mxu0 0.0
    %4306 = vmatpush1.msra.mxu0 %v3638
    %4307 = vmatprep.subr.mxu0 0.0
    %4308 = vmatpush1.msra.mxu0 %v3637
    %4309 = vmatprep.subr.mxu0 0.0
    %4310 = vmatpush1.msra.mxu0 %v3636
    %4311 = vmatprep.subr.mxu0 0.0
    %4312 = vmatpush2.msra.mxu0 0.0
    %4313 = vmatprep.subr.mxu0 0.0
    %4314 = vmatpush2.msra.mxu0 0.0
    %4315 = vmatprep.subr.mxu0 0.0
    %4316 = vmatpush2.msra.mxu0 0.0
    %4317 = vmatprep.subr.mxu0 0.0
    %4318 = vmatpush2.msra.mxu0 0.0
    %4319 = vmatprep.subr.mxu0 0.0
    %4320 = vmatpush2.msra.mxu0 0.0
    %4321 = vmatprep.subr.mxu0 0.0
    %4322 = vmatpush2.msra.mxu0 0.0
    %4323 = vmatprep.subr.mxu0 0.0
    %4324 = vmatpush2.msra.mxu0 0.0
    %4325 = vmatprep.subr.mxu0 0.0
    %4326 = vmatpush2.msra.mxu0 0.0
    %4327 = vmatprep.subr.mxu0 0.0
    %4328 = vmatpush2.msra.mxu0 0.0
    %4329 = vmatprep.subr.mxu0 0.0
    %4330 = vmatpush2.msra.mxu0 0.0
    %4331 = vmatprep.subr.mxu0 0.0
    %4332 = vmatpush2.msra.mxu0 0.0
    %4333 = vmatprep.subr.mxu0 0.0
    %4334 = vmatpush2.msra.mxu0 0.0
    %4335 = vmatprep.subr.mxu0 0.0
    %4336 = vmatpush2.msra.mxu0 0.0
    %4337 = vmatprep.subr.mxu0 0.0
    %4338 = vmatpush2.msra.mxu0 0.0
    %4339 = vmatprep.subr.mxu0 0.0
    %4340 = vmatpush2.msra.mxu0 0.0
    %4341 = vmatprep.subr.mxu0 0.0
    %4342 = vmatpush2.msra.mxu0 0.0
    %4343 = vmatprep.mubr.f32.mxu0 0.0
    %4344 = vmatmul.mubr.f32.gmra.mxu0 %v4277
    %v4345 = vpop.f32.mrf.mxu0
    %v4346 = vadd.f32 0.0, %v4345
    %v4347 = vpop.f32.mrf.mxu0
    %4348 = vdwg.mxu0
    %v4350 = vrot.slane %v4346, 3
    %v4352 = vadd.f32 %v3724, %v4350
    %v4353 = vtanh.pop %v4352
    %v4354 = vxor.u32 %v4352, 2147483648
    %v4355 = vmul.f32 %v4354, 1.442695
    %v4356 = vpow.pop %v4355
    %v4357 = vadd.f32 %v4356, 1.0
    %v4358 = vrcp.pop %v4357
    %v4359 = vmul.f32 1.0, %v4358
    %v4360 = vsel %vm3729, %v4353, %v4359
    %v4362 = vrot.slane %v4266, 7
    %v4364 = vmul.f32 %v4360, %v4362
    %4366 = vrot.lane.b32.xlu0 %v4360, 68
    %v4367 = vpop.permute.xlu0 %4366
    %v4369 = vmul.f32 %v4360, %v4367
    %4371 = vrot.lane.b32.xlu0 %v4369, 30
    %v4372 = vpop.permute.xlu0 %4371
    %v4374 = vadd.f32 %v4364, %v4372
    %v4375 = vtanh.pop %v4374
    %4377 = vrot.lane.b32.xlu0 %v4375, 60
    %v4378 = vpop.permute.xlu0 %4377
    %v4380 = vmul.f32 %v4360, %v4378
    %v4382 = vrot.slane %v4380, 5
    %4383 = vrot.lane.b32.xlu0 %v4382, 38
    %v4384 = vpop.permute.xlu0 %4383
    %v4385 = vsel %vm3730, %v4384, 0
    %4387 = vmatprep.subr.mxu0 0.0
    %4388 = vmatpush1.msra.mxu0 0.0
    %4389 = vmatprep.subr.mxu0 0.0
    %4390 = vmatpush1.msra.mxu0 0.0
    %4391 = vmatprep.subr.mxu0 0.0
    %4392 = vmatpush1.msra.mxu0 0.0
    %4393 = vmatprep.subr.mxu0 0.0
    %4394 = vmatpush1.msra.mxu0 0.0
    %4395 = vmatprep.subr.mxu0 0.0
    %4396 = vmatpush1.msra.mxu0 0.0
    %4397 = vmatprep.subr.mxu0 0.0
    %4398 = vmatpush1.msra.mxu0 0.0
    %4399 = vmatprep.subr.mxu0 0.0
    %4400 = vmatpush1.msra.mxu0 0.0
    %4401 = vmatprep.subr.mxu0 0.0
    %4402 = vmatpush1.msra.mxu0 0.0
    %4403 = vmatprep.subr.mxu0 0.0
    %4404 = vmatpush1.msra.mxu0 0.0
    %4405 = vmatprep.subr.mxu0 0.0
    %4406 = vmatpush1.msra.mxu0 0.0
    %4407 = vmatprep.subr.mxu0 0.0
    %4408 = vmatpush1.msra.mxu0 0.0
    %4409 = vmatprep.subr.mxu0 0.0
    %4410 = vmatpush1.msra.mxu0 0.0
    %4411 = vmatprep.subr.mxu0 0.0
    %4412 = vmatpush1.msra.mxu0 %v3736
    %4413 = vmatprep.subr.mxu0 0.0
    %4414 = vmatpush1.msra.mxu0 %v3638
    %4415 = vmatprep.subr.mxu0 0.0
    %4416 = vmatpush1.msra.mxu0 %v3637
    %4417 = vmatprep.subr.mxu0 0.0
    %4418 = vmatpush1.msra.mxu0 %v3636
    %4419 = vmatprep.subr.mxu0 0.0
    %4420 = vmatpush2.msra.mxu0 0.0
    %4421 = vmatprep.subr.mxu0 0.0
    %4422 = vmatpush2.msra.mxu0 0.0
    %4423 = vmatprep.subr.mxu0 0.0
    %4424 = vmatpush2.msra.mxu0 0.0
    %4425 = vmatprep.subr.mxu0 0.0
    %4426 = vmatpush2.msra.mxu0 0.0
    %4427 = vmatprep.subr.mxu0 0.0
    %4428 = vmatpush2.msra.mxu0 0.0
    %4429 = vmatprep.subr.mxu0 0.0
    %4430 = vmatpush2.msra.mxu0 0.0
    %4431 = vmatprep.subr.mxu0 0.0
    %4432 = vmatpush2.msra.mxu0 0.0
    %4433 = vmatprep.subr.mxu0 0.0
    %4434 = vmatpush2.msra.mxu0 0.0
    %4435 = vmatprep.subr.mxu0 0.0
    %4436 = vmatpush2.msra.mxu0 0.0
    %4437 = vmatprep.subr.mxu0 0.0
    %4438 = vmatpush2.msra.mxu0 0.0
    %4439 = vmatprep.subr.mxu0 0.0
    %4440 = vmatpush2.msra.mxu0 0.0
    %4441 = vmatprep.subr.mxu0 0.0
    %4442 = vmatpush2.msra.mxu0 0.0
    %4443 = vmatprep.subr.mxu0 0.0
    %4444 = vmatpush2.msra.mxu0 0.0
    %4445 = vmatprep.subr.mxu0 0.0
    %4446 = vmatpush2.msra.mxu0 0.0
    %4447 = vmatprep.subr.mxu0 0.0
    %4448 = vmatpush2.msra.mxu0 0.0
    %4449 = vmatprep.subr.mxu0 0.0
    %4450 = vmatpush2.msra.mxu0 0.0
    %4451 = vmatprep.mubr.f32.mxu0 0.0
    %4452 = vmatmul.mubr.f32.gmra.mxu0 %v4385
    %v4453 = vpop.f32.mrf.mxu0
    %v4454 = vadd.f32 0.0, %v4453
    %v4455 = vpop.f32.mrf.mxu0
    %4456 = vdwg.mxu0
    %v4458 = vrot.slane %v4454, 2
    %v4460 = vadd.f32 %v3724, %v4458
    %v4461 = vtanh.pop %v4460
    %v4462 = vxor.u32 %v4460, 2147483648
    %v4463 = vmul.f32 %v4462, 1.442695
    %v4464 = vpow.pop %v4463
    %v4465 = vadd.f32 %v4464, 1.0
    %v4466 = vrcp.pop %v4465
    %v4467 = vmul.f32 1.0, %v4466
    %v4468 = vsel %vm3729, %v4461, %v4467
    %v4470 = vrot.slane %v4374, 7
    %v4472 = vmul.f32 %v4468, %v4470
    %4474 = vrot.lane.b32.xlu0 %v4468, 68
    %v4475 = vpop.permute.xlu0 %4474
    %v4477 = vmul.f32 %v4468, %v4475
    %4479 = vrot.lane.b32.xlu0 %v4477, 30
    %v4480 = vpop.permute.xlu0 %4479
    %v4482 = vadd.f32 %v4472, %v4480
    %v4483 = vtanh.pop %v4482
    %4485 = vrot.lane.b32.xlu0 %v4483, 60
    %v4486 = vpop.permute.xlu0 %4485
    %v4488 = vmul.f32 %v4468, %v4486
    %v4490 = vrot.slane %v4488, 6
    %4491 = vrot.lane.b32.xlu0 %v4490, 38
    %v4492 = vpop.permute.xlu0 %4491
    %v4493 = vsel %vm3730, %v4492, 0
    %4495 = vmatprep.subr.mxu0 0.0
    %4496 = vmatpush1.msra.mxu0 0.0
    %4497 = vmatprep.subr.mxu0 0.0
    %4498 = vmatpush1.msra.mxu0 0.0
    %4499 = vmatprep.subr.mxu0 0.0
    %4500 = vmatpush1.msra.mxu0 0.0
    %4501 = vmatprep.subr.mxu0 0.0
    %4502 = vmatpush1.msra.mxu0 0.0
    %4503 = vmatprep.subr.mxu0 0.0
    %4504 = vmatpush1.msra.mxu0 0.0
    %4505 = vmatprep.subr.mxu0 0.0
    %4506 = vmatpush1.msra.mxu0 0.0
    %4507 = vmatprep.subr.mxu0 0.0
    %4508 = vmatpush1.msra.mxu0 0.0
    %4509 = vmatprep.subr.mxu0 0.0
    %4510 = vmatpush1.msra.mxu0 0.0
    %4511 = vmatprep.subr.mxu0 0.0
    %4512 = vmatpush1.msra.mxu0 0.0
    %4513 = vmatprep.subr.mxu0 0.0
    %4514 = vmatpush1.msra.mxu0 0.0
    %4515 = vmatprep.subr.mxu0 0.0
    %4516 = vmatpush1.msra.mxu0 0.0
    %4517 = vmatprep.subr.mxu0 0.0
    %4518 = vmatpush1.msra.mxu0 0.0
    %4519 = vmatprep.subr.mxu0 0.0
    %4520 = vmatpush1.msra.mxu0 %v3736
    %4521 = vmatprep.subr.mxu0 0.0
    %4522 = vmatpush1.msra.mxu0 %v3638
    %4523 = vmatprep.subr.mxu0 0.0
    %4524 = vmatpush1.msra.mxu0 %v3637
    %4525 = vmatprep.subr.mxu0 0.0
    %4526 = vmatpush1.msra.mxu0 %v3636
    %4527 = vmatprep.subr.mxu0 0.0
    %4528 = vmatpush2.msra.mxu0 0.0
    %4529 = vmatprep.subr.mxu0 0.0
    %4530 = vmatpush2.msra.mxu0 0.0
    %4531 = vmatprep.subr.mxu0 0.0
    %4532 = vmatpush2.msra.mxu0 0.0
    %4533 = vmatprep.subr.mxu0 0.0
    %4534 = vmatpush2.msra.mxu0 0.0
    %4535 = vmatprep.subr.mxu0 0.0
    %4536 = vmatpush2.msra.mxu0 0.0
    %4537 = vmatprep.subr.mxu0 0.0
    %4538 = vmatpush2.msra.mxu0 0.0
    %4539 = vmatprep.subr.mxu0 0.0
    %4540 = vmatpush2.msra.mxu0 0.0
    %4541 = vmatprep.subr.mxu0 0.0
    %4542 = vmatpush2.msra.mxu0 0.0
    %4543 = vmatprep.subr.mxu0 0.0
    %4544 = vmatpush2.msra.mxu0 0.0
    %4545 = vmatprep.subr.mxu0 0.0
    %4546 = vmatpush2.msra.mxu0 0.0
    %4547 = vmatprep.subr.mxu0 0.0
    %4548 = vmatpush2.msra.mxu0 0.0
    %4549 = vmatprep.subr.mxu0 0.0
    %4550 = vmatpush2.msra.mxu0 0.0
    %4551 = vmatprep.subr.mxu0 0.0
    %4552 = vmatpush2.msra.mxu0 0.0
    %4553 = vmatprep.subr.mxu0 0.0
    %4554 = vmatpush2.msra.mxu0 0.0
    %4555 = vmatprep.subr.mxu0 0.0
    %4556 = vmatpush2.msra.mxu0 0.0
    %4557 = vmatprep.subr.mxu0 0.0
    %4558 = vmatpush2.msra.mxu0 0.0
    %4559 = vmatprep.mubr.f32.mxu0 0.0
    %4560 = vmatmul.mubr.f32.gmra.mxu0 %v4493
    %v4561 = vpop.f32.mrf.mxu0
    %v4562 = vadd.f32 0.0, %v4561
    %v4563 = vpop.f32.mrf.mxu0
    %4564 = vdwg.mxu0
    %v4566 = vrot.slane %v4562, 1
    %v4568 = vadd.f32 %v3724, %v4566
    %v4569 = vtanh.pop %v4568
    %v4570 = vxor.u32 %v4568, 2147483648
    %v4571 = vmul.f32 %v4570, 1.442695
    %v4572 = vpow.pop %v4571
    %v4573 = vadd.f32 %v4572, 1.0
    %v4574 = vrcp.pop %v4573
    %v4575 = vmul.f32 1.0, %v4574
    %v4576 = vsel %vm3729, %v4569, %v4575
    %v4578 = vrot.slane %v4482, 7
    %v4580 = vmul.f32 %v4576, %v4578
    %4582 = vrot.lane.b32.xlu0 %v4576, 68
    %v4583 = vpop.permute.xlu0 %4582
    %v4585 = vmul.f32 %v4576, %v4583
    %4587 = vrot.lane.b32.xlu0 %v4585, 30
    %v4588 = vpop.permute.xlu0 %4587
    %v4590 = vadd.f32 %v4580, %v4588
    %v4591 = vtanh.pop %v4590
    %4593 = vrot.lane.b32.xlu0 %v4591, 60
    %v4594 = vpop.permute.xlu0 %4593
    %v4596 = vmul.f32 %v4576, %v4594
    %vm4597 = vcmask 1040384
    %v4598 = vsel %vm4597, %v3841, %v3948
    %v4599 = vsel %vm85, %v4598, %v4056
    %vm4600 = vcmask 1042432
    %v4601 = vsel %vm4600, %v4599, %v4164
    %vm4602 = vcmask 1043456
    %v4603 = vsel %vm4602, %v4601, %v4272
    %vm4604 = vcmask 1044480
    %v4605 = vsel %vm4604, %v4603, %v4380
    %v4606 = vsel %vm3734, %v4605, %v4488
    %vm4607 = vcmask 1046528
    %v4608 = vsel %vm4607, %v4606, %v4596
    %s4609 = scalar_lea.vmem %s4, 56
    %v4610 = vld [vmem:[%s4609] sm:$0xff]
    %v4611 = vld [vmem:[%s4609 + $0x8] sm:$0xff]
    %v4612 = vld [vmem:[%s4609 + $0x10] sm:$0xff]
    %v4613 = vld [vmem:[%s4609 + $0x18] sm:$0xff]
    %v4614 = vld [vmem:[%s4609 + $0x20] sm:$0xff]
    %v4615 = vld [vmem:[%s4609 + $0x28] sm:$0xff]
    %v4616 = vld [vmem:[%s4609 + $0x30] sm:$0x3]
    %s4617 = scalar_lea.vmem %s5, 32
    %v4618 = vld [vmem:[%s4617] sm:$0xff]
    %v4619 = vld [vmem:[%s4617 + $0x8] sm:$0xff]
    %v4620 = vld [vmem:[%s4617 + $0x10] sm:$0xff]
    %v4621 = vld [vmem:[%s4617 + $0x18] sm:$0x3f]
    %s4622 = scalar_lea.vmem %s6, 1
    %v4623 = vld [vmem:[%s4622] sm:$0x1]
    %s4624 = scalar_lea.vmem %s7, 1
    %v4625 = vld [vmem:[%s4624] sm:$0x1]
    %s4626 = scalar_lea.vmem %s8, 1
    %v4627 = vld [vmem:[%s4626] sm:$0x1]
    %v4629 = vlaneseq
    %v4630 = vshrl.u32 %v4629, 7
    %v4631 = vsub.s32 0, %v4630
    %v4632 = vrot.slane %v4623, %v4631
    %v4635 = vsel %vm85, %v4616, 0
    %4637 = vmatprep.subr.mxu0 0.0
    %4638 = vmatpush1.msra.mxu0 0.0
    %4639 = vmatprep.subr.mxu0 0.0
    %4640 = vmatpush1.msra.mxu0 0.0
    %4641 = vmatprep.subr.mxu0 0.0
    %4642 = vmatpush1.msra.mxu0 0.0
    %4643 = vmatprep.subr.mxu0 0.0
    %4644 = vmatpush1.msra.mxu0 0.0
    %4645 = vmatprep.subr.mxu0 0.0
    %4646 = vmatpush1.msra.mxu0 0.0
    %4647 = vmatprep.subr.mxu0 0.0
    %4648 = vmatpush1.msra.mxu0 0.0
    %4649 = vmatprep.subr.mxu0 0.0
    %4650 = vmatpush1.msra.mxu0 0.0
    %4651 = vmatprep.subr.mxu0 0.0
    %4652 = vmatpush1.msra.mxu0 0.0
    %4653 = vmatprep.subr.mxu0 0.0
    %4654 = vmatpush1.msra.mxu0 0.0
    %4655 = vmatprep.subr.mxu0 0.0
    %4656 = vmatpush1.msra.mxu0 %v4635
    %4657 = vmatprep.subr.mxu0 0.0
    %4658 = vmatpush1.msra.mxu0 %v4615
    %4659 = vmatprep.subr.mxu0 0.0
    %4660 = vmatpush1.msra.mxu0 %v4614
    %4661 = vmatprep.subr.mxu0 0.0
    %4662 = vmatpush1.msra.mxu0 %v4613
    %4663 = vmatprep.subr.mxu0 0.0
    %4664 = vmatpush1.msra.mxu0 %v4612
    %4665 = vmatprep.subr.mxu0 0.0
    %4666 = vmatpush1.msra.mxu0 %v4611
    %4667 = vmatprep.subr.mxu0 0.0
    %4668 = vmatpush1.msra.mxu0 %v4610
    %4669 = vmatprep.subr.mxu0 0.0
    %4670 = vmatpush2.msra.mxu0 0.0
    %4671 = vmatprep.subr.mxu0 0.0
    %4672 = vmatpush2.msra.mxu0 0.0
    %4673 = vmatprep.subr.mxu0 0.0
    %4674 = vmatpush2.msra.mxu0 0.0
    %4675 = vmatprep.subr.mxu0 0.0
    %4676 = vmatpush2.msra.mxu0 0.0
    %4677 = vmatprep.subr.mxu0 0.0
    %4678 = vmatpush2.msra.mxu0 0.0
    %4679 = vmatprep.subr.mxu0 0.0
    %4680 = vmatpush2.msra.mxu0 0.0
    %4681 = vmatprep.subr.mxu0 0.0
    %4682 = vmatpush2.msra.mxu0 0.0
    %4683 = vmatprep.subr.mxu0 0.0
    %4684 = vmatpush2.msra.mxu0 0.0
    %4685 = vmatprep.subr.mxu0 0.0
    %4686 = vmatpush2.msra.mxu0 0.0
    %4687 = vmatprep.subr.mxu0 0.0
    %4688 = vmatpush2.msra.mxu0 0.0
    %4689 = vmatprep.subr.mxu0 0.0
    %4690 = vmatpush2.msra.mxu0 0.0
    %4691 = vmatprep.subr.mxu0 0.0
    %4692 = vmatpush2.msra.mxu0 0.0
    %4693 = vmatprep.subr.mxu0 0.0
    %4694 = vmatpush2.msra.mxu0 0.0
    %4695 = vmatprep.subr.mxu0 0.0
    %4696 = vmatpush2.msra.mxu0 0.0
    %4697 = vmatprep.subr.mxu0 0.0
    %4698 = vmatpush2.msra.mxu0 0.0
    %4699 = vmatprep.subr.mxu0 0.0
    %4700 = vmatpush2.msra.mxu0 0.0
    %4701 = vmatprep.mubr.f32.mxu0 0.0
    %4702 = vmatmul.mubr.f32.gmra.mxu0 %v3652
    %v4703 = vpop.f32.mrf.mxu0
    %v4704 = vadd.f32 %v4632, %v4703
    %v4705 = vpop.f32.mrf.mxu0
    %4706 = vdwg.mxu0
    %v4708 = vsel %vm3730, %v4625, 0
    %v4711 = vsel %vm3734, %v4621, 0
    %4713 = vmatprep.subr.mxu0 0.0
    %4714 = vmatpush1.msra.mxu0 0.0
    %4715 = vmatprep.subr.mxu0 0.0
    %4716 = vmatpush1.msra.mxu0 0.0
    %4717 = vmatprep.subr.mxu0 0.0
    %4718 = vmatpush1.msra.mxu0 0.0
    %4719 = vmatprep.subr.mxu0 0.0
    %4720 = vmatpush1.msra.mxu0 0.0
    %4721 = vmatprep.subr.mxu0 0.0
    %4722 = vmatpush1.msra.mxu0 0.0
    %4723 = vmatprep.subr.mxu0 0.0
    %4724 = vmatpush1.msra.mxu0 0.0
    %4725 = vmatprep.subr.mxu0 0.0
    %4726 = vmatpush1.msra.mxu0 0.0
    %4727 = vmatprep.subr.mxu0 0.0
    %4728 = vmatpush1.msra.mxu0 0.0
    %4729 = vmatprep.subr.mxu0 0.0
    %4730 = vmatpush1.msra.mxu0 0.0
    %4731 = vmatprep.subr.mxu0 0.0
    %4732 = vmatpush1.msra.mxu0 0.0
    %4733 = vmatprep.subr.mxu0 0.0
    %4734 = vmatpush1.msra.mxu0 0.0
    %4735 = vmatprep.subr.mxu0 0.0
    %4736 = vmatpush1.msra.mxu0 0.0
    %4737 = vmatprep.subr.mxu0 0.0
    %4738 = vmatpush1.msra.mxu0 %v4711
    %4739 = vmatprep.subr.mxu0 0.0
    %4740 = vmatpush1.msra.mxu0 %v4620
    %4741 = vmatprep.subr.mxu0 0.0
    %4742 = vmatpush1.msra.mxu0 %v4619
    %4743 = vmatprep.subr.mxu0 0.0
    %4744 = vmatpush1.msra.mxu0 %v4618
    %4745 = vmatprep.subr.mxu0 0.0
    %4746 = vmatpush2.msra.mxu0 0.0
    %4747 = vmatprep.subr.mxu0 0.0
    %4748 = vmatpush2.msra.mxu0 0.0
    %4749 = vmatprep.subr.mxu0 0.0
    %4750 = vmatpush2.msra.mxu0 0.0
    %4751 = vmatprep.subr.mxu0 0.0
    %4752 = vmatpush2.msra.mxu0 0.0
    %4753 = vmatprep.subr.mxu0 0.0
    %4754 = vmatpush2.msra.mxu0 0.0
    %4755 = vmatprep.subr.mxu0 0.0
    %4756 = vmatpush2.msra.mxu0 0.0
    %4757 = vmatprep.subr.mxu0 0.0
    %4758 = vmatpush2.msra.mxu0 0.0
    %4759 = vmatprep.subr.mxu0 0.0
    %4760 = vmatpush2.msra.mxu0 0.0
    %4761 = vmatprep.subr.mxu0 0.0
    %4762 = vmatpush2.msra.mxu0 0.0
    %4763 = vmatprep.subr.mxu0 0.0
    %4764 = vmatpush2.msra.mxu0 0.0
    %4765 = vmatprep.subr.mxu0 0.0
    %4766 = vmatpush2.msra.mxu0 0.0
    %4767 = vmatprep.subr.mxu0 0.0
    %4768 = vmatpush2.msra.mxu0 0.0
    %4769 = vmatprep.subr.mxu0 0.0
    %4770 = vmatpush2.msra.mxu0 0.0
    %4771 = vmatprep.subr.mxu0 0.0
    %4772 = vmatpush2.msra.mxu0 0.0
    %4773 = vmatprep.subr.mxu0 0.0
    %4774 = vmatpush2.msra.mxu0 0.0
    %4775 = vmatprep.subr.mxu0 0.0
    %4776 = vmatpush2.msra.mxu0 0.0
    %4777 = vmatprep.mubr.f32.mxu0 0.0
    %4778 = vmatmul.mubr.f32.gmra.mxu0 %v4708
    %v4779 = vpop.f32.mrf.mxu0
    %v4780 = vadd.f32 0.0, %v4779
    %v4781 = vpop.f32.mrf.mxu0
    %4782 = vdwg.mxu0
    %v4784 = vrot.slane %v4780, 1
    %v4786 = vadd.f32 %v4704, %v4784
    %v4787 = vtanh.pop %v4786
    %v4788 = vxor.u32 %v4786, 2147483648
    %v4789 = vmul.f32 %v4788, 1.442695
    %v4790 = vpow.pop %v4789
    %v4791 = vadd.f32 %v4790, 1.0
    %v4792 = vrcp.pop %v4791
    %v4793 = vmul.f32 1.0, %v4792
    %v4794 = vsel %vm3729, %v4787, %v4793
    %v4796 = vlaneseq
    %v4797 = vshrl.u32 %v4796, 7
    %v4798 = vsub.s32 0, %v4797
    %v4799 = vrot.slane %v4627, %v4798
    %4800 = vrot.lane.b32.xlu0 %v4799, 30
    %v4801 = vpop.permute.xlu0 %4800
    %v4803 = vmul.f32 %v4794, %v4801
    %4805 = vrot.lane.b32.xlu0 %v4794, 68
    %v4806 = vpop.permute.xlu0 %4805
    %v4808 = vmul.f32 %v4794, %v4806
    %4810 = vrot.lane.b32.xlu0 %v4808, 30
    %v4811 = vpop.permute.xlu0 %4810
    %v4813 = vadd.f32 %v4803, %v4811
    %v4814 = vtanh.pop %v4813
    %4816 = vrot.lane.b32.xlu0 %v4814, 60
    %v4817 = vpop.permute.xlu0 %4816
    %v4819 = vmul.f32 %v4794, %v4817
    %v4821 = vrot.slane %v4819, 7
    %4822 = vrot.lane.b32.xlu0 %v4821, 38
    %v4823 = vpop.permute.xlu0 %4822
    %v4824 = vsel %vm3730, %v4823, 0
    %4826 = vmatprep.subr.mxu0 0.0
    %4827 = vmatpush1.msra.mxu0 0.0
    %4828 = vmatprep.subr.mxu0 0.0
    %4829 = vmatpush1.msra.mxu0 0.0
    %4830 = vmatprep.subr.mxu0 0.0
    %4831 = vmatpush1.msra.mxu0 0.0
    %4832 = vmatprep.subr.mxu0 0.0
    %4833 = vmatpush1.msra.mxu0 0.0
    %4834 = vmatprep.subr.mxu0 0.0
    %4835 = vmatpush1.msra.mxu0 0.0
    %4836 = vmatprep.subr.mxu0 0.0
    %4837 = vmatpush1.msra.mxu0 0.0
    %4838 = vmatprep.subr.mxu0 0.0
    %4839 = vmatpush1.msra.mxu0 0.0
    %4840 = vmatprep.subr.mxu0 0.0
    %4841 = vmatpush1.msra.mxu0 0.0
    %4842 = vmatprep.subr.mxu0 0.0
    %4843 = vmatpush1.msra.mxu0 0.0
    %4844 = vmatprep.subr.mxu0 0.0
    %4845 = vmatpush1.msra.mxu0 0.0
    %4846 = vmatprep.subr.mxu0 0.0
    %4847 = vmatpush1.msra.mxu0 0.0
    %4848 = vmatprep.subr.mxu0 0.0
    %4849 = vmatpush1.msra.mxu0 0.0
    %4850 = vmatprep.subr.mxu0 0.0
    %4851 = vmatpush1.msra.mxu0 %v4711
    %4852 = vmatprep.subr.mxu0 0.0
    %4853 = vmatpush1.msra.mxu0 %v4620
    %4854 = vmatprep.subr.mxu0 0.0
    %4855 = vmatpush1.msra.mxu0 %v4619
    %4856 = vmatprep.subr.mxu0 0.0
    %4857 = vmatpush1.msra.mxu0 %v4618
    %4858 = vmatprep.subr.mxu0 0.0
    %4859 = vmatpush2.msra.mxu0 0.0
    %4860 = vmatprep.subr.mxu0 0.0
    %4861 = vmatpush2.msra.mxu0 0.0
    %4862 = vmatprep.subr.mxu0 0.0
    %4863 = vmatpush2.msra.mxu0 0.0
    %4864 = vmatprep.subr.mxu0 0.0
    %4865 = vmatpush2.msra.mxu0 0.0
    %4866 = vmatprep.subr.mxu0 0.0
    %4867 = vmatpush2.msra.mxu0 0.0
    %4868 = vmatprep.subr.mxu0 0.0
    %4869 = vmatpush2.msra.mxu0 0.0
    %4870 = vmatprep.subr.mxu0 0.0
    %4871 = vmatpush2.msra.mxu0 0.0
    %4872 = vmatprep.subr.mxu0 0.0
    %4873 = vmatpush2.msra.mxu0 0.0
    %4874 = vmatprep.subr.mxu0 0.0
    %4875 = vmatpush2.msra.mxu0 0.0
    %4876 = vmatprep.subr.mxu0 0.0
    %4877 = vmatpush2.msra.mxu0 0.0
    %4878 = vmatprep.subr.mxu0 0.0
    %4879 = vmatpush2.msra.mxu0 0.0
    %4880 = vmatprep.subr.mxu0 0.0
    %4881 = vmatpush2.msra.mxu0 0.0
    %4882 = vmatprep.subr.mxu0 0.0
    %4883 = vmatpush2.msra.mxu0 0.0
    %4884 = vmatprep.subr.mxu0 0.0
    %4885 = vmatpush2.msra.mxu0 0.0
    %4886 = vmatprep.subr.mxu0 0.0
    %4887 = vmatpush2.msra.mxu0 0.0
    %4888 = vmatprep.subr.mxu0 0.0
    %4889 = vmatpush2.msra.mxu0 0.0
    %4890 = vmatprep.mubr.f32.mxu0 0.0
    %4891 = vmatmul.mubr.f32.gmra.mxu0 %v4824
    %v4892 = vpop.f32.mrf.mxu0
    %v4893 = vadd.f32 0.0, %v4892
    %v4894 = vpop.f32.mrf.mxu0
    %4895 = vdwg.mxu0
    %v4897 = vrot.slane %v4893, 2
    %v4899 = vadd.f32 %v4704, %v4897
    %v4900 = vtanh.pop %v4899
    %v4901 = vxor.u32 %v4899, 2147483648
    %v4902 = vmul.f32 %v4901, 1.442695
    %v4903 = vpow.pop %v4902
    %v4904 = vadd.f32 %v4903, 1.0
    %v4905 = vrcp.pop %v4904
    %v4906 = vmul.f32 1.0, %v4905
    %v4907 = vsel %vm3729, %v4900, %v4906
    %v4909 = vrot.slane %v4813, 1
    %v4911 = vmul.f32 %v4907, %v4909
    %4913 = vrot.lane.b32.xlu0 %v4907, 68
    %v4914 = vpop.permute.xlu0 %4913
    %v4916 = vmul.f32 %v4907, %v4914
    %4918 = vrot.lane.b32.xlu0 %v4916, 30
    %v4919 = vpop.permute.xlu0 %4918
    %v4921 = vadd.f32 %v4911, %v4919
    %v4922 = vtanh.pop %v4921
    %4924 = vrot.lane.b32.xlu0 %v4922, 60
    %v4925 = vpop.permute.xlu0 %4924
    %v4927 = vmul.f32 %v4907, %v4925
    %v4929 = vrot.slane %v4927, 6
    %4930 = vrot.lane.b32.xlu0 %v4929, 38
    %v4931 = vpop.permute.xlu0 %4930
    %v4932 = vsel %vm3730, %v4931, 0
    %4934 = vmatprep.subr.mxu0 0.0
    %4935 = vmatpush1.msra.mxu0 0.0
    %4936 = vmatprep.subr.mxu0 0.0
    %4937 = vmatpush1.msra.mxu0 0.0
    %4938 = vmatprep.subr.mxu0 0.0
    %4939 = vmatpush1.msra.mxu0 0.0
    %4940 = vmatprep.subr.mxu0 0.0
    %4941 = vmatpush1.msra.mxu0 0.0
    %4942 = vmatprep.subr.mxu0 0.0
    %4943 = vmatpush1.msra.mxu0 0.0
    %4944 = vmatprep.subr.mxu0 0.0
    %4945 = vmatpush1.msra.mxu0 0.0
    %4946 = vmatprep.subr.mxu0 0.0
    %4947 = vmatpush1.msra.mxu0 0.0
    %4948 = vmatprep.subr.mxu0 0.0
    %4949 = vmatpush1.msra.mxu0 0.0
    %4950 = vmatprep.subr.mxu0 0.0
    %4951 = vmatpush1.msra.mxu0 0.0
    %4952 = vmatprep.subr.mxu0 0.0
    %4953 = vmatpush1.msra.mxu0 0.0
    %4954 = vmatprep.subr.mxu0 0.0
    %4955 = vmatpush1.msra.mxu0 0.0
    %4956 = vmatprep.subr.mxu0 0.0
    %4957 = vmatpush1.msra.mxu0 0.0
    %4958 = vmatprep.subr.mxu0 0.0
    %4959 = vmatpush1.msra.mxu0 %v4711
    %4960 = vmatprep.subr.mxu0 0.0
    %4961 = vmatpush1.msra.mxu0 %v4620
    %4962 = vmatprep.subr.mxu0 0.0
    %4963 = vmatpush1.msra.mxu0 %v4619
    %4964 = vmatprep.subr.mxu0 0.0
    %4965 = vmatpush1.msra.mxu0 %v4618
    %4966 = vmatprep.subr.mxu0 0.0
    %4967 = vmatpush2.msra.mxu0 0.0
    %4968 = vmatprep.subr.mxu0 0.0
    %4969 = vmatpush2.msra.mxu0 0.0
    %4970 = vmatprep.subr.mxu0 0.0
    %4971 = vmatpush2.msra.mxu0 0.0
    %4972 = vmatprep.subr.mxu0 0.0
    %4973 = vmatpush2.msra.mxu0 0.0
    %4974 = vmatprep.subr.mxu0 0.0
    %4975 = vmatpush2.msra.mxu0 0.0
    %4976 = vmatprep.subr.mxu0 0.0
    %4977 = vmatpush2.msra.mxu0 0.0
    %4978 = vmatprep.subr.mxu0 0.0
    %4979 = vmatpush2.msra.mxu0 0.0
    %4980 = vmatprep.subr.mxu0 0.0
    %4981 = vmatpush2.msra.mxu0 0.0
    %4982 = vmatprep.subr.mxu0 0.0
    %4983 = vmatpush2.msra.mxu0 0.0
    %4984 = vmatprep.subr.mxu0 0.0
    %4985 = vmatpush2.msra.mxu0 0.0
    %4986 = vmatprep.subr.mxu0 0.0
    %4987 = vmatpush2.msra.mxu0 0.0
    %4988 = vmatprep.subr.mxu0 0.0
    %4989 = vmatpush2.msra.mxu0 0.0
    %4990 = vmatprep.subr.mxu0 0.0
    %4991 = vmatpush2.msra.mxu0 0.0
    %4992 = vmatprep.subr.mxu0 0.0
    %4993 = vmatpush2.msra.mxu0 0.0
    %4994 = vmatprep.subr.mxu0 0.0
    %4995 = vmatpush2.msra.mxu0 0.0
    %4996 = vmatprep.subr.mxu0 0.0
    %4997 = vmatpush2.msra.mxu0 0.0
    %4998 = vmatprep.mubr.f32.mxu0 0.0
    %4999 = vmatmul.mubr.f32.gmra.mxu0 %v4932
    %v5000 = vpop.f32.mrf.mxu0
    %v5001 = vadd.f32 0.0, %v5000
    %v5002 = vpop.f32.mrf.mxu0
    %5003 = vdwg.mxu0
    %v5005 = vrot.slane %v5001, 3
    %v5007 = vadd.f32 %v4704, %v5005
    %v5008 = vtanh.pop %v5007
    %v5009 = vxor.u32 %v5007, 2147483648
    %v5010 = vmul.f32 %v5009, 1.442695
    %v5011 = vpow.pop %v5010
    %v5012 = vadd.f32 %v5011, 1.0
    %v5013 = vrcp.pop %v5012
    %v5014 = vmul.f32 1.0, %v5013
    %v5015 = vsel %vm3729, %v5008, %v5014
    %v5017 = vrot.slane %v4921, 1
    %v5019 = vmul.f32 %v5015, %v5017
    %5021 = vrot.lane.b32.xlu0 %v5015, 68
    %v5022 = vpop.permute.xlu0 %5021
    %v5024 = vmul.f32 %v5015, %v5022
    %5026 = vrot.lane.b32.xlu0 %v5024, 30
    %v5027 = vpop.permute.xlu0 %5026
    %v5029 = vadd.f32 %v5019, %v5027
    %v5030 = vtanh.pop %v5029
    %5032 = vrot.lane.b32.xlu0 %v5030, 60
    %v5033 = vpop.permute.xlu0 %5032
    %v5035 = vmul.f32 %v5015, %v5033
    %v5037 = vrot.slane %v5035, 5
    %5038 = vrot.lane.b32.xlu0 %v5037, 38
    %v5039 = vpop.permute.xlu0 %5038
    %v5040 = vsel %vm3730, %v5039, 0
    %5042 = vmatprep.subr.mxu0 0.0
    %5043 = vmatpush1.msra.mxu0 0.0
    %5044 = vmatprep.subr.mxu0 0.0
    %5045 = vmatpush1.msra.mxu0 0.0
    %5046 = vmatprep.subr.mxu0 0.0
    %5047 = vmatpush1.msra.mxu0 0.0
    %5048 = vmatprep.subr.mxu0 0.0
    %5049 = vmatpush1.msra.mxu0 0.0
    %5050 = vmatprep.subr.mxu0 0.0
    %5051 = vmatpush1.msra.mxu0 0.0
    %5052 = vmatprep.subr.mxu0 0.0
    %5053 = vmatpush1.msra.mxu0 0.0
    %5054 = vmatprep.subr.mxu0 0.0
    %5055 = vmatpush1.msra.mxu0 0.0
    %5056 = vmatprep.subr.mxu0 0.0
    %5057 = vmatpush1.msra.mxu0 0.0
    %5058 = vmatprep.subr.mxu0 0.0
    %5059 = vmatpush1.msra.mxu0 0.0
    %5060 = vmatprep.subr.mxu0 0.0
    %5061 = vmatpush1.msra.mxu0 0.0
    %5062 = vmatprep.subr.mxu0 0.0
    %5063 = vmatpush1.msra.mxu0 0.0
    %5064 = vmatprep.subr.mxu0 0.0
    %5065 = vmatpush1.msra.mxu0 0.0
    %5066 = vmatprep.subr.mxu0 0.0
    %5067 = vmatpush1.msra.mxu0 %v4711
    %5068 = vmatprep.subr.mxu0 0.0
    %5069 = vmatpush1.msra.mxu0 %v4620
    %5070 = vmatprep.subr.mxu0 0.0
    %5071 = vmatpush1.msra.mxu0 %v4619
    %5072 = vmatprep.subr.mxu0 0.0
    %5073 = vmatpush1.msra.mxu0 %v4618
    %5074 = vmatprep.subr.mxu0 0.0
    %5075 = vmatpush2.msra.mxu0 0.0
    %5076 = vmatprep.subr.mxu0 0.0
    %5077 = vmatpush2.msra.mxu0 0.0
    %5078 = vmatprep.subr.mxu0 0.0
    %5079 = vmatpush2.msra.mxu0 0.0
    %5080 = vmatprep.subr.mxu0 0.0
    %5081 = vmatpush2.msra.mxu0 0.0
    %5082 = vmatprep.subr.mxu0 0.0
    %5083 = vmatpush2.msra.mxu0 0.0
    %5084 = vmatprep.subr.mxu0 0.0
    %5085 = vmatpush2.msra.mxu0 0.0
    %5086 = vmatprep.subr.mxu0 0.0
    %5087 = vmatpush2.msra.mxu0 0.0
    %5088 = vmatprep.subr.mxu0 0.0
    %5089 = vmatpush2.msra.mxu0 0.0
    %5090 = vmatprep.subr.mxu0 0.0
    %5091 = vmatpush2.msra.mxu0 0.0
    %5092 = vmatprep.subr.mxu0 0.0
    %5093 = vmatpush2.msra.mxu0 0.0
    %5094 = vmatprep.subr.mxu0 0.0
    %5095 = vmatpush2.msra.mxu0 0.0
    %5096 = vmatprep.subr.mxu0 0.0
    %5097 = vmatpush2.msra.mxu0 0.0
    %5098 = vmatprep.subr.mxu0 0.0
    %5099 = vmatpush2.msra.mxu0 0.0
    %5100 = vmatprep.subr.mxu0 0.0
    %5101 = vmatpush2.msra.mxu0 0.0
    %5102 = vmatprep.subr.mxu0 0.0
    %5103 = vmatpush2.msra.mxu0 0.0
    %5104 = vmatprep.subr.mxu0 0.0
    %5105 = vmatpush2.msra.mxu0 0.0
    %5106 = vmatprep.mubr.f32.mxu0 0.0
    %5107 = vmatmul.mubr.f32.gmra.mxu0 %v5040
    %v5108 = vpop.f32.mrf.mxu0
    %v5109 = vadd.f32 0.0, %v5108
    %v5110 = vpop.f32.mrf.mxu0
    %5111 = vdwg.mxu0
    %v5113 = vrot.slane %v5109, 4
    %v5115 = vadd.f32 %v4704, %v5113
    %v5116 = vtanh.pop %v5115
    %v5117 = vxor.u32 %v5115, 2147483648
    %v5118 = vmul.f32 %v5117, 1.442695
    %v5119 = vpow.pop %v5118
    %v5120 = vadd.f32 %v5119, 1.0
    %v5121 = vrcp.pop %v5120
    %v5122 = vmul.f32 1.0, %v5121
    %v5123 = vsel %vm3729, %v5116, %v5122
    %v5125 = vrot.slane %v5029, 1
    %v5127 = vmul.f32 %v5123, %v5125
    %5129 = vrot.lane.b32.xlu0 %v5123, 68
    %v5130 = vpop.permute.xlu0 %5129
    %v5132 = vmul.f32 %v5123, %v5130
    %5134 = vrot.lane.b32.xlu0 %v5132, 30
    %v5135 = vpop.permute.xlu0 %5134
    %v5137 = vadd.f32 %v5127, %v5135
    %v5138 = vtanh.pop %v5137
    %5140 = vrot.lane.b32.xlu0 %v5138, 60
    %v5141 = vpop.permute.xlu0 %5140
    %v5143 = vmul.f32 %v5123, %v5141
    %v5145 = vrot.slane %v5143, 4
    %5146 = vrot.lane.b32.xlu0 %v5145, 38
    %v5147 = vpop.permute.xlu0 %5146
    %v5148 = vsel %vm3730, %v5147, 0
    %5150 = vmatprep.subr.mxu0 0.0
    %5151 = vmatpush1.msra.mxu0 0.0
    %5152 = vmatprep.subr.mxu0 0.0
    %5153 = vmatpush1.msra.mxu0 0.0
    %5154 = vmatprep.subr.mxu0 0.0
    %5155 = vmatpush1.msra.mxu0 0.0
    %5156 = vmatprep.subr.mxu0 0.0
    %5157 = vmatpush1.msra.mxu0 0.0
    %5158 = vmatprep.subr.mxu0 0.0
    %5159 = vmatpush1.msra.mxu0 0.0
    %5160 = vmatprep.subr.mxu0 0.0
    %5161 = vmatpush1.msra.mxu0 0.0
    %5162 = vmatprep.subr.mxu0 0.0
    %5163 = vmatpush1.msra.mxu0 0.0
    %5164 = vmatprep.subr.mxu0 0.0
    %5165 = vmatpush1.msra.mxu0 0.0
    %5166 = vmatprep.subr.mxu0 0.0
    %5167 = vmatpush1.msra.mxu0 0.0
    %5168 = vmatprep.subr.mxu0 0.0
    %5169 = vmatpush1.msra.mxu0 0.0
    %5170 = vmatprep.subr.mxu0 0.0
    %5171 = vmatpush1.msra.mxu0 0.0
    %5172 = vmatprep.subr.mxu0 0.0
    %5173 = vmatpush1.msra.mxu0 0.0
    %5174 = vmatprep.subr.mxu0 0.0
    %5175 = vmatpush1.msra.mxu0 %v4711
    %5176 = vmatprep.subr.mxu0 0.0
    %5177 = vmatpush1.msra.mxu0 %v4620
    %5178 = vmatprep.subr.mxu0 0.0
    %5179 = vmatpush1.msra.mxu0 %v4619
    %5180 = vmatprep.subr.mxu0 0.0
    %5181 = vmatpush1.msra.mxu0 %v4618
    %5182 = vmatprep.subr.mxu0 0.0
    %5183 = vmatpush2.msra.mxu0 0.0
    %5184 = vmatprep.subr.mxu0 0.0
    %5185 = vmatpush2.msra.mxu0 0.0
    %5186 = vmatprep.subr.mxu0 0.0
    %5187 = vmatpush2.msra.mxu0 0.0
    %5188 = vmatprep.subr.mxu0 0.0
    %5189 = vmatpush2.msra.mxu0 0.0
    %5190 = vmatprep.subr.mxu0 0.0
    %5191 = vmatpush2.msra.mxu0 0.0
    %5192 = vmatprep.subr.mxu0 0.0
    %5193 = vmatpush2.msra.mxu0 0.0
    %5194 = vmatprep.subr.mxu0 0.0
    %5195 = vmatpush2.msra.mxu0 0.0
    %5196 = vmatprep.subr.mxu0 0.0
    %5197 = vmatpush2.msra.mxu0 0.0
    %5198 = vmatprep.subr.mxu0 0.0
    %5199 = vmatpush2.msra.mxu0 0.0
    %5200 = vmatprep.subr.mxu0 0.0
    %5201 = vmatpush2.msra.mxu0 0.0
    %5202 = vmatprep.subr.mxu0 0.0
    %5203 = vmatpush2.msra.mxu0 0.0
    %5204 = vmatprep.subr.mxu0 0.0
    %5205 = vmatpush2.msra.mxu0 0.0
    %5206 = vmatprep.subr.mxu0 0.0
    %5207 = vmatpush2.msra.mxu0 0.0
    %5208 = vmatprep.subr.mxu0 0.0
    %5209 = vmatpush2.msra.mxu0 0.0
    %5210 = vmatprep.subr.mxu0 0.0
    %5211 = vmatpush2.msra.mxu0 0.0
    %5212 = vmatprep.subr.mxu0 0.0
    %5213 = vmatpush2.msra.mxu0 0.0
    %5214 = vmatprep.mubr.f32.mxu0 0.0
    %5215 = vmatmul.mubr.f32.gmra.mxu0 %v5148
    %v5216 = vpop.f32.mrf.mxu0
    %v5217 = vadd.f32 0.0, %v5216
    %v5218 = vpop.f32.mrf.mxu0
    %5219 = vdwg.mxu0
    %v5221 = vrot.slane %v5217, 5
    %v5223 = vadd.f32 %v4704, %v5221
    %v5224 = vtanh.pop %v5223
    %v5225 = vxor.u32 %v5223, 2147483648
    %v5226 = vmul.f32 %v5225, 1.442695
    %v5227 = vpow.pop %v5226
    %v5228 = vadd.f32 %v5227, 1.0
    %v5229 = vrcp.pop %v5228
    %v5230 = vmul.f32 1.0, %v5229
    %v5231 = vsel %vm3729, %v5224, %v5230
    %v5233 = vrot.slane %v5137, 1
    %v5235 = vmul.f32 %v5231, %v5233
    %5237 = vrot.lane.b32.xlu0 %v5231, 68
    %v5238 = vpop.permute.xlu0 %5237
    %v5240 = vmul.f32 %v5231, %v5238
    %5242 = vrot.lane.b32.xlu0 %v5240, 30
    %v5243 = vpop.permute.xlu0 %5242
    %v5245 = vadd.f32 %v5235, %v5243
    %v5246 = vtanh.pop %v5245
    %5248 = vrot.lane.b32.xlu0 %v5246, 60
    %v5249 = vpop.permute.xlu0 %5248
    %v5251 = vmul.f32 %v5231, %v5249
    %v5253 = vrot.slane %v5251, 3
    %5254 = vrot.lane.b32.xlu0 %v5253, 38
    %v5255 = vpop.permute.xlu0 %5254
    %v5256 = vsel %vm3730, %v5255, 0
    %5258 = vmatprep.subr.mxu0 0.0
    %5259 = vmatpush1.msra.mxu0 0.0
    %5260 = vmatprep.subr.mxu0 0.0
    %5261 = vmatpush1.msra.mxu0 0.0
    %5262 = vmatprep.subr.mxu0 0.0
    %5263 = vmatpush1.msra.mxu0 0.0
    %5264 = vmatprep.subr.mxu0 0.0
    %5265 = vmatpush1.msra.mxu0 0.0
    %5266 = vmatprep.subr.mxu0 0.0
    %5267 = vmatpush1.msra.mxu0 0.0
    %5268 = vmatprep.subr.mxu0 0.0
    %5269 = vmatpush1.msra.mxu0 0.0
    %5270 = vmatprep.subr.mxu0 0.0
    %5271 = vmatpush1.msra.mxu0 0.0
    %5272 = vmatprep.subr.mxu0 0.0
    %5273 = vmatpush1.msra.mxu0 0.0
    %5274 = vmatprep.subr.mxu0 0.0
    %5275 = vmatpush1.msra.mxu0 0.0
    %5276 = vmatprep.subr.mxu0 0.0
    %5277 = vmatpush1.msra.mxu0 0.0
    %5278 = vmatprep.subr.mxu0 0.0
    %5279 = vmatpush1.msra.mxu0 0.0
    %5280 = vmatprep.subr.mxu0 0.0
    %5281 = vmatpush1.msra.mxu0 0.0
    %5282 = vmatprep.subr.mxu0 0.0
    %5283 = vmatpush1.msra.mxu0 %v4711
    %5284 = vmatprep.subr.mxu0 0.0
    %5285 = vmatpush1.msra.mxu0 %v4620
    %5286 = vmatprep.subr.mxu0 0.0
    %5287 = vmatpush1.msra.mxu0 %v4619
    %5288 = vmatprep.subr.mxu0 0.0
    %5289 = vmatpush1.msra.mxu0 %v4618
    %5290 = vmatprep.subr.mxu0 0.0
    %5291 = vmatpush2.msra.mxu0 0.0
    %5292 = vmatprep.subr.mxu0 0.0
    %5293 = vmatpush2.msra.mxu0 0.0
    %5294 = vmatprep.subr.mxu0 0.0
    %5295 = vmatpush2.msra.mxu0 0.0
    %5296 = vmatprep.subr.mxu0 0.0
    %5297 = vmatpush2.msra.mxu0 0.0
    %5298 = vmatprep.subr.mxu0 0.0
    %5299 = vmatpush2.msra.mxu0 0.0
    %5300 = vmatprep.subr.mxu0 0.0
    %5301 = vmatpush2.msra.mxu0 0.0
    %5302 = vmatprep.subr.mxu0 0.0
    %5303 = vmatpush2.msra.mxu0 0.0
    %5304 = vmatprep.subr.mxu0 0.0
    %5305 = vmatpush2.msra.mxu0 0.0
    %5306 = vmatprep.subr.mxu0 0.0
    %5307 = vmatpush2.msra.mxu0 0.0
    %5308 = vmatprep.subr.mxu0 0.0
    %5309 = vmatpush2.msra.mxu0 0.0
    %5310 = vmatprep.subr.mxu0 0.0
    %5311 = vmatpush2.msra.mxu0 0.0
    %5312 = vmatprep.subr.mxu0 0.0
    %5313 = vmatpush2.msra.mxu0 0.0
    %5314 = vmatprep.subr.mxu0 0.0
    %5315 = vmatpush2.msra.mxu0 0.0
    %5316 = vmatprep.subr.mxu0 0.0
    %5317 = vmatpush2.msra.mxu0 0.0
    %5318 = vmatprep.subr.mxu0 0.0
    %5319 = vmatpush2.msra.mxu0 0.0
    %5320 = vmatprep.subr.mxu0 0.0
    %5321 = vmatpush2.msra.mxu0 0.0
    %5322 = vmatprep.mubr.f32.mxu0 0.0
    %5323 = vmatmul.mubr.f32.gmra.mxu0 %v5256
    %v5324 = vpop.f32.mrf.mxu0
    %v5325 = vadd.f32 0.0, %v5324
    %v5326 = vpop.f32.mrf.mxu0
    %5327 = vdwg.mxu0
    %v5329 = vrot.slane %v5325, 6
    %v5331 = vadd.f32 %v4704, %v5329
    %v5332 = vtanh.pop %v5331
    %v5333 = vxor.u32 %v5331, 2147483648
    %v5334 = vmul.f32 %v5333, 1.442695
    %v5335 = vpow.pop %v5334
    %v5336 = vadd.f32 %v5335, 1.0
    %v5337 = vrcp.pop %v5336
    %v5338 = vmul.f32 1.0, %v5337
    %v5339 = vsel %vm3729, %v5332, %v5338
    %v5341 = vrot.slane %v5245, 1
    %v5343 = vmul.f32 %v5339, %v5341
    %5345 = vrot.lane.b32.xlu0 %v5339, 68
    %v5346 = vpop.permute.xlu0 %5345
    %v5348 = vmul.f32 %v5339, %v5346
    %5350 = vrot.lane.b32.xlu0 %v5348, 30
    %v5351 = vpop.permute.xlu0 %5350
    %v5353 = vadd.f32 %v5343, %v5351
    %v5354 = vtanh.pop %v5353
    %5356 = vrot.lane.b32.xlu0 %v5354, 60
    %v5357 = vpop.permute.xlu0 %5356
    %v5359 = vmul.f32 %v5339, %v5357
    %v5361 = vrot.slane %v5359, 2
    %5362 = vrot.lane.b32.xlu0 %v5361, 38
    %v5363 = vpop.permute.xlu0 %5362
    %v5364 = vsel %vm3730, %v5363, 0
    %5366 = vmatprep.subr.mxu0 0.0
    %5367 = vmatpush1.msra.mxu0 0.0
    %5368 = vmatprep.subr.mxu0 0.0
    %5369 = vmatpush1.msra.mxu0 0.0
    %5370 = vmatprep.subr.mxu0 0.0
    %5371 = vmatpush1.msra.mxu0 0.0
    %5372 = vmatprep.subr.mxu0 0.0
    %5373 = vmatpush1.msra.mxu0 0.0
    %5374 = vmatprep.subr.mxu0 0.0
    %5375 = vmatpush1.msra.mxu0 0.0
    %5376 = vmatprep.subr.mxu0 0.0
    %5377 = vmatpush1.msra.mxu0 0.0
    %5378 = vmatprep.subr.mxu0 0.0
    %5379 = vmatpush1.msra.mxu0 0.0
    %5380 = vmatprep.subr.mxu0 0.0
    %5381 = vmatpush1.msra.mxu0 0.0
    %5382 = vmatprep.subr.mxu0 0.0
    %5383 = vmatpush1.msra.mxu0 0.0
    %5384 = vmatprep.subr.mxu0 0.0
    %5385 = vmatpush1.msra.mxu0 0.0
    %5386 = vmatprep.subr.mxu0 0.0
    %5387 = vmatpush1.msra.mxu0 0.0
    %5388 = vmatprep.subr.mxu0 0.0
    %5389 = vmatpush1.msra.mxu0 0.0
    %5390 = vmatprep.subr.mxu0 0.0
    %5391 = vmatpush1.msra.mxu0 %v4711
    %5392 = vmatprep.subr.mxu0 0.0
    %5393 = vmatpush1.msra.mxu0 %v4620
    %5394 = vmatprep.subr.mxu0 0.0
    %5395 = vmatpush1.msra.mxu0 %v4619
    %5396 = vmatprep.subr.mxu0 0.0
    %5397 = vmatpush1.msra.mxu0 %v4618
    %5398 = vmatprep.subr.mxu0 0.0
    %5399 = vmatpush2.msra.mxu0 0.0
    %5400 = vmatprep.subr.mxu0 0.0
    %5401 = vmatpush2.msra.mxu0 0.0
    %5402 = vmatprep.subr.mxu0 0.0
    %5403 = vmatpush2.msra.mxu0 0.0
    %5404 = vmatprep.subr.mxu0 0.0
    %5405 = vmatpush2.msra.mxu0 0.0
    %5406 = vmatprep.subr.mxu0 0.0
    %5407 = vmatpush2.msra.mxu0 0.0
    %5408 = vmatprep.subr.mxu0 0.0
    %5409 = vmatpush2.msra.mxu0 0.0
    %5410 = vmatprep.subr.mxu0 0.0
    %5411 = vmatpush2.msra.mxu0 0.0
    %5412 = vmatprep.subr.mxu0 0.0
    %5413 = vmatpush2.msra.mxu0 0.0
    %5414 = vmatprep.subr.mxu0 0.0
    %5415 = vmatpush2.msra.mxu0 0.0
    %5416 = vmatprep.subr.mxu0 0.0
    %5417 = vmatpush2.msra.mxu0 0.0
    %5418 = vmatprep.subr.mxu0 0.0
    %5419 = vmatpush2.msra.mxu0 0.0
    %5420 = vmatprep.subr.mxu0 0.0
    %5421 = vmatpush2.msra.mxu0 0.0
    %5422 = vmatprep.subr.mxu0 0.0
    %5423 = vmatpush2.msra.mxu0 0.0
    %5424 = vmatprep.subr.mxu0 0.0
    %5425 = vmatpush2.msra.mxu0 0.0
    %5426 = vmatprep.subr.mxu0 0.0
    %5427 = vmatpush2.msra.mxu0 0.0
    %5428 = vmatprep.subr.mxu0 0.0
    %5429 = vmatpush2.msra.mxu0 0.0
    %5430 = vmatprep.mubr.f32.mxu0 0.0
    %5431 = vmatmul.mubr.f32.gmra.mxu0 %v5364
    %v5432 = vpop.f32.mrf.mxu0
    %v5433 = vadd.f32 0.0, %v5432
    %v5434 = vpop.f32.mrf.mxu0
    %5435 = vdwg.mxu0
    %v5437 = vrot.slane %v5433, 7
    %v5439 = vadd.f32 %v4704, %v5437
    %v5440 = vtanh.pop %v5439
    %v5441 = vxor.u32 %v5439, 2147483648
    %v5442 = vmul.f32 %v5441, 1.442695
    %v5443 = vpow.pop %v5442
    %v5444 = vadd.f32 %v5443, 1.0
    %v5445 = vrcp.pop %v5444
    %v5446 = vmul.f32 1.0, %v5445
    %v5447 = vsel %vm3729, %v5440, %v5446
    %v5449 = vrot.slane %v5353, 1
    %v5451 = vmul.f32 %v5447, %v5449
    %5453 = vrot.lane.b32.xlu0 %v5447, 68
    %v5454 = vpop.permute.xlu0 %5453
    %v5456 = vmul.f32 %v5447, %v5454
    %5458 = vrot.lane.b32.xlu0 %v5456, 30
    %v5459 = vpop.permute.xlu0 %5458
    %v5461 = vadd.f32 %v5451, %v5459
    %v5462 = vtanh.pop %v5461
    %5464 = vrot.lane.b32.xlu0 %v5462, 60
    %v5465 = vpop.permute.xlu0 %5464
    %v5467 = vmul.f32 %v5447, %v5465
    %v5469 = vrot.slane %v5467, 1
    %5470 = vrot.lane.b32.xlu0 %v5469, 38
    %v5471 = vpop.permute.xlu0 %5470
    %v5472 = vsel %vm3730, %v5471, 0
    %5474 = vmatprep.subr.mxu0 0.0
    %5475 = vmatpush1.msra.mxu0 0.0
    %5476 = vmatprep.subr.mxu0 0.0
    %5477 = vmatpush1.msra.mxu0 0.0
    %5478 = vmatprep.subr.mxu0 0.0
    %5479 = vmatpush1.msra.mxu0 0.0
    %5480 = vmatprep.subr.mxu0 0.0
    %5481 = vmatpush1.msra.mxu0 0.0
    %5482 = vmatprep.subr.mxu0 0.0
    %5483 = vmatpush1.msra.mxu0 0.0
    %5484 = vmatprep.subr.mxu0 0.0
    %5485 = vmatpush1.msra.mxu0 0.0
    %5486 = vmatprep.subr.mxu0 0.0
    %5487 = vmatpush1.msra.mxu0 0.0
    %5488 = vmatprep.subr.mxu0 0.0
    %5489 = vmatpush1.msra.mxu0 0.0
    %5490 = vmatprep.subr.mxu0 0.0
    %5491 = vmatpush1.msra.mxu0 0.0
    %5492 = vmatprep.subr.mxu0 0.0
    %5493 = vmatpush1.msra.mxu0 0.0
    %5494 = vmatprep.subr.mxu0 0.0
    %5495 = vmatpush1.msra.mxu0 0.0
    %5496 = vmatprep.subr.mxu0 0.0
    %5497 = vmatpush1.msra.mxu0 0.0
    %5498 = vmatprep.subr.mxu0 0.0
    %5499 = vmatpush1.msra.mxu0 %v4711
    %5500 = vmatprep.subr.mxu0 0.0
    %5501 = vmatpush1.msra.mxu0 %v4620
    %5502 = vmatprep.subr.mxu0 0.0
    %5503 = vmatpush1.msra.mxu0 %v4619
    %5504 = vmatprep.subr.mxu0 0.0
    %5505 = vmatpush1.msra.mxu0 %v4618
    %5506 = vmatprep.subr.mxu0 0.0
    %5507 = vmatpush2.msra.mxu0 0.0
    %5508 = vmatprep.subr.mxu0 0.0
    %5509 = vmatpush2.msra.mxu0 0.0
    %5510 = vmatprep.subr.mxu0 0.0
    %5511 = vmatpush2.msra.mxu0 0.0
    %5512 = vmatprep.subr.mxu0 0.0
    %5513 = vmatpush2.msra.mxu0 0.0
    %5514 = vmatprep.subr.mxu0 0.0
    %5515 = vmatpush2.msra.mxu0 0.0
    %5516 = vmatprep.subr.mxu0 0.0
    %5517 = vmatpush2.msra.mxu0 0.0
    %5518 = vmatprep.subr.mxu0 0.0
    %5519 = vmatpush2.msra.mxu0 0.0
    %5520 = vmatprep.subr.mxu0 0.0
    %5521 = vmatpush2.msra.mxu0 0.0
    %5522 = vmatprep.subr.mxu0 0.0
    %5523 = vmatpush2.msra.mxu0 0.0
    %5524 = vmatprep.subr.mxu0 0.0
    %5525 = vmatpush2.msra.mxu0 0.0
    %5526 = vmatprep.subr.mxu0 0.0
    %5527 = vmatpush2.msra.mxu0 0.0
    %5528 = vmatprep.subr.mxu0 0.0
    %5529 = vmatpush2.msra.mxu0 0.0
    %5530 = vmatprep.subr.mxu0 0.0
    %5531 = vmatpush2.msra.mxu0 0.0
    %5532 = vmatprep.subr.mxu0 0.0
    %5533 = vmatpush2.msra.mxu0 0.0
    %5534 = vmatprep.subr.mxu0 0.0
    %5535 = vmatpush2.msra.mxu0 0.0
    %5536 = vmatprep.subr.mxu0 0.0
    %5537 = vmatpush2.msra.mxu0 0.0
    %5538 = vmatprep.mubr.f32.mxu0 0.0
    %5539 = vmatmul.mubr.f32.gmra.mxu0 %v5472
    %v5540 = vpop.f32.mrf.mxu0
    %v5541 = vadd.f32 0.0, %v5540
    %v5542 = vpop.f32.mrf.mxu0
    %5543 = vdwg.mxu0
    %v5544 = vadd.f32 %v4704, %v5541
    %v5545 = vtanh.pop %v5544
    %v5546 = vxor.u32 %v5544, 2147483648
    %v5547 = vmul.f32 %v5546, 1.442695
    %v5548 = vpow.pop %v5547
    %v5549 = vadd.f32 %v5548, 1.0
    %v5550 = vrcp.pop %v5549
    %v5551 = vmul.f32 1.0, %v5550
    %v5552 = vsel %vm3729, %v5545, %v5551
    %v5554 = vrot.slane %v5461, 1
    %v5556 = vmul.f32 %v5552, %v5554
    %5558 = vrot.lane.b32.xlu0 %v5552, 68
    %v5559 = vpop.permute.xlu0 %5558
    %v5561 = vmul.f32 %v5552, %v5559
    %5563 = vrot.lane.b32.xlu0 %v5561, 30
    %v5564 = vpop.permute.xlu0 %5563
    %v5566 = vadd.f32 %v5556, %v5564
    %v5567 = vtanh.pop %v5566
    %5569 = vrot.lane.b32.xlu0 %v5567, 60
    %v5570 = vpop.permute.xlu0 %5569
    %v5572 = vmul.f32 %v5552, %v5570
    %v5574 = vrot.slane %v4927, 5
    %v5576 = vrot.slane %v5035, 3
    %v5578 = vrot.slane %v5143, 1
    %v5580 = vrot.slane %v5251, 7
    %v5582 = vrot.slane %v5359, 5
    %v5584 = vrot.slane %v5467, 3
    %v5587 = vrot.slane %v5572, 1
    %v5589 = vsel %vm4597, %v4821, %v5574
    %v5590 = vsel %vm85, %v5589, %v5576
    %v5591 = vsel %vm4600, %v5590, %v5578
    %v5592 = vsel %vm4602, %v5591, %v5580
    %v5593 = vsel %vm4604, %v5592, %v5582
    %v5594 = vsel %vm3734, %v5593, %v5584
    %v5595 = vsel %vm4607, %v5594, %v5587
    %5597 = vrot.lane.b32.xlu0 %v4608, 38
    %v5598 = vpop.permute.xlu0 %5597
    %5601 = vrot.lane.b32.xlu0 %v5595, 68
    %v5602 = vpop.permute.xlu0 %5601
    %v5604 = vsel %vm3730, %v5598, %v5602
    %v5605 = vld [vmem:[%s9] sm:$0xff]
    %v5606 = vld [vmem:[%s9 + $0x8] sm:$0xff]
    %v5607 = vld [vmem:[%s9 + $0x10] sm:$0xff]
    %v5608 = vld [vmem:[%s9 + $0x18] sm:$0xff]
    %v5609 = vld [vmem:[%s9 + $0x20] sm:$0xff]
    %v5610 = vld [vmem:[%s9 + $0x28] sm:$0xff]
    %v5611 = vld [vmem:[%s9 + $0x30] sm:$0xff]
    %v5612 = vld [vmem:[%s9 + $0x38] sm:$0xff]
    %v5613 = vld [vmem:[%s9 + $0x40] sm:$0xff]
    %v5614 = vld [vmem:[%s9 + $0x48] sm:$0xff]
    %v5615 = vld [vmem:[%s9 + $0x50] sm:$0xff]
    %v5616 = vld [vmem:[%s9 + $0x58] sm:$0xff]
    %v5617 = vld [vmem:[%s9 + $0x60] sm:$0xff]
    %v5618 = vld [vmem:[%s9 + $0x68] sm:$0xff]
    %v5619 = vld [vmem:[%s9 + $0x70] sm:$0xf]
    %v5620 = vld [vmem:[%s9 + $0x78] sm:$0xf]
    %v5621 = vld [vmem:[%s10] sm:$0xff]
    %v5622 = vld [vmem:[%s10 + $0x8] sm:$0xff]
    %v5623 = vld [vmem:[%s10 + $0x10] sm:$0xff]
    %v5624 = vld [vmem:[%s10 + $0x18] sm:$0xff]
    %v5625 = vld [vmem:[%s10 + $0x20] sm:$0xff]
    %v5626 = vld [vmem:[%s10 + $0x28] sm:$0xff]
    %v5627 = vld [vmem:[%s10 + $0x30] sm:$0xff]
    %v5628 = vld [vmem:[%s10 + $0x38] sm:$0xff]
    %v5629 = vld [vmem:[%s10 + $0x40] sm:$0xff]
    %v5630 = vld [vmem:[%s10 + $0x48] sm:$0xff]
    %v5631 = vld [vmem:[%s10 + $0x50] sm:$0xff]
    %v5632 = vld [vmem:[%s10 + $0x58] sm:$0xff]
    %v5633 = vld [vmem:[%s10 + $0x60] sm:$0x3]
    %v5634 = vld [vmem:[%s10 + $0x68] sm:$0x3]
    %v5635 = vld [vmem:[%s11] sm:$0x3]
    %v5636 = vld [vmem:[%s12] sm:$0x1]
    %v5637 = vld [vmem:[%s13] sm:$0x1]
    %v5639 = vlaneseq
    %v5640 = vshrl.u32 %v5639, 7
    %v5641 = vsub.s32 0, %v5640
    %v5642 = vrot.slane %v5635, %v5641
    %v5643 = vlaneseq
    %v5644 = vshrl.u32 %v5643, 7
    %v5645 = vsub.s32 1, %v5644
    %v5646 = vrot.slane %v5635, %v5645
    %vm5649 = vcmask 490496
    %v5651 = vsel %vm5649, %v5604, 0
    %v5654 = vsel %vm4602, %v5619, 0
    %v5657 = vsel %vm4602, %v5620, 0
    %5659 = vmatprep.subr.mxu0 0.0
    %5660 = vmatpush1.msra.mxu0 0.0
    %5661 = vmatprep.subr.mxu0 0.0
    %5662 = vmatpush1.msra.mxu0 0.0
    %5663 = vmatprep.subr.mxu0 0.0
    %5664 = vmatpush1.msra.mxu0 0.0
    %5665 = vmatprep.subr.mxu0 0.0
    %5666 = vmatpush1.msra.mxu0 0.0
    %5667 = vmatprep.subr.mxu0 0.0
    %5668 = vmatpush1.msra.mxu0 0.0
    %5669 = vmatprep.subr.mxu0 0.0
    %5670 = vmatpush1.msra.mxu0 0.0
    %5671 = vmatprep.subr.mxu0 0.0
    %5672 = vmatpush1.msra.mxu0 0.0
    %5673 = vmatprep.subr.mxu0 0.0
    %5674 = vmatpush1.msra.mxu0 0.0
    %5675 = vmatprep.subr.mxu0 %v5657
    %5676 = vmatpush1.msra.mxu0 %v5654
    %5677 = vmatprep.subr.mxu0 %v5618
    %5678 = vmatpush1.msra.mxu0 %v5617
    %5679 = vmatprep.subr.mxu0 %v5616
    %5680 = vmatpush1.msra.mxu0 %v5615
    %5681 = vmatprep.subr.mxu0 %v5614
    %5682 = vmatpush1.msra.mxu0 %v5613
    %5683 = vmatprep.subr.mxu0 %v5612
    %5684 = vmatpush1.msra.mxu0 %v5611
    %5685 = vmatprep.subr.mxu0 %v5610
    %5686 = vmatpush1.msra.mxu0 %v5609
    %5687 = vmatprep.subr.mxu0 %v5608
    %5688 = vmatpush1.msra.mxu0 %v5607
    %5689 = vmatprep.subr.mxu0 %v5606
    %5690 = vmatpush1.msra.mxu0 %v5605
    %5691 = vmatprep.subr.mxu0 0.0
    %5692 = vmatpush2.msra.mxu0 0.0
    %5693 = vmatprep.subr.mxu0 0.0
    %5694 = vmatpush2.msra.mxu0 0.0
    %5695 = vmatprep.subr.mxu0 0.0
    %5696 = vmatpush2.msra.mxu0 0.0
    %5697 = vmatprep.subr.mxu0 0.0
    %5698 = vmatpush2.msra.mxu0 0.0
    %5699 = vmatprep.subr.mxu0 0.0
    %5700 = vmatpush2.msra.mxu0 0.0
    %5701 = vmatprep.subr.mxu0 0.0
    %5702 = vmatpush2.msra.mxu0 0.0
    %5703 = vmatprep.subr.mxu0 0.0
    %5704 = vmatpush2.msra.mxu0 0.0
    %5705 = vmatprep.subr.mxu0 0.0
    %5706 = vmatpush2.msra.mxu0 0.0
    %5707 = vmatprep.subr.mxu0 0.0
    %5708 = vmatpush2.msra.mxu0 0.0
    %5709 = vmatprep.subr.mxu0 0.0
    %5710 = vmatpush2.msra.mxu0 0.0
    %5711 = vmatprep.subr.mxu0 0.0
    %5712 = vmatpush2.msra.mxu0 0.0
    %5713 = vmatprep.subr.mxu0 0.0
    %5714 = vmatpush2.msra.mxu0 0.0
    %5715 = vmatprep.subr.mxu0 0.0
    %5716 = vmatpush2.msra.mxu0 0.0
    %5717 = vmatprep.subr.mxu0 0.0
    %5718 = vmatpush2.msra.mxu0 0.0
    %5719 = vmatprep.subr.mxu0 0.0
    %5720 = vmatpush2.msra.mxu0 0.0
    %5721 = vmatprep.subr.mxu0 0.0
    %5722 = vmatpush2.msra.mxu0 0.0
    %5723 = vmatprep.mubr.f32.mxu0 0.0
    %5724 = vmatmul.mubr.f32.gmra.mxu0 %v5651
    %v5725 = vpop.f32.mrf.mxu0
    %v5726 = vadd.f32 %v5642, %v5725
    %v5727 = vpop.f32.mrf.mxu0
    %v5728 = vadd.f32 %v5646, %v5727
    %5729 = vdwg.mxu0
    %v5731 = vsel %vm81, %v5636, 0
    %v5734 = vsel %vm85, %v5633, 0
    %v5737 = vsel %vm85, %v5634, 0
    %5739 = vmatprep.subr.mxu0 0.0
    %5740 = vmatpush1.msra.mxu0 0.0
    %5741 = vmatprep.subr.mxu0 0.0
    %5742 = vmatpush1.msra.mxu0 0.0
    %5743 = vmatprep.subr.mxu0 0.0
    %5744 = vmatpush1.msra.mxu0 0.0
    %5745 = vmatprep.subr.mxu0 0.0
    %5746 = vmatpush1.msra.mxu0 0.0
    %5747 = vmatprep.subr.mxu0 0.0
    %5748 = vmatpush1.msra.mxu0 0.0
    %5749 = vmatprep.subr.mxu0 0.0
    %5750 = vmatpush1.msra.mxu0 0.0
    %5751 = vmatprep.subr.mxu0 0.0
    %5752 = vmatpush1.msra.mxu0 0.0
    %5753 = vmatprep.subr.mxu0 0.0
    %5754 = vmatpush1.msra.mxu0 0.0
    %5755 = vmatprep.subr.mxu0 0.0
    %5756 = vmatpush1.msra.mxu0 0.0
    %5757 = vmatprep.subr.mxu0 %v5737
    %5758 = vmatpush1.msra.mxu0 %v5734
    %5759 = vmatprep.subr.mxu0 %v5632
    %5760 = vmatpush1.msra.mxu0 %v5631
    %5761 = vmatprep.subr.mxu0 %v5630
    %5762 = vmatpush1.msra.mxu0 %v5629
    %5763 = vmatprep.subr.mxu0 %v5628
    %5764 = vmatpush1.msra.mxu0 %v5627
    %5765 = vmatprep.subr.mxu0 %v5626
    %5766 = vmatpush1.msra.mxu0 %v5625
    %5767 = vmatprep.subr.mxu0 %v5624
    %5768 = vmatpush1.msra.mxu0 %v5623
    %5769 = vmatprep.subr.mxu0 %v5622
    %5770 = vmatpush1.msra.mxu0 %v5621
    %5771 = vmatprep.subr.mxu0 0.0
    %5772 = vmatpush2.msra.mxu0 0.0
    %5773 = vmatprep.subr.mxu0 0.0
    %5774 = vmatpush2.msra.mxu0 0.0
    %5775 = vmatprep.subr.mxu0 0.0
    %5776 = vmatpush2.msra.mxu0 0.0
    %5777 = vmatprep.subr.mxu0 0.0
    %5778 = vmatpush2.msra.mxu0 0.0
    %5779 = vmatprep.subr.mxu0 0.0
    %5780 = vmatpush2.msra.mxu0 0.0
    %5781 = vmatprep.subr.mxu0 0.0
    %5782 = vmatpush2.msra.mxu0 0.0
    %5783 = vmatprep.subr.mxu0 0.0
    %5784 = vmatpush2.msra.mxu0 0.0
    %5785 = vmatprep.subr.mxu0 0.0
    %5786 = vmatpush2.msra.mxu0 0.0
    %5787 = vmatprep.subr.mxu0 0.0
    %5788 = vmatpush2.msra.mxu0 0.0
    %5789 = vmatprep.subr.mxu0 0.0
    %5790 = vmatpush2.msra.mxu0 0.0
    %5791 = vmatprep.subr.mxu0 0.0
    %5792 = vmatpush2.msra.mxu0 0.0
    %5793 = vmatprep.subr.mxu0 0.0
    %5794 = vmatpush2.msra.mxu0 0.0
    %5795 = vmatprep.subr.mxu0 0.0
    %5796 = vmatpush2.msra.mxu0 0.0
    %5797 = vmatprep.subr.mxu0 0.0
    %5798 = vmatpush2.msra.mxu0 0.0
    %5799 = vmatprep.subr.mxu0 0.0
    %5800 = vmatpush2.msra.mxu0 0.0
    %5801 = vmatprep.subr.mxu0 0.0
    %5802 = vmatpush2.msra.mxu0 0.0
    %5803 = vmatprep.mubr.f32.mxu0 0.0
    %5804 = vmatmul.mubr.f32.gmra.mxu0 %v5731
    %v5805 = vpop.f32.mrf.mxu0
    %v5806 = vadd.f32 0.0, %v5805
    %v5807 = vpop.f32.mrf.mxu0
    %v5808 = vadd.f32 0.0, %v5807
    %5809 = vdwg.mxu0
    %v5810 = vadd.f32 %v5726, %v5806
    %v5811 = vadd.f32 %v5728, %v5808
    %v5812 = vtanh.pop %v5810
    %v5813 = vtanh.pop %v5811
    %v5814 = vxor.u32 %v5810, 2147483648
    %v5815 = vxor.u32 %v5811, 2147483648
    %v5816 = vmul.f32 %v5814, 1.442695
    %v5817 = vpow.pop %v5816
    %v5818 = vmul.f32 %v5815, 1.442695
    %v5819 = vpow.pop %v5818
    %v5820 = vadd.f32 %v5817, 1.0
    %v5821 = vadd.f32 %v5819, 1.0
    %v5822 = vrcp.pop %v5820
    %v5823 = vmul.f32 1.0, %v5822
    %v5824 = vrcp.pop %v5821
    %v5825 = vmul.f32 1.0, %v5824
    %v5826 = vsel %vm77, %v5812, %v5823
    %v5827 = vsel %vm78, %v5813, %v5825
    %v5829 = vlaneseq
    %v5830 = vshrl.u32 %v5829, 7
    %v5831 = vsub.s32 0, %v5830
    %v5832 = vrot.slane %v5637, %v5831
    %5833 = vrot.lane.b32.xlu0 %v5832, 50
    %v5834 = vpop.permute.xlu0 %5833
    %v5836 = vmul.f32 %v5826, %v5834
    %5839 = vrot.lane.b32.xlu0 %v5826, 28
    %v5840 = vpop.permute.xlu0 %5839
    %5841 = vrot.lane.b32.xlu0 %v5827, 28
    %v5842 = vpop.permute.xlu0 %5841
    %v5843 = vsel %vm192, %v5840, %v5842
    %v5845 = vmul.f32 %v5826, %v5843
    %5847 = vrot.lane.b32.xlu0 %v5845, 50
    %v5848 = vpop.permute.xlu0 %5847
    %v5850 = vadd.f32 %v5836, %v5848
    %v5851 = vtanh.pop %v5850
    %5853 = vrot.lane.b32.xlu0 %v5851, 100
    %v5854 = vpop.permute.xlu0 %5853
    %v5856 = vmul.f32 %v5827, %v5854
    %5858 = vrot.lane.b32.xlu0 %v5856, 106
    %v5859 = vpop.permute.xlu0 %5858
    %v5860 = vsel %vm81, %v5859, 0
    %5862 = vmatprep.subr.mxu0 0.0
    %5863 = vmatpush1.msra.mxu0 0.0
    %5864 = vmatprep.subr.mxu0 0.0
    %5865 = vmatpush1.msra.mxu0 0.0
    %5866 = vmatprep.subr.mxu0 0.0
    %5867 = vmatpush1.msra.mxu0 0.0
    %5868 = vmatprep.subr.mxu0 0.0
    %5869 = vmatpush1.msra.mxu0 0.0
    %5870 = vmatprep.subr.mxu0 0.0
    %5871 = vmatpush1.msra.mxu0 0.0
    %5872 = vmatprep.subr.mxu0 0.0
    %5873 = vmatpush1.msra.mxu0 0.0
    %5874 = vmatprep.subr.mxu0 0.0
    %5875 = vmatpush1.msra.mxu0 0.0
    %5876 = vmatprep.subr.mxu0 0.0
    %5877 = vmatpush1.msra.mxu0 0.0
    %5878 = vmatprep.subr.mxu0 0.0
    %5879 = vmatpush1.msra.mxu0 0.0
    %5880 = vmatprep.subr.mxu0 %v5737
    %5881 = vmatpush1.msra.mxu0 %v5734
    %5882 = vmatprep.subr.mxu0 %v5632
    %5883 = vmatpush1.msra.mxu0 %v5631
    %5884 = vmatprep.subr.mxu0 %v5630
    %5885 = vmatpush1.msra.mxu0 %v5629
    %5886 = vmatprep.subr.mxu0 %v5628
    %5887 = vmatpush1.msra.mxu0 %v5627
    %5888 = vmatprep.subr.mxu0 %v5626
    %5889 = vmatpush1.msra.mxu0 %v5625
    %5890 = vmatprep.subr.mxu0 %v5624
    %5891 = vmatpush1.msra.mxu0 %v5623
    %5892 = vmatprep.subr.mxu0 %v5622
    %5893 = vmatpush1.msra.mxu0 %v5621
    %5894 = vmatprep.subr.mxu0 0.0
    %5895 = vmatpush2.msra.mxu0 0.0
    %5896 = vmatprep.subr.mxu0 0.0
    %5897 = vmatpush2.msra.mxu0 0.0
    %5898 = vmatprep.subr.mxu0 0.0
    %5899 = vmatpush2.msra.mxu0 0.0
    %5900 = vmatprep.subr.mxu0 0.0
    %5901 = vmatpush2.msra.mxu0 0.0
    %5902 = vmatprep.subr.mxu0 0.0
    %5903 = vmatpush2.msra.mxu0 0.0
    %5904 = vmatprep.subr.mxu0 0.0
    %5905 = vmatpush2.msra.mxu0 0.0
    %5906 = vmatprep.subr.mxu0 0.0
    %5907 = vmatpush2.msra.mxu0 0.0
    %5908 = vmatprep.subr.mxu0 0.0
    %5909 = vmatpush2.msra.mxu0 0.0
    %5910 = vmatprep.subr.mxu0 0.0
    %5911 = vmatpush2.msra.mxu0 0.0
    %5912 = vmatprep.subr.mxu0 0.0
    %5913 = vmatpush2.msra.mxu0 0.0
    %5914 = vmatprep.subr.mxu0 0.0
    %5915 = vmatpush2.msra.mxu0 0.0
    %5916 = vmatprep.subr.mxu0 0.0
    %5917 = vmatpush2.msra.mxu0 0.0
    %5918 = vmatprep.subr.mxu0 0.0
    %5919 = vmatpush2.msra.mxu0 0.0
    %5920 = vmatprep.subr.mxu0 0.0
    %5921 = vmatpush2.msra.mxu0 0.0
    %5922 = vmatprep.subr.mxu0 0.0
    %5923 = vmatpush2.msra.mxu0 0.0
    %5924 = vmatprep.subr.mxu0 0.0
    %5925 = vmatpush2.msra.mxu0 0.0
    %5926 = vmatprep.mubr.f32.mxu0 0.0
    %5927 = vmatmul.mubr.f32.gmra.mxu0 %v5860
    %v5928 = vpop.f32.mrf.mxu0
    %v5929 = vadd.f32 0.0, %v5928
    %v5930 = vpop.f32.mrf.mxu0
    %v5931 = vadd.f32 0.0, %v5930
    %5932 = vdwg.mxu0
    %v5935 = vrot.slane %v5929, 7
    %v5936 = vrot.slane %v5931, 7
    %v5939 = vadd.f32 %v5726, %v5935
    %v5940 = vadd.f32 %v5728, %v5936
    %v5941 = vtanh.pop %v5939
    %v5942 = vtanh.pop %v5940
    %v5943 = vxor.u32 %v5939, 2147483648
    %v5944 = vxor.u32 %v5940, 2147483648
    %v5945 = vmul.f32 %v5943, 1.442695
    %v5946 = vpow.pop %v5945
    %v5947 = vmul.f32 %v5944, 1.442695
    %v5948 = vpow.pop %v5947
    %v5949 = vadd.f32 %v5946, 1.0
    %v5950 = vadd.f32 %v5948, 1.0
    %v5951 = vrcp.pop %v5949
    %v5952 = vmul.f32 1.0, %v5951
    %v5953 = vrcp.pop %v5950
    %v5954 = vmul.f32 1.0, %v5953
    %v5955 = vsel %vm77, %v5941, %v5952
    %v5956 = vsel %vm78, %v5942, %v5954
    %v5958 = vrot.slane %v5850, 7
    %v5960 = vmul.f32 %v5955, %v5958
    %5963 = vrot.lane.b32.xlu0 %v5955, 28
    %v5964 = vpop.permute.xlu0 %5963
    %5965 = vrot.lane.b32.xlu0 %v5956, 28
    %v5966 = vpop.permute.xlu0 %5965
    %v5967 = vsel %vm192, %v5964, %v5966
    %v5969 = vmul.f32 %v5955, %v5967
    %5971 = vrot.lane.b32.xlu0 %v5969, 50
    %v5972 = vpop.permute.xlu0 %5971
    %v5974 = vadd.f32 %v5960, %v5972
    %v5975 = vtanh.pop %v5974
    %5977 = vrot.lane.b32.xlu0 %v5975, 100
    %v5978 = vpop.permute.xlu0 %5977
    %v5980 = vmul.f32 %v5956, %v5978
    %v5982 = vrot.slane %v5980, 1
    %5983 = vrot.lane.b32.xlu0 %v5982, 106
    %v5984 = vpop.permute.xlu0 %5983
    %v5985 = vsel %vm81, %v5984, 0
    %5987 = vmatprep.subr.mxu0 0.0
    %5988 = vmatpush1.msra.mxu0 0.0
    %5989 = vmatprep.subr.mxu0 0.0
    %5990 = vmatpush1.msra.mxu0 0.0
    %5991 = vmatprep.subr.mxu0 0.0
    %5992 = vmatpush1.msra.mxu0 0.0
    %5993 = vmatprep.subr.mxu0 0.0
    %5994 = vmatpush1.msra.mxu0 0.0
    %5995 = vmatprep.subr.mxu0 0.0
    %5996 = vmatpush1.msra.mxu0 0.0
    %5997 = vmatprep.subr.mxu0 0.0
    %5998 = vmatpush1.msra.mxu0 0.0
    %5999 = vmatprep.subr.mxu0 0.0
    %6000 = vmatpush1.msra.mxu0 0.0
    %6001 = vmatprep.subr.mxu0 0.0
    %6002 = vmatpush1.msra.mxu0 0.0
    %6003 = vmatprep.subr.mxu0 0.0
    %6004 = vmatpush1.msra.mxu0 0.0
    %6005 = vmatprep.subr.mxu0 %v5737
    %6006 = vmatpush1.msra.mxu0 %v5734
    %6007 = vmatprep.subr.mxu0 %v5632
    %6008 = vmatpush1.msra.mxu0 %v5631
    %6009 = vmatprep.subr.mxu0 %v5630
    %6010 = vmatpush1.msra.mxu0 %v5629
    %6011 = vmatprep.subr.mxu0 %v5628
    %6012 = vmatpush1.msra.mxu0 %v5627
    %6013 = vmatprep.subr.mxu0 %v5626
    %6014 = vmatpush1.msra.mxu0 %v5625
    %6015 = vmatprep.subr.mxu0 %v5624
    %6016 = vmatpush1.msra.mxu0 %v5623
    %6017 = vmatprep.subr.mxu0 %v5622
    %6018 = vmatpush1.msra.mxu0 %v5621
    %6019 = vmatprep.subr.mxu0 0.0
    %6020 = vmatpush2.msra.mxu0 0.0
    %6021 = vmatprep.subr.mxu0 0.0
    %6022 = vmatpush2.msra.mxu0 0.0
    %6023 = vmatprep.subr.mxu0 0.0
    %6024 = vmatpush2.msra.mxu0 0.0
    %6025 = vmatprep.subr.mxu0 0.0
    %6026 = vmatpush2.msra.mxu0 0.0
    %6027 = vmatprep.subr.mxu0 0.0
    %6028 = vmatpush2.msra.mxu0 0.0
    %6029 = vmatprep.subr.mxu0 0.0
    %6030 = vmatpush2.msra.mxu0 0.0
    %6031 = vmatprep.subr.mxu0 0.0
    %6032 = vmatpush2.msra.mxu0 0.0
    %6033 = vmatprep.subr.mxu0 0.0
    %6034 = vmatpush2.msra.mxu0 0.0
    %6035 = vmatprep.subr.mxu0 0.0
    %6036 = vmatpush2.msra.mxu0 0.0
    %6037 = vmatprep.subr.mxu0 0.0
    %6038 = vmatpush2.msra.mxu0 0.0
    %6039 = vmatprep.subr.mxu0 0.0
    %6040 = vmatpush2.msra.mxu0 0.0
    %6041 = vmatprep.subr.mxu0 0.0
    %6042 = vmatpush2.msra.mxu0 0.0
    %6043 = vmatprep.subr.mxu0 0.0
    %6044 = vmatpush2.msra.mxu0 0.0
    %6045 = vmatprep.subr.mxu0 0.0
    %6046 = vmatpush2.msra.mxu0 0.0
    %6047 = vmatprep.subr.mxu0 0.0
    %6048 = vmatpush2.msra.mxu0 0.0
    %6049 = vmatprep.subr.mxu0 0.0
    %6050 = vmatpush2.msra.mxu0 0.0
    %6051 = vmatprep.mubr.f32.mxu0 0.0
    %6052 = vmatmul.mubr.f32.gmra.mxu0 %v5985
    %v6053 = vpop.f32.mrf.mxu0
    %v6054 = vadd.f32 0.0, %v6053
    %v6055 = vpop.f32.mrf.mxu0
    %v6056 = vadd.f32 0.0, %v6055
    %6057 = vdwg.mxu0
    %v6060 = vrot.slane %v6054, 6
    %v6061 = vrot.slane %v6056, 6
    %v6064 = vadd.f32 %v5726, %v6060
    %v6065 = vadd.f32 %v5728, %v6061
    %v6066 = vtanh.pop %v6064
    %v6067 = vtanh.pop %v6065
    %v6068 = vxor.u32 %v6064, 2147483648
    %v6069 = vxor.u32 %v6065, 2147483648
    %v6070 = vmul.f32 %v6068, 1.442695
    %v6071 = vpow.pop %v6070
    %v6072 = vmul.f32 %v6069, 1.442695
    %v6073 = vpow.pop %v6072
    %v6074 = vadd.f32 %v6071, 1.0
    %v6075 = vadd.f32 %v6073, 1.0
    %v6076 = vrcp.pop %v6074
    %v6077 = vmul.f32 1.0, %v6076
    %v6078 = vrcp.pop %v6075
    %v6079 = vmul.f32 1.0, %v6078
    %v6080 = vsel %vm77, %v6066, %v6077
    %v6081 = vsel %vm78, %v6067, %v6079
    %v6083 = vrot.slane %v5974, 7
    %v6085 = vmul.f32 %v6080, %v6083
    %6088 = vrot.lane.b32.xlu0 %v6080, 28
    %v6089 = vpop.permute.xlu0 %6088
    %6090 = vrot.lane.b32.xlu0 %v6081, 28
    %v6091 = vpop.permute.xlu0 %6090
    %v6092 = vsel %vm192, %v6089, %v6091
    %v6094 = vmul.f32 %v6080, %v6092
    %6096 = vrot.lane.b32.xlu0 %v6094, 50
    %v6097 = vpop.permute.xlu0 %6096
    %v6099 = vadd.f32 %v6085, %v6097
    %v6100 = vtanh.pop %v6099
    %6102 = vrot.lane.b32.xlu0 %v6100, 100
    %v6103 = vpop.permute.xlu0 %6102
    %v6105 = vmul.f32 %v6081, %v6103
    %v6107 = vrot.slane %v6105, 2
    %6108 = vrot.lane.b32.xlu0 %v6107, 106
    %v6109 = vpop.permute.xlu0 %6108
    %v6110 = vsel %vm81, %v6109, 0
    %6112 = vmatprep.subr.mxu0 0.0
    %6113 = vmatpush1.msra.mxu0 0.0
    %6114 = vmatprep.subr.mxu0 0.0
    %6115 = vmatpush1.msra.mxu0 0.0
    %6116 = vmatprep.subr.mxu0 0.0
    %6117 = vmatpush1.msra.mxu0 0.0
    %6118 = vmatprep.subr.mxu0 0.0
    %6119 = vmatpush1.msra.mxu0 0.0
    %6120 = vmatprep.subr.mxu0 0.0
    %6121 = vmatpush1.msra.mxu0 0.0
    %6122 = vmatprep.subr.mxu0 0.0
    %6123 = vmatpush1.msra.mxu0 0.0
    %6124 = vmatprep.subr.mxu0 0.0
    %6125 = vmatpush1.msra.mxu0 0.0
    %6126 = vmatprep.subr.mxu0 0.0
    %6127 = vmatpush1.msra.mxu0 0.0
    %6128 = vmatprep.subr.mxu0 0.0
    %6129 = vmatpush1.msra.mxu0 0.0
    %6130 = vmatprep.subr.mxu0 %v5737
    %6131 = vmatpush1.msra.mxu0 %v5734
    %6132 = vmatprep.subr.mxu0 %v5632
    %6133 = vmatpush1.msra.mxu0 %v5631
    %6134 = vmatprep.subr.mxu0 %v5630
    %6135 = vmatpush1.msra.mxu0 %v5629
    %6136 = vmatprep.subr.mxu0 %v5628
    %6137 = vmatpush1.msra.mxu0 %v5627
    %6138 = vmatprep.subr.mxu0 %v5626
    %6139 = vmatpush1.msra.mxu0 %v5625
    %6140 = vmatprep.subr.mxu0 %v5624
    %6141 = vmatpush1.msra.mxu0 %v5623
    %6142 = vmatprep.subr.mxu0 %v5622
    %6143 = vmatpush1.msra.mxu0 %v5621
    %6144 = vmatprep.subr.mxu0 0.0
    %6145 = vmatpush2.msra.mxu0 0.0
    %6146 = vmatprep.subr.mxu0 0.0
    %6147 = vmatpush2.msra.mxu0 0.0
    %6148 = vmatprep.subr.mxu0 0.0
    %6149 = vmatpush2.msra.mxu0 0.0
    %6150 = vmatprep.subr.mxu0 0.0
    %6151 = vmatpush2.msra.mxu0 0.0
    %6152 = vmatprep.subr.mxu0 0.0
    %6153 = vmatpush2.msra.mxu0 0.0
    %6154 = vmatprep.subr.mxu0 0.0
    %6155 = vmatpush2.msra.mxu0 0.0
    %6156 = vmatprep.subr.mxu0 0.0
    %6157 = vmatpush2.msra.mxu0 0.0
    %6158 = vmatprep.subr.mxu0 0.0
    %6159 = vmatpush2.msra.mxu0 0.0
    %6160 = vmatprep.subr.mxu0 0.0
    %6161 = vmatpush2.msra.mxu0 0.0
    %6162 = vmatprep.subr.mxu0 0.0
    %6163 = vmatpush2.msra.mxu0 0.0
    %6164 = vmatprep.subr.mxu0 0.0
    %6165 = vmatpush2.msra.mxu0 0.0
    %6166 = vmatprep.subr.mxu0 0.0
    %6167 = vmatpush2.msra.mxu0 0.0
    %6168 = vmatprep.subr.mxu0 0.0
    %6169 = vmatpush2.msra.mxu0 0.0
    %6170 = vmatprep.subr.mxu0 0.0
    %6171 = vmatpush2.msra.mxu0 0.0
    %6172 = vmatprep.subr.mxu0 0.0
    %6173 = vmatpush2.msra.mxu0 0.0
    %6174 = vmatprep.subr.mxu0 0.0
    %6175 = vmatpush2.msra.mxu0 0.0
    %6176 = vmatprep.mubr.f32.mxu0 0.0
    %6177 = vmatmul.mubr.f32.gmra.mxu0 %v6110
    %v6178 = vpop.f32.mrf.mxu0
    %v6179 = vadd.f32 0.0, %v6178
    %v6180 = vpop.f32.mrf.mxu0
    %v6181 = vadd.f32 0.0, %v6180
    %6182 = vdwg.mxu0
    %v6185 = vrot.slane %v6179, 5
    %v6186 = vrot.slane %v6181, 5
    %v6189 = vadd.f32 %v5726, %v6185
    %v6190 = vadd.f32 %v5728, %v6186
    %v6191 = vtanh.pop %v6189
    %v6192 = vtanh.pop %v6190
    %v6193 = vxor.u32 %v6189, 2147483648
    %v6194 = vxor.u32 %v6190, 2147483648
    %v6195 = vmul.f32 %v6193, 1.442695
    %v6196 = vpow.pop %v6195
    %v6197 = vmul.f32 %v6194, 1.442695
    %v6198 = vpow.pop %v6197
    %v6199 = vadd.f32 %v6196, 1.0
    %v6200 = vadd.f32 %v6198, 1.0
    %v6201 = vrcp.pop %v6199
    %v6202 = vmul.f32 1.0, %v6201
    %v6203 = vrcp.pop %v6200
    %v6204 = vmul.f32 1.0, %v6203
    %v6205 = vsel %vm77, %v6191, %v6202
    %v6206 = vsel %vm78, %v6192, %v6204
    %v6208 = vrot.slane %v6099, 7
    %v6210 = vmul.f32 %v6205, %v6208
    %6213 = vrot.lane.b32.xlu0 %v6205, 28
    %v6214 = vpop.permute.xlu0 %6213
    %6215 = vrot.lane.b32.xlu0 %v6206, 28
    %v6216 = vpop.permute.xlu0 %6215
    %v6217 = vsel %vm192, %v6214, %v6216
    %v6219 = vmul.f32 %v6205, %v6217
    %6221 = vrot.lane.b32.xlu0 %v6219, 50
    %v6222 = vpop.permute.xlu0 %6221
    %v6224 = vadd.f32 %v6210, %v6222
    %v6225 = vtanh.pop %v6224
    %6227 = vrot.lane.b32.xlu0 %v6225, 100
    %v6228 = vpop.permute.xlu0 %6227
    %v6230 = vmul.f32 %v6206, %v6228
    %v6232 = vrot.slane %v6230, 3
    %6233 = vrot.lane.b32.xlu0 %v6232, 106
    %v6234 = vpop.permute.xlu0 %6233
    %v6235 = vsel %vm81, %v6234, 0
    %6237 = vmatprep.subr.mxu0 0.0
    %6238 = vmatpush1.msra.mxu0 0.0
    %6239 = vmatprep.subr.mxu0 0.0
    %6240 = vmatpush1.msra.mxu0 0.0
    %6241 = vmatprep.subr.mxu0 0.0
    %6242 = vmatpush1.msra.mxu0 0.0
    %6243 = vmatprep.subr.mxu0 0.0
    %6244 = vmatpush1.msra.mxu0 0.0
    %6245 = vmatprep.subr.mxu0 0.0
    %6246 = vmatpush1.msra.mxu0 0.0
    %6247 = vmatprep.subr.mxu0 0.0
    %6248 = vmatpush1.msra.mxu0 0.0
    %6249 = vmatprep.subr.mxu0 0.0
    %6250 = vmatpush1.msra.mxu0 0.0
    %6251 = vmatprep.subr.mxu0 0.0
    %6252 = vmatpush1.msra.mxu0 0.0
    %6253 = vmatprep.subr.mxu0 0.0
    %6254 = vmatpush1.msra.mxu0 0.0
    %6255 = vmatprep.subr.mxu0 %v5737
    %6256 = vmatpush1.msra.mxu0 %v5734
    %6257 = vmatprep.subr.mxu0 %v5632
    %6258 = vmatpush1.msra.mxu0 %v5631
    %6259 = vmatprep.subr.mxu0 %v5630
    %6260 = vmatpush1.msra.mxu0 %v5629
    %6261 = vmatprep.subr.mxu0 %v5628
    %6262 = vmatpush1.msra.mxu0 %v5627
    %6263 = vmatprep.subr.mxu0 %v5626
    %6264 = vmatpush1.msra.mxu0 %v5625
    %6265 = vmatprep.subr.mxu0 %v5624
    %6266 = vmatpush1.msra.mxu0 %v5623
    %6267 = vmatprep.subr.mxu0 %v5622
    %6268 = vmatpush1.msra.mxu0 %v5621
    %6269 = vmatprep.subr.mxu0 0.0
    %6270 = vmatpush2.msra.mxu0 0.0
    %6271 = vmatprep.subr.mxu0 0.0
    %6272 = vmatpush2.msra.mxu0 0.0
    %6273 = vmatprep.subr.mxu0 0.0
    %6274 = vmatpush2.msra.mxu0 0.0
    %6275 = vmatprep.subr.mxu0 0.0
    %6276 = vmatpush2.msra.mxu0 0.0
    %6277 = vmatprep.subr.mxu0 0.0
    %6278 = vmatpush2.msra.mxu0 0.0
    %6279 = vmatprep.subr.mxu0 0.0
    %6280 = vmatpush2.msra.mxu0 0.0
    %6281 = vmatprep.subr.mxu0 0.0
    %6282 = vmatpush2.msra.mxu0 0.0
    %6283 = vmatprep.subr.mxu0 0.0
    %6284 = vmatpush2.msra.mxu0 0.0
    %6285 = vmatprep.subr.mxu0 0.0
    %6286 = vmatpush2.msra.mxu0 0.0
    %6287 = vmatprep.subr.mxu0 0.0
    %6288 = vmatpush2.msra.mxu0 0.0
    %6289 = vmatprep.subr.mxu0 0.0
    %6290 = vmatpush2.msra.mxu0 0.0
    %6291 = vmatprep.subr.mxu0 0.0
    %6292 = vmatpush2.msra.mxu0 0.0
    %6293 = vmatprep.subr.mxu0 0.0
    %6294 = vmatpush2.msra.mxu0 0.0
    %6295 = vmatprep.subr.mxu0 0.0
    %6296 = vmatpush2.msra.mxu0 0.0
    %6297 = vmatprep.subr.mxu0 0.0
    %6298 = vmatpush2.msra.mxu0 0.0
    %6299 = vmatprep.subr.mxu0 0.0
    %6300 = vmatpush2.msra.mxu0 0.0
    %6301 = vmatprep.mubr.f32.mxu0 0.0
    %6302 = vmatmul.mubr.f32.gmra.mxu0 %v6235
    %v6303 = vpop.f32.mrf.mxu0
    %v6304 = vadd.f32 0.0, %v6303
    %v6305 = vpop.f32.mrf.mxu0
    %v6306 = vadd.f32 0.0, %v6305
    %6307 = vdwg.mxu0
    %v6310 = vrot.slane %v6304, 4
    %v6311 = vrot.slane %v6306, 4
    %v6314 = vadd.f32 %v5726, %v6310
    %v6315 = vadd.f32 %v5728, %v6311
    %v6316 = vtanh.pop %v6314
    %v6317 = vtanh.pop %v6315
    %v6318 = vxor.u32 %v6314, 2147483648
    %v6319 = vxor.u32 %v6315, 2147483648
    %v6320 = vmul.f32 %v6318, 1.442695
    %v6321 = vpow.pop %v6320
    %v6322 = vmul.f32 %v6319, 1.442695
    %v6323 = vpow.pop %v6322
    %v6324 = vadd.f32 %v6321, 1.0
    %v6325 = vadd.f32 %v6323, 1.0
    %v6326 = vrcp.pop %v6324
    %v6327 = vmul.f32 1.0, %v6326
    %v6328 = vrcp.pop %v6325
    %v6329 = vmul.f32 1.0, %v6328
    %v6330 = vsel %vm77, %v6316, %v6327
    %v6331 = vsel %vm78, %v6317, %v6329
    %v6333 = vrot.slane %v6224, 7
    %v6335 = vmul.f32 %v6330, %v6333
    %6338 = vrot.lane.b32.xlu0 %v6330, 28
    %v6339 = vpop.permute.xlu0 %6338
    %6340 = vrot.lane.b32.xlu0 %v6331, 28
    %v6341 = vpop.permute.xlu0 %6340
    %v6342 = vsel %vm192, %v6339, %v6341
    %v6344 = vmul.f32 %v6330, %v6342
    %6346 = vrot.lane.b32.xlu0 %v6344, 50
    %v6347 = vpop.permute.xlu0 %6346
    %v6349 = vadd.f32 %v6335, %v6347
    %v6350 = vtanh.pop %v6349
    %6352 = vrot.lane.b32.xlu0 %v6350, 100
    %v6353 = vpop.permute.xlu0 %6352
    %v6355 = vmul.f32 %v6331, %v6353
    %v6357 = vrot.slane %v6355, 4
    %6358 = vrot.lane.b32.xlu0 %v6357, 106
    %v6359 = vpop.permute.xlu0 %6358
    %v6360 = vsel %vm81, %v6359, 0
    %6362 = vmatprep.subr.mxu0 0.0
    %6363 = vmatpush1.msra.mxu0 0.0
    %6364 = vmatprep.subr.mxu0 0.0
    %6365 = vmatpush1.msra.mxu0 0.0
    %6366 = vmatprep.subr.mxu0 0.0
    %6367 = vmatpush1.msra.mxu0 0.0
    %6368 = vmatprep.subr.mxu0 0.0
    %6369 = vmatpush1.msra.mxu0 0.0
    %6370 = vmatprep.subr.mxu0 0.0
    %6371 = vmatpush1.msra.mxu0 0.0
    %6372 = vmatprep.subr.mxu0 0.0
    %6373 = vmatpush1.msra.mxu0 0.0
    %6374 = vmatprep.subr.mxu0 0.0
    %6375 = vmatpush1.msra.mxu0 0.0
    %6376 = vmatprep.subr.mxu0 0.0
    %6377 = vmatpush1.msra.mxu0 0.0
    %6378 = vmatprep.subr.mxu0 0.0
    %6379 = vmatpush1.msra.mxu0 0.0
    %6380 = vmatprep.subr.mxu0 %v5737
    %6381 = vmatpush1.msra.mxu0 %v5734
    %6382 = vmatprep.subr.mxu0 %v5632
    %6383 = vmatpush1.msra.mxu0 %v5631
    %6384 = vmatprep.subr.mxu0 %v5630
    %6385 = vmatpush1.msra.mxu0 %v5629
    %6386 = vmatprep.subr.mxu0 %v5628
    %6387 = vmatpush1.msra.mxu0 %v5627
    %6388 = vmatprep.subr.mxu0 %v5626
    %6389 = vmatpush1.msra.mxu0 %v5625
    %6390 = vmatprep.subr.mxu0 %v5624
    %6391 = vmatpush1.msra.mxu0 %v5623
    %6392 = vmatprep.subr.mxu0 %v5622
    %6393 = vmatpush1.msra.mxu0 %v5621
    %6394 = vmatprep.subr.mxu0 0.0
    %6395 = vmatpush2.msra.mxu0 0.0
    %6396 = vmatprep.subr.mxu0 0.0
    %6397 = vmatpush2.msra.mxu0 0.0
    %6398 = vmatprep.subr.mxu0 0.0
    %6399 = vmatpush2.msra.mxu0 0.0
    %6400 = vmatprep.subr.mxu0 0.0
    %6401 = vmatpush2.msra.mxu0 0.0
    %6402 = vmatprep.subr.mxu0 0.0
    %6403 = vmatpush2.msra.mxu0 0.0
    %6404 = vmatprep.subr.mxu0 0.0
    %6405 = vmatpush2.msra.mxu0 0.0
    %6406 = vmatprep.subr.mxu0 0.0
    %6407 = vmatpush2.msra.mxu0 0.0
    %6408 = vmatprep.subr.mxu0 0.0
    %6409 = vmatpush2.msra.mxu0 0.0
    %6410 = vmatprep.subr.mxu0 0.0
    %6411 = vmatpush2.msra.mxu0 0.0
    %6412 = vmatprep.subr.mxu0 0.0
    %6413 = vmatpush2.msra.mxu0 0.0
    %6414 = vmatprep.subr.mxu0 0.0
    %6415 = vmatpush2.msra.mxu0 0.0
    %6416 = vmatprep.subr.mxu0 0.0
    %6417 = vmatpush2.msra.mxu0 0.0
    %6418 = vmatprep.subr.mxu0 0.0
    %6419 = vmatpush2.msra.mxu0 0.0
    %6420 = vmatprep.subr.mxu0 0.0
    %6421 = vmatpush2.msra.mxu0 0.0
    %6422 = vmatprep.subr.mxu0 0.0
    %6423 = vmatpush2.msra.mxu0 0.0
    %6424 = vmatprep.subr.mxu0 0.0
    %6425 = vmatpush2.msra.mxu0 0.0
    %6426 = vmatprep.mubr.f32.mxu0 0.0
    %6427 = vmatmul.mubr.f32.gmra.mxu0 %v6360
    %v6428 = vpop.f32.mrf.mxu0
    %v6429 = vadd.f32 0.0, %v6428
    %v6430 = vpop.f32.mrf.mxu0
    %v6431 = vadd.f32 0.0, %v6430
    %6432 = vdwg.mxu0
    %v6435 = vrot.slane %v6429, 3
    %v6436 = vrot.slane %v6431, 3
    %v6439 = vadd.f32 %v5726, %v6435
    %v6440 = vadd.f32 %v5728, %v6436
    %v6441 = vtanh.pop %v6439
    %v6442 = vtanh.pop %v6440
    %v6443 = vxor.u32 %v6439, 2147483648
    %v6444 = vxor.u32 %v6440, 2147483648
    %v6445 = vmul.f32 %v6443, 1.442695
    %v6446 = vpow.pop %v6445
    %v6447 = vmul.f32 %v6444, 1.442695
    %v6448 = vpow.pop %v6447
    %v6449 = vadd.f32 %v6446, 1.0
    %v6450 = vadd.f32 %v6448, 1.0
    %v6451 = vrcp.pop %v6449
    %v6452 = vmul.f32 1.0, %v6451
    %v6453 = vrcp.pop %v6450
    %v6454 = vmul.f32 1.0, %v6453
    %v6455 = vsel %vm77, %v6441, %v6452
    %v6456 = vsel %vm78, %v6442, %v6454
    %v6458 = vrot.slane %v6349, 7
    %v6460 = vmul.f32 %v6455, %v6458
    %6463 = vrot.lane.b32.xlu0 %v6455, 28
    %v6464 = vpop.permute.xlu0 %6463
    %6465 = vrot.lane.b32.xlu0 %v6456, 28
    %v6466 = vpop.permute.xlu0 %6465
    %v6467 = vsel %vm192, %v6464, %v6466
    %v6469 = vmul.f32 %v6455, %v6467
    %6471 = vrot.lane.b32.xlu0 %v6469, 50
    %v6472 = vpop.permute.xlu0 %6471
    %v6474 = vadd.f32 %v6460, %v6472
    %v6475 = vtanh.pop %v6474
    %6477 = vrot.lane.b32.xlu0 %v6475, 100
    %v6478 = vpop.permute.xlu0 %6477
    %v6480 = vmul.f32 %v6456, %v6478
    %v6482 = vrot.slane %v6480, 5
    %6483 = vrot.lane.b32.xlu0 %v6482, 106
    %v6484 = vpop.permute.xlu0 %6483
    %v6485 = vsel %vm81, %v6484, 0
    %6487 = vmatprep.subr.mxu0 0.0
    %6488 = vmatpush1.msra.mxu0 0.0
    %6489 = vmatprep.subr.mxu0 0.0
    %6490 = vmatpush1.msra.mxu0 0.0
    %6491 = vmatprep.subr.mxu0 0.0
    %6492 = vmatpush1.msra.mxu0 0.0
    %6493 = vmatprep.subr.mxu0 0.0
    %6494 = vmatpush1.msra.mxu0 0.0
    %6495 = vmatprep.subr.mxu0 0.0
    %6496 = vmatpush1.msra.mxu0 0.0
    %6497 = vmatprep.subr.mxu0 0.0
    %6498 = vmatpush1.msra.mxu0 0.0
    %6499 = vmatprep.subr.mxu0 0.0
    %6500 = vmatpush1.msra.mxu0 0.0
    %6501 = vmatprep.subr.mxu0 0.0
    %6502 = vmatpush1.msra.mxu0 0.0
    %6503 = vmatprep.subr.mxu0 0.0
    %6504 = vmatpush1.msra.mxu0 0.0
    %6505 = vmatprep.subr.mxu0 %v5737
    %6506 = vmatpush1.msra.mxu0 %v5734
    %6507 = vmatprep.subr.mxu0 %v5632
    %6508 = vmatpush1.msra.mxu0 %v5631
    %6509 = vmatprep.subr.mxu0 %v5630
    %6510 = vmatpush1.msra.mxu0 %v5629
    %6511 = vmatprep.subr.mxu0 %v5628
    %6512 = vmatpush1.msra.mxu0 %v5627
    %6513 = vmatprep.subr.mxu0 %v5626
    %6514 = vmatpush1.msra.mxu0 %v5625
    %6515 = vmatprep.subr.mxu0 %v5624
    %6516 = vmatpush1.msra.mxu0 %v5623
    %6517 = vmatprep.subr.mxu0 %v5622
    %6518 = vmatpush1.msra.mxu0 %v5621
    %6519 = vmatprep.subr.mxu0 0.0
    %6520 = vmatpush2.msra.mxu0 0.0
    %6521 = vmatprep.subr.mxu0 0.0
    %6522 = vmatpush2.msra.mxu0 0.0
    %6523 = vmatprep.subr.mxu0 0.0
    %6524 = vmatpush2.msra.mxu0 0.0
    %6525 = vmatprep.subr.mxu0 0.0
    %6526 = vmatpush2.msra.mxu0 0.0
    %6527 = vmatprep.subr.mxu0 0.0
    %6528 = vmatpush2.msra.mxu0 0.0
    %6529 = vmatprep.subr.mxu0 0.0
    %6530 = vmatpush2.msra.mxu0 0.0
    %6531 = vmatprep.subr.mxu0 0.0
    %6532 = vmatpush2.msra.mxu0 0.0
    %6533 = vmatprep.subr.mxu0 0.0
    %6534 = vmatpush2.msra.mxu0 0.0
    %6535 = vmatprep.subr.mxu0 0.0
    %6536 = vmatpush2.msra.mxu0 0.0
    %6537 = vmatprep.subr.mxu0 0.0
    %6538 = vmatpush2.msra.mxu0 0.0
    %6539 = vmatprep.subr.mxu0 0.0
    %6540 = vmatpush2.msra.mxu0 0.0
    %6541 = vmatprep.subr.mxu0 0.0
    %6542 = vmatpush2.msra.mxu0 0.0
    %6543 = vmatprep.subr.mxu0 0.0
    %6544 = vmatpush2.msra.mxu0 0.0
    %6545 = vmatprep.subr.mxu0 0.0
    %6546 = vmatpush2.msra.mxu0 0.0
    %6547 = vmatprep.subr.mxu0 0.0
    %6548 = vmatpush2.msra.mxu0 0.0
    %6549 = vmatprep.subr.mxu0 0.0
    %6550 = vmatpush2.msra.mxu0 0.0
    %6551 = vmatprep.mubr.f32.mxu0 0.0
    %6552 = vmatmul.mubr.f32.gmra.mxu0 %v6485
    %v6553 = vpop.f32.mrf.mxu0
    %v6554 = vadd.f32 0.0, %v6553
    %v6555 = vpop.f32.mrf.mxu0
    %v6556 = vadd.f32 0.0, %v6555
    %6557 = vdwg.mxu0
    %v6560 = vrot.slane %v6554, 2
    %v6561 = vrot.slane %v6556, 2
    %v6564 = vadd.f32 %v5726, %v6560
    %v6565 = vadd.f32 %v5728, %v6561
    %v6566 = vtanh.pop %v6564
    %v6567 = vtanh.pop %v6565
    %v6568 = vxor.u32 %v6564, 2147483648
    %v6569 = vxor.u32 %v6565, 2147483648
    %v6570 = vmul.f32 %v6568, 1.442695
    %v6571 = vpow.pop %v6570
    %v6572 = vmul.f32 %v6569, 1.442695
    %v6573 = vpow.pop %v6572
    %v6574 = vadd.f32 %v6571, 1.0
    %v6575 = vadd.f32 %v6573, 1.0
    %v6576 = vrcp.pop %v6574
    %v6577 = vmul.f32 1.0, %v6576
    %v6578 = vrcp.pop %v6575
    %v6579 = vmul.f32 1.0, %v6578
    %v6580 = vsel %vm77, %v6566, %v6577
    %v6581 = vsel %vm78, %v6567, %v6579
    %v6583 = vrot.slane %v6474, 7
    %v6585 = vmul.f32 %v6580, %v6583
    %6588 = vrot.lane.b32.xlu0 %v6580, 28
    %v6589 = vpop.permute.xlu0 %6588
    %6590 = vrot.lane.b32.xlu0 %v6581, 28
    %v6591 = vpop.permute.xlu0 %6590
    %v6592 = vsel %vm192, %v6589, %v6591
    %v6594 = vmul.f32 %v6580, %v6592
    %6596 = vrot.lane.b32.xlu0 %v6594, 50
    %v6597 = vpop.permute.xlu0 %6596
    %v6599 = vadd.f32 %v6585, %v6597
    %v6600 = vtanh.pop %v6599
    %6602 = vrot.lane.b32.xlu0 %v6600, 100
    %v6603 = vpop.permute.xlu0 %6602
    %v6605 = vmul.f32 %v6581, %v6603
    %v6607 = vrot.slane %v6605, 6
    %6608 = vrot.lane.b32.xlu0 %v6607, 106
    %v6609 = vpop.permute.xlu0 %6608
    %v6610 = vsel %vm81, %v6609, 0
    %6612 = vmatprep.subr.mxu0 0.0
    %6613 = vmatpush1.msra.mxu0 0.0
    %6614 = vmatprep.subr.mxu0 0.0
    %6615 = vmatpush1.msra.mxu0 0.0
    %6616 = vmatprep.subr.mxu0 0.0
    %6617 = vmatpush1.msra.mxu0 0.0
    %6618 = vmatprep.subr.mxu0 0.0
    %6619 = vmatpush1.msra.mxu0 0.0
    %6620 = vmatprep.subr.mxu0 0.0
    %6621 = vmatpush1.msra.mxu0 0.0
    %6622 = vmatprep.subr.mxu0 0.0
    %6623 = vmatpush1.msra.mxu0 0.0
    %6624 = vmatprep.subr.mxu0 0.0
    %6625 = vmatpush1.msra.mxu0 0.0
    %6626 = vmatprep.subr.mxu0 0.0
    %6627 = vmatpush1.msra.mxu0 0.0
    %6628 = vmatprep.subr.mxu0 0.0
    %6629 = vmatpush1.msra.mxu0 0.0
    %6630 = vmatprep.subr.mxu0 %v5737
    %6631 = vmatpush1.msra.mxu0 %v5734
    %6632 = vmatprep.subr.mxu0 %v5632
    %6633 = vmatpush1.msra.mxu0 %v5631
    %6634 = vmatprep.subr.mxu0 %v5630
    %6635 = vmatpush1.msra.mxu0 %v5629
    %6636 = vmatprep.subr.mxu0 %v5628
    %6637 = vmatpush1.msra.mxu0 %v5627
    %6638 = vmatprep.subr.mxu0 %v5626
    %6639 = vmatpush1.msra.mxu0 %v5625
    %6640 = vmatprep.subr.mxu0 %v5624
    %6641 = vmatpush1.msra.mxu0 %v5623
    %6642 = vmatprep.subr.mxu0 %v5622
    %6643 = vmatpush1.msra.mxu0 %v5621
    %6644 = vmatprep.subr.mxu0 0.0
    %6645 = vmatpush2.msra.mxu0 0.0
    %6646 = vmatprep.subr.mxu0 0.0
    %6647 = vmatpush2.msra.mxu0 0.0
    %6648 = vmatprep.subr.mxu0 0.0
    %6649 = vmatpush2.msra.mxu0 0.0
    %6650 = vmatprep.subr.mxu0 0.0
    %6651 = vmatpush2.msra.mxu0 0.0
    %6652 = vmatprep.subr.mxu0 0.0
    %6653 = vmatpush2.msra.mxu0 0.0
    %6654 = vmatprep.subr.mxu0 0.0
    %6655 = vmatpush2.msra.mxu0 0.0
    %6656 = vmatprep.subr.mxu0 0.0
    %6657 = vmatpush2.msra.mxu0 0.0
    %6658 = vmatprep.subr.mxu0 0.0
    %6659 = vmatpush2.msra.mxu0 0.0
    %6660 = vmatprep.subr.mxu0 0.0
    %6661 = vmatpush2.msra.mxu0 0.0
    %6662 = vmatprep.subr.mxu0 0.0
    %6663 = vmatpush2.msra.mxu0 0.0
    %6664 = vmatprep.subr.mxu0 0.0
    %6665 = vmatpush2.msra.mxu0 0.0
    %6666 = vmatprep.subr.mxu0 0.0
    %6667 = vmatpush2.msra.mxu0 0.0
    %6668 = vmatprep.subr.mxu0 0.0
    %6669 = vmatpush2.msra.mxu0 0.0
    %6670 = vmatprep.subr.mxu0 0.0
    %6671 = vmatpush2.msra.mxu0 0.0
    %6672 = vmatprep.subr.mxu0 0.0
    %6673 = vmatpush2.msra.mxu0 0.0
    %6674 = vmatprep.subr.mxu0 0.0
    %6675 = vmatpush2.msra.mxu0 0.0
    %6676 = vmatprep.mubr.f32.mxu0 0.0
    %6677 = vmatmul.mubr.f32.gmra.mxu0 %v6610
    %v6678 = vpop.f32.mrf.mxu0
    %v6679 = vadd.f32 0.0, %v6678
    %v6680 = vpop.f32.mrf.mxu0
    %v6681 = vadd.f32 0.0, %v6680
    %6682 = vdwg.mxu0
    %v6685 = vrot.slane %v6679, 1
    %v6686 = vrot.slane %v6681, 1
    %v6689 = vadd.f32 %v5726, %v6685
    %v6690 = vadd.f32 %v5728, %v6686
    %v6691 = vtanh.pop %v6689
    %v6692 = vtanh.pop %v6690
    %v6693 = vxor.u32 %v6689, 2147483648
    %v6694 = vxor.u32 %v6690, 2147483648
    %v6695 = vmul.f32 %v6693, 1.442695
    %v6696 = vpow.pop %v6695
    %v6697 = vmul.f32 %v6694, 1.442695
    %v6698 = vpow.pop %v6697
    %v6699 = vadd.f32 %v6696, 1.0
    %v6700 = vadd.f32 %v6698, 1.0
    %v6701 = vrcp.pop %v6699
    %v6702 = vmul.f32 1.0, %v6701
    %v6703 = vrcp.pop %v6700
    %v6704 = vmul.f32 1.0, %v6703
    %v6705 = vsel %vm77, %v6691, %v6702
    %v6706 = vsel %vm78, %v6692, %v6704
    %v6708 = vrot.slane %v6599, 7
    %v6710 = vmul.f32 %v6705, %v6708
    %6713 = vrot.lane.b32.xlu0 %v6705, 28
    %v6714 = vpop.permute.xlu0 %6713
    %6715 = vrot.lane.b32.xlu0 %v6706, 28
    %v6716 = vpop.permute.xlu0 %6715
    %v6717 = vsel %vm192, %v6714, %v6716
    %v6719 = vmul.f32 %v6705, %v6717
    %6721 = vrot.lane.b32.xlu0 %v6719, 50
    %v6722 = vpop.permute.xlu0 %6721
    %v6724 = vadd.f32 %v6710, %v6722
    %v6725 = vtanh.pop %v6724
    %6727 = vrot.lane.b32.xlu0 %v6725, 100
    %v6728 = vpop.permute.xlu0 %6727
    %v6730 = vmul.f32 %v6706, %v6728
    %v6731 = vsel %vm4597, %v5856, %v5980
    %v6732 = vsel %vm85, %v6731, %v6105
    %v6733 = vsel %vm4600, %v6732, %v6230
    %v6734 = vsel %vm4602, %v6733, %v6355
    %v6735 = vsel %vm4604, %v6734, %v6480
    %v6736 = vsel %vm3734, %v6735, %v6605
    %v6737 = vsel %vm4607, %v6736, %v6730
    %s6738 = scalar_lea.vmem %s9, 128
    %v6739 = vld [vmem:[%s6738] sm:$0xff]
    %v6740 = vld [vmem:[%s6738 + $0x8] sm:$0xff]
    %v6741 = vld [vmem:[%s6738 + $0x10] sm:$0xff]
    %v6742 = vld [vmem:[%s6738 + $0x18] sm:$0xff]
    %v6743 = vld [vmem:[%s6738 + $0x20] sm:$0xff]
    %v6744 = vld [vmem:[%s6738 + $0x28] sm:$0xff]
    %v6745 = vld [vmem:[%s6738 + $0x30] sm:$0xff]
    %v6746 = vld [vmem:[%s6738 + $0x38] sm:$0xff]
    %v6747 = vld [vmem:[%s6738 + $0x40] sm:$0xff]
    %v6748 = vld [vmem:[%s6738 + $0x48] sm:$0xff]
    %v6749 = vld [vmem:[%s6738 + $0x50] sm:$0xff]
    %v6750 = vld [vmem:[%s6738 + $0x58] sm:$0xff]
    %v6751 = vld [vmem:[%s6738 + $0x60] sm:$0xff]
    %v6752 = vld [vmem:[%s6738 + $0x68] sm:$0xff]
    %v6753 = vld [vmem:[%s6738 + $0x70] sm:$0xf]
    %v6754 = vld [vmem:[%s6738 + $0x78] sm:$0xf]
    %s6755 = scalar_lea.vmem %s10, 112
    %v6756 = vld [vmem:[%s6755] sm:$0xff]
    %v6757 = vld [vmem:[%s6755 + $0x8] sm:$0xff]
    %v6758 = vld [vmem:[%s6755 + $0x10] sm:$0xff]
    %v6759 = vld [vmem:[%s6755 + $0x18] sm:$0xff]
    %v6760 = vld [vmem:[%s6755 + $0x20] sm:$0xff]
    %v6761 = vld [vmem:[%s6755 + $0x28] sm:$0xff]
    %v6762 = vld [vmem:[%s6755 + $0x30] sm:$0xff]
    %v6763 = vld [vmem:[%s6755 + $0x38] sm:$0xff]
    %v6764 = vld [vmem:[%s6755 + $0x40] sm:$0xff]
    %v6765 = vld [vmem:[%s6755 + $0x48] sm:$0xff]
    %v6766 = vld [vmem:[%s6755 + $0x50] sm:$0xff]
    %v6767 = vld [vmem:[%s6755 + $0x58] sm:$0xff]
    %v6768 = vld [vmem:[%s6755 + $0x60] sm:$0x3]
    %v6769 = vld [vmem:[%s6755 + $0x68] sm:$0x3]
    %s6770 = scalar_lea.vmem %s11, 2
    %v6771 = vld [vmem:[%s6770] sm:$0x3]
    %s6772 = scalar_lea.vmem %s12, 1
    %v6773 = vld [vmem:[%s6772] sm:$0x1]
    %s6774 = scalar_lea.vmem %s13, 1
    %v6775 = vld [vmem:[%s6774] sm:$0x1]
    %v6777 = vlaneseq
    %v6778 = vshrl.u32 %v6777, 7
    %v6779 = vsub.s32 0, %v6778
    %v6780 = vrot.slane %v6771, %v6779
    %v6781 = vlaneseq
    %v6782 = vshrl.u32 %v6781, 7
    %v6783 = vsub.s32 1, %v6782
    %v6784 = vrot.slane %v6771, %v6783
    %v6788 = vsel %vm4602, %v6753, 0
    %v6791 = vsel %vm4602, %v6754, 0
    %6793 = vmatprep.subr.mxu0 0.0
    %6794 = vmatpush1.msra.mxu0 0.0
    %6795 = vmatprep.subr.mxu0 0.0
    %6796 = vmatpush1.msra.mxu0 0.0
    %6797 = vmatprep.subr.mxu0 0.0
    %6798 = vmatpush1.msra.mxu0 0.0
    %6799 = vmatprep.subr.mxu0 0.0
    %6800 = vmatpush1.msra.mxu0 0.0
    %6801 = vmatprep.subr.mxu0 0.0
    %6802 = vmatpush1.msra.mxu0 0.0
    %6803 = vmatprep.subr.mxu0 0.0
    %6804 = vmatpush1.msra.mxu0 0.0
    %6805 = vmatprep.subr.mxu0 0.0
    %6806 = vmatpush1.msra.mxu0 0.0
    %6807 = vmatprep.subr.mxu0 0.0
    %6808 = vmatpush1.msra.mxu0 0.0
    %6809 = vmatprep.subr.mxu0 %v6791
    %6810 = vmatpush1.msra.mxu0 %v6788
    %6811 = vmatprep.subr.mxu0 %v6752
    %6812 = vmatpush1.msra.mxu0 %v6751
    %6813 = vmatprep.subr.mxu0 %v6750
    %6814 = vmatpush1.msra.mxu0 %v6749
    %6815 = vmatprep.subr.mxu0 %v6748
    %6816 = vmatpush1.msra.mxu0 %v6747
    %6817 = vmatprep.subr.mxu0 %v6746
    %6818 = vmatpush1.msra.mxu0 %v6745
    %6819 = vmatprep.subr.mxu0 %v6744
    %6820 = vmatpush1.msra.mxu0 %v6743
    %6821 = vmatprep.subr.mxu0 %v6742
    %6822 = vmatpush1.msra.mxu0 %v6741
    %6823 = vmatprep.subr.mxu0 %v6740
    %6824 = vmatpush1.msra.mxu0 %v6739
    %6825 = vmatprep.subr.mxu0 0.0
    %6826 = vmatpush2.msra.mxu0 0.0
    %6827 = vmatprep.subr.mxu0 0.0
    %6828 = vmatpush2.msra.mxu0 0.0
    %6829 = vmatprep.subr.mxu0 0.0
    %6830 = vmatpush2.msra.mxu0 0.0
    %6831 = vmatprep.subr.mxu0 0.0
    %6832 = vmatpush2.msra.mxu0 0.0
    %6833 = vmatprep.subr.mxu0 0.0
    %6834 = vmatpush2.msra.mxu0 0.0
    %6835 = vmatprep.subr.mxu0 0.0
    %6836 = vmatpush2.msra.mxu0 0.0
    %6837 = vmatprep.subr.mxu0 0.0
    %6838 = vmatpush2.msra.mxu0 0.0
    %6839 = vmatprep.subr.mxu0 0.0
    %6840 = vmatpush2.msra.mxu0 0.0
    %6841 = vmatprep.subr.mxu0 0.0
    %6842 = vmatpush2.msra.mxu0 0.0
    %6843 = vmatprep.subr.mxu0 0.0
    %6844 = vmatpush2.msra.mxu0 0.0
    %6845 = vmatprep.subr.mxu0 0.0
    %6846 = vmatpush2.msra.mxu0 0.0
    %6847 = vmatprep.subr.mxu0 0.0
    %6848 = vmatpush2.msra.mxu0 0.0
    %6849 = vmatprep.subr.mxu0 0.0
    %6850 = vmatpush2.msra.mxu0 0.0
    %6851 = vmatprep.subr.mxu0 0.0
    %6852 = vmatpush2.msra.mxu0 0.0
    %6853 = vmatprep.subr.mxu0 0.0
    %6854 = vmatpush2.msra.mxu0 0.0
    %6855 = vmatprep.subr.mxu0 0.0
    %6856 = vmatpush2.msra.mxu0 0.0
    %6857 = vmatprep.mubr.f32.mxu0 0.0
    %6858 = vmatmul.mubr.f32.gmra.mxu0 %v5651
    %v6859 = vpop.f32.mrf.mxu0
    %v6860 = vadd.f32 %v6780, %v6859
    %v6861 = vpop.f32.mrf.mxu0
    %v6862 = vadd.f32 %v6784, %v6861
    %6863 = vdwg.mxu0
    %v6865 = vsel %vm81, %v6773, 0
    %v6868 = vsel %vm85, %v6768, 0
    %v6871 = vsel %vm85, %v6769, 0
    %6873 = vmatprep.subr.mxu0 0.0
    %6874 = vmatpush1.msra.mxu0 0.0
    %6875 = vmatprep.subr.mxu0 0.0
    %6876 = vmatpush1.msra.mxu0 0.0
    %6877 = vmatprep.subr.mxu0 0.0
    %6878 = vmatpush1.msra.mxu0 0.0
    %6879 = vmatprep.subr.mxu0 0.0
    %6880 = vmatpush1.msra.mxu0 0.0
    %6881 = vmatprep.subr.mxu0 0.0
    %6882 = vmatpush1.msra.mxu0 0.0
    %6883 = vmatprep.subr.mxu0 0.0
    %6884 = vmatpush1.msra.mxu0 0.0
    %6885 = vmatprep.subr.mxu0 0.0
    %6886 = vmatpush1.msra.mxu0 0.0
    %6887 = vmatprep.subr.mxu0 0.0
    %6888 = vmatpush1.msra.mxu0 0.0
    %6889 = vmatprep.subr.mxu0 0.0
    %6890 = vmatpush1.msra.mxu0 0.0
    %6891 = vmatprep.subr.mxu0 %v6871
    %6892 = vmatpush1.msra.mxu0 %v6868
    %6893 = vmatprep.subr.mxu0 %v6767
    %6894 = vmatpush1.msra.mxu0 %v6766
    %6895 = vmatprep.subr.mxu0 %v6765
    %6896 = vmatpush1.msra.mxu0 %v6764
    %6897 = vmatprep.subr.mxu0 %v6763
    %6898 = vmatpush1.msra.mxu0 %v6762
    %6899 = vmatprep.subr.mxu0 %v6761
    %6900 = vmatpush1.msra.mxu0 %v6760
    %6901 = vmatprep.subr.mxu0 %v6759
    %6902 = vmatpush1.msra.mxu0 %v6758
    %6903 = vmatprep.subr.mxu0 %v6757
    %6904 = vmatpush1.msra.mxu0 %v6756
    %6905 = vmatprep.subr.mxu0 0.0
    %6906 = vmatpush2.msra.mxu0 0.0
    %6907 = vmatprep.subr.mxu0 0.0
    %6908 = vmatpush2.msra.mxu0 0.0
    %6909 = vmatprep.subr.mxu0 0.0
    %6910 = vmatpush2.msra.mxu0 0.0
    %6911 = vmatprep.subr.mxu0 0.0
    %6912 = vmatpush2.msra.mxu0 0.0
    %6913 = vmatprep.subr.mxu0 0.0
    %6914 = vmatpush2.msra.mxu0 0.0
    %6915 = vmatprep.subr.mxu0 0.0
    %6916 = vmatpush2.msra.mxu0 0.0
    %6917 = vmatprep.subr.mxu0 0.0
    %6918 = vmatpush2.msra.mxu0 0.0
    %6919 = vmatprep.subr.mxu0 0.0
    %6920 = vmatpush2.msra.mxu0 0.0
    %6921 = vmatprep.subr.mxu0 0.0
    %6922 = vmatpush2.msra.mxu0 0.0
    %6923 = vmatprep.subr.mxu0 0.0
    %6924 = vmatpush2.msra.mxu0 0.0
    %6925 = vmatprep.subr.mxu0 0.0
    %6926 = vmatpush2.msra.mxu0 0.0
    %6927 = vmatprep.subr.mxu0 0.0
    %6928 = vmatpush2.msra.mxu0 0.0
    %6929 = vmatprep.subr.mxu0 0.0
    %6930 = vmatpush2.msra.mxu0 0.0
    %6931 = vmatprep.subr.mxu0 0.0
    %6932 = vmatpush2.msra.mxu0 0.0
    %6933 = vmatprep.subr.mxu0 0.0
    %6934 = vmatpush2.msra.mxu0 0.0
    %6935 = vmatprep.subr.mxu0 0.0
    %6936 = vmatpush2.msra.mxu0 0.0
    %6937 = vmatprep.mubr.f32.mxu0 0.0
    %6938 = vmatmul.mubr.f32.gmra.mxu0 %v6865
    %v6939 = vpop.f32.mrf.mxu0
    %v6940 = vadd.f32 0.0, %v6939
    %v6941 = vpop.f32.mrf.mxu0
    %v6942 = vadd.f32 0.0, %v6941
    %6943 = vdwg.mxu0
    %v6946 = vrot.slane %v6940, 1
    %v6947 = vrot.slane %v6942, 1
    %v6950 = vadd.f32 %v6860, %v6946
    %v6951 = vadd.f32 %v6862, %v6947
    %v6952 = vtanh.pop %v6950
    %v6953 = vtanh.pop %v6951
    %v6954 = vxor.u32 %v6950, 2147483648
    %v6955 = vxor.u32 %v6951, 2147483648
    %v6956 = vmul.f32 %v6954, 1.442695
    %v6957 = vpow.pop %v6956
    %v6958 = vmul.f32 %v6955, 1.442695
    %v6959 = vpow.pop %v6958
    %v6960 = vadd.f32 %v6957, 1.0
    %v6961 = vadd.f32 %v6959, 1.0
    %v6962 = vrcp.pop %v6960
    %v6963 = vmul.f32 1.0, %v6962
    %v6964 = vrcp.pop %v6961
    %v6965 = vmul.f32 1.0, %v6964
    %v6966 = vsel %vm77, %v6952, %v6963
    %v6967 = vsel %vm78, %v6953, %v6965
    %v6969 = vlaneseq
    %v6970 = vshrl.u32 %v6969, 7
    %v6971 = vsub.s32 0, %v6970
    %v6972 = vrot.slane %v6775, %v6971
    %6973 = vrot.lane.b32.xlu0 %v6972, 50
    %v6974 = vpop.permute.xlu0 %6973
    %v6976 = vmul.f32 %v6966, %v6974
    %6979 = vrot.lane.b32.xlu0 %v6966, 28
    %v6980 = vpop.permute.xlu0 %6979
    %6981 = vrot.lane.b32.xlu0 %v6967, 28
    %v6982 = vpop.permute.xlu0 %6981
    %v6983 = vsel %vm192, %v6980, %v6982
    %v6985 = vmul.f32 %v6966, %v6983
    %6987 = vrot.lane.b32.xlu0 %v6985, 50
    %v6988 = vpop.permute.xlu0 %6987
    %v6990 = vadd.f32 %v6976, %v6988
    %v6991 = vtanh.pop %v6990
    %6993 = vrot.lane.b32.xlu0 %v6991, 100
    %v6994 = vpop.permute.xlu0 %6993
    %v6996 = vmul.f32 %v6967, %v6994
    %v6998 = vrot.slane %v6996, 7
    %6999 = vrot.lane.b32.xlu0 %v6998, 106
    %v7000 = vpop.permute.xlu0 %6999
    %v7001 = vsel %vm81, %v7000, 0
    %7003 = vmatprep.subr.mxu0 0.0
    %7004 = vmatpush1.msra.mxu0 0.0
    %7005 = vmatprep.subr.mxu0 0.0
    %7006 = vmatpush1.msra.mxu0 0.0
    %7007 = vmatprep.subr.mxu0 0.0
    %7008 = vmatpush1.msra.mxu0 0.0
    %7009 = vmatprep.subr.mxu0 0.0
    %7010 = vmatpush1.msra.mxu0 0.0
    %7011 = vmatprep.subr.mxu0 0.0
    %7012 = vmatpush1.msra.mxu0 0.0
    %7013 = vmatprep.subr.mxu0 0.0
    %7014 = vmatpush1.msra.mxu0 0.0
    %7015 = vmatprep.subr.mxu0 0.0
    %7016 = vmatpush1.msra.mxu0 0.0
    %7017 = vmatprep.subr.mxu0 0.0
    %7018 = vmatpush1.msra.mxu0 0.0
    %7019 = vmatprep.subr.mxu0 0.0
    %7020 = vmatpush1.msra.mxu0 0.0
    %7021 = vmatprep.subr.mxu0 %v6871
    %7022 = vmatpush1.msra.mxu0 %v6868
    %7023 = vmatprep.subr.mxu0 %v6767
    %7024 = vmatpush1.msra.mxu0 %v6766
    %7025 = vmatprep.subr.mxu0 %v6765
    %7026 = vmatpush1.msra.mxu0 %v6764
    %7027 = vmatprep.subr.mxu0 %v6763
    %7028 = vmatpush1.msra.mxu0 %v6762
    %7029 = vmatprep.subr.mxu0 %v6761
    %7030 = vmatpush1.msra.mxu0 %v6760
    %7031 = vmatprep.subr.mxu0 %v6759
    %7032 = vmatpush1.msra.mxu0 %v6758
    %7033 = vmatprep.subr.mxu0 %v6757
    %7034 = vmatpush1.msra.mxu0 %v6756
    %7035 = vmatprep.subr.mxu0 0.0
    %7036 = vmatpush2.msra.mxu0 0.0
    %7037 = vmatprep.subr.mxu0 0.0
    %7038 = vmatpush2.msra.mxu0 0.0
    %7039 = vmatprep.subr.mxu0 0.0
    %7040 = vmatpush2.msra.mxu0 0.0
    %7041 = vmatprep.subr.mxu0 0.0
    %7042 = vmatpush2.msra.mxu0 0.0
    %7043 = vmatprep.subr.mxu0 0.0
    %7044 = vmatpush2.msra.mxu0 0.0
    %7045 = vmatprep.subr.mxu0 0.0
    %7046 = vmatpush2.msra.mxu0 0.0
    %7047 = vmatprep.subr.mxu0 0.0
    %7048 = vmatpush2.msra.mxu0 0.0
    %7049 = vmatprep.subr.mxu0 0.0
    %7050 = vmatpush2.msra.mxu0 0.0
    %7051 = vmatprep.subr.mxu0 0.0
    %7052 = vmatpush2.msra.mxu0 0.0
    %7053 = vmatprep.subr.mxu0 0.0
    %7054 = vmatpush2.msra.mxu0 0.0
    %7055 = vmatprep.subr.mxu0 0.0
    %7056 = vmatpush2.msra.mxu0 0.0
    %7057 = vmatprep.subr.mxu0 0.0
    %7058 = vmatpush2.msra.mxu0 0.0
    %7059 = vmatprep.subr.mxu0 0.0
    %7060 = vmatpush2.msra.mxu0 0.0
    %7061 = vmatprep.subr.mxu0 0.0
    %7062 = vmatpush2.msra.mxu0 0.0
    %7063 = vmatprep.subr.mxu0 0.0
    %7064 = vmatpush2.msra.mxu0 0.0
    %7065 = vmatprep.subr.mxu0 0.0
    %7066 = vmatpush2.msra.mxu0 0.0
    %7067 = vmatprep.mubr.f32.mxu0 0.0
    %7068 = vmatmul.mubr.f32.gmra.mxu0 %v7001
    %v7069 = vpop.f32.mrf.mxu0
    %v7070 = vadd.f32 0.0, %v7069
    %v7071 = vpop.f32.mrf.mxu0
    %v7072 = vadd.f32 0.0, %v7071
    %7073 = vdwg.mxu0
    %v7076 = vrot.slane %v7070, 2
    %v7077 = vrot.slane %v7072, 2
    %v7080 = vadd.f32 %v6860, %v7076
    %v7081 = vadd.f32 %v6862, %v7077
    %v7082 = vtanh.pop %v7080
    %v7083 = vtanh.pop %v7081
    %v7084 = vxor.u32 %v7080, 2147483648
    %v7085 = vxor.u32 %v7081, 2147483648
    %v7086 = vmul.f32 %v7084, 1.442695
    %v7087 = vpow.pop %v7086
    %v7088 = vmul.f32 %v7085, 1.442695
    %v7089 = vpow.pop %v7088
    %v7090 = vadd.f32 %v7087, 1.0
    %v7091 = vadd.f32 %v7089, 1.0
    %v7092 = vrcp.pop %v7090
    %v7093 = vmul.f32 1.0, %v7092
    %v7094 = vrcp.pop %v7091
    %v7095 = vmul.f32 1.0, %v7094
    %v7096 = vsel %vm77, %v7082, %v7093
    %v7097 = vsel %vm78, %v7083, %v7095
    %v7099 = vrot.slane %v6990, 1
    %v7101 = vmul.f32 %v7096, %v7099
    %7104 = vrot.lane.b32.xlu0 %v7096, 28
    %v7105 = vpop.permute.xlu0 %7104
    %7106 = vrot.lane.b32.xlu0 %v7097, 28
    %v7107 = vpop.permute.xlu0 %7106
    %v7108 = vsel %vm192, %v7105, %v7107
    %v7110 = vmul.f32 %v7096, %v7108
    %7112 = vrot.lane.b32.xlu0 %v7110, 50
    %v7113 = vpop.permute.xlu0 %7112
    %v7115 = vadd.f32 %v7101, %v7113
    %v7116 = vtanh.pop %v7115
    %7118 = vrot.lane.b32.xlu0 %v7116, 100
    %v7119 = vpop.permute.xlu0 %7118
    %v7121 = vmul.f32 %v7097, %v7119
    %v7123 = vrot.slane %v7121, 6
    %7124 = vrot.lane.b32.xlu0 %v7123, 106
    %v7125 = vpop.permute.xlu0 %7124
    %v7126 = vsel %vm81, %v7125, 0
    %7128 = vmatprep.subr.mxu0 0.0
    %7129 = vmatpush1.msra.mxu0 0.0
    %7130 = vmatprep.subr.mxu0 0.0
    %7131 = vmatpush1.msra.mxu0 0.0
    %7132 = vmatprep.subr.mxu0 0.0
    %7133 = vmatpush1.msra.mxu0 0.0
    %7134 = vmatprep.subr.mxu0 0.0
    %7135 = vmatpush1.msra.mxu0 0.0
    %7136 = vmatprep.subr.mxu0 0.0
    %7137 = vmatpush1.msra.mxu0 0.0
    %7138 = vmatprep.subr.mxu0 0.0
    %7139 = vmatpush1.msra.mxu0 0.0
    %7140 = vmatprep.subr.mxu0 0.0
    %7141 = vmatpush1.msra.mxu0 0.0
    %7142 = vmatprep.subr.mxu0 0.0
    %7143 = vmatpush1.msra.mxu0 0.0
    %7144 = vmatprep.subr.mxu0 0.0
    %7145 = vmatpush1.msra.mxu0 0.0
    %7146 = vmatprep.subr.mxu0 %v6871
    %7147 = vmatpush1.msra.mxu0 %v6868
    %7148 = vmatprep.subr.mxu0 %v6767
    %7149 = vmatpush1.msra.mxu0 %v6766
    %7150 = vmatprep.subr.mxu0 %v6765
    %7151 = vmatpush1.msra.mxu0 %v6764
    %7152 = vmatprep.subr.mxu0 %v6763
    %7153 = vmatpush1.msra.mxu0 %v6762
    %7154 = vmatprep.subr.mxu0 %v6761
    %7155 = vmatpush1.msra.mxu0 %v6760
    %7156 = vmatprep.subr.mxu0 %v6759
    %7157 = vmatpush1.msra.mxu0 %v6758
    %7158 = vmatprep.subr.mxu0 %v6757
    %7159 = vmatpush1.msra.mxu0 %v6756
    %7160 = vmatprep.subr.mxu0 0.0
    %7161 = vmatpush2.msra.mxu0 0.0
    %7162 = vmatprep.subr.mxu0 0.0
    %7163 = vmatpush2.msra.mxu0 0.0
    %7164 = vmatprep.subr.mxu0 0.0
    %7165 = vmatpush2.msra.mxu0 0.0
    %7166 = vmatprep.subr.mxu0 0.0
    %7167 = vmatpush2.msra.mxu0 0.0
    %7168 = vmatprep.subr.mxu0 0.0
    %7169 = vmatpush2.msra.mxu0 0.0
    %7170 = vmatprep.subr.mxu0 0.0
    %7171 = vmatpush2.msra.mxu0 0.0
    %7172 = vmatprep.subr.mxu0 0.0
    %7173 = vmatpush2.msra.mxu0 0.0
    %7174 = vmatprep.subr.mxu0 0.0
    %7175 = vmatpush2.msra.mxu0 0.0
    %7176 = vmatprep.subr.mxu0 0.0
    %7177 = vmatpush2.msra.mxu0 0.0
    %7178 = vmatprep.subr.mxu0 0.0
    %7179 = vmatpush2.msra.mxu0 0.0
    %7180 = vmatprep.subr.mxu0 0.0
    %7181 = vmatpush2.msra.mxu0 0.0
    %7182 = vmatprep.subr.mxu0 0.0
    %7183 = vmatpush2.msra.mxu0 0.0
    %7184 = vmatprep.subr.mxu0 0.0
    %7185 = vmatpush2.msra.mxu0 0.0
    %7186 = vmatprep.subr.mxu0 0.0
    %7187 = vmatpush2.msra.mxu0 0.0
    %7188 = vmatprep.subr.mxu0 0.0
    %7189 = vmatpush2.msra.mxu0 0.0
    %7190 = vmatprep.subr.mxu0 0.0
    %7191 = vmatpush2.msra.mxu0 0.0
    %7192 = vmatprep.mubr.f32.mxu0 0.0
    %7193 = vmatmul.mubr.f32.gmra.mxu0 %v7126
    %v7194 = vpop.f32.mrf.mxu0
    %v7195 = vadd.f32 0.0, %v7194
    %v7196 = vpop.f32.mrf.mxu0
    %v7197 = vadd.f32 0.0, %v7196
    %7198 = vdwg.mxu0
    %v7201 = vrot.slane %v7195, 3
    %v7202 = vrot.slane %v7197, 3
    %v7205 = vadd.f32 %v6860, %v7201
    %v7206 = vadd.f32 %v6862, %v7202
    %v7207 = vtanh.pop %v7205
    %v7208 = vtanh.pop %v7206
    %v7209 = vxor.u32 %v7205, 2147483648
    %v7210 = vxor.u32 %v7206, 2147483648
    %v7211 = vmul.f32 %v7209, 1.442695
    %v7212 = vpow.pop %v7211
    %v7213 = vmul.f32 %v7210, 1.442695
    %v7214 = vpow.pop %v7213
    %v7215 = vadd.f32 %v7212, 1.0
    %v7216 = vadd.f32 %v7214, 1.0
    %v7217 = vrcp.pop %v7215
    %v7218 = vmul.f32 1.0, %v7217
    %v7219 = vrcp.pop %v7216
    %v7220 = vmul.f32 1.0, %v7219
    %v7221 = vsel %vm77, %v7207, %v7218
    %v7222 = vsel %vm78, %v7208, %v7220
    %v7224 = vrot.slane %v7115, 1
    %v7226 = vmul.f32 %v7221, %v7224
    %7229 = vrot.lane.b32.xlu0 %v7221, 28
    %v7230 = vpop.permute.xlu0 %7229
    %7231 = vrot.lane.b32.xlu0 %v7222, 28
    %v7232 = vpop.permute.xlu0 %7231
    %v7233 = vsel %vm192, %v7230, %v7232
    %v7235 = vmul.f32 %v7221, %v7233
    %7237 = vrot.lane.b32.xlu0 %v7235, 50
    %v7238 = vpop.permute.xlu0 %7237
    %v7240 = vadd.f32 %v7226, %v7238
    %v7241 = vtanh.pop %v7240
    %7243 = vrot.lane.b32.xlu0 %v7241, 100
    %v7244 = vpop.permute.xlu0 %7243
    %v7246 = vmul.f32 %v7222, %v7244
    %v7248 = vrot.slane %v7246, 5
    %7249 = vrot.lane.b32.xlu0 %v7248, 106
    %v7250 = vpop.permute.xlu0 %7249
    %v7251 = vsel %vm81, %v7250, 0
    %7253 = vmatprep.subr.mxu0 0.0
    %7254 = vmatpush1.msra.mxu0 0.0
    %7255 = vmatprep.subr.mxu0 0.0
    %7256 = vmatpush1.msra.mxu0 0.0
    %7257 = vmatprep.subr.mxu0 0.0
    %7258 = vmatpush1.msra.mxu0 0.0
    %7259 = vmatprep.subr.mxu0 0.0
    %7260 = vmatpush1.msra.mxu0 0.0
    %7261 = vmatprep.subr.mxu0 0.0
    %7262 = vmatpush1.msra.mxu0 0.0
    %7263 = vmatprep.subr.mxu0 0.0
    %7264 = vmatpush1.msra.mxu0 0.0
    %7265 = vmatprep.subr.mxu0 0.0
    %7266 = vmatpush1.msra.mxu0 0.0
    %7267 = vmatprep.subr.mxu0 0.0
    %7268 = vmatpush1.msra.mxu0 0.0
    %7269 = vmatprep.subr.mxu0 0.0
    %7270 = vmatpush1.msra.mxu0 0.0
    %7271 = vmatprep.subr.mxu0 %v6871
    %7272 = vmatpush1.msra.mxu0 %v6868
    %7273 = vmatprep.subr.mxu0 %v6767
    %7274 = vmatpush1.msra.mxu0 %v6766
    %7275 = vmatprep.subr.mxu0 %v6765
    %7276 = vmatpush1.msra.mxu0 %v6764
    %7277 = vmatprep.subr.mxu0 %v6763
    %7278 = vmatpush1.msra.mxu0 %v6762
    %7279 = vmatprep.subr.mxu0 %v6761
    %7280 = vmatpush1.msra.mxu0 %v6760
    %7281 = vmatprep.subr.mxu0 %v6759
    %7282 = vmatpush1.msra.mxu0 %v6758
    %7283 = vmatprep.subr.mxu0 %v6757
    %7284 = vmatpush1.msra.mxu0 %v6756
    %7285 = vmatprep.subr.mxu0 0.0
    %7286 = vmatpush2.msra.mxu0 0.0
    %7287 = vmatprep.subr.mxu0 0.0
    %7288 = vmatpush2.msra.mxu0 0.0
    %7289 = vmatprep.subr.mxu0 0.0
    %7290 = vmatpush2.msra.mxu0 0.0
    %7291 = vmatprep.subr.mxu0 0.0
    %7292 = vmatpush2.msra.mxu0 0.0
    %7293 = vmatprep.subr.mxu0 0.0
    %7294 = vmatpush2.msra.mxu0 0.0
    %7295 = vmatprep.subr.mxu0 0.0
    %7296 = vmatpush2.msra.mxu0 0.0
    %7297 = vmatprep.subr.mxu0 0.0
    %7298 = vmatpush2.msra.mxu0 0.0
    %7299 = vmatprep.subr.mxu0 0.0
    %7300 = vmatpush2.msra.mxu0 0.0
    %7301 = vmatprep.subr.mxu0 0.0
    %7302 = vmatpush2.msra.mxu0 0.0
    %7303 = vmatprep.subr.mxu0 0.0
    %7304 = vmatpush2.msra.mxu0 0.0
    %7305 = vmatprep.subr.mxu0 0.0
    %7306 = vmatpush2.msra.mxu0 0.0
    %7307 = vmatprep.subr.mxu0 0.0
    %7308 = vmatpush2.msra.mxu0 0.0
    %7309 = vmatprep.subr.mxu0 0.0
    %7310 = vmatpush2.msra.mxu0 0.0
    %7311 = vmatprep.subr.mxu0 0.0
    %7312 = vmatpush2.msra.mxu0 0.0
    %7313 = vmatprep.subr.mxu0 0.0
    %7314 = vmatpush2.msra.mxu0 0.0
    %7315 = vmatprep.subr.mxu0 0.0
    %7316 = vmatpush2.msra.mxu0 0.0
    %7317 = vmatprep.mubr.f32.mxu0 0.0
    %7318 = vmatmul.mubr.f32.gmra.mxu0 %v7251
    %v7319 = vpop.f32.mrf.mxu0
    %v7320 = vadd.f32 0.0, %v7319
    %v7321 = vpop.f32.mrf.mxu0
    %v7322 = vadd.f32 0.0, %v7321
    %7323 = vdwg.mxu0
    %v7326 = vrot.slane %v7320, 4
    %v7327 = vrot.slane %v7322, 4
    %v7330 = vadd.f32 %v6860, %v7326
    %v7331 = vadd.f32 %v6862, %v7327
    %v7332 = vtanh.pop %v7330
    %v7333 = vtanh.pop %v7331
    %v7334 = vxor.u32 %v7330, 2147483648
    %v7335 = vxor.u32 %v7331, 2147483648
    %v7336 = vmul.f32 %v7334, 1.442695
    %v7337 = vpow.pop %v7336
    %v7338 = vmul.f32 %v7335, 1.442695
    %v7339 = vpow.pop %v7338
    %v7340 = vadd.f32 %v7337, 1.0
    %v7341 = vadd.f32 %v7339, 1.0
    %v7342 = vrcp.pop %v7340
    %v7343 = vmul.f32 1.0, %v7342
    %v7344 = vrcp.pop %v7341
    %v7345 = vmul.f32 1.0, %v7344
    %v7346 = vsel %vm77, %v7332, %v7343
    %v7347 = vsel %vm78, %v7333, %v7345
    %v7349 = vrot.slane %v7240, 1
    %v7351 = vmul.f32 %v7346, %v7349
    %7354 = vrot.lane.b32.xlu0 %v7346, 28
    %v7355 = vpop.permute.xlu0 %7354
    %7356 = vrot.lane.b32.xlu0 %v7347, 28
    %v7357 = vpop.permute.xlu0 %7356
    %v7358 = vsel %vm192, %v7355, %v7357
    %v7360 = vmul.f32 %v7346, %v7358
    %7362 = vrot.lane.b32.xlu0 %v7360, 50
    %v7363 = vpop.permute.xlu0 %7362
    %v7365 = vadd.f32 %v7351, %v7363
    %v7366 = vtanh.pop %v7365
    %7368 = vrot.lane.b32.xlu0 %v7366, 100
    %v7369 = vpop.permute.xlu0 %7368
    %v7371 = vmul.f32 %v7347, %v7369
    %v7373 = vrot.slane %v7371, 4
    %7374 = vrot.lane.b32.xlu0 %v7373, 106
    %v7375 = vpop.permute.xlu0 %7374
    %v7376 = vsel %vm81, %v7375, 0
    %7378 = vmatprep.subr.mxu0 0.0
    %7379 = vmatpush1.msra.mxu0 0.0
    %7380 = vmatprep.subr.mxu0 0.0
    %7381 = vmatpush1.msra.mxu0 0.0
    %7382 = vmatprep.subr.mxu0 0.0
    %7383 = vmatpush1.msra.mxu0 0.0
    %7384 = vmatprep.subr.mxu0 0.0
    %7385 = vmatpush1.msra.mxu0 0.0
    %7386 = vmatprep.subr.mxu0 0.0
    %7387 = vmatpush1.msra.mxu0 0.0
    %7388 = vmatprep.subr.mxu0 0.0
    %7389 = vmatpush1.msra.mxu0 0.0
    %7390 = vmatprep.subr.mxu0 0.0
    %7391 = vmatpush1.msra.mxu0 0.0
    %7392 = vmatprep.subr.mxu0 0.0
    %7393 = vmatpush1.msra.mxu0 0.0
    %7394 = vmatprep.subr.mxu0 0.0
    %7395 = vmatpush1.msra.mxu0 0.0
    %7396 = vmatprep.subr.mxu0 %v6871
    %7397 = vmatpush1.msra.mxu0 %v6868
    %7398 = vmatprep.subr.mxu0 %v6767
    %7399 = vmatpush1.msra.mxu0 %v6766
    %7400 = vmatprep.subr.mxu0 %v6765
    %7401 = vmatpush1.msra.mxu0 %v6764
    %7402 = vmatprep.subr.mxu0 %v6763
    %7403 = vmatpush1.msra.mxu0 %v6762
    %7404 = vmatprep.subr.mxu0 %v6761
    %7405 = vmatpush1.msra.mxu0 %v6760
    %7406 = vmatprep.subr.mxu0 %v6759
    %7407 = vmatpush1.msra.mxu0 %v6758
    %7408 = vmatprep.subr.mxu0 %v6757
    %7409 = vmatpush1.msra.mxu0 %v6756
    %7410 = vmatprep.subr.mxu0 0.0
    %7411 = vmatpush2.msra.mxu0 0.0
    %7412 = vmatprep.subr.mxu0 0.0
    %7413 = vmatpush2.msra.mxu0 0.0
    %7414 = vmatprep.subr.mxu0 0.0
    %7415 = vmatpush2.msra.mxu0 0.0
    %7416 = vmatprep.subr.mxu0 0.0
    %7417 = vmatpush2.msra.mxu0 0.0
    %7418 = vmatprep.subr.mxu0 0.0
    %7419 = vmatpush2.msra.mxu0 0.0
    %7420 = vmatprep.subr.mxu0 0.0
    %7421 = vmatpush2.msra.mxu0 0.0
    %7422 = vmatprep.subr.mxu0 0.0
    %7423 = vmatpush2.msra.mxu0 0.0
    %7424 = vmatprep.subr.mxu0 0.0
    %7425 = vmatpush2.msra.mxu0 0.0
    %7426 = vmatprep.subr.mxu0 0.0
    %7427 = vmatpush2.msra.mxu0 0.0
    %7428 = vmatprep.subr.mxu0 0.0
    %7429 = vmatpush2.msra.mxu0 0.0
    %7430 = vmatprep.subr.mxu0 0.0
    %7431 = vmatpush2.msra.mxu0 0.0
    %7432 = vmatprep.subr.mxu0 0.0
    %7433 = vmatpush2.msra.mxu0 0.0
    %7434 = vmatprep.subr.mxu0 0.0
    %7435 = vmatpush2.msra.mxu0 0.0
    %7436 = vmatprep.subr.mxu0 0.0
    %7437 = vmatpush2.msra.mxu0 0.0
    %7438 = vmatprep.subr.mxu0 0.0
    %7439 = vmatpush2.msra.mxu0 0.0
    %7440 = vmatprep.subr.mxu0 0.0
    %7441 = vmatpush2.msra.mxu0 0.0
    %7442 = vmatprep.mubr.f32.mxu0 0.0
    %7443 = vmatmul.mubr.f32.gmra.mxu0 %v7376
    %v7444 = vpop.f32.mrf.mxu0
    %v7445 = vadd.f32 0.0, %v7444
    %v7446 = vpop.f32.mrf.mxu0
    %v7447 = vadd.f32 0.0, %v7446
    %7448 = vdwg.mxu0
    %v7451 = vrot.slane %v7445, 5
    %v7452 = vrot.slane %v7447, 5
    %v7455 = vadd.f32 %v6860, %v7451
    %v7456 = vadd.f32 %v6862, %v7452
    %v7457 = vtanh.pop %v7455
    %v7458 = vtanh.pop %v7456
    %v7459 = vxor.u32 %v7455, 2147483648
    %v7460 = vxor.u32 %v7456, 2147483648
    %v7461 = vmul.f32 %v7459, 1.442695
    %v7462 = vpow.pop %v7461
    %v7463 = vmul.f32 %v7460, 1.442695
    %v7464 = vpow.pop %v7463
    %v7465 = vadd.f32 %v7462, 1.0
    %v7466 = vadd.f32 %v7464, 1.0
    %v7467 = vrcp.pop %v7465
    %v7468 = vmul.f32 1.0, %v7467
    %v7469 = vrcp.pop %v7466
    %v7470 = vmul.f32 1.0, %v7469
    %v7471 = vsel %vm77, %v7457, %v7468
    %v7472 = vsel %vm78, %v7458, %v7470
    %v7474 = vrot.slane %v7365, 1
    %v7476 = vmul.f32 %v7471, %v7474
    %7479 = vrot.lane.b32.xlu0 %v7471, 28
    %v7480 = vpop.permute.xlu0 %7479
    %7481 = vrot.lane.b32.xlu0 %v7472, 28
    %v7482 = vpop.permute.xlu0 %7481
    %v7483 = vsel %vm192, %v7480, %v7482
    %v7485 = vmul.f32 %v7471, %v7483
    %7487 = vrot.lane.b32.xlu0 %v7485, 50
    %v7488 = vpop.permute.xlu0 %7487
    %v7490 = vadd.f32 %v7476, %v7488
    %v7491 = vtanh.pop %v7490
    %7493 = vrot.lane.b32.xlu0 %v7491, 100
    %v7494 = vpop.permute.xlu0 %7493
    %v7496 = vmul.f32 %v7472, %v7494
    %v7498 = vrot.slane %v7496, 3
    %7499 = vrot.lane.b32.xlu0 %v7498, 106
    %v7500 = vpop.permute.xlu0 %7499
    %v7501 = vsel %vm81, %v7500, 0
    %7503 = vmatprep.subr.mxu0 0.0
    %7504 = vmatpush1.msra.mxu0 0.0
    %7505 = vmatprep.subr.mxu0 0.0
    %7506 = vmatpush1.msra.mxu0 0.0
    %7507 = vmatprep.subr.mxu0 0.0
    %7508 = vmatpush1.msra.mxu0 0.0
    %7509 = vmatprep.subr.mxu0 0.0
    %7510 = vmatpush1.msra.mxu0 0.0
    %7511 = vmatprep.subr.mxu0 0.0
    %7512 = vmatpush1.msra.mxu0 0.0
    %7513 = vmatprep.subr.mxu0 0.0
    %7514 = vmatpush1.msra.mxu0 0.0
    %7515 = vmatprep.subr.mxu0 0.0
    %7516 = vmatpush1.msra.mxu0 0.0
    %7517 = vmatprep.subr.mxu0 0.0
    %7518 = vmatpush1.msra.mxu0 0.0
    %7519 = vmatprep.subr.mxu0 0.0
    %7520 = vmatpush1.msra.mxu0 0.0
    %7521 = vmatprep.subr.mxu0 %v6871
    %7522 = vmatpush1.msra.mxu0 %v6868
    %7523 = vmatprep.subr.mxu0 %v6767
    %7524 = vmatpush1.msra.mxu0 %v6766
    %7525 = vmatprep.subr.mxu0 %v6765
    %7526 = vmatpush1.msra.mxu0 %v6764
    %7527 = vmatprep.subr.mxu0 %v6763
    %7528 = vmatpush1.msra.mxu0 %v6762
    %7529 = vmatprep.subr.mxu0 %v6761
    %7530 = vmatpush1.msra.mxu0 %v6760
    %7531 = vmatprep.subr.mxu0 %v6759
    %7532 = vmatpush1.msra.mxu0 %v6758
    %7533 = vmatprep.subr.mxu0 %v6757
    %7534 = vmatpush1.msra.mxu0 %v6756
    %7535 = vmatprep.subr.mxu0 0.0
    %7536 = vmatpush2.msra.mxu0 0.0
    %7537 = vmatprep.subr.mxu0 0.0
    %7538 = vmatpush2.msra.mxu0 0.0
    %7539 = vmatprep.subr.mxu0 0.0
    %7540 = vmatpush2.msra.mxu0 0.0
    %7541 = vmatprep.subr.mxu0 0.0
    %7542 = vmatpush2.msra.mxu0 0.0
    %7543 = vmatprep.subr.mxu0 0.0
    %7544 = vmatpush2.msra.mxu0 0.0
    %7545 = vmatprep.subr.mxu0 0.0
    %7546 = vmatpush2.msra.mxu0 0.0
    %7547 = vmatprep.subr.mxu0 0.0
    %7548 = vmatpush2.msra.mxu0 0.0
    %7549 = vmatprep.subr.mxu0 0.0
    %7550 = vmatpush2.msra.mxu0 0.0
    %7551 = vmatprep.subr.mxu0 0.0
    %7552 = vmatpush2.msra.mxu0 0.0
    %7553 = vmatprep.subr.mxu0 0.0
    %7554 = vmatpush2.msra.mxu0 0.0
    %7555 = vmatprep.subr.mxu0 0.0
    %7556 = vmatpush2.msra.mxu0 0.0
    %7557 = vmatprep.subr.mxu0 0.0
    %7558 = vmatpush2.msra.mxu0 0.0
    %7559 = vmatprep.subr.mxu0 0.0
    %7560 = vmatpush2.msra.mxu0 0.0
    %7561 = vmatprep.subr.mxu0 0.0
    %7562 = vmatpush2.msra.mxu0 0.0
    %7563 = vmatprep.subr.mxu0 0.0
    %7564 = vmatpush2.msra.mxu0 0.0
    %7565 = vmatprep.subr.mxu0 0.0
    %7566 = vmatpush2.msra.mxu0 0.0
    %7567 = vmatprep.mubr.f32.mxu0 0.0
    %7568 = vmatmul.mubr.f32.gmra.mxu0 %v7501
    %v7569 = vpop.f32.mrf.mxu0
    %v7570 = vadd.f32 0.0, %v7569
    %v7571 = vpop.f32.mrf.mxu0
    %v7572 = vadd.f32 0.0, %v7571
    %7573 = vdwg.mxu0
    %v7576 = vrot.slane %v7570, 6
    %v7577 = vrot.slane %v7572, 6
    %v7580 = vadd.f32 %v6860, %v7576
    %v7581 = vadd.f32 %v6862, %v7577
    %v7582 = vtanh.pop %v7580
    %v7583 = vtanh.pop %v7581
    %v7584 = vxor.u32 %v7580, 2147483648
    %v7585 = vxor.u32 %v7581, 2147483648
    %v7586 = vmul.f32 %v7584, 1.442695
    %v7587 = vpow.pop %v7586
    %v7588 = vmul.f32 %v7585, 1.442695
    %v7589 = vpow.pop %v7588
    %v7590 = vadd.f32 %v7587, 1.0
    %v7591 = vadd.f32 %v7589, 1.0
    %v7592 = vrcp.pop %v7590
    %v7593 = vmul.f32 1.0, %v7592
    %v7594 = vrcp.pop %v7591
    %v7595 = vmul.f32 1.0, %v7594
    %v7596 = vsel %vm77, %v7582, %v7593
    %v7597 = vsel %vm78, %v7583, %v7595
    %v7599 = vrot.slane %v7490, 1
    %v7601 = vmul.f32 %v7596, %v7599
    %7604 = vrot.lane.b32.xlu0 %v7596, 28
    %v7605 = vpop.permute.xlu0 %7604
    %7606 = vrot.lane.b32.xlu0 %v7597, 28
    %v7607 = vpop.permute.xlu0 %7606
    %v7608 = vsel %vm192, %v7605, %v7607
    %v7610 = vmul.f32 %v7596, %v7608
    %7612 = vrot.lane.b32.xlu0 %v7610, 50
    %v7613 = vpop.permute.xlu0 %7612
    %v7615 = vadd.f32 %v7601, %v7613
    %v7616 = vtanh.pop %v7615
    %7618 = vrot.lane.b32.xlu0 %v7616, 100
    %v7619 = vpop.permute.xlu0 %7618
    %v7621 = vmul.f32 %v7597, %v7619
    %v7623 = vrot.slane %v7621, 2
    %7624 = vrot.lane.b32.xlu0 %v7623, 106
    %v7625 = vpop.permute.xlu0 %7624
    %v7626 = vsel %vm81, %v7625, 0
    %7628 = vmatprep.subr.mxu0 0.0
    %7629 = vmatpush1.msra.mxu0 0.0
    %7630 = vmatprep.subr.mxu0 0.0
    %7631 = vmatpush1.msra.mxu0 0.0
    %7632 = vmatprep.subr.mxu0 0.0
    %7633 = vmatpush1.msra.mxu0 0.0
    %7634 = vmatprep.subr.mxu0 0.0
    %7635 = vmatpush1.msra.mxu0 0.0
    %7636 = vmatprep.subr.mxu0 0.0
    %7637 = vmatpush1.msra.mxu0 0.0
    %7638 = vmatprep.subr.mxu0 0.0
    %7639 = vmatpush1.msra.mxu0 0.0
    %7640 = vmatprep.subr.mxu0 0.0
    %7641 = vmatpush1.msra.mxu0 0.0
    %7642 = vmatprep.subr.mxu0 0.0
    %7643 = vmatpush1.msra.mxu0 0.0
    %7644 = vmatprep.subr.mxu0 0.0
    %7645 = vmatpush1.msra.mxu0 0.0
    %7646 = vmatprep.subr.mxu0 %v6871
    %7647 = vmatpush1.msra.mxu0 %v6868
    %7648 = vmatprep.subr.mxu0 %v6767
    %7649 = vmatpush1.msra.mxu0 %v6766
    %7650 = vmatprep.subr.mxu0 %v6765
    %7651 = vmatpush1.msra.mxu0 %v6764
    %7652 = vmatprep.subr.mxu0 %v6763
    %7653 = vmatpush1.msra.mxu0 %v6762
    %7654 = vmatprep.subr.mxu0 %v6761
    %7655 = vmatpush1.msra.mxu0 %v6760
    %7656 = vmatprep.subr.mxu0 %v6759
    %7657 = vmatpush1.msra.mxu0 %v6758
    %7658 = vmatprep.subr.mxu0 %v6757
    %7659 = vmatpush1.msra.mxu0 %v6756
    %7660 = vmatprep.subr.mxu0 0.0
    %7661 = vmatpush2.msra.mxu0 0.0
    %7662 = vmatprep.subr.mxu0 0.0
    %7663 = vmatpush2.msra.mxu0 0.0
    %7664 = vmatprep.subr.mxu0 0.0
    %7665 = vmatpush2.msra.mxu0 0.0
    %7666 = vmatprep.subr.mxu0 0.0
    %7667 = vmatpush2.msra.mxu0 0.0
    %7668 = vmatprep.subr.mxu0 0.0
    %7669 = vmatpush2.msra.mxu0 0.0
    %7670 = vmatprep.subr.mxu0 0.0
    %7671 = vmatpush2.msra.mxu0 0.0
    %7672 = vmatprep.subr.mxu0 0.0
    %7673 = vmatpush2.msra.mxu0 0.0
    %7674 = vmatprep.subr.mxu0 0.0
    %7675 = vmatpush2.msra.mxu0 0.0
    %7676 = vmatprep.subr.mxu0 0.0
    %7677 = vmatpush2.msra.mxu0 0.0
    %7678 = vmatprep.subr.mxu0 0.0
    %7679 = vmatpush2.msra.mxu0 0.0
    %7680 = vmatprep.subr.mxu0 0.0
    %7681 = vmatpush2.msra.mxu0 0.0
    %7682 = vmatprep.subr.mxu0 0.0
    %7683 = vmatpush2.msra.mxu0 0.0
    %7684 = vmatprep.subr.mxu0 0.0
    %7685 = vmatpush2.msra.mxu0 0.0
    %7686 = vmatprep.subr.mxu0 0.0
    %7687 = vmatpush2.msra.mxu0 0.0
    %7688 = vmatprep.subr.mxu0 0.0
    %7689 = vmatpush2.msra.mxu0 0.0
    %7690 = vmatprep.subr.mxu0 0.0
    %7691 = vmatpush2.msra.mxu0 0.0
    %7692 = vmatprep.mubr.f32.mxu0 0.0
    %7693 = vmatmul.mubr.f32.gmra.mxu0 %v7626
    %v7694 = vpop.f32.mrf.mxu0
    %v7695 = vadd.f32 0.0, %v7694
    %v7696 = vpop.f32.mrf.mxu0
    %v7697 = vadd.f32 0.0, %v7696
    %7698 = vdwg.mxu0
    %v7701 = vrot.slane %v7695, 7
    %v7702 = vrot.slane %v7697, 7
    %v7705 = vadd.f32 %v6860, %v7701
    %v7706 = vadd.f32 %v6862, %v7702
    %v7707 = vtanh.pop %v7705
    %v7708 = vtanh.pop %v7706
    %v7709 = vxor.u32 %v7705, 2147483648
    %v7710 = vxor.u32 %v7706, 2147483648
    %v7711 = vmul.f32 %v7709, 1.442695
    %v7712 = vpow.pop %v7711
    %v7713 = vmul.f32 %v7710, 1.442695
    %v7714 = vpow.pop %v7713
    %v7715 = vadd.f32 %v7712, 1.0
    %v7716 = vadd.f32 %v7714, 1.0
    %v7717 = vrcp.pop %v7715
    %v7718 = vmul.f32 1.0, %v7717
    %v7719 = vrcp.pop %v7716
    %v7720 = vmul.f32 1.0, %v7719
    %v7721 = vsel %vm77, %v7707, %v7718
    %v7722 = vsel %vm78, %v7708, %v7720
    %v7724 = vrot.slane %v7615, 1
    %v7726 = vmul.f32 %v7721, %v7724
    %7729 = vrot.lane.b32.xlu0 %v7721, 28
    %v7730 = vpop.permute.xlu0 %7729
    %7731 = vrot.lane.b32.xlu0 %v7722, 28
    %v7732 = vpop.permute.xlu0 %7731
    %v7733 = vsel %vm192, %v7730, %v7732
    %v7735 = vmul.f32 %v7721, %v7733
    %7737 = vrot.lane.b32.xlu0 %v7735, 50
    %v7738 = vpop.permute.xlu0 %7737
    %v7740 = vadd.f32 %v7726, %v7738
    %v7741 = vtanh.pop %v7740
    %7743 = vrot.lane.b32.xlu0 %v7741, 100
    %v7744 = vpop.permute.xlu0 %7743
    %v7746 = vmul.f32 %v7722, %v7744
    %v7748 = vrot.slane %v7746, 1
    %7749 = vrot.lane.b32.xlu0 %v7748, 106
    %v7750 = vpop.permute.xlu0 %7749
    %v7751 = vsel %vm81, %v7750, 0
    %7753 = vmatprep.subr.mxu0 0.0
    %7754 = vmatpush1.msra.mxu0 0.0
    %7755 = vmatprep.subr.mxu0 0.0
    %7756 = vmatpush1.msra.mxu0 0.0
    %7757 = vmatprep.subr.mxu0 0.0
    %7758 = vmatpush1.msra.mxu0 0.0
    %7759 = vmatprep.subr.mxu0 0.0
    %7760 = vmatpush1.msra.mxu0 0.0
    %7761 = vmatprep.subr.mxu0 0.0
    %7762 = vmatpush1.msra.mxu0 0.0
    %7763 = vmatprep.subr.mxu0 0.0
    %7764 = vmatpush1.msra.mxu0 0.0
    %7765 = vmatprep.subr.mxu0 0.0
    %7766 = vmatpush1.msra.mxu0 0.0
    %7767 = vmatprep.subr.mxu0 0.0
    %7768 = vmatpush1.msra.mxu0 0.0
    %7769 = vmatprep.subr.mxu0 0.0
    %7770 = vmatpush1.msra.mxu0 0.0
    %7771 = vmatprep.subr.mxu0 %v6871
    %7772 = vmatpush1.msra.mxu0 %v6868
    %7773 = vmatprep.subr.mxu0 %v6767
    %7774 = vmatpush1.msra.mxu0 %v6766
    %7775 = vmatprep.subr.mxu0 %v6765
    %7776 = vmatpush1.msra.mxu0 %v6764
    %7777 = vmatprep.subr.mxu0 %v6763
    %7778 = vmatpush1.msra.mxu0 %v6762
    %7779 = vmatprep.subr.mxu0 %v6761
    %7780 = vmatpush1.msra.mxu0 %v6760
    %7781 = vmatprep.subr.mxu0 %v6759
    %7782 = vmatpush1.msra.mxu0 %v6758
    %7783 = vmatprep.subr.mxu0 %v6757
    %7784 = vmatpush1.msra.mxu0 %v6756
    %7785 = vmatprep.subr.mxu0 0.0
    %7786 = vmatpush2.msra.mxu0 0.0
    %7787 = vmatprep.subr.mxu0 0.0
    %7788 = vmatpush2.msra.mxu0 0.0
    %7789 = vmatprep.subr.mxu0 0.0
    %7790 = vmatpush2.msra.mxu0 0.0
    %7791 = vmatprep.subr.mxu0 0.0
    %7792 = vmatpush2.msra.mxu0 0.0
    %7793 = vmatprep.subr.mxu0 0.0
    %7794 = vmatpush2.msra.mxu0 0.0
    %7795 = vmatprep.subr.mxu0 0.0
    %7796 = vmatpush2.msra.mxu0 0.0
    %7797 = vmatprep.subr.mxu0 0.0
    %7798 = vmatpush2.msra.mxu0 0.0
    %7799 = vmatprep.subr.mxu0 0.0
    %7800 = vmatpush2.msra.mxu0 0.0
    %7801 = vmatprep.subr.mxu0 0.0
    %7802 = vmatpush2.msra.mxu0 0.0
    %7803 = vmatprep.subr.mxu0 0.0
    %7804 = vmatpush2.msra.mxu0 0.0
    %7805 = vmatprep.subr.mxu0 0.0
    %7806 = vmatpush2.msra.mxu0 0.0
    %7807 = vmatprep.subr.mxu0 0.0
    %7808 = vmatpush2.msra.mxu0 0.0
    %7809 = vmatprep.subr.mxu0 0.0
    %7810 = vmatpush2.msra.mxu0 0.0
    %7811 = vmatprep.subr.mxu0 0.0
    %7812 = vmatpush2.msra.mxu0 0.0
    %7813 = vmatprep.subr.mxu0 0.0
    %7814 = vmatpush2.msra.mxu0 0.0
    %7815 = vmatprep.subr.mxu0 0.0
    %7816 = vmatpush2.msra.mxu0 0.0
    %7817 = vmatprep.mubr.f32.mxu0 0.0
    %7818 = vmatmul.mubr.f32.gmra.mxu0 %v7751
    %v7819 = vpop.f32.mrf.mxu0
    %v7820 = vadd.f32 0.0, %v7819
    %v7821 = vpop.f32.mrf.mxu0
    %v7822 = vadd.f32 0.0, %v7821
    %7823 = vdwg.mxu0
    %v7824 = vadd.f32 %v6860, %v7820
    %v7825 = vadd.f32 %v6862, %v7822
    %v7826 = vtanh.pop %v7824
    %v7827 = vtanh.pop %v7825
    %v7828 = vxor.u32 %v7824, 2147483648
    %v7829 = vxor.u32 %v7825, 2147483648
    %v7830 = vmul.f32 %v7828, 1.442695
    %v7831 = vpow.pop %v7830
    %v7832 = vmul.f32 %v7829, 1.442695
    %v7833 = vpow.pop %v7832
    %v7834 = vadd.f32 %v7831, 1.0
    %v7835 = vadd.f32 %v7833, 1.0
    %v7836 = vrcp.pop %v7834
    %v7837 = vmul.f32 1.0, %v7836
    %v7838 = vrcp.pop %v7835
    %v7839 = vmul.f32 1.0, %v7838
    %v7840 = vsel %vm77, %v7826, %v7837
    %v7841 = vsel %vm78, %v7827, %v7839
    %v7843 = vrot.slane %v7740, 1
    %v7845 = vmul.f32 %v7840, %v7843
    %7848 = vrot.lane.b32.xlu0 %v7840, 28
    %v7849 = vpop.permute.xlu0 %7848
    %7850 = vrot.lane.b32.xlu0 %v7841, 28
    %v7851 = vpop.permute.xlu0 %7850
    %v7852 = vsel %vm192, %v7849, %v7851
    %v7854 = vmul.f32 %v7840, %v7852
    %7856 = vrot.lane.b32.xlu0 %v7854, 50
    %v7857 = vpop.permute.xlu0 %7856
    %v7859 = vadd.f32 %v7845, %v7857
    %v7860 = vtanh.pop %v7859
    %7862 = vrot.lane.b32.xlu0 %v7860, 100
    %v7863 = vpop.permute.xlu0 %7862
    %v7865 = vmul.f32 %v7841, %v7863
    %v7867 = vrot.slane %v7121, 5
    %v7869 = vrot.slane %v7246, 3
    %v7871 = vrot.slane %v7371, 1
    %v7873 = vrot.slane %v7496, 7
    %v7875 = vrot.slane %v7621, 5
    %v7877 = vrot.slane %v7746, 3
    %v7880 = vrot.slane %v7865, 1
    %v7882 = vsel %vm4597, %v6998, %v7867
    %v7883 = vsel %vm85, %v7882, %v7869
    %v7884 = vsel %vm4600, %v7883, %v7871
    %v7885 = vsel %vm4602, %v7884, %v7873
    %v7886 = vsel %vm4604, %v7885, %v7875
    %v7887 = vsel %vm3734, %v7886, %v7877
    %v7888 = vsel %vm4607, %v7887, %v7880
    %7890 = vrot.lane.b32.xlu0 %v6737, 106
    %v7891 = vpop.permute.xlu0 %7890
    %7894 = vrot.lane.b32.xlu0 %v7888, 28
    %v7895 = vpop.permute.xlu0 %7894
    %v7897 = vsel %vm81, %v7891, %v7895
    %v7898 = vld [vmem:[%s14] sm:$0xff]
    %v7899 = vld [vmem:[%s14 + $0x8] sm:$0xff]
    %v7900 = vld [vmem:[%s14 + $0x10] sm:$0xff]
    %v7901 = vld [vmem:[%s14 + $0x18] sm:$0xff]
    %v7902 = vld [vmem:[%s14 + $0x20] sm:$0xff]
    %v7903 = vld [vmem:[%s14 + $0x28] sm:$0xff]
    %v7904 = vld [vmem:[%s14 + $0x30] sm:$0xff]
    %v7905 = vld [vmem:[%s14 + $0x38] sm:$0xff]
    %v7906 = vld [vmem:[%s14 + $0x40] sm:$0xff]
    %v7907 = vld [vmem:[%s14 + $0x48] sm:$0xff]
    %v7908 = vld [vmem:[%s14 + $0x50] sm:$0xff]
    %v7909 = vld [vmem:[%s14 + $0x58] sm:$0xff]
    %v7910 = vld [vmem:[%s14 + $0x60] sm:$0xf]
    %v7911 = vld [vmem:[%s15] sm:$0x1]
    %v7913 = vlaneseq
    %v7914 = vshrl.u32 %v7913, 7
    %v7915 = vsub.s32 0, %v7914
    %v7916 = vrot.slane %v7911, %v7915
    %vm7918 = vcmask 818176
    %v7920 = vsel %vm7918, %v7897, 0
    %v7923 = vsel %vm4602, %v7910, 0
    %7925 = vmatprep.subr.mxu0 0.0
    %7926 = vmatpush1.msra.mxu0 0.0
    %7927 = vmatprep.subr.mxu0 0.0
    %7928 = vmatpush1.msra.mxu0 0.0
    %7929 = vmatprep.subr.mxu0 0.0
    %7930 = vmatpush1.msra.mxu0 0.0
    %7931 = vmatprep.subr.mxu0 0.0
    %7932 = vmatpush1.msra.mxu0 %v7923
    %7933 = vmatprep.subr.mxu0 0.0
    %7934 = vmatpush1.msra.mxu0 %v7909
    %7935 = vmatprep.subr.mxu0 0.0
    %7936 = vmatpush1.msra.mxu0 %v7908
    %7937 = vmatprep.subr.mxu0 0.0
    %7938 = vmatpush1.msra.mxu0 %v7907
    %7939 = vmatprep.subr.mxu0 0.0
    %7940 = vmatpush1.msra.mxu0 %v7906
    %7941 = vmatprep.subr.mxu0 0.0
    %7942 = vmatpush1.msra.mxu0 %v7905
    %7943 = vmatprep.subr.mxu0 0.0
    %7944 = vmatpush1.msra.mxu0 %v7904
    %7945 = vmatprep.subr.mxu0 0.0
    %7946 = vmatpush1.msra.mxu0 %v7903
    %7947 = vmatprep.subr.mxu0 0.0
    %7948 = vmatpush1.msra.mxu0 %v7902
    %7949 = vmatprep.subr.mxu0 0.0
    %7950 = vmatpush1.msra.mxu0 %v7901
    %7951 = vmatprep.subr.mxu0 0.0
    %7952 = vmatpush1.msra.mxu0 %v7900
    %7953 = vmatprep.subr.mxu0 0.0
    %7954 = vmatpush1.msra.mxu0 %v7899
    %7955 = vmatprep.subr.mxu0 0.0
    %7956 = vmatpush1.msra.mxu0 %v7898
    %7957 = vmatprep.subr.mxu0 0.0
    %7958 = vmatpush2.msra.mxu0 0.0
    %7959 = vmatprep.subr.mxu0 0.0
    %7960 = vmatpush2.msra.mxu0 0.0
    %7961 = vmatprep.subr.mxu0 0.0
    %7962 = vmatpush2.msra.mxu0 0.0
    %7963 = vmatprep.subr.mxu0 0.0
    %7964 = vmatpush2.msra.mxu0 0.0
    %7965 = vmatprep.subr.mxu0 0.0
    %7966 = vmatpush2.msra.mxu0 0.0
    %7967 = vmatprep.subr.mxu0 0.0
    %7968 = vmatpush2.msra.mxu0 0.0
    %7969 = vmatprep.subr.mxu0 0.0
    %7970 = vmatpush2.msra.mxu0 0.0
    %7971 = vmatprep.subr.mxu0 0.0
    %7972 = vmatpush2.msra.mxu0 0.0
    %7973 = vmatprep.subr.mxu0 0.0
    %7974 = vmatpush2.msra.mxu0 0.0
    %7975 = vmatprep.subr.mxu0 0.0
    %7976 = vmatpush2.msra.mxu0 0.0
    %7977 = vmatprep.subr.mxu0 0.0
    %7978 = vmatpush2.msra.mxu0 0.0
    %7979 = vmatprep.subr.mxu0 0.0
    %7980 = vmatpush2.msra.mxu0 0.0
    %7981 = vmatprep.subr.mxu0 0.0
    %7982 = vmatpush2.msra.mxu0 0.0
    %7983 = vmatprep.subr.mxu0 0.0
    %7984 = vmatpush2.msra.mxu0 0.0
    %7985 = vmatprep.subr.mxu0 0.0
    %7986 = vmatpush2.msra.mxu0 0.0
    %7987 = vmatprep.subr.mxu0 0.0
    %7988 = vmatpush2.msra.mxu0 0.0
    %7989 = vmatprep.mubr.f32.mxu0 0.0
    %7990 = vmatmul.mubr.f32.gmra.mxu0 %v7920
    %v7991 = vpop.f32.mrf.mxu0
    %v7992 = vadd.f32 %v7916, %v7991
    %v7993 = vpop.f32.mrf.mxu0
    %7994 = vdwg.mxu0
    %vm7995 = vcmask 39936
    %7996 = vst.msk [vmem:[#allocation2] sm:$0xff] %vm7995, %v7992
    // Predicated region
    $region66: #{tpu_custom_call.1} parent=1 // pred_check
      _
    $region67: #{tpu_custom_call.1} parent=1 // pred_check_branch
      %7998 = sbr.rel (0) target = $region69
    $region68: #{tpu_custom_call.1} parent=1 // pred_region
      %s8000 = ssub.s32 128, 128
      %8001 = vsyncadd [#allocation3], %s8000
      %s8003 = sshll.u32 [#allocation2], 4
      %s8004 = int_to_ptr.vmem [resolvable:$true] %s8003
      %8006 = dma.vmem_to_hbm [thread:$0]  %s8004, 128, %s16, [#allocation3]
    $region69: #{tpu_custom_call.1} parent=1 // pred_fallthru
      _
    // Predicated region
    $region70: #{tpu_custom_call.1} parent=1 // pred_check
      _
    $region71: #{tpu_custom_call.1} parent=1 // pred_check_branch
      %8008 = sbr.rel (0) target = $region73
    $region72: #{tpu_custom_call.1} parent=1 // pred_region
      %8009 = dma.done [#allocation3], 128
    $region73: #{tpu_custom_call.1} parent=1 // pred_fallthru
      _
    %8010 = vsyncpa [#allocation3], 1

</llo_original>
